<compile_context>
chip_gen: v5e
topology: v5e:2x2
jax: 0.10.0
libtpu: 0.0.40
codegen_flags: <defaults>
</compile_context>

<pallas_src>
import math
import functools

import jax
import jax.numpy as jnp
from jax.experimental import pallas as pl
from jax.experimental.pallas import tpu as pltpu

_HALO = 128  # lane-aligned halo so the l1 scratch core store stays 128-aligned


def _gcn_kernel(xp_ref, wl1_ref, wl2_ref, wr1_ref, wr2_ref,
                bl1_ref, bl2_ref, br1_ref, br2_ref,
                mL2_ref, mR1_ref,
                o_ref, l1_scr, r1_scr,
                *, K, p, Cin, Cmid, Cout, H, W):
    f32 = jnp.float32
    hi = jax.lax.Precision.HIGHEST
    R = H * W                      # flattened output spatial size
    Rr = (H + 2 * p) * W           # right-branch intermediate spatial size

    # ---------------- branch L, stage 1: (k,1) conv along H ----------------
    # out_l1[c, h*W+w] = bl1[c] + sum_{dh,ci} wl1[dh,c,ci] * xpad[ci, (h+dh)*W+w]
    l1 = jnp.zeros((Cmid, R), f32) + bl1_ref[...]
    for dh in range(K):
        win = xp_ref[:, pl.ds(p + dh * W, R)]                     # (Cin, R) shifted load
        l1 = l1 + jnp.dot(wl1_ref[dh], win,                       # MXU (Cmid,Cin)@(Cin,R)
                          preferred_element_type=f32, precision=hi)

    # Stash l1 with zeroed halos so stage-2 W-taps can read in-bounds windows.
    # Only the halos are zeroed (no full-buffer rewrite); core is one aligned store.
    l1_scr[:, :_HALO] = jnp.zeros((Cmid, _HALO), f32)
    l1_scr[:, _HALO + R:] = jnp.zeros((Cmid, _HALO), f32)
    l1_scr[:, _HALO:_HALO + R] = l1

    # ---------------- branch R, stage 1: (1,k) conv along W ----------------
    # The module's conv_r1 pads along H (wrong axis), so its W-conv is "valid"
    # (width W-2p) and conv_r2's W-padding zero-pads it back to W; both effects
    # are reproduced by the band mask mR1 applied to the centered full conv.
    r1 = jnp.zeros((Cmid, Rr), f32) + br1_ref[...]
    for dw in range(K):
        win = xp_ref[:, pl.ds(dw, Rr)]                            # (Cin, Rr) shifted load
        r1 = r1 + jnp.dot(wr1_ref[dw], win,
                          preferred_element_type=f32, precision=hi)
    r1_scr[...] = r1 * mR1_ref[...]                               # crop + re-pad

    # ---------- stage 2 of both branches, fused with the final add ----------
    out = jnp.zeros((Cout, R), f32) + (bl2_ref[...] + br2_ref[...])
    for dw in range(K):            # conv_l2: (1,k) conv along W over padded l1
        win = l1_scr[:, pl.ds(_HALO + dw - p, R)] * mL2_ref[dw:dw + 1, :]
        out = out + jnp.dot(wl2_ref[dw], win,
                            preferred_element_type=f32, precision=hi)
    for dh in range(K):            # conv_r2: (k,1) conv along H over re-padded r1
        win = r1_scr[:, pl.ds(dh * W, R)]
        out = out + jnp.dot(wr2_ref[dh], win,
                            preferred_element_type=f32, precision=hi)

    o_ref[...] = out               # (Cout, R): lane-dense store


def _taps_3d(w, G):
    """(Cout, Cin, kh, kw) separable conv weight -> (K, G*Cout, G*Cin) per-tap
    matrices.  For G>1 the per-tap matrix is block-diagonal so packed images
    (stacked along the channel/sublane axis) never mix."""
    Co, Ci, kh, kw = w.shape
    taps = w[:, :, :, 0] if kh >= kw else w[:, :, 0, :]           # (Co, Ci, K)
    taps = jnp.transpose(taps, (2, 0, 1))                         # (K, Co, Ci)
    if G == 1:
        return taps
    eye = jnp.eye(G, dtype=taps.dtype)
    blk = eye[None, :, None, :, None] * taps[:, None, :, None, :]  # (K,G,Co,G,Ci)
    return blk.reshape(taps.shape[0], G * Co, G * Ci)


def _pack_bias(b, G):
    return jnp.tile(b, G).reshape(G * b.shape[0], 1)


def gcn_forward(x, params, k, pack=None):
    """Fused GCN forward.  x: (N, Cin, H, W) float32 -> (N, Cout, H, W)."""
    p = (k - 1) // 2
    N, Cin0, H, W = x.shape
    Cmid0 = int(params["bl1"].shape[0])
    Cout0 = int(params["bl2"].shape[0])

    # Pack 2 images per grid step (full 8-sublane vregs, unmasked output stores)
    # only when that still leaves >= 2 grid steps, so a v7x megacore never idles.
    if pack is None:
        G = 2 if (N % 2 == 0 and N >= 4) else 1
    else:
        G = int(pack)
    assert N % G == 0, (N, G)
    NB = N // G
    Cin, Cmid, Cout = G * Cin0, G * Cmid0, G * Cout0

    R = H * W
    Rr = (H + 2 * p) * W
    Lx = Rr + 2 * p

    # Single H-pad (shared by both branches), flatten spatial into the lane dim,
    # add a small flat halo so every shifted tap window is an in-bounds slice,
    # and fold G images into the channel (sublane) axis.
    xp = jnp.pad(x, ((0, 0), (0, 0), (p, p), (0, 0))).reshape(N, Cin0, Rr)
    xp = jnp.pad(xp, ((0, 0), (0, 0), (p, p)))                    # (N, Cin0, Lx)
    xp = xp.reshape(NB, Cin, Lx)

    wl1 = _taps_3d(params["wl1"], G); bl1 = _pack_bias(params["bl1"], G)
    wl2 = _taps_3d(params["wl2"], G); bl2 = _pack_bias(params["bl2"], G)
    wr1 = _taps_3d(params["wr1"], G); br1 = _pack_bias(params["br1"], G)
    wr2 = _taps_3d(params["wr2"], G); br2 = _pack_bias(params["br2"], G)

    # Masks reproducing the module's exact padding semantics in flat layout.
    w_idx = jnp.arange(W)
    dws = jnp.arange(k)
    valid = ((w_idx[None, :] + dws[:, None] - p >= 0) &
             (w_idx[None, :] + dws[:, None] - p < W))             # (K, W)
    maskL2 = jnp.tile(valid.astype(jnp.float32), (1, H))          # (K, H*W)
    band = (w_idx >= p) & (w_idx < W - p)                         # (W,)
    maskR1 = jnp.tile(band.astype(jnp.float32), H + 2 * p)[None]  # (1, Rr)

    kernel = functools.partial(_gcn_kernel, K=k, p=p, Cin=Cin, Cmid=Cmid,
                               Cout=Cout, H=H, W=W)

    # Right-size the scoped VMEM limit (v7x-friendly): blocked operands are
    # double-buffered; 4x headroom for live temporaries / compiler scratch.
    est_words = (2 * Cin * Lx + 2 * Cout * R
                 + 2 * k * (Cmid * Cin + Cout * Cmid) + 4 * max(Cmid, Cout)
                 + 2 * (k * R + Rr)
                 + Cmid * (R + 2 * _HALO) + Cmid * Rr
                 + 4 * (Cmid + Cout) * max(R, Rr))
    vmem_limit = int(min(32 * 1024 * 1024, max(4 * 1024 * 1024, 16 * est_words)))

    out = pl.pallas_call(
        kernel,
        out_shape=jax.ShapeDtypeStruct((NB, Cout, R), jnp.float32),
        grid=(NB,),
        in_specs=[
            pl.BlockSpec((None, Cin, Lx), lambda b: (b, 0, 0)),   # x (per step)
            pl.BlockSpec((k, Cmid, Cin), lambda b: (0, 0, 0)),    # wl1 per-tap
            pl.BlockSpec((k, Cout, Cmid), lambda b: (0, 0, 0)),   # wl2 per-tap
            pl.BlockSpec((k, Cmid, Cin), lambda b: (0, 0, 0)),    # wr1 per-tap
            pl.BlockSpec((k, Cout, Cmid), lambda b: (0, 0, 0)),   # wr2 per-tap
            pl.BlockSpec((Cmid, 1), lambda b: (0, 0)),            # bl1
            pl.BlockSpec((Cout, 1), lambda b: (0, 0)),            # bl2
            pl.BlockSpec((Cmid, 1), lambda b: (0, 0)),            # br1
            pl.BlockSpec((Cout, 1), lambda b: (0, 0)),            # br2
            pl.BlockSpec((k, R), lambda b: (0, 0)),               # maskL2
            pl.BlockSpec((1, Rr), lambda b: (0, 0)),              # maskR1
        ],
        out_specs=pl.BlockSpec((None, Cout, R), lambda b: (b, 0, 0)),
        scratch_shapes=[
            pltpu.VMEM((Cmid, R + 2 * _HALO), jnp.float32),       # l1 + zero halos
            pltpu.VMEM((Cmid, Rr), jnp.float32),                  # masked r1
        ],
        compiler_params=pltpu.CompilerParams(
            dimension_semantics=("parallel",),   # megacore sharding on v7x
            vmem_limit_bytes=vmem_limit,
        ),
    )(xp, wl1, wl2, wr1, wr2, bl1, bl2, br1, br2, maskL2, maskR1)

    return out.reshape(N, Cout0, H, W)


# -------------------- pure-JAX reference for validation --------------------
def _ref_conv(x, w, b, pad):
    out = jax.lax.conv_general_dilated(
        x, w, window_strides=(1, 1),
        padding=((pad[0], pad[0]), (pad[1], pad[1])),
        dimension_numbers=("NCHW", "OIHW", "NCHW"),
        precision=jax.lax.Precision.HIGHEST)
    return out + b.reshape(1, -1, 1, 1)


def _ref_forward(x, params, k):
    p = (k - 1) // 2
    l = _ref_conv(x, params["wl1"], params["bl1"], (p, 0))
    l = _ref_conv(l, params["wl2"], params["bl2"], (0, p))
    r = _ref_conv(x, params["wr1"], params["br1"], (p, 0))
    r = _ref_conv(r, params["wr2"], params["br2"], (0, p))
    return l + r


if __name__ == "__main__":
    inplanes, planes, H, W, k = 4, 4, 16, 16, 7

    key = jax.random.PRNGKey(0)
    keys = jax.random.split(key, 9)

    def init_conv(kw_key, kb_key, cout, cin, kh, kw):
        fan_in = cin * kh * kw
        bound = 1.0 / math.sqrt(fan_in)
        w = jax.random.uniform(kw_key, (cout, cin, kh, kw), jnp.float32, -bound, bound)
        b = jax.random.uniform(kb_key, (cout,), jnp.float32, -bound, bound)
        return w, b

    wl1, bl1 = init_conv(keys[1], keys[2], planes, inplanes, k, 1)
    wl2, bl2 = init_conv(keys[3], keys[4], planes, planes, 1, k)
    wr1, br1 = init_conv(keys[5], keys[6], planes, inplanes, 1, k)
    wr2, br2 = init_conv(keys[7], keys[8], planes, planes, k, 1)

    params = dict(wl1=wl1, bl1=bl1, wl2=wl2, bl2=bl2,
                  wr1=wr1, br1=br1, wr2=wr2, br2=br2)

    fwd = jax.jit(gcn_forward, static_argnums=(2,))

    # N=4 exercises the 2-image sublane-packed path (grid=(2,)); N=2 the
    # per-image fallback that keeps both v7x TensorCores busy.
    for N in (4, 2):
        x = jax.random.normal(jax.random.fold_in(keys[0], N),
                              (N, inplanes, H, W), jnp.float32)
        out = jax.block_until_ready(fwd(x, params, k))
        ref = jax.block_until_ready(_ref_forward(x, params, k))
        assert out.shape == (N, planes, H, W), out.shape
        err = float(jnp.max(jnp.abs(out - ref)))
        assert jnp.allclose(out, ref, atol=1e-3, rtol=1e-3), (N, err)

    print("KERNEL_OK")
</pallas_src>

<mosaic_0001>
module attributes {stable_mosaic.version = 11 : i64} {
  func.func @_gcn_kernel(%arg0: i32, %arg1: memref<1x8x358xf32, #tpu.memory_space<vmem>>, %arg2: memref<7x8x8xf32, #tpu.memory_space<vmem>>, %arg3: memref<7x8x8xf32, #tpu.memory_space<vmem>>, %arg4: memref<7x8x8xf32, #tpu.memory_space<vmem>>, %arg5: memref<7x8x8xf32, #tpu.memory_space<vmem>>, %arg6: memref<8x1xf32, #tpu.memory_space<vmem>>, %arg7: memref<8x1xf32, #tpu.memory_space<vmem>>, %arg8: memref<8x1xf32, #tpu.memory_space<vmem>>, %arg9: memref<8x1xf32, #tpu.memory_space<vmem>>, %arg10: memref<7x256xf32, #tpu.memory_space<vmem>>, %arg11: memref<1x352xf32, #tpu.memory_space<vmem>>, %arg12: memref<1x8x256xf32, #tpu.memory_space<vmem>>, %arg13: memref<8x512xf32, #tpu.memory_space<vmem>>, %arg14: memref<8x352xf32, #tpu.memory_space<vmem>>) attributes {dimension_semantics = [#tpu.dimension_semantics<parallel>], iteration_bounds = array<i64: 2>, scalar_prefetch = 0 : i64, scratch_operands = 2 : i64, tpu.core_type = #tpu.core_type<tc>, window_params = [{transform_indices = @transform_0, window_bounds = array<i64: 1, 8, 358>}, {pipeline_mode = #tpu.pipeline_mode<synchronous>, transform_indices = @transform_1, window_bounds = array<i64: 7, 8, 8>}, {pipeline_mode = #tpu.pipeline_mode<synchronous>, transform_indices = @transform_2, window_bounds = array<i64: 7, 8, 8>}, {pipeline_mode = #tpu.pipeline_mode<synchronous>, transform_indices = @transform_3, window_bounds = array<i64: 7, 8, 8>}, {pipeline_mode = #tpu.pipeline_mode<synchronous>, transform_indices = @transform_4, window_bounds = array<i64: 7, 8, 8>}, {pipeline_mode = #tpu.pipeline_mode<synchronous>, transform_indices = @transform_5, window_bounds = array<i64: 8, 1>}, {pipeline_mode = #tpu.pipeline_mode<synchronous>, transform_indices = @transform_6, window_bounds = array<i64: 8, 1>}, {pipeline_mode = #tpu.pipeline_mode<synchronous>, transform_indices = @transform_7, window_bounds = array<i64: 8, 1>}, {pipeline_mode = #tpu.pipeline_mode<synchronous>, transform_indices = @transform_8, window_bounds = array<i64: 8, 1>}, {pipeline_mode = #tpu.pipeline_mode<synchronous>, transform_indices = @transform_9, window_bounds = array<i64: 7, 256>}, {pipeline_mode = #tpu.pipeline_mode<synchronous>, transform_indices = @transform_10, window_bounds = array<i64: 1, 352>}, {transform_indices = @transform_11, window_bounds = array<i64: 1, 8, 256>}]} {
    %cst = arith.constant 0.000000e+00 : f32
    %0 = vector.broadcast %cst : f32 to vector<8x256xf32>
    %c0 = arith.constant 0 : index
    %c0_0 = arith.constant 0 : index
    %1 = vector.load %arg6[%c0, %c0_0] : memref<8x1xf32, #tpu.memory_space<vmem>>, vector<8x1xf32>
    %2 = vector.broadcast %1 : vector<8x1xf32> to vector<8x256xf32>
    %3 = arith.addf %0, %2 : vector<8x256xf32>
    %c0_1 = arith.constant 0 : index
    %c0_2 = arith.constant 0 : index
    %c3 = arith.constant 3 : index
    %4 = vector.load %arg1[%c0_1, %c0_2, %c3] : memref<1x8x358xf32, #tpu.memory_space<vmem>>, vector<1x8x256xf32>
    %5 = vector.shape_cast %4 : vector<1x8x256xf32> to vector<8x256xf32>
    %c0_3 = arith.constant 0 : index
    %c0_4 = arith.constant 0 : index
    %c0_5 = arith.constant 0 : index
    %6 = vector.load %arg2[%c0_3, %c0_4, %c0_5] : memref<7x8x8xf32, #tpu.memory_space<vmem>>, vector<1x8x8xf32>
    %7 = vector.shape_cast %6 : vector<1x8x8xf32> to vector<8x8xf32>
    %cst_6 = arith.constant dense<0.000000e+00> : vector<8x256xf32>
    %8 = tpu.matmul %7, %5, %cst_6 {dimension_numbers = #tpu.dot_dimension_numbers<[1], [0], [0], [1], [0, 0, 1, 1], [], []>, precision = #tpu.contract_precision<fp32>} : vector<8x8xf32>, vector<8x256xf32>, vector<8x256xf32> -> vector<8x256xf32>
    %9 = arith.addf %3, %8 : vector<8x256xf32>
    %c0_7 = arith.constant 0 : index
    %c0_8 = arith.constant 0 : index
    %c19 = arith.constant 19 : index
    %10 = vector.load %arg1[%c0_7, %c0_8, %c19] : memref<1x8x358xf32, #tpu.memory_space<vmem>>, vector<1x8x256xf32>
    %11 = vector.shape_cast %10 : vector<1x8x256xf32> to vector<8x256xf32>
    %c1 = arith.constant 1 : index
    %c0_9 = arith.constant 0 : index
    %c0_10 = arith.constant 0 : index
    %12 = vector.load %arg2[%c1, %c0_9, %c0_10] : memref<7x8x8xf32, #tpu.memory_space<vmem>>, vector<1x8x8xf32>
    %13 = vector.shape_cast %12 : vector<1x8x8xf32> to vector<8x8xf32>
    %cst_11 = arith.constant dense<0.000000e+00> : vector<8x256xf32>
    %14 = tpu.matmul %13, %11, %cst_11 {dimension_numbers = #tpu.dot_dimension_numbers<[1], [0], [0], [1], [0, 0, 1, 1], [], []>, precision = #tpu.contract_precision<fp32>} : vector<8x8xf32>, vector<8x256xf32>, vector<8x256xf32> -> vector<8x256xf32>
    %15 = arith.addf %9, %14 : vector<8x256xf32>
    %c0_12 = arith.constant 0 : index
    %c0_13 = arith.constant 0 : index
    %c35 = arith.constant 35 : index
    %16 = vector.load %arg1[%c0_12, %c0_13, %c35] : memref<1x8x358xf32, #tpu.memory_space<vmem>>, vector<1x8x256xf32>
    %17 = vector.shape_cast %16 : vector<1x8x256xf32> to vector<8x256xf32>
    %c2 = arith.constant 2 : index
    %c0_14 = arith.constant 0 : index
    %c0_15 = arith.constant 0 : index
    %18 = vector.load %arg2[%c2, %c0_14, %c0_15] : memref<7x8x8xf32, #tpu.memory_space<vmem>>, vector<1x8x8xf32>
    %19 = vector.shape_cast %18 : vector<1x8x8xf32> to vector<8x8xf32>
    %cst_16 = arith.constant dense<0.000000e+00> : vector<8x256xf32>
    %20 = tpu.matmul %19, %17, %cst_16 {dimension_numbers = #tpu.dot_dimension_numbers<[1], [0], [0], [1], [0, 0, 1, 1], [], []>, precision = #tpu.contract_precision<fp32>} : vector<8x8xf32>, vector<8x256xf32>, vector<8x256xf32> -> vector<8x256xf32>
    %21 = arith.addf %15, %20 : vector<8x256xf32>
    %c0_17 = arith.constant 0 : index
    %c0_18 = arith.constant 0 : index
    %c51 = arith.constant 51 : index
    %22 = vector.load %arg1[%c0_17, %c0_18, %c51] : memref<1x8x358xf32, #tpu.memory_space<vmem>>, vector<1x8x256xf32>
    %23 = vector.shape_cast %22 : vector<1x8x256xf32> to vector<8x256xf32>
    %c3_19 = arith.constant 3 : index
    %c0_20 = arith.constant 0 : index
    %c0_21 = arith.constant 0 : index
    %24 = vector.load %arg2[%c3_19, %c0_20, %c0_21] : memref<7x8x8xf32, #tpu.memory_space<vmem>>, vector<1x8x8xf32>
    %25 = vector.shape_cast %24 : vector<1x8x8xf32> to vector<8x8xf32>
    %cst_22 = arith.constant dense<0.000000e+00> : vector<8x256xf32>
    %26 = tpu.matmul %25, %23, %cst_22 {dimension_numbers = #tpu.dot_dimension_numbers<[1], [0], [0], [1], [0, 0, 1, 1], [], []>, precision = #tpu.contract_precision<fp32>} : vector<8x8xf32>, vector<8x256xf32>, vector<8x256xf32> -> vector<8x256xf32>
    %27 = arith.addf %21, %26 : vector<8x256xf32>
    %c0_23 = arith.constant 0 : index
    %c0_24 = arith.constant 0 : index
    %c67 = arith.constant 67 : index
    %28 = vector.load %arg1[%c0_23, %c0_24, %c67] : memref<1x8x358xf32, #tpu.memory_space<vmem>>, vector<1x8x256xf32>
    %29 = vector.shape_cast %28 : vector<1x8x256xf32> to vector<8x256xf32>
    %c4 = arith.constant 4 : index
    %c0_25 = arith.constant 0 : index
    %c0_26 = arith.constant 0 : index
    %30 = vector.load %arg2[%c4, %c0_25, %c0_26] : memref<7x8x8xf32, #tpu.memory_space<vmem>>, vector<1x8x8xf32>
    %31 = vector.shape_cast %30 : vector<1x8x8xf32> to vector<8x8xf32>
    %cst_27 = arith.constant dense<0.000000e+00> : vector<8x256xf32>
    %32 = tpu.matmul %31, %29, %cst_27 {dimension_numbers = #tpu.dot_dimension_numbers<[1], [0], [0], [1], [0, 0, 1, 1], [], []>, precision = #tpu.contract_precision<fp32>} : vector<8x8xf32>, vector<8x256xf32>, vector<8x256xf32> -> vector<8x256xf32>
    %33 = arith.addf %27, %32 : vector<8x256xf32>
    %c0_28 = arith.constant 0 : index
    %c0_29 = arith.constant 0 : index
    %c83 = arith.constant 83 : index
    %34 = vector.load %arg1[%c0_28, %c0_29, %c83] : memref<1x8x358xf32, #tpu.memory_space<vmem>>, vector<1x8x256xf32>
    %35 = vector.shape_cast %34 : vector<1x8x256xf32> to vector<8x256xf32>
    %c5 = arith.constant 5 : index
    %c0_30 = arith.constant 0 : index
    %c0_31 = arith.constant 0 : index
    %36 = vector.load %arg2[%c5, %c0_30, %c0_31] : memref<7x8x8xf32, #tpu.memory_space<vmem>>, vector<1x8x8xf32>
    %37 = vector.shape_cast %36 : vector<1x8x8xf32> to vector<8x8xf32>
    %cst_32 = arith.constant dense<0.000000e+00> : vector<8x256xf32>
    %38 = tpu.matmul %37, %35, %cst_32 {dimension_numbers = #tpu.dot_dimension_numbers<[1], [0], [0], [1], [0, 0, 1, 1], [], []>, precision = #tpu.contract_precision<fp32>} : vector<8x8xf32>, vector<8x256xf32>, vector<8x256xf32> -> vector<8x256xf32>
    %39 = arith.addf %33, %38 : vector<8x256xf32>
    %c0_33 = arith.constant 0 : index
    %c0_34 = arith.constant 0 : index
    %c99 = arith.constant 99 : index
    %40 = vector.load %arg1[%c0_33, %c0_34, %c99] : memref<1x8x358xf32, #tpu.memory_space<vmem>>, vector<1x8x256xf32>
    %41 = vector.shape_cast %40 : vector<1x8x256xf32> to vector<8x256xf32>
    %c6 = arith.constant 6 : index
    %c0_35 = arith.constant 0 : index
    %c0_36 = arith.constant 0 : index
    %42 = vector.load %arg2[%c6, %c0_35, %c0_36] : memref<7x8x8xf32, #tpu.memory_space<vmem>>, vector<1x8x8xf32>
    %43 = vector.shape_cast %42 : vector<1x8x8xf32> to vector<8x8xf32>
    %cst_37 = arith.constant dense<0.000000e+00> : vector<8x256xf32>
    %44 = tpu.matmul %43, %41, %cst_37 {dimension_numbers = #tpu.dot_dimension_numbers<[1], [0], [0], [1], [0, 0, 1, 1], [], []>, precision = #tpu.contract_precision<fp32>} : vector<8x8xf32>, vector<8x256xf32>, vector<8x256xf32> -> vector<8x256xf32>
    %45 = arith.addf %39, %44 : vector<8x256xf32>
    %cst_38 = arith.constant 0.000000e+00 : f32
    %46 = vector.broadcast %cst_38 : f32 to vector<8x128xf32>
    %c0_39 = arith.constant 0 : index
    %c0_40 = arith.constant 0 : index
    %47 = vector.load %arg13[%c0_39, %c0_40] : memref<8x512xf32, #tpu.memory_space<vmem>>, vector<8x128xf32>
    tpu.vector_store %arg13[%c0_39, %c0_40], %46 {strides = array<i32>} : memref<8x512xf32, #tpu.memory_space<vmem>>, vector<8x128xf32>,
    %cst_41 = arith.constant 0.000000e+00 : f32
    %48 = vector.broadcast %cst_41 : f32 to vector<8x128xf32>
    %c0_42 = arith.constant 0 : index
    %c384 = arith.constant 384 : index
    %49 = vector.load %arg13[%c0_42, %c384] : memref<8x512xf32, #tpu.memory_space<vmem>>, vector<8x128xf32>
    tpu.vector_store %arg13[%c0_42, %c384], %48 {strides = array<i32>} : memref<8x512xf32, #tpu.memory_space<vmem>>, vector<8x128xf32>,
    %c0_43 = arith.constant 0 : index
    %c128 = arith.constant 128 : index
    %50 = vector.load %arg13[%c0_43, %c128] : memref<8x512xf32, #tpu.memory_space<vmem>>, vector<8x256xf32>
    tpu.vector_store %arg13[%c0_43, %c128], %45 {strides = array<i32>} : memref<8x512xf32, #tpu.memory_space<vmem>>, vector<8x256xf32>,
    %cst_44 = arith.constant 0.000000e+00 : f32
    %51 = vector.broadcast %cst_44 : f32 to vector<8x352xf32>
    %c0_45 = arith.constant 0 : index
    %c0_46 = arith.constant 0 : index
    %52 = vector.load %arg8[%c0_45, %c0_46] : memref<8x1xf32, #tpu.memory_space<vmem>>, vector<8x1xf32>
    %53 = vector.broadcast %52 : vector<8x1xf32> to vector<8x352xf32>
    %54 = arith.addf %51, %53 : vector<8x352xf32>
    %c0_47 = arith.constant 0 : index
    %c0_48 = arith.constant 0 : index
    %c0_49 = arith.constant 0 : index
    %55 = vector.load %arg1[%c0_47, %c0_48, %c0_49] : memref<1x8x358xf32, #tpu.memory_space<vmem>>, vector<1x8x352xf32>
    %56 = vector.shape_cast %55 : vector<1x8x352xf32> to vector<8x352xf32>
    %c0_50 = arith.constant 0 : index
    %c0_51 = arith.constant 0 : index
    %c0_52 = arith.constant 0 : index
    %57 = vector.load %arg4[%c0_50, %c0_51, %c0_52] : memref<7x8x8xf32, #tpu.memory_space<vmem>>, vector<1x8x8xf32>
    %58 = vector.shape_cast %57 : vector<1x8x8xf32> to vector<8x8xf32>
    %cst_53 = arith.constant dense<0.000000e+00> : vector<8x352xf32>
    %59 = tpu.matmul %58, %56, %cst_53 {dimension_numbers = #tpu.dot_dimension_numbers<[1], [0], [0], [1], [0, 0, 1, 1], [], []>, precision = #tpu.contract_precision<fp32>} : vector<8x8xf32>, vector<8x352xf32>, vector<8x352xf32> -> vector<8x352xf32>
    %60 = arith.addf %54, %59 : vector<8x352xf32>
    %c0_54 = arith.constant 0 : index
    %c0_55 = arith.constant 0 : index
    %c1_56 = arith.constant 1 : index
    %61 = vector.load %arg1[%c0_54, %c0_55, %c1_56] : memref<1x8x358xf32, #tpu.memory_space<vmem>>, vector<1x8x352xf32>
    %62 = vector.shape_cast %61 : vector<1x8x352xf32> to vector<8x352xf32>
    %c1_57 = arith.constant 1 : index
    %c0_58 = arith.constant 0 : index
    %c0_59 = arith.constant 0 : index
    %63 = vector.load %arg4[%c1_57, %c0_58, %c0_59] : memref<7x8x8xf32, #tpu.memory_space<vmem>>, vector<1x8x8xf32>
    %64 = vector.shape_cast %63 : vector<1x8x8xf32> to vector<8x8xf32>
    %cst_60 = arith.constant dense<0.000000e+00> : vector<8x352xf32>
    %65 = tpu.matmul %64, %62, %cst_60 {dimension_numbers = #tpu.dot_dimension_numbers<[1], [0], [0], [1], [0, 0, 1, 1], [], []>, precision = #tpu.contract_precision<fp32>} : vector<8x8xf32>, vector<8x352xf32>, vector<8x352xf32> -> vector<8x352xf32>
    %66 = arith.addf %60, %65 : vector<8x352xf32>
    %c0_61 = arith.constant 0 : index
    %c0_62 = arith.constant 0 : index
    %c2_63 = arith.constant 2 : index
    %67 = vector.load %arg1[%c0_61, %c0_62, %c2_63] : memref<1x8x358xf32, #tpu.memory_space<vmem>>, vector<1x8x352xf32>
    %68 = vector.shape_cast %67 : vector<1x8x352xf32> to vector<8x352xf32>
    %c2_64 = arith.constant 2 : index
    %c0_65 = arith.constant 0 : index
    %c0_66 = arith.constant 0 : index
    %69 = vector.load %arg4[%c2_64, %c0_65, %c0_66] : memref<7x8x8xf32, #tpu.memory_space<vmem>>, vector<1x8x8xf32>
    %70 = vector.shape_cast %69 : vector<1x8x8xf32> to vector<8x8xf32>
    %cst_67 = arith.constant dense<0.000000e+00> : vector<8x352xf32>
    %71 = tpu.matmul %70, %68, %cst_67 {dimension_numbers = #tpu.dot_dimension_numbers<[1], [0], [0], [1], [0, 0, 1, 1], [], []>, precision = #tpu.contract_precision<fp32>} : vector<8x8xf32>, vector<8x352xf32>, vector<8x352xf32> -> vector<8x352xf32>
    %72 = arith.addf %66, %71 : vector<8x352xf32>
    %c0_68 = arith.constant 0 : index
    %c0_69 = arith.constant 0 : index
    %c3_70 = arith.constant 3 : index
    %73 = vector.load %arg1[%c0_68, %c0_69, %c3_70] : memref<1x8x358xf32, #tpu.memory_space<vmem>>, vector<1x8x352xf32>
    %74 = vector.shape_cast %73 : vector<1x8x352xf32> to vector<8x352xf32>
    %c3_71 = arith.constant 3 : index
    %c0_72 = arith.constant 0 : index
    %c0_73 = arith.constant 0 : index
    %75 = vector.load %arg4[%c3_71, %c0_72, %c0_73] : memref<7x8x8xf32, #tpu.memory_space<vmem>>, vector<1x8x8xf32>
    %76 = vector.shape_cast %75 : vector<1x8x8xf32> to vector<8x8xf32>
    %cst_74 = arith.constant dense<0.000000e+00> : vector<8x352xf32>
    %77 = tpu.matmul %76, %74, %cst_74 {dimension_numbers = #tpu.dot_dimension_numbers<[1], [0], [0], [1], [0, 0, 1, 1], [], []>, precision = #tpu.contract_precision<fp32>} : vector<8x8xf32>, vector<8x352xf32>, vector<8x352xf32> -> vector<8x352xf32>
    %78 = arith.addf %72, %77 : vector<8x352xf32>
    %c0_75 = arith.constant 0 : index
    %c0_76 = arith.constant 0 : index
    %c4_77 = arith.constant 4 : index
    %79 = vector.load %arg1[%c0_75, %c0_76, %c4_77] : memref<1x8x358xf32, #tpu.memory_space<vmem>>, vector<1x8x352xf32>
    %80 = vector.shape_cast %79 : vector<1x8x352xf32> to vector<8x352xf32>
    %c4_78 = arith.constant 4 : index
    %c0_79 = arith.constant 0 : index
    %c0_80 = arith.constant 0 : index
    %81 = vector.load %arg4[%c4_78, %c0_79, %c0_80] : memref<7x8x8xf32, #tpu.memory_space<vmem>>, vector<1x8x8xf32>
    %82 = vector.shape_cast %81 : vector<1x8x8xf32> to vector<8x8xf32>
    %cst_81 = arith.constant dense<0.000000e+00> : vector<8x352xf32>
    %83 = tpu.matmul %82, %80, %cst_81 {dimension_numbers = #tpu.dot_dimension_numbers<[1], [0], [0], [1], [0, 0, 1, 1], [], []>, precision = #tpu.contract_precision<fp32>} : vector<8x8xf32>, vector<8x352xf32>, vector<8x352xf32> -> vector<8x352xf32>
    %84 = arith.addf %78, %83 : vector<8x352xf32>
    %c0_82 = arith.constant 0 : index
    %c0_83 = arith.constant 0 : index
    %c5_84 = arith.constant 5 : index
    %85 = vector.load %arg1[%c0_82, %c0_83, %c5_84] : memref<1x8x358xf32, #tpu.memory_space<vmem>>, vector<1x8x352xf32>
    %86 = vector.shape_cast %85 : vector<1x8x352xf32> to vector<8x352xf32>
    %c5_85 = arith.constant 5 : index
    %c0_86 = arith.constant 0 : index
    %c0_87 = arith.constant 0 : index
    %87 = vector.load %arg4[%c5_85, %c0_86, %c0_87] : memref<7x8x8xf32, #tpu.memory_space<vmem>>, vector<1x8x8xf32>
    %88 = vector.shape_cast %87 : vector<1x8x8xf32> to vector<8x8xf32>
    %cst_88 = arith.constant dense<0.000000e+00> : vector<8x352xf32>
    %89 = tpu.matmul %88, %86, %cst_88 {dimension_numbers = #tpu.dot_dimension_numbers<[1], [0], [0], [1], [0, 0, 1, 1], [], []>, precision = #tpu.contract_precision<fp32>} : vector<8x8xf32>, vector<8x352xf32>, vector<8x352xf32> -> vector<8x352xf32>
    %90 = arith.addf %84, %89 : vector<8x352xf32>
    %c0_89 = arith.constant 0 : index
    %c0_90 = arith.constant 0 : index
    %c6_91 = arith.constant 6 : index
    %91 = vector.load %arg1[%c0_89, %c0_90, %c6_91] : memref<1x8x358xf32, #tpu.memory_space<vmem>>, vector<1x8x352xf32>
    %92 = vector.shape_cast %91 : vector<1x8x352xf32> to vector<8x352xf32>
    %c6_92 = arith.constant 6 : index
    %c0_93 = arith.constant 0 : index
    %c0_94 = arith.constant 0 : index
    %93 = vector.load %arg4[%c6_92, %c0_93, %c0_94] : memref<7x8x8xf32, #tpu.memory_space<vmem>>, vector<1x8x8xf32>
    %94 = vector.shape_cast %93 : vector<1x8x8xf32> to vector<8x8xf32>
    %cst_95 = arith.constant dense<0.000000e+00> : vector<8x352xf32>
    %95 = tpu.matmul %94, %92, %cst_95 {dimension_numbers = #tpu.dot_dimension_numbers<[1], [0], [0], [1], [0, 0, 1, 1], [], []>, precision = #tpu.contract_precision<fp32>} : vector<8x8xf32>, vector<8x352xf32>, vector<8x352xf32> -> vector<8x352xf32>
    %96 = arith.addf %90, %95 : vector<8x352xf32>
    %c0_96 = arith.constant 0 : index
    %c0_97 = arith.constant 0 : index
    %97 = vector.load %arg11[%c0_96, %c0_97] : memref<1x352xf32, #tpu.memory_space<vmem>>, vector<1x352xf32>
    %98 = vector.broadcast %97 : vector<1x352xf32> to vector<8x352xf32>
    %99 = arith.mulf %96, %98 : vector<8x352xf32>
    %c0_98 = arith.constant 0 : index
    %c0_99 = arith.constant 0 : index
    %100 = vector.load %arg14[%c0_98, %c0_99] : memref<8x352xf32, #tpu.memory_space<vmem>>, vector<8x352xf32>
    tpu.vector_store %arg14[%c0_98, %c0_99], %99 {strides = array<i32>} : memref<8x352xf32, #tpu.memory_space<vmem>>, vector<8x352xf32>,
    %cst_100 = arith.constant 0.000000e+00 : f32
    %101 = vector.broadcast %cst_100 : f32 to vector<8x256xf32>
    %c0_101 = arith.constant 0 : index
    %c0_102 = arith.constant 0 : index
    %102 = vector.load %arg7[%c0_101, %c0_102] : memref<8x1xf32, #tpu.memory_space<vmem>>, vector<8x1xf32>
    %c0_103 = arith.constant 0 : index
    %c0_104 = arith.constant 0 : index
    %103 = vector.load %arg9[%c0_103, %c0_104] : memref<8x1xf32, #tpu.memory_space<vmem>>, vector<8x1xf32>
    %104 = arith.addf %102, %103 : vector<8x1xf32>
    %105 = vector.broadcast %104 : vector<8x1xf32> to vector<8x256xf32>
    %106 = arith.addf %101, %105 : vector<8x256xf32>
    %c0_105 = arith.constant 0 : index
    %c125 = arith.constant 125 : index
    %107 = vector.load %arg13[%c0_105, %c125] : memref<8x512xf32, #tpu.memory_space<vmem>>, vector<8x256xf32>
    %c0_106 = arith.constant 0 : index
    %c0_107 = arith.constant 0 : index
    %108 = vector.load %arg10[%c0_106, %c0_107] : memref<7x256xf32, #tpu.memory_space<vmem>>, vector<1x256xf32>
    %109 = vector.broadcast %108 : vector<1x256xf32> to vector<8x256xf32>
    %110 = arith.mulf %107, %109 : vector<8x256xf32>
    %c0_108 = arith.constant 0 : index
    %c0_109 = arith.constant 0 : index
    %c0_110 = arith.constant 0 : index
    %111 = vector.load %arg3[%c0_108, %c0_109, %c0_110] : memref<7x8x8xf32, #tpu.memory_space<vmem>>, vector<1x8x8xf32>
    %112 = vector.shape_cast %111 : vector<1x8x8xf32> to vector<8x8xf32>
    %cst_111 = arith.constant dense<0.000000e+00> : vector<8x256xf32>
    %113 = tpu.matmul %112, %110, %cst_111 {dimension_numbers = #tpu.dot_dimension_numbers<[1], [0], [0], [1], [0, 0, 1, 1], [], []>, precision = #tpu.contract_precision<fp32>} : vector<8x8xf32>, vector<8x256xf32>, vector<8x256xf32> -> vector<8x256xf32>
    %114 = arith.addf %106, %113 : vector<8x256xf32>
    %c0_112 = arith.constant 0 : index
    %c126 = arith.constant 126 : index
    %115 = vector.load %arg13[%c0_112, %c126] : memref<8x512xf32, #tpu.memory_space<vmem>>, vector<8x256xf32>
    %c1_113 = arith.constant 1 : index
    %c0_114 = arith.constant 0 : index
    %116 = vector.load %arg10[%c1_113, %c0_114] : memref<7x256xf32, #tpu.memory_space<vmem>>, vector<1x256xf32>
    %117 = vector.broadcast %116 : vector<1x256xf32> to vector<8x256xf32>
    %118 = arith.mulf %115, %117 : vector<8x256xf32>
    %c1_115 = arith.constant 1 : index
    %c0_116 = arith.constant 0 : index
    %c0_117 = arith.constant 0 : index
    %119 = vector.load %arg3[%c1_115, %c0_116, %c0_117] : memref<7x8x8xf32, #tpu.memory_space<vmem>>, vector<1x8x8xf32>
    %120 = vector.shape_cast %119 : vector<1x8x8xf32> to vector<8x8xf32>
    %cst_118 = arith.constant dense<0.000000e+00> : vector<8x256xf32>
    %121 = tpu.matmul %120, %118, %cst_118 {dimension_numbers = #tpu.dot_dimension_numbers<[1], [0], [0], [1], [0, 0, 1, 1], [], []>, precision = #tpu.contract_precision<fp32>} : vector<8x8xf32>, vector<8x256xf32>, vector<8x256xf32> -> vector<8x256xf32>
    %122 = arith.addf %114, %121 : vector<8x256xf32>
    %c0_119 = arith.constant 0 : index
    %c127 = arith.constant 127 : index
    %123 = vector.load %arg13[%c0_119, %c127] : memref<8x512xf32, #tpu.memory_space<vmem>>, vector<8x256xf32>
    %c2_120 = arith.constant 2 : index
    %c0_121 = arith.constant 0 : index
    %124 = vector.load %arg10[%c2_120, %c0_121] : memref<7x256xf32, #tpu.memory_space<vmem>>, vector<1x256xf32>
    %125 = vector.broadcast %124 : vector<1x256xf32> to vector<8x256xf32>
    %126 = arith.mulf %123, %125 : vector<8x256xf32>
    %c2_122 = arith.constant 2 : index
    %c0_123 = arith.constant 0 : index
    %c0_124 = arith.constant 0 : index
    %127 = vector.load %arg3[%c2_122, %c0_123, %c0_124] : memref<7x8x8xf32, #tpu.memory_space<vmem>>, vector<1x8x8xf32>
    %128 = vector.shape_cast %127 : vector<1x8x8xf32> to vector<8x8xf32>
    %cst_125 = arith.constant dense<0.000000e+00> : vector<8x256xf32>
    %129 = tpu.matmul %128, %126, %cst_125 {dimension_numbers = #tpu.dot_dimension_numbers<[1], [0], [0], [1], [0, 0, 1, 1], [], []>, precision = #tpu.contract_precision<fp32>} : vector<8x8xf32>, vector<8x256xf32>, vector<8x256xf32> -> vector<8x256xf32>
    %130 = arith.addf %122, %129 : vector<8x256xf32>
    %c0_126 = arith.constant 0 : index
    %c128_127 = arith.constant 128 : index
    %131 = vector.load %arg13[%c0_126, %c128_127] : memref<8x512xf32, #tpu.memory_space<vmem>>, vector<8x256xf32>
    %c3_128 = arith.constant 3 : index
    %c0_129 = arith.constant 0 : index
    %132 = vector.load %arg10[%c3_128, %c0_129] : memref<7x256xf32, #tpu.memory_space<vmem>>, vector<1x256xf32>
    %133 = vector.broadcast %132 : vector<1x256xf32> to vector<8x256xf32>
    %134 = arith.mulf %131, %133 : vector<8x256xf32>
    %c3_130 = arith.constant 3 : index
    %c0_131 = arith.constant 0 : index
    %c0_132 = arith.constant 0 : index
    %135 = vector.load %arg3[%c3_130, %c0_131, %c0_132] : memref<7x8x8xf32, #tpu.memory_space<vmem>>, vector<1x8x8xf32>
    %136 = vector.shape_cast %135 : vector<1x8x8xf32> to vector<8x8xf32>
    %cst_133 = arith.constant dense<0.000000e+00> : vector<8x256xf32>
    %137 = tpu.matmul %136, %134, %cst_133 {dimension_numbers = #tpu.dot_dimension_numbers<[1], [0], [0], [1], [0, 0, 1, 1], [], []>, precision = #tpu.contract_precision<fp32>} : vector<8x8xf32>, vector<8x256xf32>, vector<8x256xf32> -> vector<8x256xf32>
    %138 = arith.addf %130, %137 : vector<8x256xf32>
    %c0_134 = arith.constant 0 : index
    %c129 = arith.constant 129 : index
    %139 = vector.load %arg13[%c0_134, %c129] : memref<8x512xf32, #tpu.memory_space<vmem>>, vector<8x256xf32>
    %c4_135 = arith.constant 4 : index
    %c0_136 = arith.constant 0 : index
    %140 = vector.load %arg10[%c4_135, %c0_136] : memref<7x256xf32, #tpu.memory_space<vmem>>, vector<1x256xf32>
    %141 = vector.broadcast %140 : vector<1x256xf32> to vector<8x256xf32>
    %142 = arith.mulf %139, %141 : vector<8x256xf32>
    %c4_137 = arith.constant 4 : index
    %c0_138 = arith.constant 0 : index
    %c0_139 = arith.constant 0 : index
    %143 = vector.load %arg3[%c4_137, %c0_138, %c0_139] : memref<7x8x8xf32, #tpu.memory_space<vmem>>, vector<1x8x8xf32>
    %144 = vector.shape_cast %143 : vector<1x8x8xf32> to vector<8x8xf32>
    %cst_140 = arith.constant dense<0.000000e+00> : vector<8x256xf32>
    %145 = tpu.matmul %144, %142, %cst_140 {dimension_numbers = #tpu.dot_dimension_numbers<[1], [0], [0], [1], [0, 0, 1, 1], [], []>, precision = #tpu.contract_precision<fp32>} : vector<8x8xf32>, vector<8x256xf32>, vector<8x256xf32> -> vector<8x256xf32>
    %146 = arith.addf %138, %145 : vector<8x256xf32>
    %c0_141 = arith.constant 0 : index
    %c130 = arith.constant 130 : index
    %147 = vector.load %arg13[%c0_141, %c130] : memref<8x512xf32, #tpu.memory_space<vmem>>, vector<8x256xf32>
    %c5_142 = arith.constant 5 : index
    %c0_143 = arith.constant 0 : index
    %148 = vector.load %arg10[%c5_142, %c0_143] : memref<7x256xf32, #tpu.memory_space<vmem>>, vector<1x256xf32>
    %149 = vector.broadcast %148 : vector<1x256xf32> to vector<8x256xf32>
    %150 = arith.mulf %147, %149 : vector<8x256xf32>
    %c5_144 = arith.constant 5 : index
    %c0_145 = arith.constant 0 : index
    %c0_146 = arith.constant 0 : index
    %151 = vector.load %arg3[%c5_144, %c0_145, %c0_146] : memref<7x8x8xf32, #tpu.memory_space<vmem>>, vector<1x8x8xf32>
    %152 = vector.shape_cast %151 : vector<1x8x8xf32> to vector<8x8xf32>
    %cst_147 = arith.constant dense<0.000000e+00> : vector<8x256xf32>
    %153 = tpu.matmul %152, %150, %cst_147 {dimension_numbers = #tpu.dot_dimension_numbers<[1], [0], [0], [1], [0, 0, 1, 1], [], []>, precision = #tpu.contract_precision<fp32>} : vector<8x8xf32>, vector<8x256xf32>, vector<8x256xf32> -> vector<8x256xf32>
    %154 = arith.addf %146, %153 : vector<8x256xf32>
    %c0_148 = arith.constant 0 : index
    %c131 = arith.constant 131 : index
    %155 = vector.load %arg13[%c0_148, %c131] : memref<8x512xf32, #tpu.memory_space<vmem>>, vector<8x256xf32>
    %c6_149 = arith.constant 6 : index
    %c0_150 = arith.constant 0 : index
    %156 = vector.load %arg10[%c6_149, %c0_150] : memref<7x256xf32, #tpu.memory_space<vmem>>, vector<1x256xf32>
    %157 = vector.broadcast %156 : vector<1x256xf32> to vector<8x256xf32>
    %158 = arith.mulf %155, %157 : vector<8x256xf32>
    %c6_151 = arith.constant 6 : index
    %c0_152 = arith.constant 0 : index
    %c0_153 = arith.constant 0 : index
    %159 = vector.load %arg3[%c6_151, %c0_152, %c0_153] : memref<7x8x8xf32, #tpu.memory_space<vmem>>, vector<1x8x8xf32>
    %160 = vector.shape_cast %159 : vector<1x8x8xf32> to vector<8x8xf32>
    %cst_154 = arith.constant dense<0.000000e+00> : vector<8x256xf32>
    %161 = tpu.matmul %160, %158, %cst_154 {dimension_numbers = #tpu.dot_dimension_numbers<[1], [0], [0], [1], [0, 0, 1, 1], [], []>, precision = #tpu.contract_precision<fp32>} : vector<8x8xf32>, vector<8x256xf32>, vector<8x256xf32> -> vector<8x256xf32>
    %162 = arith.addf %154, %161 : vector<8x256xf32>
    %c0_155 = arith.constant 0 : index
    %c0_156 = arith.constant 0 : index
    %163 = vector.load %arg14[%c0_155, %c0_156] : memref<8x352xf32, #tpu.memory_space<vmem>>, vector<8x256xf32>
    %c0_157 = arith.constant 0 : index
    %c0_158 = arith.constant 0 : index
    %c0_159 = arith.constant 0 : index
    %164 = vector.load %arg5[%c0_157, %c0_158, %c0_159] : memref<7x8x8xf32, #tpu.memory_space<vmem>>, vector<1x8x8xf32>
    %165 = vector.shape_cast %164 : vector<1x8x8xf32> to vector<8x8xf32>
    %cst_160 = arith.constant dense<0.000000e+00> : vector<8x256xf32>
    %166 = tpu.matmul %165, %163, %cst_160 {dimension_numbers = #tpu.dot_dimension_numbers<[1], [0], [0], [1], [0, 0, 1, 1], [], []>, precision = #tpu.contract_precision<fp32>} : vector<8x8xf32>, vector<8x256xf32>, vector<8x256xf32> -> vector<8x256xf32>
    %167 = arith.addf %162, %166 : vector<8x256xf32>
    %c0_161 = arith.constant 0 : index
    %c16 = arith.constant 16 : index
    %168 = vector.load %arg14[%c0_161, %c16] : memref<8x352xf32, #tpu.memory_space<vmem>>, vector<8x256xf32>
    %c1_162 = arith.constant 1 : index
    %c0_163 = arith.constant 0 : index
    %c0_164 = arith.constant 0 : index
    %169 = vector.load %arg5[%c1_162, %c0_163, %c0_164] : memref<7x8x8xf32, #tpu.memory_space<vmem>>, vector<1x8x8xf32>
    %170 = vector.shape_cast %169 : vector<1x8x8xf32> to vector<8x8xf32>
    %cst_165 = arith.constant dense<0.000000e+00> : vector<8x256xf32>
    %171 = tpu.matmul %170, %168, %cst_165 {dimension_numbers = #tpu.dot_dimension_numbers<[1], [0], [0], [1], [0, 0, 1, 1], [], []>, precision = #tpu.contract_precision<fp32>} : vector<8x8xf32>, vector<8x256xf32>, vector<8x256xf32> -> vector<8x256xf32>
    %172 = arith.addf %167, %171 : vector<8x256xf32>
    %c0_166 = arith.constant 0 : index
    %c32 = arith.constant 32 : index
    %173 = vector.load %arg14[%c0_166, %c32] : memref<8x352xf32, #tpu.memory_space<vmem>>, vector<8x256xf32>
    %c2_167 = arith.constant 2 : index
    %c0_168 = arith.constant 0 : index
    %c0_169 = arith.constant 0 : index
    %174 = vector.load %arg5[%c2_167, %c0_168, %c0_169] : memref<7x8x8xf32, #tpu.memory_space<vmem>>, vector<1x8x8xf32>
    %175 = vector.shape_cast %174 : vector<1x8x8xf32> to vector<8x8xf32>
    %cst_170 = arith.constant dense<0.000000e+00> : vector<8x256xf32>
    %176 = tpu.matmul %175, %173, %cst_170 {dimension_numbers = #tpu.dot_dimension_numbers<[1], [0], [0], [1], [0, 0, 1, 1], [], []>, precision = #tpu.contract_precision<fp32>} : vector<8x8xf32>, vector<8x256xf32>, vector<8x256xf32> -> vector<8x256xf32>
    %177 = arith.addf %172, %176 : vector<8x256xf32>
    %c0_171 = arith.constant 0 : index
    %c48 = arith.constant 48 : index
    %178 = vector.load %arg14[%c0_171, %c48] : memref<8x352xf32, #tpu.memory_space<vmem>>, vector<8x256xf32>
    %c3_172 = arith.constant 3 : index
    %c0_173 = arith.constant 0 : index
    %c0_174 = arith.constant 0 : index
    %179 = vector.load %arg5[%c3_172, %c0_173, %c0_174] : memref<7x8x8xf32, #tpu.memory_space<vmem>>, vector<1x8x8xf32>
    %180 = vector.shape_cast %179 : vector<1x8x8xf32> to vector<8x8xf32>
    %cst_175 = arith.constant dense<0.000000e+00> : vector<8x256xf32>
    %181 = tpu.matmul %180, %178, %cst_175 {dimension_numbers = #tpu.dot_dimension_numbers<[1], [0], [0], [1], [0, 0, 1, 1], [], []>, precision = #tpu.contract_precision<fp32>} : vector<8x8xf32>, vector<8x256xf32>, vector<8x256xf32> -> vector<8x256xf32>
    %182 = arith.addf %177, %181 : vector<8x256xf32>
    %c0_176 = arith.constant 0 : index
    %c64 = arith.constant 64 : index
    %183 = vector.load %arg14[%c0_176, %c64] : memref<8x352xf32, #tpu.memory_space<vmem>>, vector<8x256xf32>
    %c4_177 = arith.constant 4 : index
    %c0_178 = arith.constant 0 : index
    %c0_179 = arith.constant 0 : index
    %184 = vector.load %arg5[%c4_177, %c0_178, %c0_179] : memref<7x8x8xf32, #tpu.memory_space<vmem>>, vector<1x8x8xf32>
    %185 = vector.shape_cast %184 : vector<1x8x8xf32> to vector<8x8xf32>
    %cst_180 = arith.constant dense<0.000000e+00> : vector<8x256xf32>
    %186 = tpu.matmul %185, %183, %cst_180 {dimension_numbers = #tpu.dot_dimension_numbers<[1], [0], [0], [1], [0, 0, 1, 1], [], []>, precision = #tpu.contract_precision<fp32>} : vector<8x8xf32>, vector<8x256xf32>, vector<8x256xf32> -> vector<8x256xf32>
    %187 = arith.addf %182, %186 : vector<8x256xf32>
    %c0_181 = arith.constant 0 : index
    %c80 = arith.constant 80 : index
    %188 = vector.load %arg14[%c0_181, %c80] : memref<8x352xf32, #tpu.memory_space<vmem>>, vector<8x256xf32>
    %c5_182 = arith.constant 5 : index
    %c0_183 = arith.constant 0 : index
    %c0_184 = arith.constant 0 : index
    %189 = vector.load %arg5[%c5_182, %c0_183, %c0_184] : memref<7x8x8xf32, #tpu.memory_space<vmem>>, vector<1x8x8xf32>
    %190 = vector.shape_cast %189 : vector<1x8x8xf32> to vector<8x8xf32>
    %cst_185 = arith.constant dense<0.000000e+00> : vector<8x256xf32>
    %191 = tpu.matmul %190, %188, %cst_185 {dimension_numbers = #tpu.dot_dimension_numbers<[1], [0], [0], [1], [0, 0, 1, 1], [], []>, precision = #tpu.contract_precision<fp32>} : vector<8x8xf32>, vector<8x256xf32>, vector<8x256xf32> -> vector<8x256xf32>
    %192 = arith.addf %187, %191 : vector<8x256xf32>
    %c0_186 = arith.constant 0 : index
    %c96 = arith.constant 96 : index
    %193 = vector.load %arg14[%c0_186, %c96] : memref<8x352xf32, #tpu.memory_space<vmem>>, vector<8x256xf32>
    %c6_187 = arith.constant 6 : index
    %c0_188 = arith.constant 0 : index
    %c0_189 = arith.constant 0 : index
    %194 = vector.load %arg5[%c6_187, %c0_188, %c0_189] : memref<7x8x8xf32, #tpu.memory_space<vmem>>, vector<1x8x8xf32>
    %195 = vector.shape_cast %194 : vector<1x8x8xf32> to vector<8x8xf32>
    %cst_190 = arith.constant dense<0.000000e+00> : vector<8x256xf32>
    %196 = tpu.matmul %195, %193, %cst_190 {dimension_numbers = #tpu.dot_dimension_numbers<[1], [0], [0], [1], [0, 0, 1, 1], [], []>, precision = #tpu.contract_precision<fp32>} : vector<8x8xf32>, vector<8x256xf32>, vector<8x256xf32> -> vector<8x256xf32>
    %197 = arith.addf %192, %196 : vector<8x256xf32>
    %c0_191 = arith.constant 0 : index
    %c0_192 = arith.constant 0 : index
    %c0_193 = arith.constant 0 : index
    %198 = vector.load %arg12[%c0_191, %c0_192, %c0_193] : memref<1x8x256xf32, #tpu.memory_space<vmem>>, vector<1x8x256xf32>
    %199 = vector.shape_cast %198 : vector<1x8x256xf32> to vector<8x256xf32>
    %200 = vector.shape_cast %197 : vector<8x256xf32> to vector<1x8x256xf32>
    tpu.vector_store %arg12[%c0_191, %c0_192, %c0_193], %200 {strides = array<i32>} : memref<1x8x256xf32, #tpu.memory_space<vmem>>, vector<1x8x256xf32>,
    return
  }
  func.func @transform_0(%arg0: i32) -> (i32, i32, i32) {
    %c0_i32 = arith.constant 0 : i32
    %c0_i32_0 = arith.constant 0 : i32
    %c0_i32_1 = arith.constant 0 : i32
    return %arg0, %c0_i32, %c0_i32_0 : i32, i32, i32
  }
  func.func @transform_1(%arg0: i32) -> (i32, i32, i32) {
    %c0_i32 = arith.constant 0 : i32
    %c0_i32_0 = arith.constant 0 : i32
    %c0_i32_1 = arith.constant 0 : i32
    %c0_i32_2 = arith.constant 0 : i32
    return %c0_i32, %c0_i32_0, %c0_i32_1 : i32, i32, i32
  }
  func.func @transform_2(%arg0: i32) -> (i32, i32, i32) {
    %c0_i32 = arith.constant 0 : i32
    %c0_i32_0 = arith.constant 0 : i32
    %c0_i32_1 = arith.constant 0 : i32
    %c0_i32_2 = arith.constant 0 : i32
    return %c0_i32, %c0_i32_0, %c0_i32_1 : i32, i32, i32
  }
  func.func @transform_3(%arg0: i32) -> (i32, i32, i32) {
    %c0_i32 = arith.constant 0 : i32
    %c0_i32_0 = arith.constant 0 : i32
    %c0_i32_1 = arith.constant 0 : i32
    %c0_i32_2 = arith.constant 0 : i32
    return %c0_i32, %c0_i32_0, %c0_i32_1 : i32, i32, i32
  }
  func.func @transform_4(%arg0: i32) -> (i32, i32, i32) {
    %c0_i32 = arith.constant 0 : i32
    %c0_i32_0 = arith.constant 0 : i32
    %c0_i32_1 = arith.constant 0 : i32
    %c0_i32_2 = arith.constant 0 : i32
    return %c0_i32, %c0_i32_0, %c0_i32_1 : i32, i32, i32
  }
  func.func @transform_5(%arg0: i32) -> (i32, i32) {
    %c0_i32 = arith.constant 0 : i32
    %c0_i32_0 = arith.constant 0 : i32
    %c0_i32_1 = arith.constant 0 : i32
    return %c0_i32, %c0_i32_0 : i32, i32
  }
  func.func @transform_6(%arg0: i32) -> (i32, i32) {
    %c0_i32 = arith.constant 0 : i32
    %c0_i32_0 = arith.constant 0 : i32
    %c0_i32_1 = arith.constant 0 : i32
    return %c0_i32, %c0_i32_0 : i32, i32
  }
  func.func @transform_7(%arg0: i32) -> (i32, i32) {
    %c0_i32 = arith.constant 0 : i32
    %c0_i32_0 = arith.constant 0 : i32
    %c0_i32_1 = arith.constant 0 : i32
    return %c0_i32, %c0_i32_0 : i32, i32
  }
  func.func @transform_8(%arg0: i32) -> (i32, i32) {
    %c0_i32 = arith.constant 0 : i32
    %c0_i32_0 = arith.constant 0 : i32
    %c0_i32_1 = arith.constant 0 : i32
    return %c0_i32, %c0_i32_0 : i32, i32
  }
  func.func @transform_9(%arg0: i32) -> (i32, i32) {
    %c0_i32 = arith.constant 0 : i32
    %c0_i32_0 = arith.constant 0 : i32
    %c0_i32_1 = arith.constant 0 : i32
    return %c0_i32, %c0_i32_0 : i32, i32
  }
  func.func @transform_10(%arg0: i32) -> (i32, i32) {
    %c0_i32 = arith.constant 0 : i32
    %c0_i32_0 = arith.constant 0 : i32
    %c0_i32_1 = arith.constant 0 : i32
    return %c0_i32, %c0_i32_0 : i32, i32
  }
  func.func @transform_11(%arg0: i32) -> (i32, i32, i32) {
    %c0_i32 = arith.constant 0 : i32
    %c0_i32_0 = arith.constant 0 : i32
    %c0_i32_1 = arith.constant 0 : i32
    return %arg0, %c0_i32, %c0_i32_0 : i32, i32, i32
  }
}

</mosaic_0001>

<llo_original>
// kernel: tile.33
$region0: #{tile.33}
  #allocation0 [shape = 's32[1]{0}', space=sflag, size = 0x4, scoped, tag = 'scoped memory for tile.33']
  %s0 = inlined_call_operand.vmem [shape: f32[4], index: 0, kind: input, shape index: {}]
  %s1 = inlined_call_operand.vmem [shape: f32[2,4], index: 1, kind: output, shape index: {}]
  // Predicated region
  $region2: #{tile.33} parent=0 // pred_check
    _
  $region3: #{tile.33} parent=0 // pred_check_branch
    %3 = sbr.rel (0) target = $region5
  $region4: #{tile.33} parent=0 // pred_region
    _
  $region5: #{tile.33} parent=0 // pred_fallthru
    _
  %v4 = vld [vmem:[%s0] ss:$0 sm:$0xff]
  %5 = vst [vmem:[%s1] sm:$0x3] %v4

// kernel: tile.0
$region0: #{tile.0}
  %s0 = inlined_call_operand.vmem [shape: f32[2,4], index: 0, kind: input, shape index: {}]
  %s1 = inlined_call_operand.vmem [shape: f32[8,1], index: 1, kind: output, shape index: {}]
  $region1: #{tile.0} parent=0
    #allocation0 [shape = 'u8[4096]{0}', space=vmem, size = 0x1000, scoped, tag = 'scoped mem for input reshape']
    %s3 = ssub.s32 4, 1
    %v4 = vld [vmem:[%s0] sm:%s3]
    %5 = vst [vmem:[#allocation0] sm:%s3] %v4
    %v6 = vld [vmem:[#allocation0] sm:$0x3]
    %vm7 = vcmask 7168
    %8 = vst.msk [vmem:[%s1] ss:$4 sm:$0x3] %vm7, %v6
    %v9 = vld [vmem:[#allocation0] sm:$0x3]
    %10 = vrot.lane.b32.xlu0 %v9, 127
    %v11 = vpop.permute.xlu0 %10
    %vm12 = vcmask 7168
    %s13 = scalar_lea.vmem %s1, 1
    %14 = vst.msk [vmem:[%s13] ss:$4 sm:$0x3] %vm12, %v11
    %v15 = vld [vmem:[#allocation0] sm:$0x3]
    %16 = vrot.lane.b32.xlu0 %v15, 126
    %v17 = vpop.permute.xlu0 %16
    %vm18 = vcmask 7168
    %s19 = scalar_lea.vmem %s1, 2
    %20 = vst.msk [vmem:[%s19] ss:$4 sm:$0x3] %vm18, %v17
    %v21 = vld [vmem:[#allocation0] sm:$0x3]
    %22 = vrot.lane.b32.xlu0 %v21, 125
    %v23 = vpop.permute.xlu0 %22
    %vm24 = vcmask 7168
    %s25 = scalar_lea.vmem %s1, 3
    %26 = vst.msk [vmem:[%s25] ss:$4 sm:$0x3] %vm24, %v23

// kernel: tile.58
$region0: #{tile.58}
  #allocation0 [shape = 's32[1]{0}', space=sflag, size = 0x4, scoped, tag = 'scoped memory for tile.58']
  %s0 = inlined_call_operand.vmem [shape: f32[16], index: 0, kind: input, shape index: {}]
  %s1 = inlined_call_operand.vmem [shape: f32[22,16], index: 1, kind: output, shape index: {}]
  // Predicated region
  $region2: #{tile.58} parent=0 // pred_check
    _
  $region3: #{tile.58} parent=0 // pred_check_branch
    %3 = sbr.rel (0) target = $region5
  $region4: #{tile.58} parent=0 // pred_region
    _
  $region5: #{tile.58} parent=0 // pred_fallthru
    _
  %v4 = vld [vmem:[%s0] ss:$0 sm:$0xff]
  %5 = vst [vmem:[%s1] sm:$0xff] %v4
  %s6 = scalar_lea.vmem %s1, 8
  %7 = vst [vmem:[%s6] sm:$0xff] %v4
  %s8 = scalar_lea.vmem %s1, 16
  %9 = vst [vmem:[%s8] sm:$0xff] %v4

// kernel: tile.59
$region0: #{tile.59}
  %s0 = inlined_call_operand.vmem [shape: f32[22,16], index: 0, kind: input, shape index: {}]
  %s1 = inlined_call_operand.vmem [shape: f32[1,352], index: 1, kind: output, shape index: {}]
  $region1: #{tile.59} parent=0
    #allocation0 [shape = 'u8[12288]{0}', space=vmem, size = 0x3000, scoped, tag = 'scoped mem for output reshape']
    %v2 = vld [vmem:[%s0] ss:$8 sm:$0x7]
    %vm3 = vcmask 130048
    %4 = vst.msk [vmem:[#allocation0] ss:$8 sm:$0x7] %vm3, %v2
    %s5 = scalar_lea.vmem %s0, 7
    %s6 = smov 3
    %v7 = vld [vmem:[%s5] ss:$8 sm:%s6]
    %8 = vrot.lane.b32.xlu0 %v7, 112
    %v9 = vpop.permute.xlu0 %8
    %vm10 = vcmask 1048448
    %11 = vst.msk [vmem:[#allocation0] ss:$8 sm:$0x3] %vm10, %v9
    %s12 = scalar_lea.vmem %s0, 6
    %s13 = smov 3
    %v14 = vld [vmem:[%s12] ss:$8 sm:%s13]
    %15 = vrot.lane.b32.xlu0 %v14, 96
    %v16 = vpop.permute.xlu0 %15
    %vm17 = vcmask 917248
    %18 = vst.msk [vmem:[#allocation0] ss:$8 sm:$0x3] %vm17, %v16
    %s19 = scalar_lea.vmem %s0, 5
    %v20 = vld [vmem:[%s19] ss:$8 sm:$0x7]
    %21 = vrot.lane.b32.xlu0 %v20, 80
    %v22 = vpop.permute.xlu0 %21
    %vm23 = vcmask 786048
    %24 = vst.msk [vmem:[#allocation0] ss:$8 sm:$0x7] %vm23, %v22
    %s25 = scalar_lea.vmem %s0, 4
    %v26 = vld [vmem:[%s25] ss:$8 sm:$0x7]
    %27 = vrot.lane.b32.xlu0 %v26, 64
    %v28 = vpop.permute.xlu0 %27
    %vm29 = vcmask 654848
    %30 = vst.msk [vmem:[#allocation0] ss:$8 sm:$0x7] %vm29, %v28
    %s31 = scalar_lea.vmem %s0, 3
    %v32 = vld [vmem:[%s31] ss:$8 sm:$0x7]
    %33 = vrot.lane.b32.xlu0 %v32, 48
    %v34 = vpop.permute.xlu0 %33
    %vm35 = vcmask 523648
    %36 = vst.msk [vmem:[#allocation0] ss:$8 sm:$0x7] %vm35, %v34
    %s37 = scalar_lea.vmem %s0, 2
    %v38 = vld [vmem:[%s37] ss:$8 sm:$0x7]
    %39 = vrot.lane.b32.xlu0 %v38, 32
    %v40 = vpop.permute.xlu0 %39
    %vm41 = vcmask 392448
    %42 = vst.msk [vmem:[#allocation0] ss:$8 sm:$0x7] %vm41, %v40
    %s43 = scalar_lea.vmem %s0, 1
    %v44 = vld [vmem:[%s43] ss:$8 sm:$0x7]
    %45 = vrot.lane.b32.xlu0 %v44, 16
    %v46 = vpop.permute.xlu0 %45
    %vm47 = vcmask 261248
    %48 = vst.msk [vmem:[#allocation0] ss:$8 sm:$0x7] %vm47, %v46
    %s50 = ssub.s32 2, 1
    %v51 = vld [vmem:[#allocation0] sm:%s50]
    %s53 = ssub.s32 2, 1
    %54 = vst [vmem:[%s1] sm:%s53] %v51
    %s55 = scalar_lea.vmem [#allocation0], 8
    %v56 = vld [vmem:[%s55] sm:%s50]
    %s58 = ssub.s32 2, 1
    %s59 = scalar_lea.vmem %s1, 1
    %60 = vst [vmem:[%s59] sm:%s58] %v56
    %s61 = scalar_lea.vmem [#allocation0], 16
    %v62 = vld [vmem:[%s61] sm:%s50]
    %s64 = ssub.s32 2, 1
    %s65 = scalar_lea.vmem %s1, 2
    %66 = vst [vmem:[%s65] sm:%s64] %v62

// kernel: tile.54
$region0: #{tile.54}
  %s0 = inlined_call_operand.vmem [shape: f32[7,16,16], index: 0, kind: input, shape index: {}]
  %s1 = inlined_call_operand.vmem [shape: f32[7,256], index: 1, kind: output, shape index: {}]
  %v2 = vld [vmem:[%s0] ss:$8 sm:$0xf]
  %v3 = vld [vmem:[%s0] ss:$8 sm:$0xf0]
  %vm4 = vcmask 1047556
  %v5 = vsel %vm4, %v3, %v2
  %vm6 = vcmask 130048
  %7 = vst.msk [vmem:[%s1] ss:$8 sm:$0x3] %vm6, %v5
  %s8 = scalar_lea.vmem %s1, 4294967281
  %9 = vst.msk [vmem:[%s8] ss:$8 sm:$0xc] %vm6, %v5
  %s10 = scalar_lea.vmem %s1, 4294967266
  %11 = vst.msk [vmem:[%s10] ss:$8 sm:$0x30] %vm6, %v5
  %s12 = scalar_lea.vmem %s1, 4294967251
  %13 = vst.msk [vmem:[%s12] ss:$8 sm:$0xc0] %vm6, %v5
  %s14 = scalar_lea.vmem %s0, 64
  %v15 = vld [vmem:[%s14] ss:$8 sm:$0xf]
  %s16 = scalar_lea.vmem %s0, 64
  %s17 = smov 48
  %v18 = vld [vmem:[%s16] ss:$8 sm:%s17]
  %vm19 = vcmask 1045508
  %v20 = vsel %vm19, %v18, %v15
  %vm21 = vcmask 130048
  %s22 = scalar_lea.vmem %s1, 4
  %23 = vst.msk [vmem:[%s22] ss:$8 sm:$0x3] %vm21, %v20
  %s24 = scalar_lea.vmem %s1, 4294967285
  %25 = vst.msk [vmem:[%s24] ss:$8 sm:$0xc] %vm21, %v20
  %s26 = scalar_lea.vmem %s1, 4294967270
  %27 = vst.msk [vmem:[%s26] ss:$8 sm:$0x30] %vm21, %v20
  %s28 = scalar_lea.vmem %s0, 7
  %s29 = smov 3
  %v30 = vld [vmem:[%s28] ss:$16 sm:%s29]
  %s31 = scalar_lea.vmem %s0, 7
  %s32 = smov 12
  %v33 = vld [vmem:[%s31] ss:$16 sm:%s32]
  %vm34 = vcmask 1043458
  %v35 = vsel %vm34, %v33, %v30
  %s36 = scalar_lea.vmem %s0, 7
  %s37 = smov 48
  %v38 = vld [vmem:[%s36] ss:$16 sm:%s37]
  %vm39 = vcmask 1045508
  %v40 = vsel %vm39, %v38, %v35
  %s41 = scalar_lea.vmem %s0, 631
  %s42 = smov 192
  %v43 = vld [vmem:[%s41] ss:$-88 sm:%s42]
  %vm44 = vcmask 1047558
  %v45 = vsel %vm44, %v43, %v40
  %46 = vrot.lane.b32.xlu0 %v45, 112
  %v47 = vpop.permute.xlu0 %46
  %vm48 = vcmask 1048448
  %49 = vst.msk [vmem:[%s1] sm:$0x7f] %vm48, %v47
  %s50 = scalar_lea.vmem %s1, 1
  %51 = vst.msk [vmem:[%s50] sm:$0x80] %vm48, %v47
  %s52 = scalar_lea.vmem %s0, 31
  %s53 = smov 3
  %v54 = vld [vmem:[%s52] ss:$16 sm:%s53]
  %s55 = scalar_lea.vmem %s0, 31
  %s56 = smov 12
  %v57 = vld [vmem:[%s55] ss:$16 sm:%s56]
  %vm58 = vcmask 1043458
  %v59 = vsel %vm58, %v57, %v54
  %s60 = scalar_lea.vmem %s0, 31
  %s61 = smov 48
  %v62 = vld [vmem:[%s60] ss:$16 sm:%s61]
  %vm63 = vcmask 1045508
  %v64 = vsel %vm63, %v62, %v59
  %65 = vrot.lane.b32.xlu0 %v64, 112
  %v66 = vpop.permute.xlu0 %65
  %vm67 = vcmask 1048448
  %s68 = scalar_lea.vmem %s1, 9
  %69 = vst.msk [vmem:[%s68] sm:$0x3f] %vm67, %v66
  %s70 = scalar_lea.vmem %s0, 6
  %s71 = smov 3
  %v72 = vld [vmem:[%s70] ss:$16 sm:%s71]
  %s73 = scalar_lea.vmem %s0, 6
  %s74 = smov 12
  %v75 = vld [vmem:[%s73] ss:$16 sm:%s74]
  %vm76 = vcmask 1043458
  %v77 = vsel %vm76, %v75, %v72
  %s78 = scalar_lea.vmem %s0, 6
  %s79 = smov 48
  %v80 = vld [vmem:[%s78] ss:$16 sm:%s79]
  %vm81 = vcmask 1045508
  %v82 = vsel %vm81, %v80, %v77
  %s83 = scalar_lea.vmem %s0, 630
  %s84 = smov 192
  %v85 = vld [vmem:[%s83] ss:$-88 sm:%s84]
  %vm86 = vcmask 1047558
  %v87 = vsel %vm86, %v85, %v82
  %88 = vrot.lane.b32.xlu0 %v87, 96
  %v89 = vpop.permute.xlu0 %88
  %vm90 = vcmask 917248
  %91 = vst.msk [vmem:[%s1] sm:$0x7f] %vm90, %v89
  %s92 = scalar_lea.vmem %s1, 1
  %93 = vst.msk [vmem:[%s92] sm:$0x80] %vm90, %v89
  %s94 = scalar_lea.vmem %s0, 30
  %s95 = smov 3
  %v96 = vld [vmem:[%s94] ss:$16 sm:%s95]
  %s97 = scalar_lea.vmem %s0, 30
  %s98 = smov 12
  %v99 = vld [vmem:[%s97] ss:$16 sm:%s98]
  %vm100 = vcmask 1043458
  %v101 = vsel %vm100, %v99, %v96
  %s102 = scalar_lea.vmem %s0, 30
  %s103 = smov 48
  %v104 = vld [vmem:[%s102] ss:$16 sm:%s103]
  %vm105 = vcmask 1045508
  %v106 = vsel %vm105, %v104, %v101
  %107 = vrot.lane.b32.xlu0 %v106, 96
  %v108 = vpop.permute.xlu0 %107
  %vm109 = vcmask 917248
  %s110 = scalar_lea.vmem %s1, 9
  %111 = vst.msk [vmem:[%s110] sm:$0x3f] %vm109, %v108
  %s112 = scalar_lea.vmem %s0, 5
  %s113 = smov 3
  %v114 = vld [vmem:[%s112] ss:$16 sm:%s113]
  %s115 = scalar_lea.vmem %s0, 5
  %s116 = smov 12
  %v117 = vld [vmem:[%s115] ss:$16 sm:%s116]
  %vm118 = vcmask 1043458
  %v119 = vsel %vm118, %v117, %v114
  %s120 = scalar_lea.vmem %s0, 5
  %s121 = smov 48
  %v122 = vld [vmem:[%s120] ss:$16 sm:%s121]
  %vm123 = vcmask 1045508
  %v124 = vsel %vm123, %v122, %v119
  %s125 = scalar_lea.vmem %s0, 629
  %s126 = smov 192
  %v127 = vld [vmem:[%s125] ss:$-88 sm:%s126]
  %vm128 = vcmask 1047558
  %v129 = vsel %vm128, %v127, %v124
  %130 = vrot.lane.b32.xlu0 %v129, 80
  %v131 = vpop.permute.xlu0 %130
  %vm132 = vcmask 786048
  %133 = vst.msk [vmem:[%s1] sm:$0x7f] %vm132, %v131
  %s134 = scalar_lea.vmem %s1, 1
  %135 = vst.msk [vmem:[%s134] sm:$0x80] %vm132, %v131
  %s136 = scalar_lea.vmem %s0, 29
  %s137 = smov 3
  %v138 = vld [vmem:[%s136] ss:$16 sm:%s137]
  %s139 = scalar_lea.vmem %s0, 29
  %s140 = smov 12
  %v141 = vld [vmem:[%s139] ss:$16 sm:%s140]
  %vm142 = vcmask 1043458
  %v143 = vsel %vm142, %v141, %v138
  %s144 = scalar_lea.vmem %s0, 29
  %s145 = smov 48
  %v146 = vld [vmem:[%s144] ss:$16 sm:%s145]
  %vm147 = vcmask 1045508
  %v148 = vsel %vm147, %v146, %v143
  %149 = vrot.lane.b32.xlu0 %v148, 80
  %v150 = vpop.permute.xlu0 %149
  %vm151 = vcmask 786048
  %s152 = scalar_lea.vmem %s1, 9
  %153 = vst.msk [vmem:[%s152] sm:$0x3f] %vm151, %v150
  %s154 = scalar_lea.vmem %s0, 4
  %s155 = smov 3
  %v156 = vld [vmem:[%s154] ss:$16 sm:%s155]
  %s157 = scalar_lea.vmem %s0, 4
  %s158 = smov 12
  %v159 = vld [vmem:[%s157] ss:$16 sm:%s158]
  %vm160 = vcmask 1043458
  %v161 = vsel %vm160, %v159, %v156
  %s162 = scalar_lea.vmem %s0, 4
  %s163 = smov 48
  %v164 = vld [vmem:[%s162] ss:$16 sm:%s163]
  %vm165 = vcmask 1045508
  %v166 = vsel %vm165, %v164, %v161
  %s167 = scalar_lea.vmem %s0, 628
  %s168 = smov 192
  %v169 = vld [vmem:[%s167] ss:$-88 sm:%s168]
  %vm170 = vcmask 1047558
  %v171 = vsel %vm170, %v169, %v166
  %172 = vrot.lane.b32.xlu0 %v171, 64
  %v173 = vpop.permute.xlu0 %172
  %vm174 = vcmask 654848
  %175 = vst.msk [vmem:[%s1] sm:$0x7f] %vm174, %v173
  %s176 = scalar_lea.vmem %s1, 1
  %177 = vst.msk [vmem:[%s176] sm:$0x80] %vm174, %v173
  %s178 = scalar_lea.vmem %s0, 28
  %s179 = smov 3
  %v180 = vld [vmem:[%s178] ss:$16 sm:%s179]
  %s181 = scalar_lea.vmem %s0, 28
  %s182 = smov 12
  %v183 = vld [vmem:[%s181] ss:$16 sm:%s182]
  %vm184 = vcmask 1043458
  %v185 = vsel %vm184, %v183, %v180
  %s186 = scalar_lea.vmem %s0, 28
  %s187 = smov 48
  %v188 = vld [vmem:[%s186] ss:$16 sm:%s187]
  %vm189 = vcmask 1045508
  %v190 = vsel %vm189, %v188, %v185
  %191 = vrot.lane.b32.xlu0 %v190, 64
  %v192 = vpop.permute.xlu0 %191
  %vm193 = vcmask 654848
  %s194 = scalar_lea.vmem %s1, 9
  %195 = vst.msk [vmem:[%s194] sm:$0x3f] %vm193, %v192
  %s196 = scalar_lea.vmem %s0, 3
  %s197 = smov 3
  %v198 = vld [vmem:[%s196] ss:$16 sm:%s197]
  %s199 = scalar_lea.vmem %s0, 3
  %s200 = smov 12
  %v201 = vld [vmem:[%s199] ss:$16 sm:%s200]
  %vm202 = vcmask 1043458
  %v203 = vsel %vm202, %v201, %v198
  %s204 = scalar_lea.vmem %s0, 3
  %s205 = smov 48
  %v206 = vld [vmem:[%s204] ss:$16 sm:%s205]
  %vm207 = vcmask 1045508
  %v208 = vsel %vm207, %v206, %v203
  %s209 = scalar_lea.vmem %s0, 627
  %s210 = smov 192
  %v211 = vld [vmem:[%s209] ss:$-88 sm:%s210]
  %vm212 = vcmask 1047558
  %v213 = vsel %vm212, %v211, %v208
  %214 = vrot.lane.b32.xlu0 %v213, 48
  %v215 = vpop.permute.xlu0 %214
  %vm216 = vcmask 523648
  %217 = vst.msk [vmem:[%s1] sm:$0x7f] %vm216, %v215
  %s218 = scalar_lea.vmem %s1, 1
  %219 = vst.msk [vmem:[%s218] sm:$0x80] %vm216, %v215
  %s220 = scalar_lea.vmem %s0, 27
  %s221 = smov 3
  %v222 = vld [vmem:[%s220] ss:$16 sm:%s221]
  %s223 = scalar_lea.vmem %s0, 27
  %s224 = smov 12
  %v225 = vld [vmem:[%s223] ss:$16 sm:%s224]
  %vm226 = vcmask 1043458
  %v227 = vsel %vm226, %v225, %v222
  %s228 = scalar_lea.vmem %s0, 27
  %s229 = smov 48
  %v230 = vld [vmem:[%s228] ss:$16 sm:%s229]
  %vm231 = vcmask 1045508
  %v232 = vsel %vm231, %v230, %v227
  %233 = vrot.lane.b32.xlu0 %v232, 48
  %v234 = vpop.permute.xlu0 %233
  %vm235 = vcmask 523648
  %s236 = scalar_lea.vmem %s1, 9
  %237 = vst.msk [vmem:[%s236] sm:$0x3f] %vm235, %v234
  %s238 = scalar_lea.vmem %s0, 2
  %s239 = smov 3
  %v240 = vld [vmem:[%s238] ss:$16 sm:%s239]
  %s241 = scalar_lea.vmem %s0, 2
  %s242 = smov 12
  %v243 = vld [vmem:[%s241] ss:$16 sm:%s242]
  %vm244 = vcmask 1043458
  %v245 = vsel %vm244, %v243, %v240
  %s246 = scalar_lea.vmem %s0, 2
  %s247 = smov 48
  %v248 = vld [vmem:[%s246] ss:$16 sm:%s247]
  %vm249 = vcmask 1045508
  %v250 = vsel %vm249, %v248, %v245
  %s251 = scalar_lea.vmem %s0, 626
  %s252 = smov 192
  %v253 = vld [vmem:[%s251] ss:$-88 sm:%s252]
  %vm254 = vcmask 1047558
  %v255 = vsel %vm254, %v253, %v250
  %256 = vrot.lane.b32.xlu0 %v255, 32
  %v257 = vpop.permute.xlu0 %256
  %vm258 = vcmask 392448
  %259 = vst.msk [vmem:[%s1] sm:$0x7f] %vm258, %v257
  %s260 = scalar_lea.vmem %s1, 1
  %261 = vst.msk [vmem:[%s260] sm:$0x80] %vm258, %v257
  %s262 = scalar_lea.vmem %s0, 26
  %s263 = smov 3
  %v264 = vld [vmem:[%s262] ss:$16 sm:%s263]
  %s265 = scalar_lea.vmem %s0, 26
  %s266 = smov 12
  %v267 = vld [vmem:[%s265] ss:$16 sm:%s266]
  %vm268 = vcmask 1043458
  %v269 = vsel %vm268, %v267, %v264
  %s270 = scalar_lea.vmem %s0, 26
  %s271 = smov 48
  %v272 = vld [vmem:[%s270] ss:$16 sm:%s271]
  %vm273 = vcmask 1045508
  %v274 = vsel %vm273, %v272, %v269
  %275 = vrot.lane.b32.xlu0 %v274, 32
  %v276 = vpop.permute.xlu0 %275
  %vm277 = vcmask 392448
  %s278 = scalar_lea.vmem %s1, 9
  %279 = vst.msk [vmem:[%s278] sm:$0x3f] %vm277, %v276
  %s280 = scalar_lea.vmem %s0, 1
  %s281 = smov 3
  %v282 = vld [vmem:[%s280] ss:$16 sm:%s281]
  %s283 = scalar_lea.vmem %s0, 1
  %s284 = smov 12
  %v285 = vld [vmem:[%s283] ss:$16 sm:%s284]
  %vm286 = vcmask 1043458
  %v287 = vsel %vm286, %v285, %v282
  %s288 = scalar_lea.vmem %s0, 1
  %s289 = smov 48
  %v290 = vld [vmem:[%s288] ss:$16 sm:%s289]
  %vm291 = vcmask 1045508
  %v292 = vsel %vm291, %v290, %v287
  %s293 = scalar_lea.vmem %s0, 625
  %s294 = smov 192
  %v295 = vld [vmem:[%s293] ss:$-88 sm:%s294]
  %vm296 = vcmask 1047558
  %v297 = vsel %vm296, %v295, %v292
  %298 = vrot.lane.b32.xlu0 %v297, 16
  %v299 = vpop.permute.xlu0 %298
  %vm300 = vcmask 261248
  %301 = vst.msk [vmem:[%s1] sm:$0x7f] %vm300, %v299
  %s302 = scalar_lea.vmem %s1, 1
  %303 = vst.msk [vmem:[%s302] sm:$0x80] %vm300, %v299
  %s304 = scalar_lea.vmem %s0, 25
  %s305 = smov 3
  %v306 = vld [vmem:[%s304] ss:$16 sm:%s305]
  %s307 = scalar_lea.vmem %s0, 25
  %s308 = smov 12
  %v309 = vld [vmem:[%s307] ss:$16 sm:%s308]
  %vm310 = vcmask 1043458
  %v311 = vsel %vm310, %v309, %v306
  %s312 = scalar_lea.vmem %s0, 25
  %s313 = smov 48
  %v314 = vld [vmem:[%s312] ss:$16 sm:%s313]
  %vm315 = vcmask 1045508
  %v316 = vsel %vm315, %v314, %v311
  %317 = vrot.lane.b32.xlu0 %v316, 16
  %v318 = vpop.permute.xlu0 %317
  %vm319 = vcmask 261248
  %s320 = scalar_lea.vmem %s1, 9
  %321 = vst.msk [vmem:[%s320] sm:$0x3f] %vm319, %v318

// kernel: gcn_forward.1
$region0: #{gcn_forward.1}
  #allocation0 [shape = 'u32[]', space=smem, size = 0x4, offset = 0x4, fixed_abs, tag = 'smem constant byte address 0x4 - core index']
  #allocation1 [shape = 'u32[72,128]{1,0:T(1,128)}', space=vmem, size = 0x9000, scoped, tag = 'internal scratch']
  #allocation2 [shape = 'f32[8,512]{1,0:T(8,128)}', space=vmem, size = 0x4000, scoped, tag = 'scratch operand']
  #allocation3 [shape = 'f32[8,352]{1,0:T(8,128)}', space=vmem, size = 0x3000, scoped, tag = 'scratch operand']
  %s0 = inlined_call_operand.vmem [shape: f32[2,8,358], index: 0, kind: input, shape index: {}]
  %s1 = inlined_call_operand.vmem [shape: f32[7,8,8], index: 1, kind: input, shape index: {}]
  %s2 = inlined_call_operand.vmem [shape: f32[7,8,8], index: 2, kind: input, shape index: {}]
  %s3 = inlined_call_operand.vmem [shape: f32[7,8,8], index: 3, kind: input, shape index: {}]
  %s4 = inlined_call_operand.vmem [shape: f32[7,8,8], index: 4, kind: input, shape index: {}]
  %s5 = inlined_call_operand.vmem [shape: f32[8,1], index: 5, kind: input, shape index: {}]
  %s6 = inlined_call_operand.vmem [shape: f32[8,1], index: 6, kind: input, shape index: {}]
  %s7 = inlined_call_operand.vmem [shape: f32[8,1], index: 7, kind: input, shape index: {}]
  %s8 = inlined_call_operand.vmem [shape: f32[8,1], index: 8, kind: input, shape index: {}]
  %s9 = inlined_call_operand.vmem [shape: f32[7,256], index: 9, kind: input, shape index: {}]
  %s10 = inlined_call_operand.vmem [shape: f32[1,352], index: 10, kind: input, shape index: {}]
  %s11 = inlined_call_operand.vmem [shape: f32[2,8,256], index: 11, kind: output, shape index: {}]
  %s12 = sld [smem:[#allocation0]]
  $region77: #{gcn_forward.1} parent=0
    _
  %s14 = ssub.s32 1, %s12
  %s15 = scalar_select 0, %s14, %s12
  loop: start=0, step=1, limit=4
  $region2: #{gcn_forward.1} parent=0 // loop_pre_header
    _
  $region3: #{gcn_forward.1} parent=0 // loop_header
    %s17 = sphi 0, %s21
    %p18 = scmp.ge.s32.totalorder %s17, 4
    %s27 = sphi 0, %s29
    %s30 = sphi 0, %s27
    %s31 = sphi 0, %s30
    %s47 = sphi 0, %s31
    %s51 = sphi 0, %s51
    %s53 = sphi 0, %s51
    %s54 = sphi 0, %s53
    %s68 = sphi 0, %s54
    %s72 = sphi 0, %s72
    %s74 = sphi 0, %s72
    %s75 = sphi 0, %s74
    %s89 = sphi 0, %s75
    %s93 = sphi 0, %s93
    %s95 = sphi 0, %s93
    %s96 = sphi 0, %s95
    %s110 = sphi 0, %s96
    %s114 = sphi 0, %s114
    %s116 = sphi 0, %s114
    %s117 = sphi 0, %s116
    %s131 = sphi 0, %s117
    %s135 = sphi 0, %s135
    %s137 = sphi 0, %s135
    %s138 = sphi 0, %s137
    %s152 = sphi 0, %s138
    %s156 = sphi 0, %s156
    %s158 = sphi 0, %s156
    %s159 = sphi 0, %s158
    %s173 = sphi 0, %s159
    %s177 = sphi 0, %s177
    %s179 = sphi 0, %s177
    %s180 = sphi 0, %s179
    %s194 = sphi 0, %s180
    %s198 = sphi 0, %s198
    %s200 = sphi 0, %s198
    %s201 = sphi 0, %s200
    %s215 = sphi 0, %s201
    %s219 = sphi 0, %s219
    %s221 = sphi 0, %s219
    %s222 = sphi 0, %s221
    %s236 = sphi 0, %s222
    %s240 = sphi 0, %s240
    %s242 = sphi 0, %s240
    %s243 = sphi 0, %s242
    %s257 = sphi 0, %s243
    %s263 = sphi 0, %s265
    %s266 = sphi 0, %s263
    %s267 = sphi 0, %s266
    %s283 = sphi 0, %s267
  $region4: #{gcn_forward.1} parent=0 // loop_header_branch
    %20 = sbr.rel (%p18) target = $region8
  $region5: #{gcn_forward.1} parent=0 // loop_body
    %s22 = ssub.s32 %s17, 1
    %s23 = ssub.s32 %s17, 2
    %s24 = sadd.s32 %s17, 1
    %s25 = ssub.s32 %s17, %s24
    %p26 = scmp.eq.s32.totalorder %s25, 0
    %s28 = sadd.s32 %s27, 1
    %s29 = scalar_select %p26, %s27, %s28
    %p32 = pneg %p26
    %p33 = scmp.eq.s32.totalorder %s17, 1
    %p34 = por %p32, %p33
    %p35 = scmp.ne.s32.totalorder %s27, %s30
    %p36 = scmp.eq.s32.totalorder %s17, 0
    %p37 = por %p35, %p36
    %p38 = scmp.ne.s32.totalorder %s27, %s30
    %p39 = scmp.eq.s32.totalorder %s22, 1
    %p40 = por %p38, %p39
    %p41 = scmp.ne.s32.totalorder %s30, %s31
    %p42 = scmp.eq.s32.totalorder %s22, 0
    %p43 = por %p41, %p42
    %p44 = scmp.ne.s32.totalorder %s30, %s31
    %p45 = scmp.eq.s32.totalorder %s23, 1
    %p46 = por %p44, %p45
    %p48 = scmp.ne.s32.totalorder %s31, %s47
    %p49 = scmp.eq.s32.totalorder %s23, 0
    %p50 = por %p48, %p49
    %s52 = sadd.s32 %s51, 1
    %p55 = scmp.eq.s32.totalorder %s17, 1
    %p56 = scmp.ne.s32.totalorder %s51, %s53
    %p57 = scmp.eq.s32.totalorder %s17, 0
    %p58 = por %p56, %p57
    %p59 = scmp.ne.s32.totalorder %s51, %s53
    %p60 = scmp.eq.s32.totalorder %s22, 1
    %p61 = por %p59, %p60
    %p62 = scmp.ne.s32.totalorder %s53, %s54
    %p63 = scmp.eq.s32.totalorder %s22, 0
    %p64 = por %p62, %p63
    %p65 = scmp.ne.s32.totalorder %s53, %s54
    %p66 = scmp.eq.s32.totalorder %s23, 1
    %p67 = por %p65, %p66
    %p69 = scmp.ne.s32.totalorder %s54, %s68
    %p70 = scmp.eq.s32.totalorder %s23, 0
    %p71 = por %p69, %p70
    %s73 = sadd.s32 %s72, 1
    %p76 = scmp.eq.s32.totalorder %s17, 1
    %p77 = scmp.ne.s32.totalorder %s72, %s74
    %p78 = scmp.eq.s32.totalorder %s17, 0
    %p79 = por %p77, %p78
    %p80 = scmp.ne.s32.totalorder %s72, %s74
    %p81 = scmp.eq.s32.totalorder %s22, 1
    %p82 = por %p80, %p81
    %p83 = scmp.ne.s32.totalorder %s74, %s75
    %p84 = scmp.eq.s32.totalorder %s22, 0
    %p85 = por %p83, %p84
    %p86 = scmp.ne.s32.totalorder %s74, %s75
    %p87 = scmp.eq.s32.totalorder %s23, 1
    %p88 = por %p86, %p87
    %p90 = scmp.ne.s32.totalorder %s75, %s89
    %p91 = scmp.eq.s32.totalorder %s23, 0
    %p92 = por %p90, %p91
    %s94 = sadd.s32 %s93, 1
    %p97 = scmp.eq.s32.totalorder %s17, 1
    %p98 = scmp.ne.s32.totalorder %s93, %s95
    %p99 = scmp.eq.s32.totalorder %s17, 0
    %p100 = por %p98, %p99
    %p101 = scmp.ne.s32.totalorder %s93, %s95
    %p102 = scmp.eq.s32.totalorder %s22, 1
    %p103 = por %p101, %p102
    %p104 = scmp.ne.s32.totalorder %s95, %s96
    %p105 = scmp.eq.s32.totalorder %s22, 0
    %p106 = por %p104, %p105
    %p107 = scmp.ne.s32.totalorder %s95, %s96
    %p108 = scmp.eq.s32.totalorder %s23, 1
    %p109 = por %p107, %p108
    %p111 = scmp.ne.s32.totalorder %s96, %s110
    %p112 = scmp.eq.s32.totalorder %s23, 0
    %p113 = por %p111, %p112
    %s115 = sadd.s32 %s114, 1
    %p118 = scmp.eq.s32.totalorder %s17, 1
    %p119 = scmp.ne.s32.totalorder %s114, %s116
    %p120 = scmp.eq.s32.totalorder %s17, 0
    %p121 = por %p119, %p120
    %p122 = scmp.ne.s32.totalorder %s114, %s116
    %p123 = scmp.eq.s32.totalorder %s22, 1
    %p124 = por %p122, %p123
    %p125 = scmp.ne.s32.totalorder %s116, %s117
    %p126 = scmp.eq.s32.totalorder %s22, 0
    %p127 = por %p125, %p126
    %p128 = scmp.ne.s32.totalorder %s116, %s117
    %p129 = scmp.eq.s32.totalorder %s23, 1
    %p130 = por %p128, %p129
    %p132 = scmp.ne.s32.totalorder %s117, %s131
    %p133 = scmp.eq.s32.totalorder %s23, 0
    %p134 = por %p132, %p133
    %s136 = sadd.s32 %s135, 1
    %p139 = scmp.eq.s32.totalorder %s17, 1
    %p140 = scmp.ne.s32.totalorder %s135, %s137
    %p141 = scmp.eq.s32.totalorder %s17, 0
    %p142 = por %p140, %p141
    %p143 = scmp.ne.s32.totalorder %s135, %s137
    %p144 = scmp.eq.s32.totalorder %s22, 1
    %p145 = por %p143, %p144
    %p146 = scmp.ne.s32.totalorder %s137, %s138
    %p147 = scmp.eq.s32.totalorder %s22, 0
    %p148 = por %p146, %p147
    %p149 = scmp.ne.s32.totalorder %s137, %s138
    %p150 = scmp.eq.s32.totalorder %s23, 1
    %p151 = por %p149, %p150
    %p153 = scmp.ne.s32.totalorder %s138, %s152
    %p154 = scmp.eq.s32.totalorder %s23, 0
    %p155 = por %p153, %p154
    %s157 = sadd.s32 %s156, 1
    %p160 = scmp.eq.s32.totalorder %s17, 1
    %p161 = scmp.ne.s32.totalorder %s156, %s158
    %p162 = scmp.eq.s32.totalorder %s17, 0
    %p163 = por %p161, %p162
    %p164 = scmp.ne.s32.totalorder %s156, %s158
    %p165 = scmp.eq.s32.totalorder %s22, 1
    %p166 = por %p164, %p165
    %p167 = scmp.ne.s32.totalorder %s158, %s159
    %p168 = scmp.eq.s32.totalorder %s22, 0
    %p169 = por %p167, %p168
    %p170 = scmp.ne.s32.totalorder %s158, %s159
    %p171 = scmp.eq.s32.totalorder %s23, 1
    %p172 = por %p170, %p171
    %p174 = scmp.ne.s32.totalorder %s159, %s173
    %p175 = scmp.eq.s32.totalorder %s23, 0
    %p176 = por %p174, %p175
    %s178 = sadd.s32 %s177, 1
    %p181 = scmp.eq.s32.totalorder %s17, 1
    %p182 = scmp.ne.s32.totalorder %s177, %s179
    %p183 = scmp.eq.s32.totalorder %s17, 0
    %p184 = por %p182, %p183
    %p185 = scmp.ne.s32.totalorder %s177, %s179
    %p186 = scmp.eq.s32.totalorder %s22, 1
    %p187 = por %p185, %p186
    %p188 = scmp.ne.s32.totalorder %s179, %s180
    %p189 = scmp.eq.s32.totalorder %s22, 0
    %p190 = por %p188, %p189
    %p191 = scmp.ne.s32.totalorder %s179, %s180
    %p192 = scmp.eq.s32.totalorder %s23, 1
    %p193 = por %p191, %p192
    %p195 = scmp.ne.s32.totalorder %s180, %s194
    %p196 = scmp.eq.s32.totalorder %s23, 0
    %p197 = por %p195, %p196
    %s199 = sadd.s32 %s198, 1
    %p202 = scmp.eq.s32.totalorder %s17, 1
    %p203 = scmp.ne.s32.totalorder %s198, %s200
    %p204 = scmp.eq.s32.totalorder %s17, 0
    %p205 = por %p203, %p204
    %p206 = scmp.ne.s32.totalorder %s198, %s200
    %p207 = scmp.eq.s32.totalorder %s22, 1
    %p208 = por %p206, %p207
    %p209 = scmp.ne.s32.totalorder %s200, %s201
    %p210 = scmp.eq.s32.totalorder %s22, 0
    %p211 = por %p209, %p210
    %p212 = scmp.ne.s32.totalorder %s200, %s201
    %p213 = scmp.eq.s32.totalorder %s23, 1
    %p214 = por %p212, %p213
    %p216 = scmp.ne.s32.totalorder %s201, %s215
    %p217 = scmp.eq.s32.totalorder %s23, 0
    %p218 = por %p216, %p217
    %s220 = sadd.s32 %s219, 1
    %p223 = scmp.eq.s32.totalorder %s17, 1
    %p224 = scmp.ne.s32.totalorder %s219, %s221
    %p225 = scmp.eq.s32.totalorder %s17, 0
    %p226 = por %p224, %p225
    %p227 = scmp.ne.s32.totalorder %s219, %s221
    %p228 = scmp.eq.s32.totalorder %s22, 1
    %p229 = por %p227, %p228
    %p230 = scmp.ne.s32.totalorder %s221, %s222
    %p231 = scmp.eq.s32.totalorder %s22, 0
    %p232 = por %p230, %p231
    %p233 = scmp.ne.s32.totalorder %s221, %s222
    %p234 = scmp.eq.s32.totalorder %s23, 1
    %p235 = por %p233, %p234
    %p237 = scmp.ne.s32.totalorder %s222, %s236
    %p238 = scmp.eq.s32.totalorder %s23, 0
    %p239 = por %p237, %p238
    %s241 = sadd.s32 %s240, 1
    %p244 = scmp.eq.s32.totalorder %s17, 1
    %p245 = scmp.ne.s32.totalorder %s240, %s242
    %p246 = scmp.eq.s32.totalorder %s17, 0
    %p247 = por %p245, %p246
    %p248 = scmp.ne.s32.totalorder %s240, %s242
    %p249 = scmp.eq.s32.totalorder %s22, 1
    %p250 = por %p248, %p249
    %p251 = scmp.ne.s32.totalorder %s242, %s243
    %p252 = scmp.eq.s32.totalorder %s22, 0
    %p253 = por %p251, %p252
    %p254 = scmp.ne.s32.totalorder %s242, %s243
    %p255 = scmp.eq.s32.totalorder %s23, 1
    %p256 = por %p254, %p255
    %p258 = scmp.ne.s32.totalorder %s243, %s257
    %p259 = scmp.eq.s32.totalorder %s23, 0
    %p260 = por %p258, %p259
    %s261 = ssub.s32 %s17, %s24
    %p262 = scmp.eq.s32.totalorder %s261, 0
    %s264 = sadd.s32 %s263, 1
    %s265 = scalar_select %p262, %s263, %s264
    %p268 = pneg %p262
    %p269 = scmp.eq.s32.totalorder %s17, 1
    %p270 = por %p268, %p269
    %p271 = scmp.ne.s32.totalorder %s263, %s266
    %p272 = scmp.eq.s32.totalorder %s17, 0
    %p273 = por %p271, %p272
    %p274 = scmp.ne.s32.totalorder %s263, %s266
    %p275 = scmp.eq.s32.totalorder %s22, 1
    %p276 = por %p274, %p275
    %p277 = scmp.ne.s32.totalorder %s266, %s267
    %p278 = scmp.eq.s32.totalorder %s22, 0
    %p279 = por %p277, %p278
    %p280 = scmp.ne.s32.totalorder %s266, %s267
    %p281 = scmp.eq.s32.totalorder %s23, 1
    %p282 = por %p280, %p281
    %p284 = scmp.ne.s32.totalorder %s267, %s283
    %p285 = scmp.eq.s32.totalorder %s23, 0
    %p286 = por %p284, %p285
    %p287 = scmp.le.s32.totalorder 1, %s17
    %p288 = scmp.lt.s32.totalorder %s17, 3
    %p289 = pnand %p287, %p288
    %p290 = pneg %p289
    // Predicated region
    $region9: #{gcn_forward.1} parent=5 // pred_check
      _
    $region10: #{gcn_forward.1} parent=5 // pred_check_branch
      %292 = sbr.rel (%p289) target = $region12
    $region11: #{gcn_forward.1} parent=5 // pred_region
      %s293 = ssub.s32 %s17, 1
      // Predicated region
      $region13: #{gcn_forward.1} parent=11 // pred_check
        %p294 = pneg %p64
      $region14: #{gcn_forward.1} parent=11 // pred_check_branch
        %296 = sbr.rel (%p294) target = $region16
      $region15: #{gcn_forward.1} parent=11 // pred_region
        _
      $region16: #{gcn_forward.1} parent=11 // pred_fallthru
        _
      // Predicated region
      $region17: #{gcn_forward.1} parent=11 // pred_check
        %p297 = pneg %p85
      $region18: #{gcn_forward.1} parent=11 // pred_check_branch
        %299 = sbr.rel (%p297) target = $region20
      $region19: #{gcn_forward.1} parent=11 // pred_region
        _
      $region20: #{gcn_forward.1} parent=11 // pred_fallthru
        _
      // Predicated region
      $region21: #{gcn_forward.1} parent=11 // pred_check
        %p300 = pneg %p106
      $region22: #{gcn_forward.1} parent=11 // pred_check_branch
        %302 = sbr.rel (%p300) target = $region24
      $region23: #{gcn_forward.1} parent=11 // pred_region
        _
      $region24: #{gcn_forward.1} parent=11 // pred_fallthru
        _
      // Predicated region
      $region25: #{gcn_forward.1} parent=11 // pred_check
        %p303 = pneg %p127
      $region26: #{gcn_forward.1} parent=11 // pred_check_branch
        %305 = sbr.rel (%p303) target = $region28
      $region27: #{gcn_forward.1} parent=11 // pred_region
        _
      $region28: #{gcn_forward.1} parent=11 // pred_fallthru
        _
      // Predicated region
      $region29: #{gcn_forward.1} parent=11 // pred_check
        %p306 = pneg %p148
      $region30: #{gcn_forward.1} parent=11 // pred_check_branch
        %308 = sbr.rel (%p306) target = $region32
      $region31: #{gcn_forward.1} parent=11 // pred_region
        _
      $region32: #{gcn_forward.1} parent=11 // pred_fallthru
        _
      // Predicated region
      $region33: #{gcn_forward.1} parent=11 // pred_check
        %p309 = pneg %p169
      $region34: #{gcn_forward.1} parent=11 // pred_check_branch
        %311 = sbr.rel (%p309) target = $region36
      $region35: #{gcn_forward.1} parent=11 // pred_region
        _
      $region36: #{gcn_forward.1} parent=11 // pred_fallthru
        _
      // Predicated region
      $region37: #{gcn_forward.1} parent=11 // pred_check
        %p312 = pneg %p190
      $region38: #{gcn_forward.1} parent=11 // pred_check_branch
        %314 = sbr.rel (%p312) target = $region40
      $region39: #{gcn_forward.1} parent=11 // pred_region
        _
      $region40: #{gcn_forward.1} parent=11 // pred_fallthru
        _
      // Predicated region
      $region41: #{gcn_forward.1} parent=11 // pred_check
        %p315 = pneg %p211
      $region42: #{gcn_forward.1} parent=11 // pred_check_branch
        %317 = sbr.rel (%p315) target = $region44
      $region43: #{gcn_forward.1} parent=11 // pred_region
        _
      $region44: #{gcn_forward.1} parent=11 // pred_fallthru
        _
      // Predicated region
      $region45: #{gcn_forward.1} parent=11 // pred_check
        %p318 = pneg %p232
      $region46: #{gcn_forward.1} parent=11 // pred_check_branch
        %320 = sbr.rel (%p318) target = $region48
      $region47: #{gcn_forward.1} parent=11 // pred_region
        _
      $region48: #{gcn_forward.1} parent=11 // pred_fallthru
        _
      // Predicated region
      $region49: #{gcn_forward.1} parent=11 // pred_check
        %p321 = pneg %p253
      $region50: #{gcn_forward.1} parent=11 // pred_check_branch
        %323 = sbr.rel (%p321) target = $region52
      $region51: #{gcn_forward.1} parent=11 // pred_region
        _
      $region52: #{gcn_forward.1} parent=11 // pred_fallthru
        _
    $region12: #{gcn_forward.1} parent=5 // pred_fallthru
      _
    %p324 = scmp.lt.s32.totalorder %s17, 2
    // Predicated region
    $region53: #{gcn_forward.1} parent=5 // pred_check
      %p325 = pneg %p324
    $region54: #{gcn_forward.1} parent=5 // pred_check_branch
      %327 = sbr.rel (%p325) target = $region56
    $region55: #{gcn_forward.1} parent=5 // pred_region
      // Predicated region
      $region57: #{gcn_forward.1} parent=55 // pred_check
        %p328 = pneg %p37
      $region58: #{gcn_forward.1} parent=55 // pred_check_branch
        %330 = sbr.rel (%p328) target = $region60
      $region59: #{gcn_forward.1} parent=55 // pred_region
        %p331 = scmp.lt.s32.totalorder %s17, 1
        %s332 = scalar_select %p331, %s17, 1
        %s333 = smul.addr %s332, 3
        %s334 = smul.addr %s333, 8
        %s335 = scalar_lea.vmem %s0, %s334
      $region60: #{gcn_forward.1} parent=55 // pred_fallthru
        _
    $region56: #{gcn_forward.1} parent=5 // pred_fallthru
      _
    %p336 = scmp.le.s32.totalorder 1, %s17
    %p337 = scmp.lt.s32.totalorder %s17, 3
    %p338 = pnand %p336, %p337
    %p339 = pneg %p338
    // Predicated region
    $region61: #{gcn_forward.1} parent=5 // pred_check
      _
    $region62: #{gcn_forward.1} parent=5 // pred_check_branch
      %341 = sbr.rel (%p338) target = $region64
    $region63: #{gcn_forward.1} parent=5 // pred_region
      %s342 = ssub.s32 %s17, 1
      %p343 = scmp.lt.s32.totalorder %s22, 1
      %s344 = scalar_select %p343, %s22, 1
      %s345 = smul.addr %s344, 3
      %s346 = smul.addr %s345, 8
      %s347 = scalar_lea.vmem %s0, %s346
      %p348 = pneg %p43
      %p349 = pneg %p40
      %p350 = pneg %p64
      %p351 = pneg %p61
      %p352 = pneg %p85
      %p353 = pneg %p82
      %p354 = pneg %p106
      %p355 = pneg %p103
      %p356 = pneg %p127
      %p357 = pneg %p124
      %p358 = pneg %p148
      %p359 = pneg %p145
      %p360 = pneg %p169
      %p361 = pneg %p166
      %p362 = pneg %p190
      %p363 = pneg %p187
      %p364 = pneg %p211
      %p365 = pneg %p208
      %p366 = pneg %p232
      %p367 = pneg %p229
      %p368 = pneg %p253
      %p369 = pneg %p250
      %p370 = pneg %p279
      %p371 = pneg %p276
      %p372 = scmp.lt.s32.totalorder %s22, 1
      %s373 = scalar_select %p372, %s22, 1
      %s374 = smul.addr %s373, 2
      %s375 = smul.addr %s374, 8
      %s376 = scalar_lea.vmem %s11, %s375
      %p377 = scmp.lt.s32.totalorder %s22, 1
      %s378 = scalar_select %p377, %s22, 1
      %s379 = smul.addr %s378, 3
      %s380 = smul.addr %s379, 8
      %s381 = scalar_lea.vmem %s0, %s380
      %p382 = scmp.lt.s32.totalorder %s22, 1
      %s383 = scalar_select %p382, %s22, 1
      %s384 = smul.addr %s383, 2
      %s385 = smul.addr %s384, 8
      %s386 = scalar_lea.vmem %s11, %s385
      %v387 = vld [vmem:[%s5] sm:$0xff]
      %389 = vset.pattern.permute.xlu0 0
      %390 = vperm.xlu0 %389, %v387
      %v391 = vpop.permute.xlu0 %390
      %v393 = vadd.f32 %v391, 0.0
      %v394 = vld [vmem:[%s381] sm:$0xff]
      %v395 = vld [vmem:[%s381 + $0x8] sm:$0xff]
      %v396 = vld [vmem:[%s381 + $0x10] sm:$0xff]
      %v397 = vld [vmem:[%s1] sm:$0xff]
      %401 = vrot.lane.b32.xlu0 %v394, 125
      %v402 = vpop.permute.xlu0 %401
      %403 = vrot.lane.b32.xlu0 %v395, 125
      %v404 = vpop.permute.xlu0 %403
      %405 = vrot.lane.b32.xlu0 %v396, 125
      %v406 = vpop.permute.xlu0 %405
      %vm407 = vcmask 1022976
      %v408 = vsel %vm407, %v402, %v404
      %v409 = vsel %vm407, %v404, %v406
      %vm412 = vcmask 64512
      %v414 = vsel %vm412, %v397, 0
      %416 = vmatpush.msra.mxu0 0.0
      %417 = vmatpush.msra.mxu0 0.0
      %418 = vmatpush.msra.mxu0 0.0
      %419 = vmatpush.msra.mxu0 0.0
      %420 = vmatpush.msra.mxu0 0.0
      %421 = vmatpush.msra.mxu0 0.0
      %422 = vmatpush.msra.mxu0 0.0
      %423 = vmatpush.msra.mxu0 0.0
      %424 = vmatpush.msra.mxu0 0.0
      %425 = vmatpush.msra.mxu0 0.0
      %426 = vmatpush.msra.mxu0 0.0
      %427 = vmatpush.msra.mxu0 0.0
      %428 = vmatpush.msra.mxu0 0.0
      %429 = vmatpush.msra.mxu0 0.0
      %430 = vmatpush.msra.mxu0 0.0
      %v431 = vand.u32 %v408, 4294901760
      %432 = vmatpush.msra.mxu0 %v431
      %v433 = vand.u32 %v414, 4294901760
      %v434 = vsub.f32 %v414, %v433
      %v435 = vand.u32 %v434, 4294901760
      %v436 = vsub.f32 %v434, %v435
      %v437 = vand.u32 %v436, 4294901760
      %438 = vmatmul.f32.gmra.mxu0 %v437
      %v439 = vpop.f32.mrf.mxu0
      %v440 = vadd.f32 0.0, %v439
      %441 = vdwg.mxu0
      %442 = vmatpush.msra.mxu0 0.0
      %443 = vmatpush.msra.mxu0 0.0
      %444 = vmatpush.msra.mxu0 0.0
      %445 = vmatpush.msra.mxu0 0.0
      %446 = vmatpush.msra.mxu0 0.0
      %447 = vmatpush.msra.mxu0 0.0
      %448 = vmatpush.msra.mxu0 0.0
      %449 = vmatpush.msra.mxu0 0.0
      %450 = vmatpush.msra.mxu0 0.0
      %451 = vmatpush.msra.mxu0 0.0
      %452 = vmatpush.msra.mxu0 0.0
      %453 = vmatpush.msra.mxu0 0.0
      %454 = vmatpush.msra.mxu0 0.0
      %455 = vmatpush.msra.mxu0 0.0
      %456 = vmatpush.msra.mxu0 0.0
      %v457 = vand.u32 %v408, 4294901760
      %v458 = vsub.f32 %v408, %v457
      %v459 = vand.u32 %v458, 4294901760
      %v460 = vsub.f32 %v458, %v459
      %v461 = vand.u32 %v460, 4294901760
      %462 = vmatpush.msra.mxu0 %v461
      %v463 = vand.u32 %v414, 4294901760
      %464 = vmatmul.f32.gmra.mxu0 %v463
      %v465 = vpop.f32.mrf.mxu0
      %v466 = vadd.f32 %v440, %v465
      %467 = vdwg.mxu0
      %468 = vmatpush.msra.mxu0 0.0
      %469 = vmatpush.msra.mxu0 0.0
      %470 = vmatpush.msra.mxu0 0.0
      %471 = vmatpush.msra.mxu0 0.0
      %472 = vmatpush.msra.mxu0 0.0
      %473 = vmatpush.msra.mxu0 0.0
      %474 = vmatpush.msra.mxu0 0.0
      %475 = vmatpush.msra.mxu0 0.0
      %476 = vmatpush.msra.mxu0 0.0
      %477 = vmatpush.msra.mxu0 0.0
      %478 = vmatpush.msra.mxu0 0.0
      %479 = vmatpush.msra.mxu0 0.0
      %480 = vmatpush.msra.mxu0 0.0
      %481 = vmatpush.msra.mxu0 0.0
      %482 = vmatpush.msra.mxu0 0.0
      %v483 = vand.u32 %v408, 4294901760
      %v484 = vsub.f32 %v408, %v483
      %485 = vmatpush.msra.mxu0 %v484
      %v486 = vand.u32 %v414, 4294901760
      %v487 = vsub.f32 %v414, %v486
      %488 = vmatmul.f32.gmra.mxu0 %v487
      %v489 = vpop.f32.mrf.mxu0
      %v490 = vadd.f32 %v466, %v489
      %491 = vdwg.mxu0
      %492 = vmatpush.msra.mxu0 0.0
      %493 = vmatpush.msra.mxu0 0.0
      %494 = vmatpush.msra.mxu0 0.0
      %495 = vmatpush.msra.mxu0 0.0
      %496 = vmatpush.msra.mxu0 0.0
      %497 = vmatpush.msra.mxu0 0.0
      %498 = vmatpush.msra.mxu0 0.0
      %499 = vmatpush.msra.mxu0 0.0
      %500 = vmatpush.msra.mxu0 0.0
      %501 = vmatpush.msra.mxu0 0.0
      %502 = vmatpush.msra.mxu0 0.0
      %503 = vmatpush.msra.mxu0 0.0
      %504 = vmatpush.msra.mxu0 0.0
      %505 = vmatpush.msra.mxu0 0.0
      %506 = vmatpush.msra.mxu0 0.0
      %v507 = vand.u32 %v408, 4294901760
      %508 = vmatpush.msra.mxu0 %v507
      %v509 = vand.u32 %v414, 4294901760
      %v510 = vsub.f32 %v414, %v509
      %v511 = vand.u32 %v510, 4294901760
      %512 = vmatmul.f32.gmra.mxu0 %v511
      %v513 = vpop.f32.mrf.mxu0
      %v514 = vadd.f32 %v490, %v513
      %515 = vdwg.mxu0
      %516 = vmatpush.msra.mxu0 0.0
      %517 = vmatpush.msra.mxu0 0.0
      %518 = vmatpush.msra.mxu0 0.0
      %519 = vmatpush.msra.mxu0 0.0
      %520 = vmatpush.msra.mxu0 0.0
      %521 = vmatpush.msra.mxu0 0.0
      %522 = vmatpush.msra.mxu0 0.0
      %523 = vmatpush.msra.mxu0 0.0
      %524 = vmatpush.msra.mxu0 0.0
      %525 = vmatpush.msra.mxu0 0.0
      %526 = vmatpush.msra.mxu0 0.0
      %527 = vmatpush.msra.mxu0 0.0
      %528 = vmatpush.msra.mxu0 0.0
      %529 = vmatpush.msra.mxu0 0.0
      %530 = vmatpush.msra.mxu0 0.0
      %v531 = vand.u32 %v408, 4294901760
      %v532 = vsub.f32 %v408, %v531
      %v533 = vand.u32 %v532, 4294901760
      %534 = vmatpush.msra.mxu0 %v533
      %v535 = vand.u32 %v414, 4294901760
      %536 = vmatmul.f32.gmra.mxu0 %v535
      %v537 = vpop.f32.mrf.mxu0
      %v538 = vadd.f32 %v514, %v537
      %539 = vdwg.mxu0
      %540 = vmatpush.msra.mxu0 0.0
      %541 = vmatpush.msra.mxu0 0.0
      %542 = vmatpush.msra.mxu0 0.0
      %543 = vmatpush.msra.mxu0 0.0
      %544 = vmatpush.msra.mxu0 0.0
      %545 = vmatpush.msra.mxu0 0.0
      %546 = vmatpush.msra.mxu0 0.0
      %547 = vmatpush.msra.mxu0 0.0
      %548 = vmatpush.msra.mxu0 0.0
      %549 = vmatpush.msra.mxu0 0.0
      %550 = vmatpush.msra.mxu0 0.0
      %551 = vmatpush.msra.mxu0 0.0
      %552 = vmatpush.msra.mxu0 0.0
      %553 = vmatpush.msra.mxu0 0.0
      %554 = vmatpush.msra.mxu0 0.0
      %v555 = vand.u32 %v408, 4294901760
      %556 = vmatpush.msra.mxu0 %v555
      %v557 = vand.u32 %v414, 4294901760
      %558 = vmatmul.f32.gmra.mxu0 %v557
      %v559 = vpop.f32.mrf.mxu0
      %v560 = vadd.f32 %v538, %v559
      %561 = vdwg.mxu0
      %562 = vmatpush.msra.mxu0 0.0
      %563 = vmatpush.msra.mxu0 0.0
      %564 = vmatpush.msra.mxu0 0.0
      %565 = vmatpush.msra.mxu0 0.0
      %566 = vmatpush.msra.mxu0 0.0
      %567 = vmatpush.msra.mxu0 0.0
      %568 = vmatpush.msra.mxu0 0.0
      %569 = vmatpush.msra.mxu0 0.0
      %570 = vmatpush.msra.mxu0 0.0
      %571 = vmatpush.msra.mxu0 0.0
      %572 = vmatpush.msra.mxu0 0.0
      %573 = vmatpush.msra.mxu0 0.0
      %574 = vmatpush.msra.mxu0 0.0
      %575 = vmatpush.msra.mxu0 0.0
      %576 = vmatpush.msra.mxu0 0.0
      %v577 = vand.u32 %v409, 4294901760
      %578 = vmatpush.msra.mxu0 %v577
      %v579 = vand.u32 %v414, 4294901760
      %v580 = vsub.f32 %v414, %v579
      %v581 = vand.u32 %v580, 4294901760
      %v582 = vsub.f32 %v580, %v581
      %v583 = vand.u32 %v582, 4294901760
      %584 = vmatmul.f32.gmra.mxu0 %v583
      %v585 = vpop.f32.mrf.mxu0
      %v586 = vadd.f32 0.0, %v585
      %587 = vdwg.mxu0
      %588 = vmatpush.msra.mxu0 0.0
      %589 = vmatpush.msra.mxu0 0.0
      %590 = vmatpush.msra.mxu0 0.0
      %591 = vmatpush.msra.mxu0 0.0
      %592 = vmatpush.msra.mxu0 0.0
      %593 = vmatpush.msra.mxu0 0.0
      %594 = vmatpush.msra.mxu0 0.0
      %595 = vmatpush.msra.mxu0 0.0
      %596 = vmatpush.msra.mxu0 0.0
      %597 = vmatpush.msra.mxu0 0.0
      %598 = vmatpush.msra.mxu0 0.0
      %599 = vmatpush.msra.mxu0 0.0
      %600 = vmatpush.msra.mxu0 0.0
      %601 = vmatpush.msra.mxu0 0.0
      %602 = vmatpush.msra.mxu0 0.0
      %v603 = vand.u32 %v409, 4294901760
      %v604 = vsub.f32 %v409, %v603
      %v605 = vand.u32 %v604, 4294901760
      %v606 = vsub.f32 %v604, %v605
      %v607 = vand.u32 %v606, 4294901760
      %608 = vmatpush.msra.mxu0 %v607
      %v609 = vand.u32 %v414, 4294901760
      %610 = vmatmul.f32.gmra.mxu0 %v609
      %v611 = vpop.f32.mrf.mxu0
      %v612 = vadd.f32 %v586, %v611
      %613 = vdwg.mxu0
      %614 = vmatpush.msra.mxu0 0.0
      %615 = vmatpush.msra.mxu0 0.0
      %616 = vmatpush.msra.mxu0 0.0
      %617 = vmatpush.msra.mxu0 0.0
      %618 = vmatpush.msra.mxu0 0.0
      %619 = vmatpush.msra.mxu0 0.0
      %620 = vmatpush.msra.mxu0 0.0
      %621 = vmatpush.msra.mxu0 0.0
      %622 = vmatpush.msra.mxu0 0.0
      %623 = vmatpush.msra.mxu0 0.0
      %624 = vmatpush.msra.mxu0 0.0
      %625 = vmatpush.msra.mxu0 0.0
      %626 = vmatpush.msra.mxu0 0.0
      %627 = vmatpush.msra.mxu0 0.0
      %628 = vmatpush.msra.mxu0 0.0
      %v629 = vand.u32 %v409, 4294901760
      %v630 = vsub.f32 %v409, %v629
      %631 = vmatpush.msra.mxu0 %v630
      %v632 = vand.u32 %v414, 4294901760
      %v633 = vsub.f32 %v414, %v632
      %634 = vmatmul.f32.gmra.mxu0 %v633
      %v635 = vpop.f32.mrf.mxu0
      %v636 = vadd.f32 %v612, %v635
      %637 = vdwg.mxu0
      %638 = vmatpush.msra.mxu0 0.0
      %639 = vmatpush.msra.mxu0 0.0
      %640 = vmatpush.msra.mxu0 0.0
      %641 = vmatpush.msra.mxu0 0.0
      %642 = vmatpush.msra.mxu0 0.0
      %643 = vmatpush.msra.mxu0 0.0
      %644 = vmatpush.msra.mxu0 0.0
      %645 = vmatpush.msra.mxu0 0.0
      %646 = vmatpush.msra.mxu0 0.0
      %647 = vmatpush.msra.mxu0 0.0
      %648 = vmatpush.msra.mxu0 0.0
      %649 = vmatpush.msra.mxu0 0.0
      %650 = vmatpush.msra.mxu0 0.0
      %651 = vmatpush.msra.mxu0 0.0
      %652 = vmatpush.msra.mxu0 0.0
      %v653 = vand.u32 %v409, 4294901760
      %654 = vmatpush.msra.mxu0 %v653
      %v655 = vand.u32 %v414, 4294901760
      %v656 = vsub.f32 %v414, %v655
      %v657 = vand.u32 %v656, 4294901760
      %658 = vmatmul.f32.gmra.mxu0 %v657
      %v659 = vpop.f32.mrf.mxu0
      %v660 = vadd.f32 %v636, %v659
      %661 = vdwg.mxu0
      %662 = vmatpush.msra.mxu0 0.0
      %663 = vmatpush.msra.mxu0 0.0
      %664 = vmatpush.msra.mxu0 0.0
      %665 = vmatpush.msra.mxu0 0.0
      %666 = vmatpush.msra.mxu0 0.0
      %667 = vmatpush.msra.mxu0 0.0
      %668 = vmatpush.msra.mxu0 0.0
      %669 = vmatpush.msra.mxu0 0.0
      %670 = vmatpush.msra.mxu0 0.0
      %671 = vmatpush.msra.mxu0 0.0
      %672 = vmatpush.msra.mxu0 0.0
      %673 = vmatpush.msra.mxu0 0.0
      %674 = vmatpush.msra.mxu0 0.0
      %675 = vmatpush.msra.mxu0 0.0
      %676 = vmatpush.msra.mxu0 0.0
      %v677 = vand.u32 %v409, 4294901760
      %v678 = vsub.f32 %v409, %v677
      %v679 = vand.u32 %v678, 4294901760
      %680 = vmatpush.msra.mxu0 %v679
      %v681 = vand.u32 %v414, 4294901760
      %682 = vmatmul.f32.gmra.mxu0 %v681
      %v683 = vpop.f32.mrf.mxu0
      %v684 = vadd.f32 %v660, %v683
      %685 = vdwg.mxu0
      %686 = vmatpush.msra.mxu0 0.0
      %687 = vmatpush.msra.mxu0 0.0
      %688 = vmatpush.msra.mxu0 0.0
      %689 = vmatpush.msra.mxu0 0.0
      %690 = vmatpush.msra.mxu0 0.0
      %691 = vmatpush.msra.mxu0 0.0
      %692 = vmatpush.msra.mxu0 0.0
      %693 = vmatpush.msra.mxu0 0.0
      %694 = vmatpush.msra.mxu0 0.0
      %695 = vmatpush.msra.mxu0 0.0
      %696 = vmatpush.msra.mxu0 0.0
      %697 = vmatpush.msra.mxu0 0.0
      %698 = vmatpush.msra.mxu0 0.0
      %699 = vmatpush.msra.mxu0 0.0
      %700 = vmatpush.msra.mxu0 0.0
      %v701 = vand.u32 %v409, 4294901760
      %702 = vmatpush.msra.mxu0 %v701
      %v703 = vand.u32 %v414, 4294901760
      %704 = vmatmul.f32.gmra.mxu0 %v703
      %v705 = vpop.f32.mrf.mxu0
      %v706 = vadd.f32 %v684, %v705
      %707 = vdwg.mxu0
      %v708 = vadd.f32 %v393, %v560
      %v709 = vadd.f32 %v393, %v706
      %s710 = scalar_lea.vmem %s1, 8
      %v711 = vld [vmem:[%s710] sm:$0xff]
      %712 = vrot.lane.b32.xlu0 %v394, 109
      %v713 = vpop.permute.xlu0 %712
      %714 = vrot.lane.b32.xlu0 %v395, 109
      %v715 = vpop.permute.xlu0 %714
      %716 = vrot.lane.b32.xlu0 %v396, 109
      %v717 = vpop.permute.xlu0 %716
      %vm718 = vcmask 891904
      %v719 = vsel %vm718, %v713, %v715
      %v720 = vsel %vm718, %v715, %v717
      %v724 = vsel %vm412, %v711, 0
      %726 = vmatpush.msra.mxu0 0.0
      %727 = vmatpush.msra.mxu0 0.0
      %728 = vmatpush.msra.mxu0 0.0
      %729 = vmatpush.msra.mxu0 0.0
      %730 = vmatpush.msra.mxu0 0.0
      %731 = vmatpush.msra.mxu0 0.0
      %732 = vmatpush.msra.mxu0 0.0
      %733 = vmatpush.msra.mxu0 0.0
      %734 = vmatpush.msra.mxu0 0.0
      %735 = vmatpush.msra.mxu0 0.0
      %736 = vmatpush.msra.mxu0 0.0
      %737 = vmatpush.msra.mxu0 0.0
      %738 = vmatpush.msra.mxu0 0.0
      %739 = vmatpush.msra.mxu0 0.0
      %740 = vmatpush.msra.mxu0 0.0
      %v741 = vand.u32 %v719, 4294901760
      %742 = vmatpush.msra.mxu0 %v741
      %v743 = vand.u32 %v724, 4294901760
      %v744 = vsub.f32 %v724, %v743
      %v745 = vand.u32 %v744, 4294901760
      %v746 = vsub.f32 %v744, %v745
      %v747 = vand.u32 %v746, 4294901760
      %748 = vmatmul.f32.gmra.mxu0 %v747
      %v749 = vpop.f32.mrf.mxu0
      %v750 = vadd.f32 0.0, %v749
      %751 = vdwg.mxu0
      %752 = vmatpush.msra.mxu0 0.0
      %753 = vmatpush.msra.mxu0 0.0
      %754 = vmatpush.msra.mxu0 0.0
      %755 = vmatpush.msra.mxu0 0.0
      %756 = vmatpush.msra.mxu0 0.0
      %757 = vmatpush.msra.mxu0 0.0
      %758 = vmatpush.msra.mxu0 0.0
      %759 = vmatpush.msra.mxu0 0.0
      %760 = vmatpush.msra.mxu0 0.0
      %761 = vmatpush.msra.mxu0 0.0
      %762 = vmatpush.msra.mxu0 0.0
      %763 = vmatpush.msra.mxu0 0.0
      %764 = vmatpush.msra.mxu0 0.0
      %765 = vmatpush.msra.mxu0 0.0
      %766 = vmatpush.msra.mxu0 0.0
      %v767 = vand.u32 %v719, 4294901760
      %v768 = vsub.f32 %v719, %v767
      %v769 = vand.u32 %v768, 4294901760
      %v770 = vsub.f32 %v768, %v769
      %v771 = vand.u32 %v770, 4294901760
      %772 = vmatpush.msra.mxu0 %v771
      %v773 = vand.u32 %v724, 4294901760
      %774 = vmatmul.f32.gmra.mxu0 %v773
      %v775 = vpop.f32.mrf.mxu0
      %v776 = vadd.f32 %v750, %v775
      %777 = vdwg.mxu0
      %778 = vmatpush.msra.mxu0 0.0
      %779 = vmatpush.msra.mxu0 0.0
      %780 = vmatpush.msra.mxu0 0.0
      %781 = vmatpush.msra.mxu0 0.0
      %782 = vmatpush.msra.mxu0 0.0
      %783 = vmatpush.msra.mxu0 0.0
      %784 = vmatpush.msra.mxu0 0.0
      %785 = vmatpush.msra.mxu0 0.0
      %786 = vmatpush.msra.mxu0 0.0
      %787 = vmatpush.msra.mxu0 0.0
      %788 = vmatpush.msra.mxu0 0.0
      %789 = vmatpush.msra.mxu0 0.0
      %790 = vmatpush.msra.mxu0 0.0
      %791 = vmatpush.msra.mxu0 0.0
      %792 = vmatpush.msra.mxu0 0.0
      %v793 = vand.u32 %v719, 4294901760
      %v794 = vsub.f32 %v719, %v793
      %795 = vmatpush.msra.mxu0 %v794
      %v796 = vand.u32 %v724, 4294901760
      %v797 = vsub.f32 %v724, %v796
      %798 = vmatmul.f32.gmra.mxu0 %v797
      %v799 = vpop.f32.mrf.mxu0
      %v800 = vadd.f32 %v776, %v799
      %801 = vdwg.mxu0
      %802 = vmatpush.msra.mxu0 0.0
      %803 = vmatpush.msra.mxu0 0.0
      %804 = vmatpush.msra.mxu0 0.0
      %805 = vmatpush.msra.mxu0 0.0
      %806 = vmatpush.msra.mxu0 0.0
      %807 = vmatpush.msra.mxu0 0.0
      %808 = vmatpush.msra.mxu0 0.0
      %809 = vmatpush.msra.mxu0 0.0
      %810 = vmatpush.msra.mxu0 0.0
      %811 = vmatpush.msra.mxu0 0.0
      %812 = vmatpush.msra.mxu0 0.0
      %813 = vmatpush.msra.mxu0 0.0
      %814 = vmatpush.msra.mxu0 0.0
      %815 = vmatpush.msra.mxu0 0.0
      %816 = vmatpush.msra.mxu0 0.0
      %v817 = vand.u32 %v719, 4294901760
      %818 = vmatpush.msra.mxu0 %v817
      %v819 = vand.u32 %v724, 4294901760
      %v820 = vsub.f32 %v724, %v819
      %v821 = vand.u32 %v820, 4294901760
      %822 = vmatmul.f32.gmra.mxu0 %v821
      %v823 = vpop.f32.mrf.mxu0
      %v824 = vadd.f32 %v800, %v823
      %825 = vdwg.mxu0
      %826 = vmatpush.msra.mxu0 0.0
      %827 = vmatpush.msra.mxu0 0.0
      %828 = vmatpush.msra.mxu0 0.0
      %829 = vmatpush.msra.mxu0 0.0
      %830 = vmatpush.msra.mxu0 0.0
      %831 = vmatpush.msra.mxu0 0.0
      %832 = vmatpush.msra.mxu0 0.0
      %833 = vmatpush.msra.mxu0 0.0
      %834 = vmatpush.msra.mxu0 0.0
      %835 = vmatpush.msra.mxu0 0.0
      %836 = vmatpush.msra.mxu0 0.0
      %837 = vmatpush.msra.mxu0 0.0
      %838 = vmatpush.msra.mxu0 0.0
      %839 = vmatpush.msra.mxu0 0.0
      %840 = vmatpush.msra.mxu0 0.0
      %v841 = vand.u32 %v719, 4294901760
      %v842 = vsub.f32 %v719, %v841
      %v843 = vand.u32 %v842, 4294901760
      %844 = vmatpush.msra.mxu0 %v843
      %v845 = vand.u32 %v724, 4294901760
      %846 = vmatmul.f32.gmra.mxu0 %v845
      %v847 = vpop.f32.mrf.mxu0
      %v848 = vadd.f32 %v824, %v847
      %849 = vdwg.mxu0
      %850 = vmatpush.msra.mxu0 0.0
      %851 = vmatpush.msra.mxu0 0.0
      %852 = vmatpush.msra.mxu0 0.0
      %853 = vmatpush.msra.mxu0 0.0
      %854 = vmatpush.msra.mxu0 0.0
      %855 = vmatpush.msra.mxu0 0.0
      %856 = vmatpush.msra.mxu0 0.0
      %857 = vmatpush.msra.mxu0 0.0
      %858 = vmatpush.msra.mxu0 0.0
      %859 = vmatpush.msra.mxu0 0.0
      %860 = vmatpush.msra.mxu0 0.0
      %861 = vmatpush.msra.mxu0 0.0
      %862 = vmatpush.msra.mxu0 0.0
      %863 = vmatpush.msra.mxu0 0.0
      %864 = vmatpush.msra.mxu0 0.0
      %v865 = vand.u32 %v719, 4294901760
      %866 = vmatpush.msra.mxu0 %v865
      %v867 = vand.u32 %v724, 4294901760
      %868 = vmatmul.f32.gmra.mxu0 %v867
      %v869 = vpop.f32.mrf.mxu0
      %v870 = vadd.f32 %v848, %v869
      %871 = vdwg.mxu0
      %872 = vmatpush.msra.mxu0 0.0
      %873 = vmatpush.msra.mxu0 0.0
      %874 = vmatpush.msra.mxu0 0.0
      %875 = vmatpush.msra.mxu0 0.0
      %876 = vmatpush.msra.mxu0 0.0
      %877 = vmatpush.msra.mxu0 0.0
      %878 = vmatpush.msra.mxu0 0.0
      %879 = vmatpush.msra.mxu0 0.0
      %880 = vmatpush.msra.mxu0 0.0
      %881 = vmatpush.msra.mxu0 0.0
      %882 = vmatpush.msra.mxu0 0.0
      %883 = vmatpush.msra.mxu0 0.0
      %884 = vmatpush.msra.mxu0 0.0
      %885 = vmatpush.msra.mxu0 0.0
      %886 = vmatpush.msra.mxu0 0.0
      %v887 = vand.u32 %v720, 4294901760
      %888 = vmatpush.msra.mxu0 %v887
      %v889 = vand.u32 %v724, 4294901760
      %v890 = vsub.f32 %v724, %v889
      %v891 = vand.u32 %v890, 4294901760
      %v892 = vsub.f32 %v890, %v891
      %v893 = vand.u32 %v892, 4294901760
      %894 = vmatmul.f32.gmra.mxu0 %v893
      %v895 = vpop.f32.mrf.mxu0
      %v896 = vadd.f32 0.0, %v895
      %897 = vdwg.mxu0
      %898 = vmatpush.msra.mxu0 0.0
      %899 = vmatpush.msra.mxu0 0.0
      %900 = vmatpush.msra.mxu0 0.0
      %901 = vmatpush.msra.mxu0 0.0
      %902 = vmatpush.msra.mxu0 0.0
      %903 = vmatpush.msra.mxu0 0.0
      %904 = vmatpush.msra.mxu0 0.0
      %905 = vmatpush.msra.mxu0 0.0
      %906 = vmatpush.msra.mxu0 0.0
      %907 = vmatpush.msra.mxu0 0.0
      %908 = vmatpush.msra.mxu0 0.0
      %909 = vmatpush.msra.mxu0 0.0
      %910 = vmatpush.msra.mxu0 0.0
      %911 = vmatpush.msra.mxu0 0.0
      %912 = vmatpush.msra.mxu0 0.0
      %v913 = vand.u32 %v720, 4294901760
      %v914 = vsub.f32 %v720, %v913
      %v915 = vand.u32 %v914, 4294901760
      %v916 = vsub.f32 %v914, %v915
      %v917 = vand.u32 %v916, 4294901760
      %918 = vmatpush.msra.mxu0 %v917
      %v919 = vand.u32 %v724, 4294901760
      %920 = vmatmul.f32.gmra.mxu0 %v919
      %v921 = vpop.f32.mrf.mxu0
      %v922 = vadd.f32 %v896, %v921
      %923 = vdwg.mxu0
      %924 = vmatpush.msra.mxu0 0.0
      %925 = vmatpush.msra.mxu0 0.0
      %926 = vmatpush.msra.mxu0 0.0
      %927 = vmatpush.msra.mxu0 0.0
      %928 = vmatpush.msra.mxu0 0.0
      %929 = vmatpush.msra.mxu0 0.0
      %930 = vmatpush.msra.mxu0 0.0
      %931 = vmatpush.msra.mxu0 0.0
      %932 = vmatpush.msra.mxu0 0.0
      %933 = vmatpush.msra.mxu0 0.0
      %934 = vmatpush.msra.mxu0 0.0
      %935 = vmatpush.msra.mxu0 0.0
      %936 = vmatpush.msra.mxu0 0.0
      %937 = vmatpush.msra.mxu0 0.0
      %938 = vmatpush.msra.mxu0 0.0
      %v939 = vand.u32 %v720, 4294901760
      %v940 = vsub.f32 %v720, %v939
      %941 = vmatpush.msra.mxu0 %v940
      %v942 = vand.u32 %v724, 4294901760
      %v943 = vsub.f32 %v724, %v942
      %944 = vmatmul.f32.gmra.mxu0 %v943
      %v945 = vpop.f32.mrf.mxu0
      %v946 = vadd.f32 %v922, %v945
      %947 = vdwg.mxu0
      %948 = vmatpush.msra.mxu0 0.0
      %949 = vmatpush.msra.mxu0 0.0
      %950 = vmatpush.msra.mxu0 0.0
      %951 = vmatpush.msra.mxu0 0.0
      %952 = vmatpush.msra.mxu0 0.0
      %953 = vmatpush.msra.mxu0 0.0
      %954 = vmatpush.msra.mxu0 0.0
      %955 = vmatpush.msra.mxu0 0.0
      %956 = vmatpush.msra.mxu0 0.0
      %957 = vmatpush.msra.mxu0 0.0
      %958 = vmatpush.msra.mxu0 0.0
      %959 = vmatpush.msra.mxu0 0.0
      %960 = vmatpush.msra.mxu0 0.0
      %961 = vmatpush.msra.mxu0 0.0
      %962 = vmatpush.msra.mxu0 0.0
      %v963 = vand.u32 %v720, 4294901760
      %964 = vmatpush.msra.mxu0 %v963
      %v965 = vand.u32 %v724, 4294901760
      %v966 = vsub.f32 %v724, %v965
      %v967 = vand.u32 %v966, 4294901760
      %968 = vmatmul.f32.gmra.mxu0 %v967
      %v969 = vpop.f32.mrf.mxu0
      %v970 = vadd.f32 %v946, %v969
      %971 = vdwg.mxu0
      %972 = vmatpush.msra.mxu0 0.0
      %973 = vmatpush.msra.mxu0 0.0
      %974 = vmatpush.msra.mxu0 0.0
      %975 = vmatpush.msra.mxu0 0.0
      %976 = vmatpush.msra.mxu0 0.0
      %977 = vmatpush.msra.mxu0 0.0
      %978 = vmatpush.msra.mxu0 0.0
      %979 = vmatpush.msra.mxu0 0.0
      %980 = vmatpush.msra.mxu0 0.0
      %981 = vmatpush.msra.mxu0 0.0
      %982 = vmatpush.msra.mxu0 0.0
      %983 = vmatpush.msra.mxu0 0.0
      %984 = vmatpush.msra.mxu0 0.0
      %985 = vmatpush.msra.mxu0 0.0
      %986 = vmatpush.msra.mxu0 0.0
      %v987 = vand.u32 %v720, 4294901760
      %v988 = vsub.f32 %v720, %v987
      %v989 = vand.u32 %v988, 4294901760
      %990 = vmatpush.msra.mxu0 %v989
      %v991 = vand.u32 %v724, 4294901760
      %992 = vmatmul.f32.gmra.mxu0 %v991
      %v993 = vpop.f32.mrf.mxu0
      %v994 = vadd.f32 %v970, %v993
      %995 = vdwg.mxu0
      %996 = vmatpush.msra.mxu0 0.0
      %997 = vmatpush.msra.mxu0 0.0
      %998 = vmatpush.msra.mxu0 0.0
      %999 = vmatpush.msra.mxu0 0.0
      %1000 = vmatpush.msra.mxu0 0.0
      %1001 = vmatpush.msra.mxu0 0.0
      %1002 = vmatpush.msra.mxu0 0.0
      %1003 = vmatpush.msra.mxu0 0.0
      %1004 = vmatpush.msra.mxu0 0.0
      %1005 = vmatpush.msra.mxu0 0.0
      %1006 = vmatpush.msra.mxu0 0.0
      %1007 = vmatpush.msra.mxu0 0.0
      %1008 = vmatpush.msra.mxu0 0.0
      %1009 = vmatpush.msra.mxu0 0.0
      %1010 = vmatpush.msra.mxu0 0.0
      %v1011 = vand.u32 %v720, 4294901760
      %1012 = vmatpush.msra.mxu0 %v1011
      %v1013 = vand.u32 %v724, 4294901760
      %1014 = vmatmul.f32.gmra.mxu0 %v1013
      %v1015 = vpop.f32.mrf.mxu0
      %v1016 = vadd.f32 %v994, %v1015
      %1017 = vdwg.mxu0
      %v1018 = vadd.f32 %v708, %v870
      %v1019 = vadd.f32 %v709, %v1016
      %s1020 = scalar_lea.vmem %s1, 16
      %v1021 = vld [vmem:[%s1020] sm:$0xff]
      %1022 = vrot.lane.b32.xlu0 %v394, 93
      %v1023 = vpop.permute.xlu0 %1022
      %1024 = vrot.lane.b32.xlu0 %v395, 93
      %v1025 = vpop.permute.xlu0 %1024
      %1026 = vrot.lane.b32.xlu0 %v396, 93
      %v1027 = vpop.permute.xlu0 %1026
      %vm1028 = vcmask 760832
      %v1029 = vsel %vm1028, %v1023, %v1025
      %v1030 = vsel %vm1028, %v1025, %v1027
      %v1034 = vsel %vm412, %v1021, 0
      %1036 = vmatpush.msra.mxu0 0.0
      %1037 = vmatpush.msra.mxu0 0.0
      %1038 = vmatpush.msra.mxu0 0.0
      %1039 = vmatpush.msra.mxu0 0.0
      %1040 = vmatpush.msra.mxu0 0.0
      %1041 = vmatpush.msra.mxu0 0.0
      %1042 = vmatpush.msra.mxu0 0.0
      %1043 = vmatpush.msra.mxu0 0.0
      %1044 = vmatpush.msra.mxu0 0.0
      %1045 = vmatpush.msra.mxu0 0.0
      %1046 = vmatpush.msra.mxu0 0.0
      %1047 = vmatpush.msra.mxu0 0.0
      %1048 = vmatpush.msra.mxu0 0.0
      %1049 = vmatpush.msra.mxu0 0.0
      %1050 = vmatpush.msra.mxu0 0.0
      %v1051 = vand.u32 %v1029, 4294901760
      %1052 = vmatpush.msra.mxu0 %v1051
      %v1053 = vand.u32 %v1034, 4294901760
      %v1054 = vsub.f32 %v1034, %v1053
      %v1055 = vand.u32 %v1054, 4294901760
      %v1056 = vsub.f32 %v1054, %v1055
      %v1057 = vand.u32 %v1056, 4294901760
      %1058 = vmatmul.f32.gmra.mxu0 %v1057
      %v1059 = vpop.f32.mrf.mxu0
      %v1060 = vadd.f32 0.0, %v1059
      %1061 = vdwg.mxu0
      %1062 = vmatpush.msra.mxu0 0.0
      %1063 = vmatpush.msra.mxu0 0.0
      %1064 = vmatpush.msra.mxu0 0.0
      %1065 = vmatpush.msra.mxu0 0.0
      %1066 = vmatpush.msra.mxu0 0.0
      %1067 = vmatpush.msra.mxu0 0.0
      %1068 = vmatpush.msra.mxu0 0.0
      %1069 = vmatpush.msra.mxu0 0.0
      %1070 = vmatpush.msra.mxu0 0.0
      %1071 = vmatpush.msra.mxu0 0.0
      %1072 = vmatpush.msra.mxu0 0.0
      %1073 = vmatpush.msra.mxu0 0.0
      %1074 = vmatpush.msra.mxu0 0.0
      %1075 = vmatpush.msra.mxu0 0.0
      %1076 = vmatpush.msra.mxu0 0.0
      %v1077 = vand.u32 %v1029, 4294901760
      %v1078 = vsub.f32 %v1029, %v1077
      %v1079 = vand.u32 %v1078, 4294901760
      %v1080 = vsub.f32 %v1078, %v1079
      %v1081 = vand.u32 %v1080, 4294901760
      %1082 = vmatpush.msra.mxu0 %v1081
      %v1083 = vand.u32 %v1034, 4294901760
      %1084 = vmatmul.f32.gmra.mxu0 %v1083
      %v1085 = vpop.f32.mrf.mxu0
      %v1086 = vadd.f32 %v1060, %v1085
      %1087 = vdwg.mxu0
      %1088 = vmatpush.msra.mxu0 0.0
      %1089 = vmatpush.msra.mxu0 0.0
      %1090 = vmatpush.msra.mxu0 0.0
      %1091 = vmatpush.msra.mxu0 0.0
      %1092 = vmatpush.msra.mxu0 0.0
      %1093 = vmatpush.msra.mxu0 0.0
      %1094 = vmatpush.msra.mxu0 0.0
      %1095 = vmatpush.msra.mxu0 0.0
      %1096 = vmatpush.msra.mxu0 0.0
      %1097 = vmatpush.msra.mxu0 0.0
      %1098 = vmatpush.msra.mxu0 0.0
      %1099 = vmatpush.msra.mxu0 0.0
      %1100 = vmatpush.msra.mxu0 0.0
      %1101 = vmatpush.msra.mxu0 0.0
      %1102 = vmatpush.msra.mxu0 0.0
      %v1103 = vand.u32 %v1029, 4294901760
      %v1104 = vsub.f32 %v1029, %v1103
      %1105 = vmatpush.msra.mxu0 %v1104
      %v1106 = vand.u32 %v1034, 4294901760
      %v1107 = vsub.f32 %v1034, %v1106
      %1108 = vmatmul.f32.gmra.mxu0 %v1107
      %v1109 = vpop.f32.mrf.mxu0
      %v1110 = vadd.f32 %v1086, %v1109
      %1111 = vdwg.mxu0
      %1112 = vmatpush.msra.mxu0 0.0
      %1113 = vmatpush.msra.mxu0 0.0
      %1114 = vmatpush.msra.mxu0 0.0
      %1115 = vmatpush.msra.mxu0 0.0
      %1116 = vmatpush.msra.mxu0 0.0
      %1117 = vmatpush.msra.mxu0 0.0
      %1118 = vmatpush.msra.mxu0 0.0
      %1119 = vmatpush.msra.mxu0 0.0
      %1120 = vmatpush.msra.mxu0 0.0
      %1121 = vmatpush.msra.mxu0 0.0
      %1122 = vmatpush.msra.mxu0 0.0
      %1123 = vmatpush.msra.mxu0 0.0
      %1124 = vmatpush.msra.mxu0 0.0
      %1125 = vmatpush.msra.mxu0 0.0
      %1126 = vmatpush.msra.mxu0 0.0
      %v1127 = vand.u32 %v1029, 4294901760
      %1128 = vmatpush.msra.mxu0 %v1127
      %v1129 = vand.u32 %v1034, 4294901760
      %v1130 = vsub.f32 %v1034, %v1129
      %v1131 = vand.u32 %v1130, 4294901760
      %1132 = vmatmul.f32.gmra.mxu0 %v1131
      %v1133 = vpop.f32.mrf.mxu0
      %v1134 = vadd.f32 %v1110, %v1133
      %1135 = vdwg.mxu0
      %1136 = vmatpush.msra.mxu0 0.0
      %1137 = vmatpush.msra.mxu0 0.0
      %1138 = vmatpush.msra.mxu0 0.0
      %1139 = vmatpush.msra.mxu0 0.0
      %1140 = vmatpush.msra.mxu0 0.0
      %1141 = vmatpush.msra.mxu0 0.0
      %1142 = vmatpush.msra.mxu0 0.0
      %1143 = vmatpush.msra.mxu0 0.0
      %1144 = vmatpush.msra.mxu0 0.0
      %1145 = vmatpush.msra.mxu0 0.0
      %1146 = vmatpush.msra.mxu0 0.0
      %1147 = vmatpush.msra.mxu0 0.0
      %1148 = vmatpush.msra.mxu0 0.0
      %1149 = vmatpush.msra.mxu0 0.0
      %1150 = vmatpush.msra.mxu0 0.0
      %v1151 = vand.u32 %v1029, 4294901760
      %v1152 = vsub.f32 %v1029, %v1151
      %v1153 = vand.u32 %v1152, 4294901760
      %1154 = vmatpush.msra.mxu0 %v1153
      %v1155 = vand.u32 %v1034, 4294901760
      %1156 = vmatmul.f32.gmra.mxu0 %v1155
      %v1157 = vpop.f32.mrf.mxu0
      %v1158 = vadd.f32 %v1134, %v1157
      %1159 = vdwg.mxu0
      %1160 = vmatpush.msra.mxu0 0.0
      %1161 = vmatpush.msra.mxu0 0.0
      %1162 = vmatpush.msra.mxu0 0.0
      %1163 = vmatpush.msra.mxu0 0.0
      %1164 = vmatpush.msra.mxu0 0.0
      %1165 = vmatpush.msra.mxu0 0.0
      %1166 = vmatpush.msra.mxu0 0.0
      %1167 = vmatpush.msra.mxu0 0.0
      %1168 = vmatpush.msra.mxu0 0.0
      %1169 = vmatpush.msra.mxu0 0.0
      %1170 = vmatpush.msra.mxu0 0.0
      %1171 = vmatpush.msra.mxu0 0.0
      %1172 = vmatpush.msra.mxu0 0.0
      %1173 = vmatpush.msra.mxu0 0.0
      %1174 = vmatpush.msra.mxu0 0.0
      %v1175 = vand.u32 %v1029, 4294901760
      %1176 = vmatpush.msra.mxu0 %v1175
      %v1177 = vand.u32 %v1034, 4294901760
      %1178 = vmatmul.f32.gmra.mxu0 %v1177
      %v1179 = vpop.f32.mrf.mxu0
      %v1180 = vadd.f32 %v1158, %v1179
      %1181 = vdwg.mxu0
      %1182 = vmatpush.msra.mxu0 0.0
      %1183 = vmatpush.msra.mxu0 0.0
      %1184 = vmatpush.msra.mxu0 0.0
      %1185 = vmatpush.msra.mxu0 0.0
      %1186 = vmatpush.msra.mxu0 0.0
      %1187 = vmatpush.msra.mxu0 0.0
      %1188 = vmatpush.msra.mxu0 0.0
      %1189 = vmatpush.msra.mxu0 0.0
      %1190 = vmatpush.msra.mxu0 0.0
      %1191 = vmatpush.msra.mxu0 0.0
      %1192 = vmatpush.msra.mxu0 0.0
      %1193 = vmatpush.msra.mxu0 0.0
      %1194 = vmatpush.msra.mxu0 0.0
      %1195 = vmatpush.msra.mxu0 0.0
      %1196 = vmatpush.msra.mxu0 0.0
      %v1197 = vand.u32 %v1030, 4294901760
      %1198 = vmatpush.msra.mxu0 %v1197
      %v1199 = vand.u32 %v1034, 4294901760
      %v1200 = vsub.f32 %v1034, %v1199
      %v1201 = vand.u32 %v1200, 4294901760
      %v1202 = vsub.f32 %v1200, %v1201
      %v1203 = vand.u32 %v1202, 4294901760
      %1204 = vmatmul.f32.gmra.mxu0 %v1203
      %v1205 = vpop.f32.mrf.mxu0
      %v1206 = vadd.f32 0.0, %v1205
      %1207 = vdwg.mxu0
      %1208 = vmatpush.msra.mxu0 0.0
      %1209 = vmatpush.msra.mxu0 0.0
      %1210 = vmatpush.msra.mxu0 0.0
      %1211 = vmatpush.msra.mxu0 0.0
      %1212 = vmatpush.msra.mxu0 0.0
      %1213 = vmatpush.msra.mxu0 0.0
      %1214 = vmatpush.msra.mxu0 0.0
      %1215 = vmatpush.msra.mxu0 0.0
      %1216 = vmatpush.msra.mxu0 0.0
      %1217 = vmatpush.msra.mxu0 0.0
      %1218 = vmatpush.msra.mxu0 0.0
      %1219 = vmatpush.msra.mxu0 0.0
      %1220 = vmatpush.msra.mxu0 0.0
      %1221 = vmatpush.msra.mxu0 0.0
      %1222 = vmatpush.msra.mxu0 0.0
      %v1223 = vand.u32 %v1030, 4294901760
      %v1224 = vsub.f32 %v1030, %v1223
      %v1225 = vand.u32 %v1224, 4294901760
      %v1226 = vsub.f32 %v1224, %v1225
      %v1227 = vand.u32 %v1226, 4294901760
      %1228 = vmatpush.msra.mxu0 %v1227
      %v1229 = vand.u32 %v1034, 4294901760
      %1230 = vmatmul.f32.gmra.mxu0 %v1229
      %v1231 = vpop.f32.mrf.mxu0
      %v1232 = vadd.f32 %v1206, %v1231
      %1233 = vdwg.mxu0
      %1234 = vmatpush.msra.mxu0 0.0
      %1235 = vmatpush.msra.mxu0 0.0
      %1236 = vmatpush.msra.mxu0 0.0
      %1237 = vmatpush.msra.mxu0 0.0
      %1238 = vmatpush.msra.mxu0 0.0
      %1239 = vmatpush.msra.mxu0 0.0
      %1240 = vmatpush.msra.mxu0 0.0
      %1241 = vmatpush.msra.mxu0 0.0
      %1242 = vmatpush.msra.mxu0 0.0
      %1243 = vmatpush.msra.mxu0 0.0
      %1244 = vmatpush.msra.mxu0 0.0
      %1245 = vmatpush.msra.mxu0 0.0
      %1246 = vmatpush.msra.mxu0 0.0
      %1247 = vmatpush.msra.mxu0 0.0
      %1248 = vmatpush.msra.mxu0 0.0
      %v1249 = vand.u32 %v1030, 4294901760
      %v1250 = vsub.f32 %v1030, %v1249
      %1251 = vmatpush.msra.mxu0 %v1250
      %v1252 = vand.u32 %v1034, 4294901760
      %v1253 = vsub.f32 %v1034, %v1252
      %1254 = vmatmul.f32.gmra.mxu0 %v1253
      %v1255 = vpop.f32.mrf.mxu0
      %v1256 = vadd.f32 %v1232, %v1255
      %1257 = vdwg.mxu0
      %1258 = vmatpush.msra.mxu0 0.0
      %1259 = vmatpush.msra.mxu0 0.0
      %1260 = vmatpush.msra.mxu0 0.0
      %1261 = vmatpush.msra.mxu0 0.0
      %1262 = vmatpush.msra.mxu0 0.0
      %1263 = vmatpush.msra.mxu0 0.0
      %1264 = vmatpush.msra.mxu0 0.0
      %1265 = vmatpush.msra.mxu0 0.0
      %1266 = vmatpush.msra.mxu0 0.0
      %1267 = vmatpush.msra.mxu0 0.0
      %1268 = vmatpush.msra.mxu0 0.0
      %1269 = vmatpush.msra.mxu0 0.0
      %1270 = vmatpush.msra.mxu0 0.0
      %1271 = vmatpush.msra.mxu0 0.0
      %1272 = vmatpush.msra.mxu0 0.0
      %v1273 = vand.u32 %v1030, 4294901760
      %1274 = vmatpush.msra.mxu0 %v1273
      %v1275 = vand.u32 %v1034, 4294901760
      %v1276 = vsub.f32 %v1034, %v1275
      %v1277 = vand.u32 %v1276, 4294901760
      %1278 = vmatmul.f32.gmra.mxu0 %v1277
      %v1279 = vpop.f32.mrf.mxu0
      %v1280 = vadd.f32 %v1256, %v1279
      %1281 = vdwg.mxu0
      %1282 = vmatpush.msra.mxu0 0.0
      %1283 = vmatpush.msra.mxu0 0.0
      %1284 = vmatpush.msra.mxu0 0.0
      %1285 = vmatpush.msra.mxu0 0.0
      %1286 = vmatpush.msra.mxu0 0.0
      %1287 = vmatpush.msra.mxu0 0.0
      %1288 = vmatpush.msra.mxu0 0.0
      %1289 = vmatpush.msra.mxu0 0.0
      %1290 = vmatpush.msra.mxu0 0.0
      %1291 = vmatpush.msra.mxu0 0.0
      %1292 = vmatpush.msra.mxu0 0.0
      %1293 = vmatpush.msra.mxu0 0.0
      %1294 = vmatpush.msra.mxu0 0.0
      %1295 = vmatpush.msra.mxu0 0.0
      %1296 = vmatpush.msra.mxu0 0.0
      %v1297 = vand.u32 %v1030, 4294901760
      %v1298 = vsub.f32 %v1030, %v1297
      %v1299 = vand.u32 %v1298, 4294901760
      %1300 = vmatpush.msra.mxu0 %v1299
      %v1301 = vand.u32 %v1034, 4294901760
      %1302 = vmatmul.f32.gmra.mxu0 %v1301
      %v1303 = vpop.f32.mrf.mxu0
      %v1304 = vadd.f32 %v1280, %v1303
      %1305 = vdwg.mxu0
      %1306 = vmatpush.msra.mxu0 0.0
      %1307 = vmatpush.msra.mxu0 0.0
      %1308 = vmatpush.msra.mxu0 0.0
      %1309 = vmatpush.msra.mxu0 0.0
      %1310 = vmatpush.msra.mxu0 0.0
      %1311 = vmatpush.msra.mxu0 0.0
      %1312 = vmatpush.msra.mxu0 0.0
      %1313 = vmatpush.msra.mxu0 0.0
      %1314 = vmatpush.msra.mxu0 0.0
      %1315 = vmatpush.msra.mxu0 0.0
      %1316 = vmatpush.msra.mxu0 0.0
      %1317 = vmatpush.msra.mxu0 0.0
      %1318 = vmatpush.msra.mxu0 0.0
      %1319 = vmatpush.msra.mxu0 0.0
      %1320 = vmatpush.msra.mxu0 0.0
      %v1321 = vand.u32 %v1030, 4294901760
      %1322 = vmatpush.msra.mxu0 %v1321
      %v1323 = vand.u32 %v1034, 4294901760
      %1324 = vmatmul.f32.gmra.mxu0 %v1323
      %v1325 = vpop.f32.mrf.mxu0
      %v1326 = vadd.f32 %v1304, %v1325
      %1327 = vdwg.mxu0
      %v1328 = vadd.f32 %v1018, %v1180
      %v1329 = vadd.f32 %v1019, %v1326
      %s1330 = scalar_lea.vmem %s1, 24
      %v1331 = vld [vmem:[%s1330] sm:$0xff]
      %1332 = vrot.lane.b32.xlu0 %v394, 77
      %v1333 = vpop.permute.xlu0 %1332
      %1334 = vrot.lane.b32.xlu0 %v395, 77
      %v1335 = vpop.permute.xlu0 %1334
      %1336 = vrot.lane.b32.xlu0 %v396, 77
      %v1337 = vpop.permute.xlu0 %1336
      %vm1338 = vcmask 629760
      %v1339 = vsel %vm1338, %v1333, %v1335
      %v1340 = vsel %vm1338, %v1335, %v1337
      %v1344 = vsel %vm412, %v1331, 0
      %1346 = vmatpush.msra.mxu0 0.0
      %1347 = vmatpush.msra.mxu0 0.0
      %1348 = vmatpush.msra.mxu0 0.0
      %1349 = vmatpush.msra.mxu0 0.0
      %1350 = vmatpush.msra.mxu0 0.0
      %1351 = vmatpush.msra.mxu0 0.0
      %1352 = vmatpush.msra.mxu0 0.0
      %1353 = vmatpush.msra.mxu0 0.0
      %1354 = vmatpush.msra.mxu0 0.0
      %1355 = vmatpush.msra.mxu0 0.0
      %1356 = vmatpush.msra.mxu0 0.0
      %1357 = vmatpush.msra.mxu0 0.0
      %1358 = vmatpush.msra.mxu0 0.0
      %1359 = vmatpush.msra.mxu0 0.0
      %1360 = vmatpush.msra.mxu0 0.0
      %v1361 = vand.u32 %v1339, 4294901760
      %1362 = vmatpush.msra.mxu0 %v1361
      %v1363 = vand.u32 %v1344, 4294901760
      %v1364 = vsub.f32 %v1344, %v1363
      %v1365 = vand.u32 %v1364, 4294901760
      %v1366 = vsub.f32 %v1364, %v1365
      %v1367 = vand.u32 %v1366, 4294901760
      %1368 = vmatmul.f32.gmra.mxu0 %v1367
      %v1369 = vpop.f32.mrf.mxu0
      %v1370 = vadd.f32 0.0, %v1369
      %1371 = vdwg.mxu0
      %1372 = vmatpush.msra.mxu0 0.0
      %1373 = vmatpush.msra.mxu0 0.0
      %1374 = vmatpush.msra.mxu0 0.0
      %1375 = vmatpush.msra.mxu0 0.0
      %1376 = vmatpush.msra.mxu0 0.0
      %1377 = vmatpush.msra.mxu0 0.0
      %1378 = vmatpush.msra.mxu0 0.0
      %1379 = vmatpush.msra.mxu0 0.0
      %1380 = vmatpush.msra.mxu0 0.0
      %1381 = vmatpush.msra.mxu0 0.0
      %1382 = vmatpush.msra.mxu0 0.0
      %1383 = vmatpush.msra.mxu0 0.0
      %1384 = vmatpush.msra.mxu0 0.0
      %1385 = vmatpush.msra.mxu0 0.0
      %1386 = vmatpush.msra.mxu0 0.0
      %v1387 = vand.u32 %v1339, 4294901760
      %v1388 = vsub.f32 %v1339, %v1387
      %v1389 = vand.u32 %v1388, 4294901760
      %v1390 = vsub.f32 %v1388, %v1389
      %v1391 = vand.u32 %v1390, 4294901760
      %1392 = vmatpush.msra.mxu0 %v1391
      %v1393 = vand.u32 %v1344, 4294901760
      %1394 = vmatmul.f32.gmra.mxu0 %v1393
      %v1395 = vpop.f32.mrf.mxu0
      %v1396 = vadd.f32 %v1370, %v1395
      %1397 = vdwg.mxu0
      %1398 = vmatpush.msra.mxu0 0.0
      %1399 = vmatpush.msra.mxu0 0.0
      %1400 = vmatpush.msra.mxu0 0.0
      %1401 = vmatpush.msra.mxu0 0.0
      %1402 = vmatpush.msra.mxu0 0.0
      %1403 = vmatpush.msra.mxu0 0.0
      %1404 = vmatpush.msra.mxu0 0.0
      %1405 = vmatpush.msra.mxu0 0.0
      %1406 = vmatpush.msra.mxu0 0.0
      %1407 = vmatpush.msra.mxu0 0.0
      %1408 = vmatpush.msra.mxu0 0.0
      %1409 = vmatpush.msra.mxu0 0.0
      %1410 = vmatpush.msra.mxu0 0.0
      %1411 = vmatpush.msra.mxu0 0.0
      %1412 = vmatpush.msra.mxu0 0.0
      %v1413 = vand.u32 %v1339, 4294901760
      %v1414 = vsub.f32 %v1339, %v1413
      %1415 = vmatpush.msra.mxu0 %v1414
      %v1416 = vand.u32 %v1344, 4294901760
      %v1417 = vsub.f32 %v1344, %v1416
      %1418 = vmatmul.f32.gmra.mxu0 %v1417
      %v1419 = vpop.f32.mrf.mxu0
      %v1420 = vadd.f32 %v1396, %v1419
      %1421 = vdwg.mxu0
      %1422 = vmatpush.msra.mxu0 0.0
      %1423 = vmatpush.msra.mxu0 0.0
      %1424 = vmatpush.msra.mxu0 0.0
      %1425 = vmatpush.msra.mxu0 0.0
      %1426 = vmatpush.msra.mxu0 0.0
      %1427 = vmatpush.msra.mxu0 0.0
      %1428 = vmatpush.msra.mxu0 0.0
      %1429 = vmatpush.msra.mxu0 0.0
      %1430 = vmatpush.msra.mxu0 0.0
      %1431 = vmatpush.msra.mxu0 0.0
      %1432 = vmatpush.msra.mxu0 0.0
      %1433 = vmatpush.msra.mxu0 0.0
      %1434 = vmatpush.msra.mxu0 0.0
      %1435 = vmatpush.msra.mxu0 0.0
      %1436 = vmatpush.msra.mxu0 0.0
      %v1437 = vand.u32 %v1339, 4294901760
      %1438 = vmatpush.msra.mxu0 %v1437
      %v1439 = vand.u32 %v1344, 4294901760
      %v1440 = vsub.f32 %v1344, %v1439
      %v1441 = vand.u32 %v1440, 4294901760
      %1442 = vmatmul.f32.gmra.mxu0 %v1441
      %v1443 = vpop.f32.mrf.mxu0
      %v1444 = vadd.f32 %v1420, %v1443
      %1445 = vdwg.mxu0
      %1446 = vmatpush.msra.mxu0 0.0
      %1447 = vmatpush.msra.mxu0 0.0
      %1448 = vmatpush.msra.mxu0 0.0
      %1449 = vmatpush.msra.mxu0 0.0
      %1450 = vmatpush.msra.mxu0 0.0
      %1451 = vmatpush.msra.mxu0 0.0
      %1452 = vmatpush.msra.mxu0 0.0
      %1453 = vmatpush.msra.mxu0 0.0
      %1454 = vmatpush.msra.mxu0 0.0
      %1455 = vmatpush.msra.mxu0 0.0
      %1456 = vmatpush.msra.mxu0 0.0
      %1457 = vmatpush.msra.mxu0 0.0
      %1458 = vmatpush.msra.mxu0 0.0
      %1459 = vmatpush.msra.mxu0 0.0
      %1460 = vmatpush.msra.mxu0 0.0
      %v1461 = vand.u32 %v1339, 4294901760
      %v1462 = vsub.f32 %v1339, %v1461
      %v1463 = vand.u32 %v1462, 4294901760
      %1464 = vmatpush.msra.mxu0 %v1463
      %v1465 = vand.u32 %v1344, 4294901760
      %1466 = vmatmul.f32.gmra.mxu0 %v1465
      %v1467 = vpop.f32.mrf.mxu0
      %v1468 = vadd.f32 %v1444, %v1467
      %1469 = vdwg.mxu0
      %1470 = vmatpush.msra.mxu0 0.0
      %1471 = vmatpush.msra.mxu0 0.0
      %1472 = vmatpush.msra.mxu0 0.0
      %1473 = vmatpush.msra.mxu0 0.0
      %1474 = vmatpush.msra.mxu0 0.0
      %1475 = vmatpush.msra.mxu0 0.0
      %1476 = vmatpush.msra.mxu0 0.0
      %1477 = vmatpush.msra.mxu0 0.0
      %1478 = vmatpush.msra.mxu0 0.0
      %1479 = vmatpush.msra.mxu0 0.0
      %1480 = vmatpush.msra.mxu0 0.0
      %1481 = vmatpush.msra.mxu0 0.0
      %1482 = vmatpush.msra.mxu0 0.0
      %1483 = vmatpush.msra.mxu0 0.0
      %1484 = vmatpush.msra.mxu0 0.0
      %v1485 = vand.u32 %v1339, 4294901760
      %1486 = vmatpush.msra.mxu0 %v1485
      %v1487 = vand.u32 %v1344, 4294901760
      %1488 = vmatmul.f32.gmra.mxu0 %v1487
      %v1489 = vpop.f32.mrf.mxu0
      %v1490 = vadd.f32 %v1468, %v1489
      %1491 = vdwg.mxu0
      %1492 = vmatpush.msra.mxu0 0.0
      %1493 = vmatpush.msra.mxu0 0.0
      %1494 = vmatpush.msra.mxu0 0.0
      %1495 = vmatpush.msra.mxu0 0.0
      %1496 = vmatpush.msra.mxu0 0.0
      %1497 = vmatpush.msra.mxu0 0.0
      %1498 = vmatpush.msra.mxu0 0.0
      %1499 = vmatpush.msra.mxu0 0.0
      %1500 = vmatpush.msra.mxu0 0.0
      %1501 = vmatpush.msra.mxu0 0.0
      %1502 = vmatpush.msra.mxu0 0.0
      %1503 = vmatpush.msra.mxu0 0.0
      %1504 = vmatpush.msra.mxu0 0.0
      %1505 = vmatpush.msra.mxu0 0.0
      %1506 = vmatpush.msra.mxu0 0.0
      %v1507 = vand.u32 %v1340, 4294901760
      %1508 = vmatpush.msra.mxu0 %v1507
      %v1509 = vand.u32 %v1344, 4294901760
      %v1510 = vsub.f32 %v1344, %v1509
      %v1511 = vand.u32 %v1510, 4294901760
      %v1512 = vsub.f32 %v1510, %v1511
      %v1513 = vand.u32 %v1512, 4294901760
      %1514 = vmatmul.f32.gmra.mxu0 %v1513
      %v1515 = vpop.f32.mrf.mxu0
      %v1516 = vadd.f32 0.0, %v1515
      %1517 = vdwg.mxu0
      %1518 = vmatpush.msra.mxu0 0.0
      %1519 = vmatpush.msra.mxu0 0.0
      %1520 = vmatpush.msra.mxu0 0.0
      %1521 = vmatpush.msra.mxu0 0.0
      %1522 = vmatpush.msra.mxu0 0.0
      %1523 = vmatpush.msra.mxu0 0.0
      %1524 = vmatpush.msra.mxu0 0.0
      %1525 = vmatpush.msra.mxu0 0.0
      %1526 = vmatpush.msra.mxu0 0.0
      %1527 = vmatpush.msra.mxu0 0.0
      %1528 = vmatpush.msra.mxu0 0.0
      %1529 = vmatpush.msra.mxu0 0.0
      %1530 = vmatpush.msra.mxu0 0.0
      %1531 = vmatpush.msra.mxu0 0.0
      %1532 = vmatpush.msra.mxu0 0.0
      %v1533 = vand.u32 %v1340, 4294901760
      %v1534 = vsub.f32 %v1340, %v1533
      %v1535 = vand.u32 %v1534, 4294901760
      %v1536 = vsub.f32 %v1534, %v1535
      %v1537 = vand.u32 %v1536, 4294901760
      %1538 = vmatpush.msra.mxu0 %v1537
      %v1539 = vand.u32 %v1344, 4294901760
      %1540 = vmatmul.f32.gmra.mxu0 %v1539
      %v1541 = vpop.f32.mrf.mxu0
      %v1542 = vadd.f32 %v1516, %v1541
      %1543 = vdwg.mxu0
      %1544 = vmatpush.msra.mxu0 0.0
      %1545 = vmatpush.msra.mxu0 0.0
      %1546 = vmatpush.msra.mxu0 0.0
      %1547 = vmatpush.msra.mxu0 0.0
      %1548 = vmatpush.msra.mxu0 0.0
      %1549 = vmatpush.msra.mxu0 0.0
      %1550 = vmatpush.msra.mxu0 0.0
      %1551 = vmatpush.msra.mxu0 0.0
      %1552 = vmatpush.msra.mxu0 0.0
      %1553 = vmatpush.msra.mxu0 0.0
      %1554 = vmatpush.msra.mxu0 0.0
      %1555 = vmatpush.msra.mxu0 0.0
      %1556 = vmatpush.msra.mxu0 0.0
      %1557 = vmatpush.msra.mxu0 0.0
      %1558 = vmatpush.msra.mxu0 0.0
      %v1559 = vand.u32 %v1340, 4294901760
      %v1560 = vsub.f32 %v1340, %v1559
      %1561 = vmatpush.msra.mxu0 %v1560
      %v1562 = vand.u32 %v1344, 4294901760
      %v1563 = vsub.f32 %v1344, %v1562
      %1564 = vmatmul.f32.gmra.mxu0 %v1563
      %v1565 = vpop.f32.mrf.mxu0
      %v1566 = vadd.f32 %v1542, %v1565
      %1567 = vdwg.mxu0
      %1568 = vmatpush.msra.mxu0 0.0
      %1569 = vmatpush.msra.mxu0 0.0
      %1570 = vmatpush.msra.mxu0 0.0
      %1571 = vmatpush.msra.mxu0 0.0
      %1572 = vmatpush.msra.mxu0 0.0
      %1573 = vmatpush.msra.mxu0 0.0
      %1574 = vmatpush.msra.mxu0 0.0
      %1575 = vmatpush.msra.mxu0 0.0
      %1576 = vmatpush.msra.mxu0 0.0
      %1577 = vmatpush.msra.mxu0 0.0
      %1578 = vmatpush.msra.mxu0 0.0
      %1579 = vmatpush.msra.mxu0 0.0
      %1580 = vmatpush.msra.mxu0 0.0
      %1581 = vmatpush.msra.mxu0 0.0
      %1582 = vmatpush.msra.mxu0 0.0
      %v1583 = vand.u32 %v1340, 4294901760
      %1584 = vmatpush.msra.mxu0 %v1583
      %v1585 = vand.u32 %v1344, 4294901760
      %v1586 = vsub.f32 %v1344, %v1585
      %v1587 = vand.u32 %v1586, 4294901760
      %1588 = vmatmul.f32.gmra.mxu0 %v1587
      %v1589 = vpop.f32.mrf.mxu0
      %v1590 = vadd.f32 %v1566, %v1589
      %1591 = vdwg.mxu0
      %1592 = vmatpush.msra.mxu0 0.0
      %1593 = vmatpush.msra.mxu0 0.0
      %1594 = vmatpush.msra.mxu0 0.0
      %1595 = vmatpush.msra.mxu0 0.0
      %1596 = vmatpush.msra.mxu0 0.0
      %1597 = vmatpush.msra.mxu0 0.0
      %1598 = vmatpush.msra.mxu0 0.0
      %1599 = vmatpush.msra.mxu0 0.0
      %1600 = vmatpush.msra.mxu0 0.0
      %1601 = vmatpush.msra.mxu0 0.0
      %1602 = vmatpush.msra.mxu0 0.0
      %1603 = vmatpush.msra.mxu0 0.0
      %1604 = vmatpush.msra.mxu0 0.0
      %1605 = vmatpush.msra.mxu0 0.0
      %1606 = vmatpush.msra.mxu0 0.0
      %v1607 = vand.u32 %v1340, 4294901760
      %v1608 = vsub.f32 %v1340, %v1607
      %v1609 = vand.u32 %v1608, 4294901760
      %1610 = vmatpush.msra.mxu0 %v1609
      %v1611 = vand.u32 %v1344, 4294901760
      %1612 = vmatmul.f32.gmra.mxu0 %v1611
      %v1613 = vpop.f32.mrf.mxu0
      %v1614 = vadd.f32 %v1590, %v1613
      %1615 = vdwg.mxu0
      %1616 = vmatpush.msra.mxu0 0.0
      %1617 = vmatpush.msra.mxu0 0.0
      %1618 = vmatpush.msra.mxu0 0.0
      %1619 = vmatpush.msra.mxu0 0.0
      %1620 = vmatpush.msra.mxu0 0.0
      %1621 = vmatpush.msra.mxu0 0.0
      %1622 = vmatpush.msra.mxu0 0.0
      %1623 = vmatpush.msra.mxu0 0.0
      %1624 = vmatpush.msra.mxu0 0.0
      %1625 = vmatpush.msra.mxu0 0.0
      %1626 = vmatpush.msra.mxu0 0.0
      %1627 = vmatpush.msra.mxu0 0.0
      %1628 = vmatpush.msra.mxu0 0.0
      %1629 = vmatpush.msra.mxu0 0.0
      %1630 = vmatpush.msra.mxu0 0.0
      %v1631 = vand.u32 %v1340, 4294901760
      %1632 = vmatpush.msra.mxu0 %v1631
      %v1633 = vand.u32 %v1344, 4294901760
      %1634 = vmatmul.f32.gmra.mxu0 %v1633
      %v1635 = vpop.f32.mrf.mxu0
      %v1636 = vadd.f32 %v1614, %v1635
      %1637 = vdwg.mxu0
      %v1638 = vadd.f32 %v1328, %v1490
      %v1639 = vadd.f32 %v1329, %v1636
      %s1640 = scalar_lea.vmem %s1, 32
      %v1641 = vld [vmem:[%s1640] sm:$0xff]
      %1642 = vrot.lane.b32.xlu0 %v394, 61
      %v1643 = vpop.permute.xlu0 %1642
      %1644 = vrot.lane.b32.xlu0 %v395, 61
      %v1645 = vpop.permute.xlu0 %1644
      %1646 = vrot.lane.b32.xlu0 %v396, 61
      %v1647 = vpop.permute.xlu0 %1646
      %vm1648 = vcmask 498688
      %v1649 = vsel %vm1648, %v1643, %v1645
      %v1650 = vsel %vm1648, %v1645, %v1647
      %v1654 = vsel %vm412, %v1641, 0
      %1656 = vmatpush.msra.mxu0 0.0
      %1657 = vmatpush.msra.mxu0 0.0
      %1658 = vmatpush.msra.mxu0 0.0
      %1659 = vmatpush.msra.mxu0 0.0
      %1660 = vmatpush.msra.mxu0 0.0
      %1661 = vmatpush.msra.mxu0 0.0
      %1662 = vmatpush.msra.mxu0 0.0
      %1663 = vmatpush.msra.mxu0 0.0
      %1664 = vmatpush.msra.mxu0 0.0
      %1665 = vmatpush.msra.mxu0 0.0
      %1666 = vmatpush.msra.mxu0 0.0
      %1667 = vmatpush.msra.mxu0 0.0
      %1668 = vmatpush.msra.mxu0 0.0
      %1669 = vmatpush.msra.mxu0 0.0
      %1670 = vmatpush.msra.mxu0 0.0
      %v1671 = vand.u32 %v1649, 4294901760
      %1672 = vmatpush.msra.mxu0 %v1671
      %v1673 = vand.u32 %v1654, 4294901760
      %v1674 = vsub.f32 %v1654, %v1673
      %v1675 = vand.u32 %v1674, 4294901760
      %v1676 = vsub.f32 %v1674, %v1675
      %v1677 = vand.u32 %v1676, 4294901760
      %1678 = vmatmul.f32.gmra.mxu0 %v1677
      %v1679 = vpop.f32.mrf.mxu0
      %v1680 = vadd.f32 0.0, %v1679
      %1681 = vdwg.mxu0
      %1682 = vmatpush.msra.mxu0 0.0
      %1683 = vmatpush.msra.mxu0 0.0
      %1684 = vmatpush.msra.mxu0 0.0
      %1685 = vmatpush.msra.mxu0 0.0
      %1686 = vmatpush.msra.mxu0 0.0
      %1687 = vmatpush.msra.mxu0 0.0
      %1688 = vmatpush.msra.mxu0 0.0
      %1689 = vmatpush.msra.mxu0 0.0
      %1690 = vmatpush.msra.mxu0 0.0
      %1691 = vmatpush.msra.mxu0 0.0
      %1692 = vmatpush.msra.mxu0 0.0
      %1693 = vmatpush.msra.mxu0 0.0
      %1694 = vmatpush.msra.mxu0 0.0
      %1695 = vmatpush.msra.mxu0 0.0
      %1696 = vmatpush.msra.mxu0 0.0
      %v1697 = vand.u32 %v1649, 4294901760
      %v1698 = vsub.f32 %v1649, %v1697
      %v1699 = vand.u32 %v1698, 4294901760
      %v1700 = vsub.f32 %v1698, %v1699
      %v1701 = vand.u32 %v1700, 4294901760
      %1702 = vmatpush.msra.mxu0 %v1701
      %v1703 = vand.u32 %v1654, 4294901760
      %1704 = vmatmul.f32.gmra.mxu0 %v1703
      %v1705 = vpop.f32.mrf.mxu0
      %v1706 = vadd.f32 %v1680, %v1705
      %1707 = vdwg.mxu0
      %1708 = vmatpush.msra.mxu0 0.0
      %1709 = vmatpush.msra.mxu0 0.0
      %1710 = vmatpush.msra.mxu0 0.0
      %1711 = vmatpush.msra.mxu0 0.0
      %1712 = vmatpush.msra.mxu0 0.0
      %1713 = vmatpush.msra.mxu0 0.0
      %1714 = vmatpush.msra.mxu0 0.0
      %1715 = vmatpush.msra.mxu0 0.0
      %1716 = vmatpush.msra.mxu0 0.0
      %1717 = vmatpush.msra.mxu0 0.0
      %1718 = vmatpush.msra.mxu0 0.0
      %1719 = vmatpush.msra.mxu0 0.0
      %1720 = vmatpush.msra.mxu0 0.0
      %1721 = vmatpush.msra.mxu0 0.0
      %1722 = vmatpush.msra.mxu0 0.0
      %v1723 = vand.u32 %v1649, 4294901760
      %v1724 = vsub.f32 %v1649, %v1723
      %1725 = vmatpush.msra.mxu0 %v1724
      %v1726 = vand.u32 %v1654, 4294901760
      %v1727 = vsub.f32 %v1654, %v1726
      %1728 = vmatmul.f32.gmra.mxu0 %v1727
      %v1729 = vpop.f32.mrf.mxu0
      %v1730 = vadd.f32 %v1706, %v1729
      %1731 = vdwg.mxu0
      %1732 = vmatpush.msra.mxu0 0.0
      %1733 = vmatpush.msra.mxu0 0.0
      %1734 = vmatpush.msra.mxu0 0.0
      %1735 = vmatpush.msra.mxu0 0.0
      %1736 = vmatpush.msra.mxu0 0.0
      %1737 = vmatpush.msra.mxu0 0.0
      %1738 = vmatpush.msra.mxu0 0.0
      %1739 = vmatpush.msra.mxu0 0.0
      %1740 = vmatpush.msra.mxu0 0.0
      %1741 = vmatpush.msra.mxu0 0.0
      %1742 = vmatpush.msra.mxu0 0.0
      %1743 = vmatpush.msra.mxu0 0.0
      %1744 = vmatpush.msra.mxu0 0.0
      %1745 = vmatpush.msra.mxu0 0.0
      %1746 = vmatpush.msra.mxu0 0.0
      %v1747 = vand.u32 %v1649, 4294901760
      %1748 = vmatpush.msra.mxu0 %v1747
      %v1749 = vand.u32 %v1654, 4294901760
      %v1750 = vsub.f32 %v1654, %v1749
      %v1751 = vand.u32 %v1750, 4294901760
      %1752 = vmatmul.f32.gmra.mxu0 %v1751
      %v1753 = vpop.f32.mrf.mxu0
      %v1754 = vadd.f32 %v1730, %v1753
      %1755 = vdwg.mxu0
      %1756 = vmatpush.msra.mxu0 0.0
      %1757 = vmatpush.msra.mxu0 0.0
      %1758 = vmatpush.msra.mxu0 0.0
      %1759 = vmatpush.msra.mxu0 0.0
      %1760 = vmatpush.msra.mxu0 0.0
      %1761 = vmatpush.msra.mxu0 0.0
      %1762 = vmatpush.msra.mxu0 0.0
      %1763 = vmatpush.msra.mxu0 0.0
      %1764 = vmatpush.msra.mxu0 0.0
      %1765 = vmatpush.msra.mxu0 0.0
      %1766 = vmatpush.msra.mxu0 0.0
      %1767 = vmatpush.msra.mxu0 0.0
      %1768 = vmatpush.msra.mxu0 0.0
      %1769 = vmatpush.msra.mxu0 0.0
      %1770 = vmatpush.msra.mxu0 0.0
      %v1771 = vand.u32 %v1649, 4294901760
      %v1772 = vsub.f32 %v1649, %v1771
      %v1773 = vand.u32 %v1772, 4294901760
      %1774 = vmatpush.msra.mxu0 %v1773
      %v1775 = vand.u32 %v1654, 4294901760
      %1776 = vmatmul.f32.gmra.mxu0 %v1775
      %v1777 = vpop.f32.mrf.mxu0
      %v1778 = vadd.f32 %v1754, %v1777
      %1779 = vdwg.mxu0
      %1780 = vmatpush.msra.mxu0 0.0
      %1781 = vmatpush.msra.mxu0 0.0
      %1782 = vmatpush.msra.mxu0 0.0
      %1783 = vmatpush.msra.mxu0 0.0
      %1784 = vmatpush.msra.mxu0 0.0
      %1785 = vmatpush.msra.mxu0 0.0
      %1786 = vmatpush.msra.mxu0 0.0
      %1787 = vmatpush.msra.mxu0 0.0
      %1788 = vmatpush.msra.mxu0 0.0
      %1789 = vmatpush.msra.mxu0 0.0
      %1790 = vmatpush.msra.mxu0 0.0
      %1791 = vmatpush.msra.mxu0 0.0
      %1792 = vmatpush.msra.mxu0 0.0
      %1793 = vmatpush.msra.mxu0 0.0
      %1794 = vmatpush.msra.mxu0 0.0
      %v1795 = vand.u32 %v1649, 4294901760
      %1796 = vmatpush.msra.mxu0 %v1795
      %v1797 = vand.u32 %v1654, 4294901760
      %1798 = vmatmul.f32.gmra.mxu0 %v1797
      %v1799 = vpop.f32.mrf.mxu0
      %v1800 = vadd.f32 %v1778, %v1799
      %1801 = vdwg.mxu0
      %1802 = vmatpush.msra.mxu0 0.0
      %1803 = vmatpush.msra.mxu0 0.0
      %1804 = vmatpush.msra.mxu0 0.0
      %1805 = vmatpush.msra.mxu0 0.0
      %1806 = vmatpush.msra.mxu0 0.0
      %1807 = vmatpush.msra.mxu0 0.0
      %1808 = vmatpush.msra.mxu0 0.0
      %1809 = vmatpush.msra.mxu0 0.0
      %1810 = vmatpush.msra.mxu0 0.0
      %1811 = vmatpush.msra.mxu0 0.0
      %1812 = vmatpush.msra.mxu0 0.0
      %1813 = vmatpush.msra.mxu0 0.0
      %1814 = vmatpush.msra.mxu0 0.0
      %1815 = vmatpush.msra.mxu0 0.0
      %1816 = vmatpush.msra.mxu0 0.0
      %v1817 = vand.u32 %v1650, 4294901760
      %1818 = vmatpush.msra.mxu0 %v1817
      %v1819 = vand.u32 %v1654, 4294901760
      %v1820 = vsub.f32 %v1654, %v1819
      %v1821 = vand.u32 %v1820, 4294901760
      %v1822 = vsub.f32 %v1820, %v1821
      %v1823 = vand.u32 %v1822, 4294901760
      %1824 = vmatmul.f32.gmra.mxu0 %v1823
      %v1825 = vpop.f32.mrf.mxu0
      %v1826 = vadd.f32 0.0, %v1825
      %1827 = vdwg.mxu0
      %1828 = vmatpush.msra.mxu0 0.0
      %1829 = vmatpush.msra.mxu0 0.0
      %1830 = vmatpush.msra.mxu0 0.0
      %1831 = vmatpush.msra.mxu0 0.0
      %1832 = vmatpush.msra.mxu0 0.0
      %1833 = vmatpush.msra.mxu0 0.0
      %1834 = vmatpush.msra.mxu0 0.0
      %1835 = vmatpush.msra.mxu0 0.0
      %1836 = vmatpush.msra.mxu0 0.0
      %1837 = vmatpush.msra.mxu0 0.0
      %1838 = vmatpush.msra.mxu0 0.0
      %1839 = vmatpush.msra.mxu0 0.0
      %1840 = vmatpush.msra.mxu0 0.0
      %1841 = vmatpush.msra.mxu0 0.0
      %1842 = vmatpush.msra.mxu0 0.0
      %v1843 = vand.u32 %v1650, 4294901760
      %v1844 = vsub.f32 %v1650, %v1843
      %v1845 = vand.u32 %v1844, 4294901760
      %v1846 = vsub.f32 %v1844, %v1845
      %v1847 = vand.u32 %v1846, 4294901760
      %1848 = vmatpush.msra.mxu0 %v1847
      %v1849 = vand.u32 %v1654, 4294901760
      %1850 = vmatmul.f32.gmra.mxu0 %v1849
      %v1851 = vpop.f32.mrf.mxu0
      %v1852 = vadd.f32 %v1826, %v1851
      %1853 = vdwg.mxu0
      %1854 = vmatpush.msra.mxu0 0.0
      %1855 = vmatpush.msra.mxu0 0.0
      %1856 = vmatpush.msra.mxu0 0.0
      %1857 = vmatpush.msra.mxu0 0.0
      %1858 = vmatpush.msra.mxu0 0.0
      %1859 = vmatpush.msra.mxu0 0.0
      %1860 = vmatpush.msra.mxu0 0.0
      %1861 = vmatpush.msra.mxu0 0.0
      %1862 = vmatpush.msra.mxu0 0.0
      %1863 = vmatpush.msra.mxu0 0.0
      %1864 = vmatpush.msra.mxu0 0.0
      %1865 = vmatpush.msra.mxu0 0.0
      %1866 = vmatpush.msra.mxu0 0.0
      %1867 = vmatpush.msra.mxu0 0.0
      %1868 = vmatpush.msra.mxu0 0.0
      %v1869 = vand.u32 %v1650, 4294901760
      %v1870 = vsub.f32 %v1650, %v1869
      %1871 = vmatpush.msra.mxu0 %v1870
      %v1872 = vand.u32 %v1654, 4294901760
      %v1873 = vsub.f32 %v1654, %v1872
      %1874 = vmatmul.f32.gmra.mxu0 %v1873
      %v1875 = vpop.f32.mrf.mxu0
      %v1876 = vadd.f32 %v1852, %v1875
      %1877 = vdwg.mxu0
      %1878 = vmatpush.msra.mxu0 0.0
      %1879 = vmatpush.msra.mxu0 0.0
      %1880 = vmatpush.msra.mxu0 0.0
      %1881 = vmatpush.msra.mxu0 0.0
      %1882 = vmatpush.msra.mxu0 0.0
      %1883 = vmatpush.msra.mxu0 0.0
      %1884 = vmatpush.msra.mxu0 0.0
      %1885 = vmatpush.msra.mxu0 0.0
      %1886 = vmatpush.msra.mxu0 0.0
      %1887 = vmatpush.msra.mxu0 0.0
      %1888 = vmatpush.msra.mxu0 0.0
      %1889 = vmatpush.msra.mxu0 0.0
      %1890 = vmatpush.msra.mxu0 0.0
      %1891 = vmatpush.msra.mxu0 0.0
      %1892 = vmatpush.msra.mxu0 0.0
      %v1893 = vand.u32 %v1650, 4294901760
      %1894 = vmatpush.msra.mxu0 %v1893
      %v1895 = vand.u32 %v1654, 4294901760
      %v1896 = vsub.f32 %v1654, %v1895
      %v1897 = vand.u32 %v1896, 4294901760
      %1898 = vmatmul.f32.gmra.mxu0 %v1897
      %v1899 = vpop.f32.mrf.mxu0
      %v1900 = vadd.f32 %v1876, %v1899
      %1901 = vdwg.mxu0
      %1902 = vmatpush.msra.mxu0 0.0
      %1903 = vmatpush.msra.mxu0 0.0
      %1904 = vmatpush.msra.mxu0 0.0
      %1905 = vmatpush.msra.mxu0 0.0
      %1906 = vmatpush.msra.mxu0 0.0
      %1907 = vmatpush.msra.mxu0 0.0
      %1908 = vmatpush.msra.mxu0 0.0
      %1909 = vmatpush.msra.mxu0 0.0
      %1910 = vmatpush.msra.mxu0 0.0
      %1911 = vmatpush.msra.mxu0 0.0
      %1912 = vmatpush.msra.mxu0 0.0
      %1913 = vmatpush.msra.mxu0 0.0
      %1914 = vmatpush.msra.mxu0 0.0
      %1915 = vmatpush.msra.mxu0 0.0
      %1916 = vmatpush.msra.mxu0 0.0
      %v1917 = vand.u32 %v1650, 4294901760
      %v1918 = vsub.f32 %v1650, %v1917
      %v1919 = vand.u32 %v1918, 4294901760
      %1920 = vmatpush.msra.mxu0 %v1919
      %v1921 = vand.u32 %v1654, 4294901760
      %1922 = vmatmul.f32.gmra.mxu0 %v1921
      %v1923 = vpop.f32.mrf.mxu0
      %v1924 = vadd.f32 %v1900, %v1923
      %1925 = vdwg.mxu0
      %1926 = vmatpush.msra.mxu0 0.0
      %1927 = vmatpush.msra.mxu0 0.0
      %1928 = vmatpush.msra.mxu0 0.0
      %1929 = vmatpush.msra.mxu0 0.0
      %1930 = vmatpush.msra.mxu0 0.0
      %1931 = vmatpush.msra.mxu0 0.0
      %1932 = vmatpush.msra.mxu0 0.0
      %1933 = vmatpush.msra.mxu0 0.0
      %1934 = vmatpush.msra.mxu0 0.0
      %1935 = vmatpush.msra.mxu0 0.0
      %1936 = vmatpush.msra.mxu0 0.0
      %1937 = vmatpush.msra.mxu0 0.0
      %1938 = vmatpush.msra.mxu0 0.0
      %1939 = vmatpush.msra.mxu0 0.0
      %1940 = vmatpush.msra.mxu0 0.0
      %v1941 = vand.u32 %v1650, 4294901760
      %1942 = vmatpush.msra.mxu0 %v1941
      %v1943 = vand.u32 %v1654, 4294901760
      %1944 = vmatmul.f32.gmra.mxu0 %v1943
      %v1945 = vpop.f32.mrf.mxu0
      %v1946 = vadd.f32 %v1924, %v1945
      %1947 = vdwg.mxu0
      %v1948 = vadd.f32 %v1638, %v1800
      %v1949 = vadd.f32 %v1639, %v1946
      %s1950 = scalar_lea.vmem %s1, 40
      %v1951 = vld [vmem:[%s1950] sm:$0xff]
      %1952 = vrot.lane.b32.xlu0 %v394, 45
      %v1953 = vpop.permute.xlu0 %1952
      %1954 = vrot.lane.b32.xlu0 %v395, 45
      %v1955 = vpop.permute.xlu0 %1954
      %1956 = vrot.lane.b32.xlu0 %v396, 45
      %v1957 = vpop.permute.xlu0 %1956
      %vm1958 = vcmask 367616
      %v1959 = vsel %vm1958, %v1953, %v1955
      %v1960 = vsel %vm1958, %v1955, %v1957
      %v1964 = vsel %vm412, %v1951, 0
      %1966 = vmatpush.msra.mxu0 0.0
      %1967 = vmatpush.msra.mxu0 0.0
      %1968 = vmatpush.msra.mxu0 0.0
      %1969 = vmatpush.msra.mxu0 0.0
      %1970 = vmatpush.msra.mxu0 0.0
      %1971 = vmatpush.msra.mxu0 0.0
      %1972 = vmatpush.msra.mxu0 0.0
      %1973 = vmatpush.msra.mxu0 0.0
      %1974 = vmatpush.msra.mxu0 0.0
      %1975 = vmatpush.msra.mxu0 0.0
      %1976 = vmatpush.msra.mxu0 0.0
      %1977 = vmatpush.msra.mxu0 0.0
      %1978 = vmatpush.msra.mxu0 0.0
      %1979 = vmatpush.msra.mxu0 0.0
      %1980 = vmatpush.msra.mxu0 0.0
      %v1981 = vand.u32 %v1959, 4294901760
      %1982 = vmatpush.msra.mxu0 %v1981
      %v1983 = vand.u32 %v1964, 4294901760
      %v1984 = vsub.f32 %v1964, %v1983
      %v1985 = vand.u32 %v1984, 4294901760
      %v1986 = vsub.f32 %v1984, %v1985
      %v1987 = vand.u32 %v1986, 4294901760
      %1988 = vmatmul.f32.gmra.mxu0 %v1987
      %v1989 = vpop.f32.mrf.mxu0
      %v1990 = vadd.f32 0.0, %v1989
      %1991 = vdwg.mxu0
      %1992 = vmatpush.msra.mxu0 0.0
      %1993 = vmatpush.msra.mxu0 0.0
      %1994 = vmatpush.msra.mxu0 0.0
      %1995 = vmatpush.msra.mxu0 0.0
      %1996 = vmatpush.msra.mxu0 0.0
      %1997 = vmatpush.msra.mxu0 0.0
      %1998 = vmatpush.msra.mxu0 0.0
      %1999 = vmatpush.msra.mxu0 0.0
      %2000 = vmatpush.msra.mxu0 0.0
      %2001 = vmatpush.msra.mxu0 0.0
      %2002 = vmatpush.msra.mxu0 0.0
      %2003 = vmatpush.msra.mxu0 0.0
      %2004 = vmatpush.msra.mxu0 0.0
      %2005 = vmatpush.msra.mxu0 0.0
      %2006 = vmatpush.msra.mxu0 0.0
      %v2007 = vand.u32 %v1959, 4294901760
      %v2008 = vsub.f32 %v1959, %v2007
      %v2009 = vand.u32 %v2008, 4294901760
      %v2010 = vsub.f32 %v2008, %v2009
      %v2011 = vand.u32 %v2010, 4294901760
      %2012 = vmatpush.msra.mxu0 %v2011
      %v2013 = vand.u32 %v1964, 4294901760
      %2014 = vmatmul.f32.gmra.mxu0 %v2013
      %v2015 = vpop.f32.mrf.mxu0
      %v2016 = vadd.f32 %v1990, %v2015
      %2017 = vdwg.mxu0
      %2018 = vmatpush.msra.mxu0 0.0
      %2019 = vmatpush.msra.mxu0 0.0
      %2020 = vmatpush.msra.mxu0 0.0
      %2021 = vmatpush.msra.mxu0 0.0
      %2022 = vmatpush.msra.mxu0 0.0
      %2023 = vmatpush.msra.mxu0 0.0
      %2024 = vmatpush.msra.mxu0 0.0
      %2025 = vmatpush.msra.mxu0 0.0
      %2026 = vmatpush.msra.mxu0 0.0
      %2027 = vmatpush.msra.mxu0 0.0
      %2028 = vmatpush.msra.mxu0 0.0
      %2029 = vmatpush.msra.mxu0 0.0
      %2030 = vmatpush.msra.mxu0 0.0
      %2031 = vmatpush.msra.mxu0 0.0
      %2032 = vmatpush.msra.mxu0 0.0
      %v2033 = vand.u32 %v1959, 4294901760
      %v2034 = vsub.f32 %v1959, %v2033
      %2035 = vmatpush.msra.mxu0 %v2034
      %v2036 = vand.u32 %v1964, 4294901760
      %v2037 = vsub.f32 %v1964, %v2036
      %2038 = vmatmul.f32.gmra.mxu0 %v2037
      %v2039 = vpop.f32.mrf.mxu0
      %v2040 = vadd.f32 %v2016, %v2039
      %2041 = vdwg.mxu0
      %2042 = vmatpush.msra.mxu0 0.0
      %2043 = vmatpush.msra.mxu0 0.0
      %2044 = vmatpush.msra.mxu0 0.0
      %2045 = vmatpush.msra.mxu0 0.0
      %2046 = vmatpush.msra.mxu0 0.0
      %2047 = vmatpush.msra.mxu0 0.0
      %2048 = vmatpush.msra.mxu0 0.0
      %2049 = vmatpush.msra.mxu0 0.0
      %2050 = vmatpush.msra.mxu0 0.0
      %2051 = vmatpush.msra.mxu0 0.0
      %2052 = vmatpush.msra.mxu0 0.0
      %2053 = vmatpush.msra.mxu0 0.0
      %2054 = vmatpush.msra.mxu0 0.0
      %2055 = vmatpush.msra.mxu0 0.0
      %2056 = vmatpush.msra.mxu0 0.0
      %v2057 = vand.u32 %v1959, 4294901760
      %2058 = vmatpush.msra.mxu0 %v2057
      %v2059 = vand.u32 %v1964, 4294901760
      %v2060 = vsub.f32 %v1964, %v2059
      %v2061 = vand.u32 %v2060, 4294901760
      %2062 = vmatmul.f32.gmra.mxu0 %v2061
      %v2063 = vpop.f32.mrf.mxu0
      %v2064 = vadd.f32 %v2040, %v2063
      %2065 = vdwg.mxu0
      %2066 = vmatpush.msra.mxu0 0.0
      %2067 = vmatpush.msra.mxu0 0.0
      %2068 = vmatpush.msra.mxu0 0.0
      %2069 = vmatpush.msra.mxu0 0.0
      %2070 = vmatpush.msra.mxu0 0.0
      %2071 = vmatpush.msra.mxu0 0.0
      %2072 = vmatpush.msra.mxu0 0.0
      %2073 = vmatpush.msra.mxu0 0.0
      %2074 = vmatpush.msra.mxu0 0.0
      %2075 = vmatpush.msra.mxu0 0.0
      %2076 = vmatpush.msra.mxu0 0.0
      %2077 = vmatpush.msra.mxu0 0.0
      %2078 = vmatpush.msra.mxu0 0.0
      %2079 = vmatpush.msra.mxu0 0.0
      %2080 = vmatpush.msra.mxu0 0.0
      %v2081 = vand.u32 %v1959, 4294901760
      %v2082 = vsub.f32 %v1959, %v2081
      %v2083 = vand.u32 %v2082, 4294901760
      %2084 = vmatpush.msra.mxu0 %v2083
      %v2085 = vand.u32 %v1964, 4294901760
      %2086 = vmatmul.f32.gmra.mxu0 %v2085
      %v2087 = vpop.f32.mrf.mxu0
      %v2088 = vadd.f32 %v2064, %v2087
      %2089 = vdwg.mxu0
      %2090 = vmatpush.msra.mxu0 0.0
      %2091 = vmatpush.msra.mxu0 0.0
      %2092 = vmatpush.msra.mxu0 0.0
      %2093 = vmatpush.msra.mxu0 0.0
      %2094 = vmatpush.msra.mxu0 0.0
      %2095 = vmatpush.msra.mxu0 0.0
      %2096 = vmatpush.msra.mxu0 0.0
      %2097 = vmatpush.msra.mxu0 0.0
      %2098 = vmatpush.msra.mxu0 0.0
      %2099 = vmatpush.msra.mxu0 0.0
      %2100 = vmatpush.msra.mxu0 0.0
      %2101 = vmatpush.msra.mxu0 0.0
      %2102 = vmatpush.msra.mxu0 0.0
      %2103 = vmatpush.msra.mxu0 0.0
      %2104 = vmatpush.msra.mxu0 0.0
      %v2105 = vand.u32 %v1959, 4294901760
      %2106 = vmatpush.msra.mxu0 %v2105
      %v2107 = vand.u32 %v1964, 4294901760
      %2108 = vmatmul.f32.gmra.mxu0 %v2107
      %v2109 = vpop.f32.mrf.mxu0
      %v2110 = vadd.f32 %v2088, %v2109
      %2111 = vdwg.mxu0
      %2112 = vmatpush.msra.mxu0 0.0
      %2113 = vmatpush.msra.mxu0 0.0
      %2114 = vmatpush.msra.mxu0 0.0
      %2115 = vmatpush.msra.mxu0 0.0
      %2116 = vmatpush.msra.mxu0 0.0
      %2117 = vmatpush.msra.mxu0 0.0
      %2118 = vmatpush.msra.mxu0 0.0
      %2119 = vmatpush.msra.mxu0 0.0
      %2120 = vmatpush.msra.mxu0 0.0
      %2121 = vmatpush.msra.mxu0 0.0
      %2122 = vmatpush.msra.mxu0 0.0
      %2123 = vmatpush.msra.mxu0 0.0
      %2124 = vmatpush.msra.mxu0 0.0
      %2125 = vmatpush.msra.mxu0 0.0
      %2126 = vmatpush.msra.mxu0 0.0
      %v2127 = vand.u32 %v1960, 4294901760
      %2128 = vmatpush.msra.mxu0 %v2127
      %v2129 = vand.u32 %v1964, 4294901760
      %v2130 = vsub.f32 %v1964, %v2129
      %v2131 = vand.u32 %v2130, 4294901760
      %v2132 = vsub.f32 %v2130, %v2131
      %v2133 = vand.u32 %v2132, 4294901760
      %2134 = vmatmul.f32.gmra.mxu0 %v2133
      %v2135 = vpop.f32.mrf.mxu0
      %v2136 = vadd.f32 0.0, %v2135
      %2137 = vdwg.mxu0
      %2138 = vmatpush.msra.mxu0 0.0
      %2139 = vmatpush.msra.mxu0 0.0
      %2140 = vmatpush.msra.mxu0 0.0
      %2141 = vmatpush.msra.mxu0 0.0
      %2142 = vmatpush.msra.mxu0 0.0
      %2143 = vmatpush.msra.mxu0 0.0
      %2144 = vmatpush.msra.mxu0 0.0
      %2145 = vmatpush.msra.mxu0 0.0
      %2146 = vmatpush.msra.mxu0 0.0
      %2147 = vmatpush.msra.mxu0 0.0
      %2148 = vmatpush.msra.mxu0 0.0
      %2149 = vmatpush.msra.mxu0 0.0
      %2150 = vmatpush.msra.mxu0 0.0
      %2151 = vmatpush.msra.mxu0 0.0
      %2152 = vmatpush.msra.mxu0 0.0
      %v2153 = vand.u32 %v1960, 4294901760
      %v2154 = vsub.f32 %v1960, %v2153
      %v2155 = vand.u32 %v2154, 4294901760
      %v2156 = vsub.f32 %v2154, %v2155
      %v2157 = vand.u32 %v2156, 4294901760
      %2158 = vmatpush.msra.mxu0 %v2157
      %v2159 = vand.u32 %v1964, 4294901760
      %2160 = vmatmul.f32.gmra.mxu0 %v2159
      %v2161 = vpop.f32.mrf.mxu0
      %v2162 = vadd.f32 %v2136, %v2161
      %2163 = vdwg.mxu0
      %2164 = vmatpush.msra.mxu0 0.0
      %2165 = vmatpush.msra.mxu0 0.0
      %2166 = vmatpush.msra.mxu0 0.0
      %2167 = vmatpush.msra.mxu0 0.0
      %2168 = vmatpush.msra.mxu0 0.0
      %2169 = vmatpush.msra.mxu0 0.0
      %2170 = vmatpush.msra.mxu0 0.0
      %2171 = vmatpush.msra.mxu0 0.0
      %2172 = vmatpush.msra.mxu0 0.0
      %2173 = vmatpush.msra.mxu0 0.0
      %2174 = vmatpush.msra.mxu0 0.0
      %2175 = vmatpush.msra.mxu0 0.0
      %2176 = vmatpush.msra.mxu0 0.0
      %2177 = vmatpush.msra.mxu0 0.0
      %2178 = vmatpush.msra.mxu0 0.0
      %v2179 = vand.u32 %v1960, 4294901760
      %v2180 = vsub.f32 %v1960, %v2179
      %2181 = vmatpush.msra.mxu0 %v2180
      %v2182 = vand.u32 %v1964, 4294901760
      %v2183 = vsub.f32 %v1964, %v2182
      %2184 = vmatmul.f32.gmra.mxu0 %v2183
      %v2185 = vpop.f32.mrf.mxu0
      %v2186 = vadd.f32 %v2162, %v2185
      %2187 = vdwg.mxu0
      %2188 = vmatpush.msra.mxu0 0.0
      %2189 = vmatpush.msra.mxu0 0.0
      %2190 = vmatpush.msra.mxu0 0.0
      %2191 = vmatpush.msra.mxu0 0.0
      %2192 = vmatpush.msra.mxu0 0.0
      %2193 = vmatpush.msra.mxu0 0.0
      %2194 = vmatpush.msra.mxu0 0.0
      %2195 = vmatpush.msra.mxu0 0.0
      %2196 = vmatpush.msra.mxu0 0.0
      %2197 = vmatpush.msra.mxu0 0.0
      %2198 = vmatpush.msra.mxu0 0.0
      %2199 = vmatpush.msra.mxu0 0.0
      %2200 = vmatpush.msra.mxu0 0.0
      %2201 = vmatpush.msra.mxu0 0.0
      %2202 = vmatpush.msra.mxu0 0.0
      %v2203 = vand.u32 %v1960, 4294901760
      %2204 = vmatpush.msra.mxu0 %v2203
      %v2205 = vand.u32 %v1964, 4294901760
      %v2206 = vsub.f32 %v1964, %v2205
      %v2207 = vand.u32 %v2206, 4294901760
      %2208 = vmatmul.f32.gmra.mxu0 %v2207
      %v2209 = vpop.f32.mrf.mxu0
      %v2210 = vadd.f32 %v2186, %v2209
      %2211 = vdwg.mxu0
      %2212 = vmatpush.msra.mxu0 0.0
      %2213 = vmatpush.msra.mxu0 0.0
      %2214 = vmatpush.msra.mxu0 0.0
      %2215 = vmatpush.msra.mxu0 0.0
      %2216 = vmatpush.msra.mxu0 0.0
      %2217 = vmatpush.msra.mxu0 0.0
      %2218 = vmatpush.msra.mxu0 0.0
      %2219 = vmatpush.msra.mxu0 0.0
      %2220 = vmatpush.msra.mxu0 0.0
      %2221 = vmatpush.msra.mxu0 0.0
      %2222 = vmatpush.msra.mxu0 0.0
      %2223 = vmatpush.msra.mxu0 0.0
      %2224 = vmatpush.msra.mxu0 0.0
      %2225 = vmatpush.msra.mxu0 0.0
      %2226 = vmatpush.msra.mxu0 0.0
      %v2227 = vand.u32 %v1960, 4294901760
      %v2228 = vsub.f32 %v1960, %v2227
      %v2229 = vand.u32 %v2228, 4294901760
      %2230 = vmatpush.msra.mxu0 %v2229
      %v2231 = vand.u32 %v1964, 4294901760
      %2232 = vmatmul.f32.gmra.mxu0 %v2231
      %v2233 = vpop.f32.mrf.mxu0
      %v2234 = vadd.f32 %v2210, %v2233
      %2235 = vdwg.mxu0
      %2236 = vmatpush.msra.mxu0 0.0
      %2237 = vmatpush.msra.mxu0 0.0
      %2238 = vmatpush.msra.mxu0 0.0
      %2239 = vmatpush.msra.mxu0 0.0
      %2240 = vmatpush.msra.mxu0 0.0
      %2241 = vmatpush.msra.mxu0 0.0
      %2242 = vmatpush.msra.mxu0 0.0
      %2243 = vmatpush.msra.mxu0 0.0
      %2244 = vmatpush.msra.mxu0 0.0
      %2245 = vmatpush.msra.mxu0 0.0
      %2246 = vmatpush.msra.mxu0 0.0
      %2247 = vmatpush.msra.mxu0 0.0
      %2248 = vmatpush.msra.mxu0 0.0
      %2249 = vmatpush.msra.mxu0 0.0
      %2250 = vmatpush.msra.mxu0 0.0
      %v2251 = vand.u32 %v1960, 4294901760
      %2252 = vmatpush.msra.mxu0 %v2251
      %v2253 = vand.u32 %v1964, 4294901760
      %2254 = vmatmul.f32.gmra.mxu0 %v2253
      %v2255 = vpop.f32.mrf.mxu0
      %v2256 = vadd.f32 %v2234, %v2255
      %2257 = vdwg.mxu0
      %v2258 = vadd.f32 %v1948, %v2110
      %v2259 = vadd.f32 %v1949, %v2256
      %s2260 = scalar_lea.vmem %s1, 48
      %v2261 = vld [vmem:[%s2260] sm:$0xff]
      %2262 = vrot.lane.b32.xlu0 %v394, 29
      %v2263 = vpop.permute.xlu0 %2262
      %2264 = vrot.lane.b32.xlu0 %v395, 29
      %v2265 = vpop.permute.xlu0 %2264
      %2266 = vrot.lane.b32.xlu0 %v396, 29
      %v2267 = vpop.permute.xlu0 %2266
      %vm2268 = vcmask 236544
      %v2269 = vsel %vm2268, %v2263, %v2265
      %v2270 = vsel %vm2268, %v2265, %v2267
      %v2274 = vsel %vm412, %v2261, 0
      %2276 = vmatpush.msra.mxu0 0.0
      %2277 = vmatpush.msra.mxu0 0.0
      %2278 = vmatpush.msra.mxu0 0.0
      %2279 = vmatpush.msra.mxu0 0.0
      %2280 = vmatpush.msra.mxu0 0.0
      %2281 = vmatpush.msra.mxu0 0.0
      %2282 = vmatpush.msra.mxu0 0.0
      %2283 = vmatpush.msra.mxu0 0.0
      %2284 = vmatpush.msra.mxu0 0.0
      %2285 = vmatpush.msra.mxu0 0.0
      %2286 = vmatpush.msra.mxu0 0.0
      %2287 = vmatpush.msra.mxu0 0.0
      %2288 = vmatpush.msra.mxu0 0.0
      %2289 = vmatpush.msra.mxu0 0.0
      %2290 = vmatpush.msra.mxu0 0.0
      %v2291 = vand.u32 %v2269, 4294901760
      %2292 = vmatpush.msra.mxu0 %v2291
      %v2293 = vand.u32 %v2274, 4294901760
      %v2294 = vsub.f32 %v2274, %v2293
      %v2295 = vand.u32 %v2294, 4294901760
      %v2296 = vsub.f32 %v2294, %v2295
      %v2297 = vand.u32 %v2296, 4294901760
      %2298 = vmatmul.f32.gmra.mxu0 %v2297
      %v2299 = vpop.f32.mrf.mxu0
      %v2300 = vadd.f32 0.0, %v2299
      %2301 = vdwg.mxu0
      %2302 = vmatpush.msra.mxu0 0.0
      %2303 = vmatpush.msra.mxu0 0.0
      %2304 = vmatpush.msra.mxu0 0.0
      %2305 = vmatpush.msra.mxu0 0.0
      %2306 = vmatpush.msra.mxu0 0.0
      %2307 = vmatpush.msra.mxu0 0.0
      %2308 = vmatpush.msra.mxu0 0.0
      %2309 = vmatpush.msra.mxu0 0.0
      %2310 = vmatpush.msra.mxu0 0.0
      %2311 = vmatpush.msra.mxu0 0.0
      %2312 = vmatpush.msra.mxu0 0.0
      %2313 = vmatpush.msra.mxu0 0.0
      %2314 = vmatpush.msra.mxu0 0.0
      %2315 = vmatpush.msra.mxu0 0.0
      %2316 = vmatpush.msra.mxu0 0.0
      %v2317 = vand.u32 %v2269, 4294901760
      %v2318 = vsub.f32 %v2269, %v2317
      %v2319 = vand.u32 %v2318, 4294901760
      %v2320 = vsub.f32 %v2318, %v2319
      %v2321 = vand.u32 %v2320, 4294901760
      %2322 = vmatpush.msra.mxu0 %v2321
      %v2323 = vand.u32 %v2274, 4294901760
      %2324 = vmatmul.f32.gmra.mxu0 %v2323
      %v2325 = vpop.f32.mrf.mxu0
      %v2326 = vadd.f32 %v2300, %v2325
      %2327 = vdwg.mxu0
      %2328 = vmatpush.msra.mxu0 0.0
      %2329 = vmatpush.msra.mxu0 0.0
      %2330 = vmatpush.msra.mxu0 0.0
      %2331 = vmatpush.msra.mxu0 0.0
      %2332 = vmatpush.msra.mxu0 0.0
      %2333 = vmatpush.msra.mxu0 0.0
      %2334 = vmatpush.msra.mxu0 0.0
      %2335 = vmatpush.msra.mxu0 0.0
      %2336 = vmatpush.msra.mxu0 0.0
      %2337 = vmatpush.msra.mxu0 0.0
      %2338 = vmatpush.msra.mxu0 0.0
      %2339 = vmatpush.msra.mxu0 0.0
      %2340 = vmatpush.msra.mxu0 0.0
      %2341 = vmatpush.msra.mxu0 0.0
      %2342 = vmatpush.msra.mxu0 0.0
      %v2343 = vand.u32 %v2269, 4294901760
      %v2344 = vsub.f32 %v2269, %v2343
      %2345 = vmatpush.msra.mxu0 %v2344
      %v2346 = vand.u32 %v2274, 4294901760
      %v2347 = vsub.f32 %v2274, %v2346
      %2348 = vmatmul.f32.gmra.mxu0 %v2347
      %v2349 = vpop.f32.mrf.mxu0
      %v2350 = vadd.f32 %v2326, %v2349
      %2351 = vdwg.mxu0
      %2352 = vmatpush.msra.mxu0 0.0
      %2353 = vmatpush.msra.mxu0 0.0
      %2354 = vmatpush.msra.mxu0 0.0
      %2355 = vmatpush.msra.mxu0 0.0
      %2356 = vmatpush.msra.mxu0 0.0
      %2357 = vmatpush.msra.mxu0 0.0
      %2358 = vmatpush.msra.mxu0 0.0
      %2359 = vmatpush.msra.mxu0 0.0
      %2360 = vmatpush.msra.mxu0 0.0
      %2361 = vmatpush.msra.mxu0 0.0
      %2362 = vmatpush.msra.mxu0 0.0
      %2363 = vmatpush.msra.mxu0 0.0
      %2364 = vmatpush.msra.mxu0 0.0
      %2365 = vmatpush.msra.mxu0 0.0
      %2366 = vmatpush.msra.mxu0 0.0
      %v2367 = vand.u32 %v2269, 4294901760
      %2368 = vmatpush.msra.mxu0 %v2367
      %v2369 = vand.u32 %v2274, 4294901760
      %v2370 = vsub.f32 %v2274, %v2369
      %v2371 = vand.u32 %v2370, 4294901760
      %2372 = vmatmul.f32.gmra.mxu0 %v2371
      %v2373 = vpop.f32.mrf.mxu0
      %v2374 = vadd.f32 %v2350, %v2373
      %2375 = vdwg.mxu0
      %2376 = vmatpush.msra.mxu0 0.0
      %2377 = vmatpush.msra.mxu0 0.0
      %2378 = vmatpush.msra.mxu0 0.0
      %2379 = vmatpush.msra.mxu0 0.0
      %2380 = vmatpush.msra.mxu0 0.0
      %2381 = vmatpush.msra.mxu0 0.0
      %2382 = vmatpush.msra.mxu0 0.0
      %2383 = vmatpush.msra.mxu0 0.0
      %2384 = vmatpush.msra.mxu0 0.0
      %2385 = vmatpush.msra.mxu0 0.0
      %2386 = vmatpush.msra.mxu0 0.0
      %2387 = vmatpush.msra.mxu0 0.0
      %2388 = vmatpush.msra.mxu0 0.0
      %2389 = vmatpush.msra.mxu0 0.0
      %2390 = vmatpush.msra.mxu0 0.0
      %v2391 = vand.u32 %v2269, 4294901760
      %v2392 = vsub.f32 %v2269, %v2391
      %v2393 = vand.u32 %v2392, 4294901760
      %2394 = vmatpush.msra.mxu0 %v2393
      %v2395 = vand.u32 %v2274, 4294901760
      %2396 = vmatmul.f32.gmra.mxu0 %v2395
      %v2397 = vpop.f32.mrf.mxu0
      %v2398 = vadd.f32 %v2374, %v2397
      %2399 = vdwg.mxu0
      %2400 = vmatpush.msra.mxu0 0.0
      %2401 = vmatpush.msra.mxu0 0.0
      %2402 = vmatpush.msra.mxu0 0.0
      %2403 = vmatpush.msra.mxu0 0.0
      %2404 = vmatpush.msra.mxu0 0.0
      %2405 = vmatpush.msra.mxu0 0.0
      %2406 = vmatpush.msra.mxu0 0.0
      %2407 = vmatpush.msra.mxu0 0.0
      %2408 = vmatpush.msra.mxu0 0.0
      %2409 = vmatpush.msra.mxu0 0.0
      %2410 = vmatpush.msra.mxu0 0.0
      %2411 = vmatpush.msra.mxu0 0.0
      %2412 = vmatpush.msra.mxu0 0.0
      %2413 = vmatpush.msra.mxu0 0.0
      %2414 = vmatpush.msra.mxu0 0.0
      %v2415 = vand.u32 %v2269, 4294901760
      %2416 = vmatpush.msra.mxu0 %v2415
      %v2417 = vand.u32 %v2274, 4294901760
      %2418 = vmatmul.f32.gmra.mxu0 %v2417
      %v2419 = vpop.f32.mrf.mxu0
      %v2420 = vadd.f32 %v2398, %v2419
      %2421 = vdwg.mxu0
      %2422 = vmatpush.msra.mxu0 0.0
      %2423 = vmatpush.msra.mxu0 0.0
      %2424 = vmatpush.msra.mxu0 0.0
      %2425 = vmatpush.msra.mxu0 0.0
      %2426 = vmatpush.msra.mxu0 0.0
      %2427 = vmatpush.msra.mxu0 0.0
      %2428 = vmatpush.msra.mxu0 0.0
      %2429 = vmatpush.msra.mxu0 0.0
      %2430 = vmatpush.msra.mxu0 0.0
      %2431 = vmatpush.msra.mxu0 0.0
      %2432 = vmatpush.msra.mxu0 0.0
      %2433 = vmatpush.msra.mxu0 0.0
      %2434 = vmatpush.msra.mxu0 0.0
      %2435 = vmatpush.msra.mxu0 0.0
      %2436 = vmatpush.msra.mxu0 0.0
      %v2437 = vand.u32 %v2270, 4294901760
      %2438 = vmatpush.msra.mxu0 %v2437
      %v2439 = vand.u32 %v2274, 4294901760
      %v2440 = vsub.f32 %v2274, %v2439
      %v2441 = vand.u32 %v2440, 4294901760
      %v2442 = vsub.f32 %v2440, %v2441
      %v2443 = vand.u32 %v2442, 4294901760
      %2444 = vmatmul.f32.gmra.mxu0 %v2443
      %v2445 = vpop.f32.mrf.mxu0
      %v2446 = vadd.f32 0.0, %v2445
      %2447 = vdwg.mxu0
      %2448 = vmatpush.msra.mxu0 0.0
      %2449 = vmatpush.msra.mxu0 0.0
      %2450 = vmatpush.msra.mxu0 0.0
      %2451 = vmatpush.msra.mxu0 0.0
      %2452 = vmatpush.msra.mxu0 0.0
      %2453 = vmatpush.msra.mxu0 0.0
      %2454 = vmatpush.msra.mxu0 0.0
      %2455 = vmatpush.msra.mxu0 0.0
      %2456 = vmatpush.msra.mxu0 0.0
      %2457 = vmatpush.msra.mxu0 0.0
      %2458 = vmatpush.msra.mxu0 0.0
      %2459 = vmatpush.msra.mxu0 0.0
      %2460 = vmatpush.msra.mxu0 0.0
      %2461 = vmatpush.msra.mxu0 0.0
      %2462 = vmatpush.msra.mxu0 0.0
      %v2463 = vand.u32 %v2270, 4294901760
      %v2464 = vsub.f32 %v2270, %v2463
      %v2465 = vand.u32 %v2464, 4294901760
      %v2466 = vsub.f32 %v2464, %v2465
      %v2467 = vand.u32 %v2466, 4294901760
      %2468 = vmatpush.msra.mxu0 %v2467
      %v2469 = vand.u32 %v2274, 4294901760
      %2470 = vmatmul.f32.gmra.mxu0 %v2469
      %v2471 = vpop.f32.mrf.mxu0
      %v2472 = vadd.f32 %v2446, %v2471
      %2473 = vdwg.mxu0
      %2474 = vmatpush.msra.mxu0 0.0
      %2475 = vmatpush.msra.mxu0 0.0
      %2476 = vmatpush.msra.mxu0 0.0
      %2477 = vmatpush.msra.mxu0 0.0
      %2478 = vmatpush.msra.mxu0 0.0
      %2479 = vmatpush.msra.mxu0 0.0
      %2480 = vmatpush.msra.mxu0 0.0
      %2481 = vmatpush.msra.mxu0 0.0
      %2482 = vmatpush.msra.mxu0 0.0
      %2483 = vmatpush.msra.mxu0 0.0
      %2484 = vmatpush.msra.mxu0 0.0
      %2485 = vmatpush.msra.mxu0 0.0
      %2486 = vmatpush.msra.mxu0 0.0
      %2487 = vmatpush.msra.mxu0 0.0
      %2488 = vmatpush.msra.mxu0 0.0
      %v2489 = vand.u32 %v2270, 4294901760
      %v2490 = vsub.f32 %v2270, %v2489
      %2491 = vmatpush.msra.mxu0 %v2490
      %v2492 = vand.u32 %v2274, 4294901760
      %v2493 = vsub.f32 %v2274, %v2492
      %2494 = vmatmul.f32.gmra.mxu0 %v2493
      %v2495 = vpop.f32.mrf.mxu0
      %v2496 = vadd.f32 %v2472, %v2495
      %2497 = vdwg.mxu0
      %2498 = vmatpush.msra.mxu0 0.0
      %2499 = vmatpush.msra.mxu0 0.0
      %2500 = vmatpush.msra.mxu0 0.0
      %2501 = vmatpush.msra.mxu0 0.0
      %2502 = vmatpush.msra.mxu0 0.0
      %2503 = vmatpush.msra.mxu0 0.0
      %2504 = vmatpush.msra.mxu0 0.0
      %2505 = vmatpush.msra.mxu0 0.0
      %2506 = vmatpush.msra.mxu0 0.0
      %2507 = vmatpush.msra.mxu0 0.0
      %2508 = vmatpush.msra.mxu0 0.0
      %2509 = vmatpush.msra.mxu0 0.0
      %2510 = vmatpush.msra.mxu0 0.0
      %2511 = vmatpush.msra.mxu0 0.0
      %2512 = vmatpush.msra.mxu0 0.0
      %v2513 = vand.u32 %v2270, 4294901760
      %2514 = vmatpush.msra.mxu0 %v2513
      %v2515 = vand.u32 %v2274, 4294901760
      %v2516 = vsub.f32 %v2274, %v2515
      %v2517 = vand.u32 %v2516, 4294901760
      %2518 = vmatmul.f32.gmra.mxu0 %v2517
      %v2519 = vpop.f32.mrf.mxu0
      %v2520 = vadd.f32 %v2496, %v2519
      %2521 = vdwg.mxu0
      %2522 = vmatpush.msra.mxu0 0.0
      %2523 = vmatpush.msra.mxu0 0.0
      %2524 = vmatpush.msra.mxu0 0.0
      %2525 = vmatpush.msra.mxu0 0.0
      %2526 = vmatpush.msra.mxu0 0.0
      %2527 = vmatpush.msra.mxu0 0.0
      %2528 = vmatpush.msra.mxu0 0.0
      %2529 = vmatpush.msra.mxu0 0.0
      %2530 = vmatpush.msra.mxu0 0.0
      %2531 = vmatpush.msra.mxu0 0.0
      %2532 = vmatpush.msra.mxu0 0.0
      %2533 = vmatpush.msra.mxu0 0.0
      %2534 = vmatpush.msra.mxu0 0.0
      %2535 = vmatpush.msra.mxu0 0.0
      %2536 = vmatpush.msra.mxu0 0.0
      %v2537 = vand.u32 %v2270, 4294901760
      %v2538 = vsub.f32 %v2270, %v2537
      %v2539 = vand.u32 %v2538, 4294901760
      %2540 = vmatpush.msra.mxu0 %v2539
      %v2541 = vand.u32 %v2274, 4294901760
      %2542 = vmatmul.f32.gmra.mxu0 %v2541
      %v2543 = vpop.f32.mrf.mxu0
      %v2544 = vadd.f32 %v2520, %v2543
      %2545 = vdwg.mxu0
      %2546 = vmatpush.msra.mxu0 0.0
      %2547 = vmatpush.msra.mxu0 0.0
      %2548 = vmatpush.msra.mxu0 0.0
      %2549 = vmatpush.msra.mxu0 0.0
      %2550 = vmatpush.msra.mxu0 0.0
      %2551 = vmatpush.msra.mxu0 0.0
      %2552 = vmatpush.msra.mxu0 0.0
      %2553 = vmatpush.msra.mxu0 0.0
      %2554 = vmatpush.msra.mxu0 0.0
      %2555 = vmatpush.msra.mxu0 0.0
      %2556 = vmatpush.msra.mxu0 0.0
      %2557 = vmatpush.msra.mxu0 0.0
      %2558 = vmatpush.msra.mxu0 0.0
      %2559 = vmatpush.msra.mxu0 0.0
      %2560 = vmatpush.msra.mxu0 0.0
      %v2561 = vand.u32 %v2270, 4294901760
      %2562 = vmatpush.msra.mxu0 %v2561
      %v2563 = vand.u32 %v2274, 4294901760
      %2564 = vmatmul.f32.gmra.mxu0 %v2563
      %v2565 = vpop.f32.mrf.mxu0
      %v2566 = vadd.f32 %v2544, %v2565
      %2567 = vdwg.mxu0
      %v2568 = vadd.f32 %v2258, %v2420
      %v2569 = vadd.f32 %v2259, %v2566
      %2570 = vst [vmem:[#allocation2] sm:$0xff] 0.0
      %2571 = vst [vmem:[#allocation2 + $0x18] sm:$0xff] 0.0
      %2572 = vst [vmem:[#allocation2 + $0x8] sm:$0xff] %v2568
      %2573 = vst [vmem:[#allocation2 + $0x10] sm:$0xff] %v2569
      %v2574 = vld [vmem:[%s7] sm:$0xff]
      %2576 = vset.pattern.permute.xlu0 0
      %2577 = vperm.xlu0 %2576, %v2574
      %v2578 = vpop.permute.xlu0 %2577
      %v2580 = vadd.f32 %v2578, 0.0
      %v2581 = vld [vmem:[%s381] sm:$0xff]
      %v2582 = vld [vmem:[%s381 + $0x8] sm:$0xff]
      %v2583 = vld [vmem:[%s381 + $0x10] sm:$0xff]
      %v2584 = vld [vmem:[%s3] sm:$0xff]
      %v2586 = vsel %vm412, %v2584, 0
      %2588 = vmatpush.msra.mxu0 0.0
      %2589 = vmatpush.msra.mxu0 0.0
      %2590 = vmatpush.msra.mxu0 0.0
      %2591 = vmatpush.msra.mxu0 0.0
      %2592 = vmatpush.msra.mxu0 0.0
      %2593 = vmatpush.msra.mxu0 0.0
      %2594 = vmatpush.msra.mxu0 0.0
      %2595 = vmatpush.msra.mxu0 0.0
      %2596 = vmatpush.msra.mxu0 0.0
      %2597 = vmatpush.msra.mxu0 0.0
      %2598 = vmatpush.msra.mxu0 0.0
      %2599 = vmatpush.msra.mxu0 0.0
      %2600 = vmatpush.msra.mxu0 0.0
      %2601 = vmatpush.msra.mxu0 0.0
      %2602 = vmatpush.msra.mxu0 0.0
      %v2603 = vand.u32 %v2581, 4294901760
      %2604 = vmatpush.msra.mxu0 %v2603
      %v2605 = vand.u32 %v2586, 4294901760
      %v2606 = vsub.f32 %v2586, %v2605
      %v2607 = vand.u32 %v2606, 4294901760
      %v2608 = vsub.f32 %v2606, %v2607
      %v2609 = vand.u32 %v2608, 4294901760
      %2610 = vmatmul.f32.gmra.mxu0 %v2609
      %v2611 = vpop.f32.mrf.mxu0
      %v2612 = vadd.f32 0.0, %v2611
      %2613 = vdwg.mxu0
      %2614 = vmatpush.msra.mxu0 0.0
      %2615 = vmatpush.msra.mxu0 0.0
      %2616 = vmatpush.msra.mxu0 0.0
      %2617 = vmatpush.msra.mxu0 0.0
      %2618 = vmatpush.msra.mxu0 0.0
      %2619 = vmatpush.msra.mxu0 0.0
      %2620 = vmatpush.msra.mxu0 0.0
      %2621 = vmatpush.msra.mxu0 0.0
      %2622 = vmatpush.msra.mxu0 0.0
      %2623 = vmatpush.msra.mxu0 0.0
      %2624 = vmatpush.msra.mxu0 0.0
      %2625 = vmatpush.msra.mxu0 0.0
      %2626 = vmatpush.msra.mxu0 0.0
      %2627 = vmatpush.msra.mxu0 0.0
      %2628 = vmatpush.msra.mxu0 0.0
      %v2629 = vand.u32 %v2581, 4294901760
      %v2630 = vsub.f32 %v2581, %v2629
      %v2631 = vand.u32 %v2630, 4294901760
      %v2632 = vsub.f32 %v2630, %v2631
      %v2633 = vand.u32 %v2632, 4294901760
      %2634 = vmatpush.msra.mxu0 %v2633
      %v2635 = vand.u32 %v2586, 4294901760
      %2636 = vmatmul.f32.gmra.mxu0 %v2635
      %v2637 = vpop.f32.mrf.mxu0
      %v2638 = vadd.f32 %v2612, %v2637
      %2639 = vdwg.mxu0
      %2640 = vmatpush.msra.mxu0 0.0
      %2641 = vmatpush.msra.mxu0 0.0
      %2642 = vmatpush.msra.mxu0 0.0
      %2643 = vmatpush.msra.mxu0 0.0
      %2644 = vmatpush.msra.mxu0 0.0
      %2645 = vmatpush.msra.mxu0 0.0
      %2646 = vmatpush.msra.mxu0 0.0
      %2647 = vmatpush.msra.mxu0 0.0
      %2648 = vmatpush.msra.mxu0 0.0
      %2649 = vmatpush.msra.mxu0 0.0
      %2650 = vmatpush.msra.mxu0 0.0
      %2651 = vmatpush.msra.mxu0 0.0
      %2652 = vmatpush.msra.mxu0 0.0
      %2653 = vmatpush.msra.mxu0 0.0
      %2654 = vmatpush.msra.mxu0 0.0
      %v2655 = vand.u32 %v2581, 4294901760
      %v2656 = vsub.f32 %v2581, %v2655
      %2657 = vmatpush.msra.mxu0 %v2656
      %v2658 = vand.u32 %v2586, 4294901760
      %v2659 = vsub.f32 %v2586, %v2658
      %2660 = vmatmul.f32.gmra.mxu0 %v2659
      %v2661 = vpop.f32.mrf.mxu0
      %v2662 = vadd.f32 %v2638, %v2661
      %2663 = vdwg.mxu0
      %2664 = vmatpush.msra.mxu0 0.0
      %2665 = vmatpush.msra.mxu0 0.0
      %2666 = vmatpush.msra.mxu0 0.0
      %2667 = vmatpush.msra.mxu0 0.0
      %2668 = vmatpush.msra.mxu0 0.0
      %2669 = vmatpush.msra.mxu0 0.0
      %2670 = vmatpush.msra.mxu0 0.0
      %2671 = vmatpush.msra.mxu0 0.0
      %2672 = vmatpush.msra.mxu0 0.0
      %2673 = vmatpush.msra.mxu0 0.0
      %2674 = vmatpush.msra.mxu0 0.0
      %2675 = vmatpush.msra.mxu0 0.0
      %2676 = vmatpush.msra.mxu0 0.0
      %2677 = vmatpush.msra.mxu0 0.0
      %2678 = vmatpush.msra.mxu0 0.0
      %v2679 = vand.u32 %v2581, 4294901760
      %2680 = vmatpush.msra.mxu0 %v2679
      %v2681 = vand.u32 %v2586, 4294901760
      %v2682 = vsub.f32 %v2586, %v2681
      %v2683 = vand.u32 %v2682, 4294901760
      %2684 = vmatmul.f32.gmra.mxu0 %v2683
      %v2685 = vpop.f32.mrf.mxu0
      %v2686 = vadd.f32 %v2662, %v2685
      %2687 = vdwg.mxu0
      %2688 = vmatpush.msra.mxu0 0.0
      %2689 = vmatpush.msra.mxu0 0.0
      %2690 = vmatpush.msra.mxu0 0.0
      %2691 = vmatpush.msra.mxu0 0.0
      %2692 = vmatpush.msra.mxu0 0.0
      %2693 = vmatpush.msra.mxu0 0.0
      %2694 = vmatpush.msra.mxu0 0.0
      %2695 = vmatpush.msra.mxu0 0.0
      %2696 = vmatpush.msra.mxu0 0.0
      %2697 = vmatpush.msra.mxu0 0.0
      %2698 = vmatpush.msra.mxu0 0.0
      %2699 = vmatpush.msra.mxu0 0.0
      %2700 = vmatpush.msra.mxu0 0.0
      %2701 = vmatpush.msra.mxu0 0.0
      %2702 = vmatpush.msra.mxu0 0.0
      %v2703 = vand.u32 %v2581, 4294901760
      %v2704 = vsub.f32 %v2581, %v2703
      %v2705 = vand.u32 %v2704, 4294901760
      %2706 = vmatpush.msra.mxu0 %v2705
      %v2707 = vand.u32 %v2586, 4294901760
      %2708 = vmatmul.f32.gmra.mxu0 %v2707
      %v2709 = vpop.f32.mrf.mxu0
      %v2710 = vadd.f32 %v2686, %v2709
      %2711 = vdwg.mxu0
      %2712 = vmatpush.msra.mxu0 0.0
      %2713 = vmatpush.msra.mxu0 0.0
      %2714 = vmatpush.msra.mxu0 0.0
      %2715 = vmatpush.msra.mxu0 0.0
      %2716 = vmatpush.msra.mxu0 0.0
      %2717 = vmatpush.msra.mxu0 0.0
      %2718 = vmatpush.msra.mxu0 0.0
      %2719 = vmatpush.msra.mxu0 0.0
      %2720 = vmatpush.msra.mxu0 0.0
      %2721 = vmatpush.msra.mxu0 0.0
      %2722 = vmatpush.msra.mxu0 0.0
      %2723 = vmatpush.msra.mxu0 0.0
      %2724 = vmatpush.msra.mxu0 0.0
      %2725 = vmatpush.msra.mxu0 0.0
      %2726 = vmatpush.msra.mxu0 0.0
      %v2727 = vand.u32 %v2581, 4294901760
      %2728 = vmatpush.msra.mxu0 %v2727
      %v2729 = vand.u32 %v2586, 4294901760
      %2730 = vmatmul.f32.gmra.mxu0 %v2729
      %v2731 = vpop.f32.mrf.mxu0
      %v2732 = vadd.f32 %v2710, %v2731
      %2733 = vdwg.mxu0
      %2734 = vmatpush.msra.mxu0 0.0
      %2735 = vmatpush.msra.mxu0 0.0
      %2736 = vmatpush.msra.mxu0 0.0
      %2737 = vmatpush.msra.mxu0 0.0
      %2738 = vmatpush.msra.mxu0 0.0
      %2739 = vmatpush.msra.mxu0 0.0
      %2740 = vmatpush.msra.mxu0 0.0
      %2741 = vmatpush.msra.mxu0 0.0
      %2742 = vmatpush.msra.mxu0 0.0
      %2743 = vmatpush.msra.mxu0 0.0
      %2744 = vmatpush.msra.mxu0 0.0
      %2745 = vmatpush.msra.mxu0 0.0
      %2746 = vmatpush.msra.mxu0 0.0
      %2747 = vmatpush.msra.mxu0 0.0
      %2748 = vmatpush.msra.mxu0 0.0
      %v2749 = vand.u32 %v2582, 4294901760
      %2750 = vmatpush.msra.mxu0 %v2749
      %v2751 = vand.u32 %v2586, 4294901760
      %v2752 = vsub.f32 %v2586, %v2751
      %v2753 = vand.u32 %v2752, 4294901760
      %v2754 = vsub.f32 %v2752, %v2753
      %v2755 = vand.u32 %v2754, 4294901760
      %2756 = vmatmul.f32.gmra.mxu0 %v2755
      %v2757 = vpop.f32.mrf.mxu0
      %v2758 = vadd.f32 0.0, %v2757
      %2759 = vdwg.mxu0
      %2760 = vmatpush.msra.mxu0 0.0
      %2761 = vmatpush.msra.mxu0 0.0
      %2762 = vmatpush.msra.mxu0 0.0
      %2763 = vmatpush.msra.mxu0 0.0
      %2764 = vmatpush.msra.mxu0 0.0
      %2765 = vmatpush.msra.mxu0 0.0
      %2766 = vmatpush.msra.mxu0 0.0
      %2767 = vmatpush.msra.mxu0 0.0
      %2768 = vmatpush.msra.mxu0 0.0
      %2769 = vmatpush.msra.mxu0 0.0
      %2770 = vmatpush.msra.mxu0 0.0
      %2771 = vmatpush.msra.mxu0 0.0
      %2772 = vmatpush.msra.mxu0 0.0
      %2773 = vmatpush.msra.mxu0 0.0
      %2774 = vmatpush.msra.mxu0 0.0
      %v2775 = vand.u32 %v2582, 4294901760
      %v2776 = vsub.f32 %v2582, %v2775
      %v2777 = vand.u32 %v2776, 4294901760
      %v2778 = vsub.f32 %v2776, %v2777
      %v2779 = vand.u32 %v2778, 4294901760
      %2780 = vmatpush.msra.mxu0 %v2779
      %v2781 = vand.u32 %v2586, 4294901760
      %2782 = vmatmul.f32.gmra.mxu0 %v2781
      %v2783 = vpop.f32.mrf.mxu0
      %v2784 = vadd.f32 %v2758, %v2783
      %2785 = vdwg.mxu0
      %2786 = vmatpush.msra.mxu0 0.0
      %2787 = vmatpush.msra.mxu0 0.0
      %2788 = vmatpush.msra.mxu0 0.0
      %2789 = vmatpush.msra.mxu0 0.0
      %2790 = vmatpush.msra.mxu0 0.0
      %2791 = vmatpush.msra.mxu0 0.0
      %2792 = vmatpush.msra.mxu0 0.0
      %2793 = vmatpush.msra.mxu0 0.0
      %2794 = vmatpush.msra.mxu0 0.0
      %2795 = vmatpush.msra.mxu0 0.0
      %2796 = vmatpush.msra.mxu0 0.0
      %2797 = vmatpush.msra.mxu0 0.0
      %2798 = vmatpush.msra.mxu0 0.0
      %2799 = vmatpush.msra.mxu0 0.0
      %2800 = vmatpush.msra.mxu0 0.0
      %v2801 = vand.u32 %v2582, 4294901760
      %v2802 = vsub.f32 %v2582, %v2801
      %2803 = vmatpush.msra.mxu0 %v2802
      %v2804 = vand.u32 %v2586, 4294901760
      %v2805 = vsub.f32 %v2586, %v2804
      %2806 = vmatmul.f32.gmra.mxu0 %v2805
      %v2807 = vpop.f32.mrf.mxu0
      %v2808 = vadd.f32 %v2784, %v2807
      %2809 = vdwg.mxu0
      %2810 = vmatpush.msra.mxu0 0.0
      %2811 = vmatpush.msra.mxu0 0.0
      %2812 = vmatpush.msra.mxu0 0.0
      %2813 = vmatpush.msra.mxu0 0.0
      %2814 = vmatpush.msra.mxu0 0.0
      %2815 = vmatpush.msra.mxu0 0.0
      %2816 = vmatpush.msra.mxu0 0.0
      %2817 = vmatpush.msra.mxu0 0.0
      %2818 = vmatpush.msra.mxu0 0.0
      %2819 = vmatpush.msra.mxu0 0.0
      %2820 = vmatpush.msra.mxu0 0.0
      %2821 = vmatpush.msra.mxu0 0.0
      %2822 = vmatpush.msra.mxu0 0.0
      %2823 = vmatpush.msra.mxu0 0.0
      %2824 = vmatpush.msra.mxu0 0.0
      %v2825 = vand.u32 %v2582, 4294901760
      %2826 = vmatpush.msra.mxu0 %v2825
      %v2827 = vand.u32 %v2586, 4294901760
      %v2828 = vsub.f32 %v2586, %v2827
      %v2829 = vand.u32 %v2828, 4294901760
      %2830 = vmatmul.f32.gmra.mxu0 %v2829
      %v2831 = vpop.f32.mrf.mxu0
      %v2832 = vadd.f32 %v2808, %v2831
      %2833 = vdwg.mxu0
      %2834 = vmatpush.msra.mxu0 0.0
      %2835 = vmatpush.msra.mxu0 0.0
      %2836 = vmatpush.msra.mxu0 0.0
      %2837 = vmatpush.msra.mxu0 0.0
      %2838 = vmatpush.msra.mxu0 0.0
      %2839 = vmatpush.msra.mxu0 0.0
      %2840 = vmatpush.msra.mxu0 0.0
      %2841 = vmatpush.msra.mxu0 0.0
      %2842 = vmatpush.msra.mxu0 0.0
      %2843 = vmatpush.msra.mxu0 0.0
      %2844 = vmatpush.msra.mxu0 0.0
      %2845 = vmatpush.msra.mxu0 0.0
      %2846 = vmatpush.msra.mxu0 0.0
      %2847 = vmatpush.msra.mxu0 0.0
      %2848 = vmatpush.msra.mxu0 0.0
      %v2849 = vand.u32 %v2582, 4294901760
      %v2850 = vsub.f32 %v2582, %v2849
      %v2851 = vand.u32 %v2850, 4294901760
      %2852 = vmatpush.msra.mxu0 %v2851
      %v2853 = vand.u32 %v2586, 4294901760
      %2854 = vmatmul.f32.gmra.mxu0 %v2853
      %v2855 = vpop.f32.mrf.mxu0
      %v2856 = vadd.f32 %v2832, %v2855
      %2857 = vdwg.mxu0
      %2858 = vmatpush.msra.mxu0 0.0
      %2859 = vmatpush.msra.mxu0 0.0
      %2860 = vmatpush.msra.mxu0 0.0
      %2861 = vmatpush.msra.mxu0 0.0
      %2862 = vmatpush.msra.mxu0 0.0
      %2863 = vmatpush.msra.mxu0 0.0
      %2864 = vmatpush.msra.mxu0 0.0
      %2865 = vmatpush.msra.mxu0 0.0
      %2866 = vmatpush.msra.mxu0 0.0
      %2867 = vmatpush.msra.mxu0 0.0
      %2868 = vmatpush.msra.mxu0 0.0
      %2869 = vmatpush.msra.mxu0 0.0
      %2870 = vmatpush.msra.mxu0 0.0
      %2871 = vmatpush.msra.mxu0 0.0
      %2872 = vmatpush.msra.mxu0 0.0
      %v2873 = vand.u32 %v2582, 4294901760
      %2874 = vmatpush.msra.mxu0 %v2873
      %v2875 = vand.u32 %v2586, 4294901760
      %2876 = vmatmul.f32.gmra.mxu0 %v2875
      %v2877 = vpop.f32.mrf.mxu0
      %v2878 = vadd.f32 %v2856, %v2877
      %2879 = vdwg.mxu0
      %2880 = vmatpush.msra.mxu0 0.0
      %2881 = vmatpush.msra.mxu0 0.0
      %2882 = vmatpush.msra.mxu0 0.0
      %2883 = vmatpush.msra.mxu0 0.0
      %2884 = vmatpush.msra.mxu0 0.0
      %2885 = vmatpush.msra.mxu0 0.0
      %2886 = vmatpush.msra.mxu0 0.0
      %2887 = vmatpush.msra.mxu0 0.0
      %2888 = vmatpush.msra.mxu0 0.0
      %2889 = vmatpush.msra.mxu0 0.0
      %2890 = vmatpush.msra.mxu0 0.0
      %2891 = vmatpush.msra.mxu0 0.0
      %2892 = vmatpush.msra.mxu0 0.0
      %2893 = vmatpush.msra.mxu0 0.0
      %2894 = vmatpush.msra.mxu0 0.0
      %v2895 = vand.u32 %v2583, 4294901760
      %2896 = vmatpush.msra.mxu0 %v2895
      %v2897 = vand.u32 %v2586, 4294901760
      %v2898 = vsub.f32 %v2586, %v2897
      %v2899 = vand.u32 %v2898, 4294901760
      %v2900 = vsub.f32 %v2898, %v2899
      %v2901 = vand.u32 %v2900, 4294901760
      %2902 = vmatmul.f32.gmra.mxu0 %v2901
      %v2903 = vpop.f32.mrf.mxu0
      %v2904 = vadd.f32 0.0, %v2903
      %2905 = vdwg.mxu0
      %2906 = vmatpush.msra.mxu0 0.0
      %2907 = vmatpush.msra.mxu0 0.0
      %2908 = vmatpush.msra.mxu0 0.0
      %2909 = vmatpush.msra.mxu0 0.0
      %2910 = vmatpush.msra.mxu0 0.0
      %2911 = vmatpush.msra.mxu0 0.0
      %2912 = vmatpush.msra.mxu0 0.0
      %2913 = vmatpush.msra.mxu0 0.0
      %2914 = vmatpush.msra.mxu0 0.0
      %2915 = vmatpush.msra.mxu0 0.0
      %2916 = vmatpush.msra.mxu0 0.0
      %2917 = vmatpush.msra.mxu0 0.0
      %2918 = vmatpush.msra.mxu0 0.0
      %2919 = vmatpush.msra.mxu0 0.0
      %2920 = vmatpush.msra.mxu0 0.0
      %v2921 = vand.u32 %v2583, 4294901760
      %v2922 = vsub.f32 %v2583, %v2921
      %v2923 = vand.u32 %v2922, 4294901760
      %v2924 = vsub.f32 %v2922, %v2923
      %v2925 = vand.u32 %v2924, 4294901760
      %2926 = vmatpush.msra.mxu0 %v2925
      %v2927 = vand.u32 %v2586, 4294901760
      %2928 = vmatmul.f32.gmra.mxu0 %v2927
      %v2929 = vpop.f32.mrf.mxu0
      %v2930 = vadd.f32 %v2904, %v2929
      %2931 = vdwg.mxu0
      %2932 = vmatpush.msra.mxu0 0.0
      %2933 = vmatpush.msra.mxu0 0.0
      %2934 = vmatpush.msra.mxu0 0.0
      %2935 = vmatpush.msra.mxu0 0.0
      %2936 = vmatpush.msra.mxu0 0.0
      %2937 = vmatpush.msra.mxu0 0.0
      %2938 = vmatpush.msra.mxu0 0.0
      %2939 = vmatpush.msra.mxu0 0.0
      %2940 = vmatpush.msra.mxu0 0.0
      %2941 = vmatpush.msra.mxu0 0.0
      %2942 = vmatpush.msra.mxu0 0.0
      %2943 = vmatpush.msra.mxu0 0.0
      %2944 = vmatpush.msra.mxu0 0.0
      %2945 = vmatpush.msra.mxu0 0.0
      %2946 = vmatpush.msra.mxu0 0.0
      %v2947 = vand.u32 %v2583, 4294901760
      %v2948 = vsub.f32 %v2583, %v2947
      %2949 = vmatpush.msra.mxu0 %v2948
      %v2950 = vand.u32 %v2586, 4294901760
      %v2951 = vsub.f32 %v2586, %v2950
      %2952 = vmatmul.f32.gmra.mxu0 %v2951
      %v2953 = vpop.f32.mrf.mxu0
      %v2954 = vadd.f32 %v2930, %v2953
      %2955 = vdwg.mxu0
      %2956 = vmatpush.msra.mxu0 0.0
      %2957 = vmatpush.msra.mxu0 0.0
      %2958 = vmatpush.msra.mxu0 0.0
      %2959 = vmatpush.msra.mxu0 0.0
      %2960 = vmatpush.msra.mxu0 0.0
      %2961 = vmatpush.msra.mxu0 0.0
      %2962 = vmatpush.msra.mxu0 0.0
      %2963 = vmatpush.msra.mxu0 0.0
      %2964 = vmatpush.msra.mxu0 0.0
      %2965 = vmatpush.msra.mxu0 0.0
      %2966 = vmatpush.msra.mxu0 0.0
      %2967 = vmatpush.msra.mxu0 0.0
      %2968 = vmatpush.msra.mxu0 0.0
      %2969 = vmatpush.msra.mxu0 0.0
      %2970 = vmatpush.msra.mxu0 0.0
      %v2971 = vand.u32 %v2583, 4294901760
      %2972 = vmatpush.msra.mxu0 %v2971
      %v2973 = vand.u32 %v2586, 4294901760
      %v2974 = vsub.f32 %v2586, %v2973
      %v2975 = vand.u32 %v2974, 4294901760
      %2976 = vmatmul.f32.gmra.mxu0 %v2975
      %v2977 = vpop.f32.mrf.mxu0
      %v2978 = vadd.f32 %v2954, %v2977
      %2979 = vdwg.mxu0
      %2980 = vmatpush.msra.mxu0 0.0
      %2981 = vmatpush.msra.mxu0 0.0
      %2982 = vmatpush.msra.mxu0 0.0
      %2983 = vmatpush.msra.mxu0 0.0
      %2984 = vmatpush.msra.mxu0 0.0
      %2985 = vmatpush.msra.mxu0 0.0
      %2986 = vmatpush.msra.mxu0 0.0
      %2987 = vmatpush.msra.mxu0 0.0
      %2988 = vmatpush.msra.mxu0 0.0
      %2989 = vmatpush.msra.mxu0 0.0
      %2990 = vmatpush.msra.mxu0 0.0
      %2991 = vmatpush.msra.mxu0 0.0
      %2992 = vmatpush.msra.mxu0 0.0
      %2993 = vmatpush.msra.mxu0 0.0
      %2994 = vmatpush.msra.mxu0 0.0
      %v2995 = vand.u32 %v2583, 4294901760
      %v2996 = vsub.f32 %v2583, %v2995
      %v2997 = vand.u32 %v2996, 4294901760
      %2998 = vmatpush.msra.mxu0 %v2997
      %v2999 = vand.u32 %v2586, 4294901760
      %3000 = vmatmul.f32.gmra.mxu0 %v2999
      %v3001 = vpop.f32.mrf.mxu0
      %v3002 = vadd.f32 %v2978, %v3001
      %3003 = vdwg.mxu0
      %3004 = vmatpush.msra.mxu0 0.0
      %3005 = vmatpush.msra.mxu0 0.0
      %3006 = vmatpush.msra.mxu0 0.0
      %3007 = vmatpush.msra.mxu0 0.0
      %3008 = vmatpush.msra.mxu0 0.0
      %3009 = vmatpush.msra.mxu0 0.0
      %3010 = vmatpush.msra.mxu0 0.0
      %3011 = vmatpush.msra.mxu0 0.0
      %3012 = vmatpush.msra.mxu0 0.0
      %3013 = vmatpush.msra.mxu0 0.0
      %3014 = vmatpush.msra.mxu0 0.0
      %3015 = vmatpush.msra.mxu0 0.0
      %3016 = vmatpush.msra.mxu0 0.0
      %3017 = vmatpush.msra.mxu0 0.0
      %3018 = vmatpush.msra.mxu0 0.0
      %v3019 = vand.u32 %v2583, 4294901760
      %3020 = vmatpush.msra.mxu0 %v3019
      %v3021 = vand.u32 %v2586, 4294901760
      %3022 = vmatmul.f32.gmra.mxu0 %v3021
      %v3023 = vpop.f32.mrf.mxu0
      %v3024 = vadd.f32 %v3002, %v3023
      %3025 = vdwg.mxu0
      %v3026 = vadd.f32 %v2580, %v2732
      %v3027 = vadd.f32 %v2580, %v2878
      %v3028 = vadd.f32 %v2580, %v3024
      %s3029 = scalar_lea.vmem %s3, 8
      %v3030 = vld [vmem:[%s3029] sm:$0xff]
      %3034 = vrot.lane.b32.xlu0 %v2581, 127
      %v3035 = vpop.permute.xlu0 %3034
      %3036 = vrot.lane.b32.xlu0 %v2582, 127
      %v3037 = vpop.permute.xlu0 %3036
      %3038 = vrot.lane.b32.xlu0 %v2583, 127
      %v3039 = vpop.permute.xlu0 %3038
      %vm3040 = vcmask 1039360
      %v3041 = vsel %vm3040, %v3035, %v3037
      %v3042 = vsel %vm3040, %v3037, %v3039
      %v3047 = vsel %vm412, %v3030, 0
      %3049 = vmatpush.msra.mxu0 0.0
      %3050 = vmatpush.msra.mxu0 0.0
      %3051 = vmatpush.msra.mxu0 0.0
      %3052 = vmatpush.msra.mxu0 0.0
      %3053 = vmatpush.msra.mxu0 0.0
      %3054 = vmatpush.msra.mxu0 0.0
      %3055 = vmatpush.msra.mxu0 0.0
      %3056 = vmatpush.msra.mxu0 0.0
      %3057 = vmatpush.msra.mxu0 0.0
      %3058 = vmatpush.msra.mxu0 0.0
      %3059 = vmatpush.msra.mxu0 0.0
      %3060 = vmatpush.msra.mxu0 0.0
      %3061 = vmatpush.msra.mxu0 0.0
      %3062 = vmatpush.msra.mxu0 0.0
      %3063 = vmatpush.msra.mxu0 0.0
      %v3064 = vand.u32 %v3041, 4294901760
      %3065 = vmatpush.msra.mxu0 %v3064
      %v3066 = vand.u32 %v3047, 4294901760
      %v3067 = vsub.f32 %v3047, %v3066
      %v3068 = vand.u32 %v3067, 4294901760
      %v3069 = vsub.f32 %v3067, %v3068
      %v3070 = vand.u32 %v3069, 4294901760
      %3071 = vmatmul.f32.gmra.mxu0 %v3070
      %v3072 = vpop.f32.mrf.mxu0
      %v3073 = vadd.f32 0.0, %v3072
      %3074 = vdwg.mxu0
      %3075 = vmatpush.msra.mxu0 0.0
      %3076 = vmatpush.msra.mxu0 0.0
      %3077 = vmatpush.msra.mxu0 0.0
      %3078 = vmatpush.msra.mxu0 0.0
      %3079 = vmatpush.msra.mxu0 0.0
      %3080 = vmatpush.msra.mxu0 0.0
      %3081 = vmatpush.msra.mxu0 0.0
      %3082 = vmatpush.msra.mxu0 0.0
      %3083 = vmatpush.msra.mxu0 0.0
      %3084 = vmatpush.msra.mxu0 0.0
      %3085 = vmatpush.msra.mxu0 0.0
      %3086 = vmatpush.msra.mxu0 0.0
      %3087 = vmatpush.msra.mxu0 0.0
      %3088 = vmatpush.msra.mxu0 0.0
      %3089 = vmatpush.msra.mxu0 0.0
      %v3090 = vand.u32 %v3041, 4294901760
      %v3091 = vsub.f32 %v3041, %v3090
      %v3092 = vand.u32 %v3091, 4294901760
      %v3093 = vsub.f32 %v3091, %v3092
      %v3094 = vand.u32 %v3093, 4294901760
      %3095 = vmatpush.msra.mxu0 %v3094
      %v3096 = vand.u32 %v3047, 4294901760
      %3097 = vmatmul.f32.gmra.mxu0 %v3096
      %v3098 = vpop.f32.mrf.mxu0
      %v3099 = vadd.f32 %v3073, %v3098
      %3100 = vdwg.mxu0
      %3101 = vmatpush.msra.mxu0 0.0
      %3102 = vmatpush.msra.mxu0 0.0
      %3103 = vmatpush.msra.mxu0 0.0
      %3104 = vmatpush.msra.mxu0 0.0
      %3105 = vmatpush.msra.mxu0 0.0
      %3106 = vmatpush.msra.mxu0 0.0
      %3107 = vmatpush.msra.mxu0 0.0
      %3108 = vmatpush.msra.mxu0 0.0
      %3109 = vmatpush.msra.mxu0 0.0
      %3110 = vmatpush.msra.mxu0 0.0
      %3111 = vmatpush.msra.mxu0 0.0
      %3112 = vmatpush.msra.mxu0 0.0
      %3113 = vmatpush.msra.mxu0 0.0
      %3114 = vmatpush.msra.mxu0 0.0
      %3115 = vmatpush.msra.mxu0 0.0
      %v3116 = vand.u32 %v3041, 4294901760
      %v3117 = vsub.f32 %v3041, %v3116
      %3118 = vmatpush.msra.mxu0 %v3117
      %v3119 = vand.u32 %v3047, 4294901760
      %v3120 = vsub.f32 %v3047, %v3119
      %3121 = vmatmul.f32.gmra.mxu0 %v3120
      %v3122 = vpop.f32.mrf.mxu0
      %v3123 = vadd.f32 %v3099, %v3122
      %3124 = vdwg.mxu0
      %3125 = vmatpush.msra.mxu0 0.0
      %3126 = vmatpush.msra.mxu0 0.0
      %3127 = vmatpush.msra.mxu0 0.0
      %3128 = vmatpush.msra.mxu0 0.0
      %3129 = vmatpush.msra.mxu0 0.0
      %3130 = vmatpush.msra.mxu0 0.0
      %3131 = vmatpush.msra.mxu0 0.0
      %3132 = vmatpush.msra.mxu0 0.0
      %3133 = vmatpush.msra.mxu0 0.0
      %3134 = vmatpush.msra.mxu0 0.0
      %3135 = vmatpush.msra.mxu0 0.0
      %3136 = vmatpush.msra.mxu0 0.0
      %3137 = vmatpush.msra.mxu0 0.0
      %3138 = vmatpush.msra.mxu0 0.0
      %3139 = vmatpush.msra.mxu0 0.0
      %v3140 = vand.u32 %v3041, 4294901760
      %3141 = vmatpush.msra.mxu0 %v3140
      %v3142 = vand.u32 %v3047, 4294901760
      %v3143 = vsub.f32 %v3047, %v3142
      %v3144 = vand.u32 %v3143, 4294901760
      %3145 = vmatmul.f32.gmra.mxu0 %v3144
      %v3146 = vpop.f32.mrf.mxu0
      %v3147 = vadd.f32 %v3123, %v3146
      %3148 = vdwg.mxu0
      %3149 = vmatpush.msra.mxu0 0.0
      %3150 = vmatpush.msra.mxu0 0.0
      %3151 = vmatpush.msra.mxu0 0.0
      %3152 = vmatpush.msra.mxu0 0.0
      %3153 = vmatpush.msra.mxu0 0.0
      %3154 = vmatpush.msra.mxu0 0.0
      %3155 = vmatpush.msra.mxu0 0.0
      %3156 = vmatpush.msra.mxu0 0.0
      %3157 = vmatpush.msra.mxu0 0.0
      %3158 = vmatpush.msra.mxu0 0.0
      %3159 = vmatpush.msra.mxu0 0.0
      %3160 = vmatpush.msra.mxu0 0.0
      %3161 = vmatpush.msra.mxu0 0.0
      %3162 = vmatpush.msra.mxu0 0.0
      %3163 = vmatpush.msra.mxu0 0.0
      %v3164 = vand.u32 %v3041, 4294901760
      %v3165 = vsub.f32 %v3041, %v3164
      %v3166 = vand.u32 %v3165, 4294901760
      %3167 = vmatpush.msra.mxu0 %v3166
      %v3168 = vand.u32 %v3047, 4294901760
      %3169 = vmatmul.f32.gmra.mxu0 %v3168
      %v3170 = vpop.f32.mrf.mxu0
      %v3171 = vadd.f32 %v3147, %v3170
      %3172 = vdwg.mxu0
      %3173 = vmatpush.msra.mxu0 0.0
      %3174 = vmatpush.msra.mxu0 0.0
      %3175 = vmatpush.msra.mxu0 0.0
      %3176 = vmatpush.msra.mxu0 0.0
      %3177 = vmatpush.msra.mxu0 0.0
      %3178 = vmatpush.msra.mxu0 0.0
      %3179 = vmatpush.msra.mxu0 0.0
      %3180 = vmatpush.msra.mxu0 0.0
      %3181 = vmatpush.msra.mxu0 0.0
      %3182 = vmatpush.msra.mxu0 0.0
      %3183 = vmatpush.msra.mxu0 0.0
      %3184 = vmatpush.msra.mxu0 0.0
      %3185 = vmatpush.msra.mxu0 0.0
      %3186 = vmatpush.msra.mxu0 0.0
      %3187 = vmatpush.msra.mxu0 0.0
      %v3188 = vand.u32 %v3041, 4294901760
      %3189 = vmatpush.msra.mxu0 %v3188
      %v3190 = vand.u32 %v3047, 4294901760
      %3191 = vmatmul.f32.gmra.mxu0 %v3190
      %v3192 = vpop.f32.mrf.mxu0
      %v3193 = vadd.f32 %v3171, %v3192
      %3194 = vdwg.mxu0
      %3195 = vmatpush.msra.mxu0 0.0
      %3196 = vmatpush.msra.mxu0 0.0
      %3197 = vmatpush.msra.mxu0 0.0
      %3198 = vmatpush.msra.mxu0 0.0
      %3199 = vmatpush.msra.mxu0 0.0
      %3200 = vmatpush.msra.mxu0 0.0
      %3201 = vmatpush.msra.mxu0 0.0
      %3202 = vmatpush.msra.mxu0 0.0
      %3203 = vmatpush.msra.mxu0 0.0
      %3204 = vmatpush.msra.mxu0 0.0
      %3205 = vmatpush.msra.mxu0 0.0
      %3206 = vmatpush.msra.mxu0 0.0
      %3207 = vmatpush.msra.mxu0 0.0
      %3208 = vmatpush.msra.mxu0 0.0
      %3209 = vmatpush.msra.mxu0 0.0
      %v3210 = vand.u32 %v3042, 4294901760
      %3211 = vmatpush.msra.mxu0 %v3210
      %v3212 = vand.u32 %v3047, 4294901760
      %v3213 = vsub.f32 %v3047, %v3212
      %v3214 = vand.u32 %v3213, 4294901760
      %v3215 = vsub.f32 %v3213, %v3214
      %v3216 = vand.u32 %v3215, 4294901760
      %3217 = vmatmul.f32.gmra.mxu0 %v3216
      %v3218 = vpop.f32.mrf.mxu0
      %v3219 = vadd.f32 0.0, %v3218
      %3220 = vdwg.mxu0
      %3221 = vmatpush.msra.mxu0 0.0
      %3222 = vmatpush.msra.mxu0 0.0
      %3223 = vmatpush.msra.mxu0 0.0
      %3224 = vmatpush.msra.mxu0 0.0
      %3225 = vmatpush.msra.mxu0 0.0
      %3226 = vmatpush.msra.mxu0 0.0
      %3227 = vmatpush.msra.mxu0 0.0
      %3228 = vmatpush.msra.mxu0 0.0
      %3229 = vmatpush.msra.mxu0 0.0
      %3230 = vmatpush.msra.mxu0 0.0
      %3231 = vmatpush.msra.mxu0 0.0
      %3232 = vmatpush.msra.mxu0 0.0
      %3233 = vmatpush.msra.mxu0 0.0
      %3234 = vmatpush.msra.mxu0 0.0
      %3235 = vmatpush.msra.mxu0 0.0
      %v3236 = vand.u32 %v3042, 4294901760
      %v3237 = vsub.f32 %v3042, %v3236
      %v3238 = vand.u32 %v3237, 4294901760
      %v3239 = vsub.f32 %v3237, %v3238
      %v3240 = vand.u32 %v3239, 4294901760
      %3241 = vmatpush.msra.mxu0 %v3240
      %v3242 = vand.u32 %v3047, 4294901760
      %3243 = vmatmul.f32.gmra.mxu0 %v3242
      %v3244 = vpop.f32.mrf.mxu0
      %v3245 = vadd.f32 %v3219, %v3244
      %3246 = vdwg.mxu0
      %3247 = vmatpush.msra.mxu0 0.0
      %3248 = vmatpush.msra.mxu0 0.0
      %3249 = vmatpush.msra.mxu0 0.0
      %3250 = vmatpush.msra.mxu0 0.0
      %3251 = vmatpush.msra.mxu0 0.0
      %3252 = vmatpush.msra.mxu0 0.0
      %3253 = vmatpush.msra.mxu0 0.0
      %3254 = vmatpush.msra.mxu0 0.0
      %3255 = vmatpush.msra.mxu0 0.0
      %3256 = vmatpush.msra.mxu0 0.0
      %3257 = vmatpush.msra.mxu0 0.0
      %3258 = vmatpush.msra.mxu0 0.0
      %3259 = vmatpush.msra.mxu0 0.0
      %3260 = vmatpush.msra.mxu0 0.0
      %3261 = vmatpush.msra.mxu0 0.0
      %v3262 = vand.u32 %v3042, 4294901760
      %v3263 = vsub.f32 %v3042, %v3262
      %3264 = vmatpush.msra.mxu0 %v3263
      %v3265 = vand.u32 %v3047, 4294901760
      %v3266 = vsub.f32 %v3047, %v3265
      %3267 = vmatmul.f32.gmra.mxu0 %v3266
      %v3268 = vpop.f32.mrf.mxu0
      %v3269 = vadd.f32 %v3245, %v3268
      %3270 = vdwg.mxu0
      %3271 = vmatpush.msra.mxu0 0.0
      %3272 = vmatpush.msra.mxu0 0.0
      %3273 = vmatpush.msra.mxu0 0.0
      %3274 = vmatpush.msra.mxu0 0.0
      %3275 = vmatpush.msra.mxu0 0.0
      %3276 = vmatpush.msra.mxu0 0.0
      %3277 = vmatpush.msra.mxu0 0.0
      %3278 = vmatpush.msra.mxu0 0.0
      %3279 = vmatpush.msra.mxu0 0.0
      %3280 = vmatpush.msra.mxu0 0.0
      %3281 = vmatpush.msra.mxu0 0.0
      %3282 = vmatpush.msra.mxu0 0.0
      %3283 = vmatpush.msra.mxu0 0.0
      %3284 = vmatpush.msra.mxu0 0.0
      %3285 = vmatpush.msra.mxu0 0.0
      %v3286 = vand.u32 %v3042, 4294901760
      %3287 = vmatpush.msra.mxu0 %v3286
      %v3288 = vand.u32 %v3047, 4294901760
      %v3289 = vsub.f32 %v3047, %v3288
      %v3290 = vand.u32 %v3289, 4294901760
      %3291 = vmatmul.f32.gmra.mxu0 %v3290
      %v3292 = vpop.f32.mrf.mxu0
      %v3293 = vadd.f32 %v3269, %v3292
      %3294 = vdwg.mxu0
      %3295 = vmatpush.msra.mxu0 0.0
      %3296 = vmatpush.msra.mxu0 0.0
      %3297 = vmatpush.msra.mxu0 0.0
      %3298 = vmatpush.msra.mxu0 0.0
      %3299 = vmatpush.msra.mxu0 0.0
      %3300 = vmatpush.msra.mxu0 0.0
      %3301 = vmatpush.msra.mxu0 0.0
      %3302 = vmatpush.msra.mxu0 0.0
      %3303 = vmatpush.msra.mxu0 0.0
      %3304 = vmatpush.msra.mxu0 0.0
      %3305 = vmatpush.msra.mxu0 0.0
      %3306 = vmatpush.msra.mxu0 0.0
      %3307 = vmatpush.msra.mxu0 0.0
      %3308 = vmatpush.msra.mxu0 0.0
      %3309 = vmatpush.msra.mxu0 0.0
      %v3310 = vand.u32 %v3042, 4294901760
      %v3311 = vsub.f32 %v3042, %v3310
      %v3312 = vand.u32 %v3311, 4294901760
      %3313 = vmatpush.msra.mxu0 %v3312
      %v3314 = vand.u32 %v3047, 4294901760
      %3315 = vmatmul.f32.gmra.mxu0 %v3314
      %v3316 = vpop.f32.mrf.mxu0
      %v3317 = vadd.f32 %v3293, %v3316
      %3318 = vdwg.mxu0
      %3319 = vmatpush.msra.mxu0 0.0
      %3320 = vmatpush.msra.mxu0 0.0
      %3321 = vmatpush.msra.mxu0 0.0
      %3322 = vmatpush.msra.mxu0 0.0
      %3323 = vmatpush.msra.mxu0 0.0
      %3324 = vmatpush.msra.mxu0 0.0
      %3325 = vmatpush.msra.mxu0 0.0
      %3326 = vmatpush.msra.mxu0 0.0
      %3327 = vmatpush.msra.mxu0 0.0
      %3328 = vmatpush.msra.mxu0 0.0
      %3329 = vmatpush.msra.mxu0 0.0
      %3330 = vmatpush.msra.mxu0 0.0
      %3331 = vmatpush.msra.mxu0 0.0
      %3332 = vmatpush.msra.mxu0 0.0
      %3333 = vmatpush.msra.mxu0 0.0
      %v3334 = vand.u32 %v3042, 4294901760
      %3335 = vmatpush.msra.mxu0 %v3334
      %v3336 = vand.u32 %v3047, 4294901760
      %3337 = vmatmul.f32.gmra.mxu0 %v3336
      %v3338 = vpop.f32.mrf.mxu0
      %v3339 = vadd.f32 %v3317, %v3338
      %3340 = vdwg.mxu0
      %3341 = vmatpush.msra.mxu0 0.0
      %3342 = vmatpush.msra.mxu0 0.0
      %3343 = vmatpush.msra.mxu0 0.0
      %3344 = vmatpush.msra.mxu0 0.0
      %3345 = vmatpush.msra.mxu0 0.0
      %3346 = vmatpush.msra.mxu0 0.0
      %3347 = vmatpush.msra.mxu0 0.0
      %3348 = vmatpush.msra.mxu0 0.0
      %3349 = vmatpush.msra.mxu0 0.0
      %3350 = vmatpush.msra.mxu0 0.0
      %3351 = vmatpush.msra.mxu0 0.0
      %3352 = vmatpush.msra.mxu0 0.0
      %3353 = vmatpush.msra.mxu0 0.0
      %3354 = vmatpush.msra.mxu0 0.0
      %3355 = vmatpush.msra.mxu0 0.0
      %v3356 = vand.u32 %v3039, 4294901760
      %3357 = vmatpush.msra.mxu0 %v3356
      %v3358 = vand.u32 %v3047, 4294901760
      %v3359 = vsub.f32 %v3047, %v3358
      %v3360 = vand.u32 %v3359, 4294901760
      %v3361 = vsub.f32 %v3359, %v3360
      %v3362 = vand.u32 %v3361, 4294901760
      %3363 = vmatmul.f32.gmra.mxu0 %v3362
      %v3364 = vpop.f32.mrf.mxu0
      %v3365 = vadd.f32 0.0, %v3364
      %3366 = vdwg.mxu0
      %3367 = vmatpush.msra.mxu0 0.0
      %3368 = vmatpush.msra.mxu0 0.0
      %3369 = vmatpush.msra.mxu0 0.0
      %3370 = vmatpush.msra.mxu0 0.0
      %3371 = vmatpush.msra.mxu0 0.0
      %3372 = vmatpush.msra.mxu0 0.0
      %3373 = vmatpush.msra.mxu0 0.0
      %3374 = vmatpush.msra.mxu0 0.0
      %3375 = vmatpush.msra.mxu0 0.0
      %3376 = vmatpush.msra.mxu0 0.0
      %3377 = vmatpush.msra.mxu0 0.0
      %3378 = vmatpush.msra.mxu0 0.0
      %3379 = vmatpush.msra.mxu0 0.0
      %3380 = vmatpush.msra.mxu0 0.0
      %3381 = vmatpush.msra.mxu0 0.0
      %v3382 = vand.u32 %v3039, 4294901760
      %v3383 = vsub.f32 %v3039, %v3382
      %v3384 = vand.u32 %v3383, 4294901760
      %v3385 = vsub.f32 %v3383, %v3384
      %v3386 = vand.u32 %v3385, 4294901760
      %3387 = vmatpush.msra.mxu0 %v3386
      %v3388 = vand.u32 %v3047, 4294901760
      %3389 = vmatmul.f32.gmra.mxu0 %v3388
      %v3390 = vpop.f32.mrf.mxu0
      %v3391 = vadd.f32 %v3365, %v3390
      %3392 = vdwg.mxu0
      %3393 = vmatpush.msra.mxu0 0.0
      %3394 = vmatpush.msra.mxu0 0.0
      %3395 = vmatpush.msra.mxu0 0.0
      %3396 = vmatpush.msra.mxu0 0.0
      %3397 = vmatpush.msra.mxu0 0.0
      %3398 = vmatpush.msra.mxu0 0.0
      %3399 = vmatpush.msra.mxu0 0.0
      %3400 = vmatpush.msra.mxu0 0.0
      %3401 = vmatpush.msra.mxu0 0.0
      %3402 = vmatpush.msra.mxu0 0.0
      %3403 = vmatpush.msra.mxu0 0.0
      %3404 = vmatpush.msra.mxu0 0.0
      %3405 = vmatpush.msra.mxu0 0.0
      %3406 = vmatpush.msra.mxu0 0.0
      %3407 = vmatpush.msra.mxu0 0.0
      %v3408 = vand.u32 %v3039, 4294901760
      %v3409 = vsub.f32 %v3039, %v3408
      %3410 = vmatpush.msra.mxu0 %v3409
      %v3411 = vand.u32 %v3047, 4294901760
      %v3412 = vsub.f32 %v3047, %v3411
      %3413 = vmatmul.f32.gmra.mxu0 %v3412
      %v3414 = vpop.f32.mrf.mxu0
      %v3415 = vadd.f32 %v3391, %v3414
      %3416 = vdwg.mxu0
      %3417 = vmatpush.msra.mxu0 0.0
      %3418 = vmatpush.msra.mxu0 0.0
      %3419 = vmatpush.msra.mxu0 0.0
      %3420 = vmatpush.msra.mxu0 0.0
      %3421 = vmatpush.msra.mxu0 0.0
      %3422 = vmatpush.msra.mxu0 0.0
      %3423 = vmatpush.msra.mxu0 0.0
      %3424 = vmatpush.msra.mxu0 0.0
      %3425 = vmatpush.msra.mxu0 0.0
      %3426 = vmatpush.msra.mxu0 0.0
      %3427 = vmatpush.msra.mxu0 0.0
      %3428 = vmatpush.msra.mxu0 0.0
      %3429 = vmatpush.msra.mxu0 0.0
      %3430 = vmatpush.msra.mxu0 0.0
      %3431 = vmatpush.msra.mxu0 0.0
      %v3432 = vand.u32 %v3039, 4294901760
      %3433 = vmatpush.msra.mxu0 %v3432
      %v3434 = vand.u32 %v3047, 4294901760
      %v3435 = vsub.f32 %v3047, %v3434
      %v3436 = vand.u32 %v3435, 4294901760
      %3437 = vmatmul.f32.gmra.mxu0 %v3436
      %v3438 = vpop.f32.mrf.mxu0
      %v3439 = vadd.f32 %v3415, %v3438
      %3440 = vdwg.mxu0
      %3441 = vmatpush.msra.mxu0 0.0
      %3442 = vmatpush.msra.mxu0 0.0
      %3443 = vmatpush.msra.mxu0 0.0
      %3444 = vmatpush.msra.mxu0 0.0
      %3445 = vmatpush.msra.mxu0 0.0
      %3446 = vmatpush.msra.mxu0 0.0
      %3447 = vmatpush.msra.mxu0 0.0
      %3448 = vmatpush.msra.mxu0 0.0
      %3449 = vmatpush.msra.mxu0 0.0
      %3450 = vmatpush.msra.mxu0 0.0
      %3451 = vmatpush.msra.mxu0 0.0
      %3452 = vmatpush.msra.mxu0 0.0
      %3453 = vmatpush.msra.mxu0 0.0
      %3454 = vmatpush.msra.mxu0 0.0
      %3455 = vmatpush.msra.mxu0 0.0
      %v3456 = vand.u32 %v3039, 4294901760
      %v3457 = vsub.f32 %v3039, %v3456
      %v3458 = vand.u32 %v3457, 4294901760
      %3459 = vmatpush.msra.mxu0 %v3458
      %v3460 = vand.u32 %v3047, 4294901760
      %3461 = vmatmul.f32.gmra.mxu0 %v3460
      %v3462 = vpop.f32.mrf.mxu0
      %v3463 = vadd.f32 %v3439, %v3462
      %3464 = vdwg.mxu0
      %3465 = vmatpush.msra.mxu0 0.0
      %3466 = vmatpush.msra.mxu0 0.0
      %3467 = vmatpush.msra.mxu0 0.0
      %3468 = vmatpush.msra.mxu0 0.0
      %3469 = vmatpush.msra.mxu0 0.0
      %3470 = vmatpush.msra.mxu0 0.0
      %3471 = vmatpush.msra.mxu0 0.0
      %3472 = vmatpush.msra.mxu0 0.0
      %3473 = vmatpush.msra.mxu0 0.0
      %3474 = vmatpush.msra.mxu0 0.0
      %3475 = vmatpush.msra.mxu0 0.0
      %3476 = vmatpush.msra.mxu0 0.0
      %3477 = vmatpush.msra.mxu0 0.0
      %3478 = vmatpush.msra.mxu0 0.0
      %3479 = vmatpush.msra.mxu0 0.0
      %v3480 = vand.u32 %v3039, 4294901760
      %3481 = vmatpush.msra.mxu0 %v3480
      %v3482 = vand.u32 %v3047, 4294901760
      %3483 = vmatmul.f32.gmra.mxu0 %v3482
      %v3484 = vpop.f32.mrf.mxu0
      %v3485 = vadd.f32 %v3463, %v3484
      %3486 = vdwg.mxu0
      %v3487 = vadd.f32 %v3026, %v3193
      %v3488 = vadd.f32 %v3027, %v3339
      %v3489 = vadd.f32 %v3028, %v3485
      %s3490 = scalar_lea.vmem %s3, 16
      %v3491 = vld [vmem:[%s3490] sm:$0xff]
      %3492 = vrot.lane.b32.xlu0 %v2581, 126
      %v3493 = vpop.permute.xlu0 %3492
      %3494 = vrot.lane.b32.xlu0 %v2582, 126
      %v3495 = vpop.permute.xlu0 %3494
      %3496 = vrot.lane.b32.xlu0 %v2583, 126
      %v3497 = vpop.permute.xlu0 %3496
      %vm3498 = vcmask 1031168
      %v3499 = vsel %vm3498, %v3493, %v3495
      %v3500 = vsel %vm3498, %v3495, %v3497
      %v3505 = vsel %vm412, %v3491, 0
      %3507 = vmatpush.msra.mxu0 0.0
      %3508 = vmatpush.msra.mxu0 0.0
      %3509 = vmatpush.msra.mxu0 0.0
      %3510 = vmatpush.msra.mxu0 0.0
      %3511 = vmatpush.msra.mxu0 0.0
      %3512 = vmatpush.msra.mxu0 0.0
      %3513 = vmatpush.msra.mxu0 0.0
      %3514 = vmatpush.msra.mxu0 0.0
      %3515 = vmatpush.msra.mxu0 0.0
      %3516 = vmatpush.msra.mxu0 0.0
      %3517 = vmatpush.msra.mxu0 0.0
      %3518 = vmatpush.msra.mxu0 0.0
      %3519 = vmatpush.msra.mxu0 0.0
      %3520 = vmatpush.msra.mxu0 0.0
      %3521 = vmatpush.msra.mxu0 0.0
      %v3522 = vand.u32 %v3499, 4294901760
      %3523 = vmatpush.msra.mxu0 %v3522
      %v3524 = vand.u32 %v3505, 4294901760
      %v3525 = vsub.f32 %v3505, %v3524
      %v3526 = vand.u32 %v3525, 4294901760
      %v3527 = vsub.f32 %v3525, %v3526
      %v3528 = vand.u32 %v3527, 4294901760
      %3529 = vmatmul.f32.gmra.mxu0 %v3528
      %v3530 = vpop.f32.mrf.mxu0
      %v3531 = vadd.f32 0.0, %v3530
      %3532 = vdwg.mxu0
      %3533 = vmatpush.msra.mxu0 0.0
      %3534 = vmatpush.msra.mxu0 0.0
      %3535 = vmatpush.msra.mxu0 0.0
      %3536 = vmatpush.msra.mxu0 0.0
      %3537 = vmatpush.msra.mxu0 0.0
      %3538 = vmatpush.msra.mxu0 0.0
      %3539 = vmatpush.msra.mxu0 0.0
      %3540 = vmatpush.msra.mxu0 0.0
      %3541 = vmatpush.msra.mxu0 0.0
      %3542 = vmatpush.msra.mxu0 0.0
      %3543 = vmatpush.msra.mxu0 0.0
      %3544 = vmatpush.msra.mxu0 0.0
      %3545 = vmatpush.msra.mxu0 0.0
      %3546 = vmatpush.msra.mxu0 0.0
      %3547 = vmatpush.msra.mxu0 0.0
      %v3548 = vand.u32 %v3499, 4294901760
      %v3549 = vsub.f32 %v3499, %v3548
      %v3550 = vand.u32 %v3549, 4294901760
      %v3551 = vsub.f32 %v3549, %v3550
      %v3552 = vand.u32 %v3551, 4294901760
      %3553 = vmatpush.msra.mxu0 %v3552
      %v3554 = vand.u32 %v3505, 4294901760
      %3555 = vmatmul.f32.gmra.mxu0 %v3554
      %v3556 = vpop.f32.mrf.mxu0
      %v3557 = vadd.f32 %v3531, %v3556
      %3558 = vdwg.mxu0
      %3559 = vmatpush.msra.mxu0 0.0
      %3560 = vmatpush.msra.mxu0 0.0
      %3561 = vmatpush.msra.mxu0 0.0
      %3562 = vmatpush.msra.mxu0 0.0
      %3563 = vmatpush.msra.mxu0 0.0
      %3564 = vmatpush.msra.mxu0 0.0
      %3565 = vmatpush.msra.mxu0 0.0
      %3566 = vmatpush.msra.mxu0 0.0
      %3567 = vmatpush.msra.mxu0 0.0
      %3568 = vmatpush.msra.mxu0 0.0
      %3569 = vmatpush.msra.mxu0 0.0
      %3570 = vmatpush.msra.mxu0 0.0
      %3571 = vmatpush.msra.mxu0 0.0
      %3572 = vmatpush.msra.mxu0 0.0
      %3573 = vmatpush.msra.mxu0 0.0
      %v3574 = vand.u32 %v3499, 4294901760
      %v3575 = vsub.f32 %v3499, %v3574
      %3576 = vmatpush.msra.mxu0 %v3575
      %v3577 = vand.u32 %v3505, 4294901760
      %v3578 = vsub.f32 %v3505, %v3577
      %3579 = vmatmul.f32.gmra.mxu0 %v3578
      %v3580 = vpop.f32.mrf.mxu0
      %v3581 = vadd.f32 %v3557, %v3580
      %3582 = vdwg.mxu0
      %3583 = vmatpush.msra.mxu0 0.0
      %3584 = vmatpush.msra.mxu0 0.0
      %3585 = vmatpush.msra.mxu0 0.0
      %3586 = vmatpush.msra.mxu0 0.0
      %3587 = vmatpush.msra.mxu0 0.0
      %3588 = vmatpush.msra.mxu0 0.0
      %3589 = vmatpush.msra.mxu0 0.0
      %3590 = vmatpush.msra.mxu0 0.0
      %3591 = vmatpush.msra.mxu0 0.0
      %3592 = vmatpush.msra.mxu0 0.0
      %3593 = vmatpush.msra.mxu0 0.0
      %3594 = vmatpush.msra.mxu0 0.0
      %3595 = vmatpush.msra.mxu0 0.0
      %3596 = vmatpush.msra.mxu0 0.0
      %3597 = vmatpush.msra.mxu0 0.0
      %v3598 = vand.u32 %v3499, 4294901760
      %3599 = vmatpush.msra.mxu0 %v3598
      %v3600 = vand.u32 %v3505, 4294901760
      %v3601 = vsub.f32 %v3505, %v3600
      %v3602 = vand.u32 %v3601, 4294901760
      %3603 = vmatmul.f32.gmra.mxu0 %v3602
      %v3604 = vpop.f32.mrf.mxu0
      %v3605 = vadd.f32 %v3581, %v3604
      %3606 = vdwg.mxu0
      %3607 = vmatpush.msra.mxu0 0.0
      %3608 = vmatpush.msra.mxu0 0.0
      %3609 = vmatpush.msra.mxu0 0.0
      %3610 = vmatpush.msra.mxu0 0.0
      %3611 = vmatpush.msra.mxu0 0.0
      %3612 = vmatpush.msra.mxu0 0.0
      %3613 = vmatpush.msra.mxu0 0.0
      %3614 = vmatpush.msra.mxu0 0.0
      %3615 = vmatpush.msra.mxu0 0.0
      %3616 = vmatpush.msra.mxu0 0.0
      %3617 = vmatpush.msra.mxu0 0.0
      %3618 = vmatpush.msra.mxu0 0.0
      %3619 = vmatpush.msra.mxu0 0.0
      %3620 = vmatpush.msra.mxu0 0.0
      %3621 = vmatpush.msra.mxu0 0.0
      %v3622 = vand.u32 %v3499, 4294901760
      %v3623 = vsub.f32 %v3499, %v3622
      %v3624 = vand.u32 %v3623, 4294901760
      %3625 = vmatpush.msra.mxu0 %v3624
      %v3626 = vand.u32 %v3505, 4294901760
      %3627 = vmatmul.f32.gmra.mxu0 %v3626
      %v3628 = vpop.f32.mrf.mxu0
      %v3629 = vadd.f32 %v3605, %v3628
      %3630 = vdwg.mxu0
      %3631 = vmatpush.msra.mxu0 0.0
      %3632 = vmatpush.msra.mxu0 0.0
      %3633 = vmatpush.msra.mxu0 0.0
      %3634 = vmatpush.msra.mxu0 0.0
      %3635 = vmatpush.msra.mxu0 0.0
      %3636 = vmatpush.msra.mxu0 0.0
      %3637 = vmatpush.msra.mxu0 0.0
      %3638 = vmatpush.msra.mxu0 0.0
      %3639 = vmatpush.msra.mxu0 0.0
      %3640 = vmatpush.msra.mxu0 0.0
      %3641 = vmatpush.msra.mxu0 0.0
      %3642 = vmatpush.msra.mxu0 0.0
      %3643 = vmatpush.msra.mxu0 0.0
      %3644 = vmatpush.msra.mxu0 0.0
      %3645 = vmatpush.msra.mxu0 0.0
      %v3646 = vand.u32 %v3499, 4294901760
      %3647 = vmatpush.msra.mxu0 %v3646
      %v3648 = vand.u32 %v3505, 4294901760
      %3649 = vmatmul.f32.gmra.mxu0 %v3648
      %v3650 = vpop.f32.mrf.mxu0
      %v3651 = vadd.f32 %v3629, %v3650
      %3652 = vdwg.mxu0
      %3653 = vmatpush.msra.mxu0 0.0
      %3654 = vmatpush.msra.mxu0 0.0
      %3655 = vmatpush.msra.mxu0 0.0
      %3656 = vmatpush.msra.mxu0 0.0
      %3657 = vmatpush.msra.mxu0 0.0
      %3658 = vmatpush.msra.mxu0 0.0
      %3659 = vmatpush.msra.mxu0 0.0
      %3660 = vmatpush.msra.mxu0 0.0
      %3661 = vmatpush.msra.mxu0 0.0
      %3662 = vmatpush.msra.mxu0 0.0
      %3663 = vmatpush.msra.mxu0 0.0
      %3664 = vmatpush.msra.mxu0 0.0
      %3665 = vmatpush.msra.mxu0 0.0
      %3666 = vmatpush.msra.mxu0 0.0
      %3667 = vmatpush.msra.mxu0 0.0
      %v3668 = vand.u32 %v3500, 4294901760
      %3669 = vmatpush.msra.mxu0 %v3668
      %v3670 = vand.u32 %v3505, 4294901760
      %v3671 = vsub.f32 %v3505, %v3670
      %v3672 = vand.u32 %v3671, 4294901760
      %v3673 = vsub.f32 %v3671, %v3672
      %v3674 = vand.u32 %v3673, 4294901760
      %3675 = vmatmul.f32.gmra.mxu0 %v3674
      %v3676 = vpop.f32.mrf.mxu0
      %v3677 = vadd.f32 0.0, %v3676
      %3678 = vdwg.mxu0
      %3679 = vmatpush.msra.mxu0 0.0
      %3680 = vmatpush.msra.mxu0 0.0
      %3681 = vmatpush.msra.mxu0 0.0
      %3682 = vmatpush.msra.mxu0 0.0
      %3683 = vmatpush.msra.mxu0 0.0
      %3684 = vmatpush.msra.mxu0 0.0
      %3685 = vmatpush.msra.mxu0 0.0
      %3686 = vmatpush.msra.mxu0 0.0
      %3687 = vmatpush.msra.mxu0 0.0
      %3688 = vmatpush.msra.mxu0 0.0
      %3689 = vmatpush.msra.mxu0 0.0
      %3690 = vmatpush.msra.mxu0 0.0
      %3691 = vmatpush.msra.mxu0 0.0
      %3692 = vmatpush.msra.mxu0 0.0
      %3693 = vmatpush.msra.mxu0 0.0
      %v3694 = vand.u32 %v3500, 4294901760
      %v3695 = vsub.f32 %v3500, %v3694
      %v3696 = vand.u32 %v3695, 4294901760
      %v3697 = vsub.f32 %v3695, %v3696
      %v3698 = vand.u32 %v3697, 4294901760
      %3699 = vmatpush.msra.mxu0 %v3698
      %v3700 = vand.u32 %v3505, 4294901760
      %3701 = vmatmul.f32.gmra.mxu0 %v3700
      %v3702 = vpop.f32.mrf.mxu0
      %v3703 = vadd.f32 %v3677, %v3702
      %3704 = vdwg.mxu0
      %3705 = vmatpush.msra.mxu0 0.0
      %3706 = vmatpush.msra.mxu0 0.0
      %3707 = vmatpush.msra.mxu0 0.0
      %3708 = vmatpush.msra.mxu0 0.0
      %3709 = vmatpush.msra.mxu0 0.0
      %3710 = vmatpush.msra.mxu0 0.0
      %3711 = vmatpush.msra.mxu0 0.0
      %3712 = vmatpush.msra.mxu0 0.0
      %3713 = vmatpush.msra.mxu0 0.0
      %3714 = vmatpush.msra.mxu0 0.0
      %3715 = vmatpush.msra.mxu0 0.0
      %3716 = vmatpush.msra.mxu0 0.0
      %3717 = vmatpush.msra.mxu0 0.0
      %3718 = vmatpush.msra.mxu0 0.0
      %3719 = vmatpush.msra.mxu0 0.0
      %v3720 = vand.u32 %v3500, 4294901760
      %v3721 = vsub.f32 %v3500, %v3720
      %3722 = vmatpush.msra.mxu0 %v3721
      %v3723 = vand.u32 %v3505, 4294901760
      %v3724 = vsub.f32 %v3505, %v3723
      %3725 = vmatmul.f32.gmra.mxu0 %v3724
      %v3726 = vpop.f32.mrf.mxu0
      %v3727 = vadd.f32 %v3703, %v3726
      %3728 = vdwg.mxu0
      %3729 = vmatpush.msra.mxu0 0.0
      %3730 = vmatpush.msra.mxu0 0.0
      %3731 = vmatpush.msra.mxu0 0.0
      %3732 = vmatpush.msra.mxu0 0.0
      %3733 = vmatpush.msra.mxu0 0.0
      %3734 = vmatpush.msra.mxu0 0.0
      %3735 = vmatpush.msra.mxu0 0.0
      %3736 = vmatpush.msra.mxu0 0.0
      %3737 = vmatpush.msra.mxu0 0.0
      %3738 = vmatpush.msra.mxu0 0.0
      %3739 = vmatpush.msra.mxu0 0.0
      %3740 = vmatpush.msra.mxu0 0.0
      %3741 = vmatpush.msra.mxu0 0.0
      %3742 = vmatpush.msra.mxu0 0.0
      %3743 = vmatpush.msra.mxu0 0.0
      %v3744 = vand.u32 %v3500, 4294901760
      %3745 = vmatpush.msra.mxu0 %v3744
      %v3746 = vand.u32 %v3505, 4294901760
      %v3747 = vsub.f32 %v3505, %v3746
      %v3748 = vand.u32 %v3747, 4294901760
      %3749 = vmatmul.f32.gmra.mxu0 %v3748
      %v3750 = vpop.f32.mrf.mxu0
      %v3751 = vadd.f32 %v3727, %v3750
      %3752 = vdwg.mxu0
      %3753 = vmatpush.msra.mxu0 0.0
      %3754 = vmatpush.msra.mxu0 0.0
      %3755 = vmatpush.msra.mxu0 0.0
      %3756 = vmatpush.msra.mxu0 0.0
      %3757 = vmatpush.msra.mxu0 0.0
      %3758 = vmatpush.msra.mxu0 0.0
      %3759 = vmatpush.msra.mxu0 0.0
      %3760 = vmatpush.msra.mxu0 0.0
      %3761 = vmatpush.msra.mxu0 0.0
      %3762 = vmatpush.msra.mxu0 0.0
      %3763 = vmatpush.msra.mxu0 0.0
      %3764 = vmatpush.msra.mxu0 0.0
      %3765 = vmatpush.msra.mxu0 0.0
      %3766 = vmatpush.msra.mxu0 0.0
      %3767 = vmatpush.msra.mxu0 0.0
      %v3768 = vand.u32 %v3500, 4294901760
      %v3769 = vsub.f32 %v3500, %v3768
      %v3770 = vand.u32 %v3769, 4294901760
      %3771 = vmatpush.msra.mxu0 %v3770
      %v3772 = vand.u32 %v3505, 4294901760
      %3773 = vmatmul.f32.gmra.mxu0 %v3772
      %v3774 = vpop.f32.mrf.mxu0
      %v3775 = vadd.f32 %v3751, %v3774
      %3776 = vdwg.mxu0
      %3777 = vmatpush.msra.mxu0 0.0
      %3778 = vmatpush.msra.mxu0 0.0
      %3779 = vmatpush.msra.mxu0 0.0
      %3780 = vmatpush.msra.mxu0 0.0
      %3781 = vmatpush.msra.mxu0 0.0
      %3782 = vmatpush.msra.mxu0 0.0
      %3783 = vmatpush.msra.mxu0 0.0
      %3784 = vmatpush.msra.mxu0 0.0
      %3785 = vmatpush.msra.mxu0 0.0
      %3786 = vmatpush.msra.mxu0 0.0
      %3787 = vmatpush.msra.mxu0 0.0
      %3788 = vmatpush.msra.mxu0 0.0
      %3789 = vmatpush.msra.mxu0 0.0
      %3790 = vmatpush.msra.mxu0 0.0
      %3791 = vmatpush.msra.mxu0 0.0
      %v3792 = vand.u32 %v3500, 4294901760
      %3793 = vmatpush.msra.mxu0 %v3792
      %v3794 = vand.u32 %v3505, 4294901760
      %3795 = vmatmul.f32.gmra.mxu0 %v3794
      %v3796 = vpop.f32.mrf.mxu0
      %v3797 = vadd.f32 %v3775, %v3796
      %3798 = vdwg.mxu0
      %3799 = vmatpush.msra.mxu0 0.0
      %3800 = vmatpush.msra.mxu0 0.0
      %3801 = vmatpush.msra.mxu0 0.0
      %3802 = vmatpush.msra.mxu0 0.0
      %3803 = vmatpush.msra.mxu0 0.0
      %3804 = vmatpush.msra.mxu0 0.0
      %3805 = vmatpush.msra.mxu0 0.0
      %3806 = vmatpush.msra.mxu0 0.0
      %3807 = vmatpush.msra.mxu0 0.0
      %3808 = vmatpush.msra.mxu0 0.0
      %3809 = vmatpush.msra.mxu0 0.0
      %3810 = vmatpush.msra.mxu0 0.0
      %3811 = vmatpush.msra.mxu0 0.0
      %3812 = vmatpush.msra.mxu0 0.0
      %3813 = vmatpush.msra.mxu0 0.0
      %v3814 = vand.u32 %v3497, 4294901760
      %3815 = vmatpush.msra.mxu0 %v3814
      %v3816 = vand.u32 %v3505, 4294901760
      %v3817 = vsub.f32 %v3505, %v3816
      %v3818 = vand.u32 %v3817, 4294901760
      %v3819 = vsub.f32 %v3817, %v3818
      %v3820 = vand.u32 %v3819, 4294901760
      %3821 = vmatmul.f32.gmra.mxu0 %v3820
      %v3822 = vpop.f32.mrf.mxu0
      %v3823 = vadd.f32 0.0, %v3822
      %3824 = vdwg.mxu0
      %3825 = vmatpush.msra.mxu0 0.0
      %3826 = vmatpush.msra.mxu0 0.0
      %3827 = vmatpush.msra.mxu0 0.0
      %3828 = vmatpush.msra.mxu0 0.0
      %3829 = vmatpush.msra.mxu0 0.0
      %3830 = vmatpush.msra.mxu0 0.0
      %3831 = vmatpush.msra.mxu0 0.0
      %3832 = vmatpush.msra.mxu0 0.0
      %3833 = vmatpush.msra.mxu0 0.0
      %3834 = vmatpush.msra.mxu0 0.0
      %3835 = vmatpush.msra.mxu0 0.0
      %3836 = vmatpush.msra.mxu0 0.0
      %3837 = vmatpush.msra.mxu0 0.0
      %3838 = vmatpush.msra.mxu0 0.0
      %3839 = vmatpush.msra.mxu0 0.0
      %v3840 = vand.u32 %v3497, 4294901760
      %v3841 = vsub.f32 %v3497, %v3840
      %v3842 = vand.u32 %v3841, 4294901760
      %v3843 = vsub.f32 %v3841, %v3842
      %v3844 = vand.u32 %v3843, 4294901760
      %3845 = vmatpush.msra.mxu0 %v3844
      %v3846 = vand.u32 %v3505, 4294901760
      %3847 = vmatmul.f32.gmra.mxu0 %v3846
      %v3848 = vpop.f32.mrf.mxu0
      %v3849 = vadd.f32 %v3823, %v3848
      %3850 = vdwg.mxu0
      %3851 = vmatpush.msra.mxu0 0.0
      %3852 = vmatpush.msra.mxu0 0.0
      %3853 = vmatpush.msra.mxu0 0.0
      %3854 = vmatpush.msra.mxu0 0.0
      %3855 = vmatpush.msra.mxu0 0.0
      %3856 = vmatpush.msra.mxu0 0.0
      %3857 = vmatpush.msra.mxu0 0.0
      %3858 = vmatpush.msra.mxu0 0.0
      %3859 = vmatpush.msra.mxu0 0.0
      %3860 = vmatpush.msra.mxu0 0.0
      %3861 = vmatpush.msra.mxu0 0.0
      %3862 = vmatpush.msra.mxu0 0.0
      %3863 = vmatpush.msra.mxu0 0.0
      %3864 = vmatpush.msra.mxu0 0.0
      %3865 = vmatpush.msra.mxu0 0.0
      %v3866 = vand.u32 %v3497, 4294901760
      %v3867 = vsub.f32 %v3497, %v3866
      %3868 = vmatpush.msra.mxu0 %v3867
      %v3869 = vand.u32 %v3505, 4294901760
      %v3870 = vsub.f32 %v3505, %v3869
      %3871 = vmatmul.f32.gmra.mxu0 %v3870
      %v3872 = vpop.f32.mrf.mxu0
      %v3873 = vadd.f32 %v3849, %v3872
      %3874 = vdwg.mxu0
      %3875 = vmatpush.msra.mxu0 0.0
      %3876 = vmatpush.msra.mxu0 0.0
      %3877 = vmatpush.msra.mxu0 0.0
      %3878 = vmatpush.msra.mxu0 0.0
      %3879 = vmatpush.msra.mxu0 0.0
      %3880 = vmatpush.msra.mxu0 0.0
      %3881 = vmatpush.msra.mxu0 0.0
      %3882 = vmatpush.msra.mxu0 0.0
      %3883 = vmatpush.msra.mxu0 0.0
      %3884 = vmatpush.msra.mxu0 0.0
      %3885 = vmatpush.msra.mxu0 0.0
      %3886 = vmatpush.msra.mxu0 0.0
      %3887 = vmatpush.msra.mxu0 0.0
      %3888 = vmatpush.msra.mxu0 0.0
      %3889 = vmatpush.msra.mxu0 0.0
      %v3890 = vand.u32 %v3497, 4294901760
      %3891 = vmatpush.msra.mxu0 %v3890
      %v3892 = vand.u32 %v3505, 4294901760
      %v3893 = vsub.f32 %v3505, %v3892
      %v3894 = vand.u32 %v3893, 4294901760
      %3895 = vmatmul.f32.gmra.mxu0 %v3894
      %v3896 = vpop.f32.mrf.mxu0
      %v3897 = vadd.f32 %v3873, %v3896
      %3898 = vdwg.mxu0
      %3899 = vmatpush.msra.mxu0 0.0
      %3900 = vmatpush.msra.mxu0 0.0
      %3901 = vmatpush.msra.mxu0 0.0
      %3902 = vmatpush.msra.mxu0 0.0
      %3903 = vmatpush.msra.mxu0 0.0
      %3904 = vmatpush.msra.mxu0 0.0
      %3905 = vmatpush.msra.mxu0 0.0
      %3906 = vmatpush.msra.mxu0 0.0
      %3907 = vmatpush.msra.mxu0 0.0
      %3908 = vmatpush.msra.mxu0 0.0
      %3909 = vmatpush.msra.mxu0 0.0
      %3910 = vmatpush.msra.mxu0 0.0
      %3911 = vmatpush.msra.mxu0 0.0
      %3912 = vmatpush.msra.mxu0 0.0
      %3913 = vmatpush.msra.mxu0 0.0
      %v3914 = vand.u32 %v3497, 4294901760
      %v3915 = vsub.f32 %v3497, %v3914
      %v3916 = vand.u32 %v3915, 4294901760
      %3917 = vmatpush.msra.mxu0 %v3916
      %v3918 = vand.u32 %v3505, 4294901760
      %3919 = vmatmul.f32.gmra.mxu0 %v3918
      %v3920 = vpop.f32.mrf.mxu0
      %v3921 = vadd.f32 %v3897, %v3920
      %3922 = vdwg.mxu0
      %3923 = vmatpush.msra.mxu0 0.0
      %3924 = vmatpush.msra.mxu0 0.0
      %3925 = vmatpush.msra.mxu0 0.0
      %3926 = vmatpush.msra.mxu0 0.0
      %3927 = vmatpush.msra.mxu0 0.0
      %3928 = vmatpush.msra.mxu0 0.0
      %3929 = vmatpush.msra.mxu0 0.0
      %3930 = vmatpush.msra.mxu0 0.0
      %3931 = vmatpush.msra.mxu0 0.0
      %3932 = vmatpush.msra.mxu0 0.0
      %3933 = vmatpush.msra.mxu0 0.0
      %3934 = vmatpush.msra.mxu0 0.0
      %3935 = vmatpush.msra.mxu0 0.0
      %3936 = vmatpush.msra.mxu0 0.0
      %3937 = vmatpush.msra.mxu0 0.0
      %v3938 = vand.u32 %v3497, 4294901760
      %3939 = vmatpush.msra.mxu0 %v3938
      %v3940 = vand.u32 %v3505, 4294901760
      %3941 = vmatmul.f32.gmra.mxu0 %v3940
      %v3942 = vpop.f32.mrf.mxu0
      %v3943 = vadd.f32 %v3921, %v3942
      %3944 = vdwg.mxu0
      %v3945 = vadd.f32 %v3487, %v3651
      %v3946 = vadd.f32 %v3488, %v3797
      %v3947 = vadd.f32 %v3489, %v3943
      %s3948 = scalar_lea.vmem %s3, 24
      %v3949 = vld [vmem:[%s3948] sm:$0xff]
      %3950 = vrot.lane.b32.xlu0 %v2581, 125
      %v3951 = vpop.permute.xlu0 %3950
      %3952 = vrot.lane.b32.xlu0 %v2582, 125
      %v3953 = vpop.permute.xlu0 %3952
      %3954 = vrot.lane.b32.xlu0 %v2583, 125
      %v3955 = vpop.permute.xlu0 %3954
      %v3956 = vsel %vm407, %v3951, %v3953
      %v3957 = vsel %vm407, %v3953, %v3955
      %v3962 = vsel %vm412, %v3949, 0
      %3964 = vmatpush.msra.mxu0 0.0
      %3965 = vmatpush.msra.mxu0 0.0
      %3966 = vmatpush.msra.mxu0 0.0
      %3967 = vmatpush.msra.mxu0 0.0
      %3968 = vmatpush.msra.mxu0 0.0
      %3969 = vmatpush.msra.mxu0 0.0
      %3970 = vmatpush.msra.mxu0 0.0
      %3971 = vmatpush.msra.mxu0 0.0
      %3972 = vmatpush.msra.mxu0 0.0
      %3973 = vmatpush.msra.mxu0 0.0
      %3974 = vmatpush.msra.mxu0 0.0
      %3975 = vmatpush.msra.mxu0 0.0
      %3976 = vmatpush.msra.mxu0 0.0
      %3977 = vmatpush.msra.mxu0 0.0
      %3978 = vmatpush.msra.mxu0 0.0
      %v3979 = vand.u32 %v3956, 4294901760
      %3980 = vmatpush.msra.mxu0 %v3979
      %v3981 = vand.u32 %v3962, 4294901760
      %v3982 = vsub.f32 %v3962, %v3981
      %v3983 = vand.u32 %v3982, 4294901760
      %v3984 = vsub.f32 %v3982, %v3983
      %v3985 = vand.u32 %v3984, 4294901760
      %3986 = vmatmul.f32.gmra.mxu0 %v3985
      %v3987 = vpop.f32.mrf.mxu0
      %v3988 = vadd.f32 0.0, %v3987
      %3989 = vdwg.mxu0
      %3990 = vmatpush.msra.mxu0 0.0
      %3991 = vmatpush.msra.mxu0 0.0
      %3992 = vmatpush.msra.mxu0 0.0
      %3993 = vmatpush.msra.mxu0 0.0
      %3994 = vmatpush.msra.mxu0 0.0
      %3995 = vmatpush.msra.mxu0 0.0
      %3996 = vmatpush.msra.mxu0 0.0
      %3997 = vmatpush.msra.mxu0 0.0
      %3998 = vmatpush.msra.mxu0 0.0
      %3999 = vmatpush.msra.mxu0 0.0
      %4000 = vmatpush.msra.mxu0 0.0
      %4001 = vmatpush.msra.mxu0 0.0
      %4002 = vmatpush.msra.mxu0 0.0
      %4003 = vmatpush.msra.mxu0 0.0
      %4004 = vmatpush.msra.mxu0 0.0
      %v4005 = vand.u32 %v3956, 4294901760
      %v4006 = vsub.f32 %v3956, %v4005
      %v4007 = vand.u32 %v4006, 4294901760
      %v4008 = vsub.f32 %v4006, %v4007
      %v4009 = vand.u32 %v4008, 4294901760
      %4010 = vmatpush.msra.mxu0 %v4009
      %v4011 = vand.u32 %v3962, 4294901760
      %4012 = vmatmul.f32.gmra.mxu0 %v4011
      %v4013 = vpop.f32.mrf.mxu0
      %v4014 = vadd.f32 %v3988, %v4013
      %4015 = vdwg.mxu0
      %4016 = vmatpush.msra.mxu0 0.0
      %4017 = vmatpush.msra.mxu0 0.0
      %4018 = vmatpush.msra.mxu0 0.0
      %4019 = vmatpush.msra.mxu0 0.0
      %4020 = vmatpush.msra.mxu0 0.0
      %4021 = vmatpush.msra.mxu0 0.0
      %4022 = vmatpush.msra.mxu0 0.0
      %4023 = vmatpush.msra.mxu0 0.0
      %4024 = vmatpush.msra.mxu0 0.0
      %4025 = vmatpush.msra.mxu0 0.0
      %4026 = vmatpush.msra.mxu0 0.0
      %4027 = vmatpush.msra.mxu0 0.0
      %4028 = vmatpush.msra.mxu0 0.0
      %4029 = vmatpush.msra.mxu0 0.0
      %4030 = vmatpush.msra.mxu0 0.0
      %v4031 = vand.u32 %v3956, 4294901760
      %v4032 = vsub.f32 %v3956, %v4031
      %4033 = vmatpush.msra.mxu0 %v4032
      %v4034 = vand.u32 %v3962, 4294901760
      %v4035 = vsub.f32 %v3962, %v4034
      %4036 = vmatmul.f32.gmra.mxu0 %v4035
      %v4037 = vpop.f32.mrf.mxu0
      %v4038 = vadd.f32 %v4014, %v4037
      %4039 = vdwg.mxu0
      %4040 = vmatpush.msra.mxu0 0.0
      %4041 = vmatpush.msra.mxu0 0.0
      %4042 = vmatpush.msra.mxu0 0.0
      %4043 = vmatpush.msra.mxu0 0.0
      %4044 = vmatpush.msra.mxu0 0.0
      %4045 = vmatpush.msra.mxu0 0.0
      %4046 = vmatpush.msra.mxu0 0.0
      %4047 = vmatpush.msra.mxu0 0.0
      %4048 = vmatpush.msra.mxu0 0.0
      %4049 = vmatpush.msra.mxu0 0.0
      %4050 = vmatpush.msra.mxu0 0.0
      %4051 = vmatpush.msra.mxu0 0.0
      %4052 = vmatpush.msra.mxu0 0.0
      %4053 = vmatpush.msra.mxu0 0.0
      %4054 = vmatpush.msra.mxu0 0.0
      %v4055 = vand.u32 %v3956, 4294901760
      %4056 = vmatpush.msra.mxu0 %v4055
      %v4057 = vand.u32 %v3962, 4294901760
      %v4058 = vsub.f32 %v3962, %v4057
      %v4059 = vand.u32 %v4058, 4294901760
      %4060 = vmatmul.f32.gmra.mxu0 %v4059
      %v4061 = vpop.f32.mrf.mxu0
      %v4062 = vadd.f32 %v4038, %v4061
      %4063 = vdwg.mxu0
      %4064 = vmatpush.msra.mxu0 0.0
      %4065 = vmatpush.msra.mxu0 0.0
      %4066 = vmatpush.msra.mxu0 0.0
      %4067 = vmatpush.msra.mxu0 0.0
      %4068 = vmatpush.msra.mxu0 0.0
      %4069 = vmatpush.msra.mxu0 0.0
      %4070 = vmatpush.msra.mxu0 0.0
      %4071 = vmatpush.msra.mxu0 0.0
      %4072 = vmatpush.msra.mxu0 0.0
      %4073 = vmatpush.msra.mxu0 0.0
      %4074 = vmatpush.msra.mxu0 0.0
      %4075 = vmatpush.msra.mxu0 0.0
      %4076 = vmatpush.msra.mxu0 0.0
      %4077 = vmatpush.msra.mxu0 0.0
      %4078 = vmatpush.msra.mxu0 0.0
      %v4079 = vand.u32 %v3956, 4294901760
      %v4080 = vsub.f32 %v3956, %v4079
      %v4081 = vand.u32 %v4080, 4294901760
      %4082 = vmatpush.msra.mxu0 %v4081
      %v4083 = vand.u32 %v3962, 4294901760
      %4084 = vmatmul.f32.gmra.mxu0 %v4083
      %v4085 = vpop.f32.mrf.mxu0
      %v4086 = vadd.f32 %v4062, %v4085
      %4087 = vdwg.mxu0
      %4088 = vmatpush.msra.mxu0 0.0
      %4089 = vmatpush.msra.mxu0 0.0
      %4090 = vmatpush.msra.mxu0 0.0
      %4091 = vmatpush.msra.mxu0 0.0
      %4092 = vmatpush.msra.mxu0 0.0
      %4093 = vmatpush.msra.mxu0 0.0
      %4094 = vmatpush.msra.mxu0 0.0
      %4095 = vmatpush.msra.mxu0 0.0
      %4096 = vmatpush.msra.mxu0 0.0
      %4097 = vmatpush.msra.mxu0 0.0
      %4098 = vmatpush.msra.mxu0 0.0
      %4099 = vmatpush.msra.mxu0 0.0
      %4100 = vmatpush.msra.mxu0 0.0
      %4101 = vmatpush.msra.mxu0 0.0
      %4102 = vmatpush.msra.mxu0 0.0
      %v4103 = vand.u32 %v3956, 4294901760
      %4104 = vmatpush.msra.mxu0 %v4103
      %v4105 = vand.u32 %v3962, 4294901760
      %4106 = vmatmul.f32.gmra.mxu0 %v4105
      %v4107 = vpop.f32.mrf.mxu0
      %v4108 = vadd.f32 %v4086, %v4107
      %4109 = vdwg.mxu0
      %4110 = vmatpush.msra.mxu0 0.0
      %4111 = vmatpush.msra.mxu0 0.0
      %4112 = vmatpush.msra.mxu0 0.0
      %4113 = vmatpush.msra.mxu0 0.0
      %4114 = vmatpush.msra.mxu0 0.0
      %4115 = vmatpush.msra.mxu0 0.0
      %4116 = vmatpush.msra.mxu0 0.0
      %4117 = vmatpush.msra.mxu0 0.0
      %4118 = vmatpush.msra.mxu0 0.0
      %4119 = vmatpush.msra.mxu0 0.0
      %4120 = vmatpush.msra.mxu0 0.0
      %4121 = vmatpush.msra.mxu0 0.0
      %4122 = vmatpush.msra.mxu0 0.0
      %4123 = vmatpush.msra.mxu0 0.0
      %4124 = vmatpush.msra.mxu0 0.0
      %v4125 = vand.u32 %v3957, 4294901760
      %4126 = vmatpush.msra.mxu0 %v4125
      %v4127 = vand.u32 %v3962, 4294901760
      %v4128 = vsub.f32 %v3962, %v4127
      %v4129 = vand.u32 %v4128, 4294901760
      %v4130 = vsub.f32 %v4128, %v4129
      %v4131 = vand.u32 %v4130, 4294901760
      %4132 = vmatmul.f32.gmra.mxu0 %v4131
      %v4133 = vpop.f32.mrf.mxu0
      %v4134 = vadd.f32 0.0, %v4133
      %4135 = vdwg.mxu0
      %4136 = vmatpush.msra.mxu0 0.0
      %4137 = vmatpush.msra.mxu0 0.0
      %4138 = vmatpush.msra.mxu0 0.0
      %4139 = vmatpush.msra.mxu0 0.0
      %4140 = vmatpush.msra.mxu0 0.0
      %4141 = vmatpush.msra.mxu0 0.0
      %4142 = vmatpush.msra.mxu0 0.0
      %4143 = vmatpush.msra.mxu0 0.0
      %4144 = vmatpush.msra.mxu0 0.0
      %4145 = vmatpush.msra.mxu0 0.0
      %4146 = vmatpush.msra.mxu0 0.0
      %4147 = vmatpush.msra.mxu0 0.0
      %4148 = vmatpush.msra.mxu0 0.0
      %4149 = vmatpush.msra.mxu0 0.0
      %4150 = vmatpush.msra.mxu0 0.0
      %v4151 = vand.u32 %v3957, 4294901760
      %v4152 = vsub.f32 %v3957, %v4151
      %v4153 = vand.u32 %v4152, 4294901760
      %v4154 = vsub.f32 %v4152, %v4153
      %v4155 = vand.u32 %v4154, 4294901760
      %4156 = vmatpush.msra.mxu0 %v4155
      %v4157 = vand.u32 %v3962, 4294901760
      %4158 = vmatmul.f32.gmra.mxu0 %v4157
      %v4159 = vpop.f32.mrf.mxu0
      %v4160 = vadd.f32 %v4134, %v4159
      %4161 = vdwg.mxu0
      %4162 = vmatpush.msra.mxu0 0.0
      %4163 = vmatpush.msra.mxu0 0.0
      %4164 = vmatpush.msra.mxu0 0.0
      %4165 = vmatpush.msra.mxu0 0.0
      %4166 = vmatpush.msra.mxu0 0.0
      %4167 = vmatpush.msra.mxu0 0.0
      %4168 = vmatpush.msra.mxu0 0.0
      %4169 = vmatpush.msra.mxu0 0.0
      %4170 = vmatpush.msra.mxu0 0.0
      %4171 = vmatpush.msra.mxu0 0.0
      %4172 = vmatpush.msra.mxu0 0.0
      %4173 = vmatpush.msra.mxu0 0.0
      %4174 = vmatpush.msra.mxu0 0.0
      %4175 = vmatpush.msra.mxu0 0.0
      %4176 = vmatpush.msra.mxu0 0.0
      %v4177 = vand.u32 %v3957, 4294901760
      %v4178 = vsub.f32 %v3957, %v4177
      %4179 = vmatpush.msra.mxu0 %v4178
      %v4180 = vand.u32 %v3962, 4294901760
      %v4181 = vsub.f32 %v3962, %v4180
      %4182 = vmatmul.f32.gmra.mxu0 %v4181
      %v4183 = vpop.f32.mrf.mxu0
      %v4184 = vadd.f32 %v4160, %v4183
      %4185 = vdwg.mxu0
      %4186 = vmatpush.msra.mxu0 0.0
      %4187 = vmatpush.msra.mxu0 0.0
      %4188 = vmatpush.msra.mxu0 0.0
      %4189 = vmatpush.msra.mxu0 0.0
      %4190 = vmatpush.msra.mxu0 0.0
      %4191 = vmatpush.msra.mxu0 0.0
      %4192 = vmatpush.msra.mxu0 0.0
      %4193 = vmatpush.msra.mxu0 0.0
      %4194 = vmatpush.msra.mxu0 0.0
      %4195 = vmatpush.msra.mxu0 0.0
      %4196 = vmatpush.msra.mxu0 0.0
      %4197 = vmatpush.msra.mxu0 0.0
      %4198 = vmatpush.msra.mxu0 0.0
      %4199 = vmatpush.msra.mxu0 0.0
      %4200 = vmatpush.msra.mxu0 0.0
      %v4201 = vand.u32 %v3957, 4294901760
      %4202 = vmatpush.msra.mxu0 %v4201
      %v4203 = vand.u32 %v3962, 4294901760
      %v4204 = vsub.f32 %v3962, %v4203
      %v4205 = vand.u32 %v4204, 4294901760
      %4206 = vmatmul.f32.gmra.mxu0 %v4205
      %v4207 = vpop.f32.mrf.mxu0
      %v4208 = vadd.f32 %v4184, %v4207
      %4209 = vdwg.mxu0
      %4210 = vmatpush.msra.mxu0 0.0
      %4211 = vmatpush.msra.mxu0 0.0
      %4212 = vmatpush.msra.mxu0 0.0
      %4213 = vmatpush.msra.mxu0 0.0
      %4214 = vmatpush.msra.mxu0 0.0
      %4215 = vmatpush.msra.mxu0 0.0
      %4216 = vmatpush.msra.mxu0 0.0
      %4217 = vmatpush.msra.mxu0 0.0
      %4218 = vmatpush.msra.mxu0 0.0
      %4219 = vmatpush.msra.mxu0 0.0
      %4220 = vmatpush.msra.mxu0 0.0
      %4221 = vmatpush.msra.mxu0 0.0
      %4222 = vmatpush.msra.mxu0 0.0
      %4223 = vmatpush.msra.mxu0 0.0
      %4224 = vmatpush.msra.mxu0 0.0
      %v4225 = vand.u32 %v3957, 4294901760
      %v4226 = vsub.f32 %v3957, %v4225
      %v4227 = vand.u32 %v4226, 4294901760
      %4228 = vmatpush.msra.mxu0 %v4227
      %v4229 = vand.u32 %v3962, 4294901760
      %4230 = vmatmul.f32.gmra.mxu0 %v4229
      %v4231 = vpop.f32.mrf.mxu0
      %v4232 = vadd.f32 %v4208, %v4231
      %4233 = vdwg.mxu0
      %4234 = vmatpush.msra.mxu0 0.0
      %4235 = vmatpush.msra.mxu0 0.0
      %4236 = vmatpush.msra.mxu0 0.0
      %4237 = vmatpush.msra.mxu0 0.0
      %4238 = vmatpush.msra.mxu0 0.0
      %4239 = vmatpush.msra.mxu0 0.0
      %4240 = vmatpush.msra.mxu0 0.0
      %4241 = vmatpush.msra.mxu0 0.0
      %4242 = vmatpush.msra.mxu0 0.0
      %4243 = vmatpush.msra.mxu0 0.0
      %4244 = vmatpush.msra.mxu0 0.0
      %4245 = vmatpush.msra.mxu0 0.0
      %4246 = vmatpush.msra.mxu0 0.0
      %4247 = vmatpush.msra.mxu0 0.0
      %4248 = vmatpush.msra.mxu0 0.0
      %v4249 = vand.u32 %v3957, 4294901760
      %4250 = vmatpush.msra.mxu0 %v4249
      %v4251 = vand.u32 %v3962, 4294901760
      %4252 = vmatmul.f32.gmra.mxu0 %v4251
      %v4253 = vpop.f32.mrf.mxu0
      %v4254 = vadd.f32 %v4232, %v4253
      %4255 = vdwg.mxu0
      %4256 = vmatpush.msra.mxu0 0.0
      %4257 = vmatpush.msra.mxu0 0.0
      %4258 = vmatpush.msra.mxu0 0.0
      %4259 = vmatpush.msra.mxu0 0.0
      %4260 = vmatpush.msra.mxu0 0.0
      %4261 = vmatpush.msra.mxu0 0.0
      %4262 = vmatpush.msra.mxu0 0.0
      %4263 = vmatpush.msra.mxu0 0.0
      %4264 = vmatpush.msra.mxu0 0.0
      %4265 = vmatpush.msra.mxu0 0.0
      %4266 = vmatpush.msra.mxu0 0.0
      %4267 = vmatpush.msra.mxu0 0.0
      %4268 = vmatpush.msra.mxu0 0.0
      %4269 = vmatpush.msra.mxu0 0.0
      %4270 = vmatpush.msra.mxu0 0.0
      %v4271 = vand.u32 %v3955, 4294901760
      %4272 = vmatpush.msra.mxu0 %v4271
      %v4273 = vand.u32 %v3962, 4294901760
      %v4274 = vsub.f32 %v3962, %v4273
      %v4275 = vand.u32 %v4274, 4294901760
      %v4276 = vsub.f32 %v4274, %v4275
      %v4277 = vand.u32 %v4276, 4294901760
      %4278 = vmatmul.f32.gmra.mxu0 %v4277
      %v4279 = vpop.f32.mrf.mxu0
      %v4280 = vadd.f32 0.0, %v4279
      %4281 = vdwg.mxu0
      %4282 = vmatpush.msra.mxu0 0.0
      %4283 = vmatpush.msra.mxu0 0.0
      %4284 = vmatpush.msra.mxu0 0.0
      %4285 = vmatpush.msra.mxu0 0.0
      %4286 = vmatpush.msra.mxu0 0.0
      %4287 = vmatpush.msra.mxu0 0.0
      %4288 = vmatpush.msra.mxu0 0.0
      %4289 = vmatpush.msra.mxu0 0.0
      %4290 = vmatpush.msra.mxu0 0.0
      %4291 = vmatpush.msra.mxu0 0.0
      %4292 = vmatpush.msra.mxu0 0.0
      %4293 = vmatpush.msra.mxu0 0.0
      %4294 = vmatpush.msra.mxu0 0.0
      %4295 = vmatpush.msra.mxu0 0.0
      %4296 = vmatpush.msra.mxu0 0.0
      %v4297 = vand.u32 %v3955, 4294901760
      %v4298 = vsub.f32 %v3955, %v4297
      %v4299 = vand.u32 %v4298, 4294901760
      %v4300 = vsub.f32 %v4298, %v4299
      %v4301 = vand.u32 %v4300, 4294901760
      %4302 = vmatpush.msra.mxu0 %v4301
      %v4303 = vand.u32 %v3962, 4294901760
      %4304 = vmatmul.f32.gmra.mxu0 %v4303
      %v4305 = vpop.f32.mrf.mxu0
      %v4306 = vadd.f32 %v4280, %v4305
      %4307 = vdwg.mxu0
      %4308 = vmatpush.msra.mxu0 0.0
      %4309 = vmatpush.msra.mxu0 0.0
      %4310 = vmatpush.msra.mxu0 0.0
      %4311 = vmatpush.msra.mxu0 0.0
      %4312 = vmatpush.msra.mxu0 0.0
      %4313 = vmatpush.msra.mxu0 0.0
      %4314 = vmatpush.msra.mxu0 0.0
      %4315 = vmatpush.msra.mxu0 0.0
      %4316 = vmatpush.msra.mxu0 0.0
      %4317 = vmatpush.msra.mxu0 0.0
      %4318 = vmatpush.msra.mxu0 0.0
      %4319 = vmatpush.msra.mxu0 0.0
      %4320 = vmatpush.msra.mxu0 0.0
      %4321 = vmatpush.msra.mxu0 0.0
      %4322 = vmatpush.msra.mxu0 0.0
      %v4323 = vand.u32 %v3955, 4294901760
      %v4324 = vsub.f32 %v3955, %v4323
      %4325 = vmatpush.msra.mxu0 %v4324
      %v4326 = vand.u32 %v3962, 4294901760
      %v4327 = vsub.f32 %v3962, %v4326
      %4328 = vmatmul.f32.gmra.mxu0 %v4327
      %v4329 = vpop.f32.mrf.mxu0
      %v4330 = vadd.f32 %v4306, %v4329
      %4331 = vdwg.mxu0
      %4332 = vmatpush.msra.mxu0 0.0
      %4333 = vmatpush.msra.mxu0 0.0
      %4334 = vmatpush.msra.mxu0 0.0
      %4335 = vmatpush.msra.mxu0 0.0
      %4336 = vmatpush.msra.mxu0 0.0
      %4337 = vmatpush.msra.mxu0 0.0
      %4338 = vmatpush.msra.mxu0 0.0
      %4339 = vmatpush.msra.mxu0 0.0
      %4340 = vmatpush.msra.mxu0 0.0
      %4341 = vmatpush.msra.mxu0 0.0
      %4342 = vmatpush.msra.mxu0 0.0
      %4343 = vmatpush.msra.mxu0 0.0
      %4344 = vmatpush.msra.mxu0 0.0
      %4345 = vmatpush.msra.mxu0 0.0
      %4346 = vmatpush.msra.mxu0 0.0
      %v4347 = vand.u32 %v3955, 4294901760
      %4348 = vmatpush.msra.mxu0 %v4347
      %v4349 = vand.u32 %v3962, 4294901760
      %v4350 = vsub.f32 %v3962, %v4349
      %v4351 = vand.u32 %v4350, 4294901760
      %4352 = vmatmul.f32.gmra.mxu0 %v4351
      %v4353 = vpop.f32.mrf.mxu0
      %v4354 = vadd.f32 %v4330, %v4353
      %4355 = vdwg.mxu0
      %4356 = vmatpush.msra.mxu0 0.0
      %4357 = vmatpush.msra.mxu0 0.0
      %4358 = vmatpush.msra.mxu0 0.0
      %4359 = vmatpush.msra.mxu0 0.0
      %4360 = vmatpush.msra.mxu0 0.0
      %4361 = vmatpush.msra.mxu0 0.0
      %4362 = vmatpush.msra.mxu0 0.0
      %4363 = vmatpush.msra.mxu0 0.0
      %4364 = vmatpush.msra.mxu0 0.0
      %4365 = vmatpush.msra.mxu0 0.0
      %4366 = vmatpush.msra.mxu0 0.0
      %4367 = vmatpush.msra.mxu0 0.0
      %4368 = vmatpush.msra.mxu0 0.0
      %4369 = vmatpush.msra.mxu0 0.0
      %4370 = vmatpush.msra.mxu0 0.0
      %v4371 = vand.u32 %v3955, 4294901760
      %v4372 = vsub.f32 %v3955, %v4371
      %v4373 = vand.u32 %v4372, 4294901760
      %4374 = vmatpush.msra.mxu0 %v4373
      %v4375 = vand.u32 %v3962, 4294901760
      %4376 = vmatmul.f32.gmra.mxu0 %v4375
      %v4377 = vpop.f32.mrf.mxu0
      %v4378 = vadd.f32 %v4354, %v4377
      %4379 = vdwg.mxu0
      %4380 = vmatpush.msra.mxu0 0.0
      %4381 = vmatpush.msra.mxu0 0.0
      %4382 = vmatpush.msra.mxu0 0.0
      %4383 = vmatpush.msra.mxu0 0.0
      %4384 = vmatpush.msra.mxu0 0.0
      %4385 = vmatpush.msra.mxu0 0.0
      %4386 = vmatpush.msra.mxu0 0.0
      %4387 = vmatpush.msra.mxu0 0.0
      %4388 = vmatpush.msra.mxu0 0.0
      %4389 = vmatpush.msra.mxu0 0.0
      %4390 = vmatpush.msra.mxu0 0.0
      %4391 = vmatpush.msra.mxu0 0.0
      %4392 = vmatpush.msra.mxu0 0.0
      %4393 = vmatpush.msra.mxu0 0.0
      %4394 = vmatpush.msra.mxu0 0.0
      %v4395 = vand.u32 %v3955, 4294901760
      %4396 = vmatpush.msra.mxu0 %v4395
      %v4397 = vand.u32 %v3962, 4294901760
      %4398 = vmatmul.f32.gmra.mxu0 %v4397
      %v4399 = vpop.f32.mrf.mxu0
      %v4400 = vadd.f32 %v4378, %v4399
      %4401 = vdwg.mxu0
      %v4402 = vadd.f32 %v3945, %v4108
      %v4403 = vadd.f32 %v3946, %v4254
      %v4404 = vadd.f32 %v3947, %v4400
      %s4405 = scalar_lea.vmem %s3, 32
      %v4406 = vld [vmem:[%s4405] sm:$0xff]
      %4407 = vrot.lane.b32.xlu0 %v2581, 124
      %v4408 = vpop.permute.xlu0 %4407
      %4409 = vrot.lane.b32.xlu0 %v2582, 124
      %v4410 = vpop.permute.xlu0 %4409
      %4411 = vrot.lane.b32.xlu0 %v2583, 124
      %v4412 = vpop.permute.xlu0 %4411
      %vm4413 = vcmask 1014784
      %v4414 = vsel %vm4413, %v4408, %v4410
      %v4415 = vsel %vm4413, %v4410, %v4412
      %v4420 = vsel %vm412, %v4406, 0
      %4422 = vmatpush.msra.mxu0 0.0
      %4423 = vmatpush.msra.mxu0 0.0
      %4424 = vmatpush.msra.mxu0 0.0
      %4425 = vmatpush.msra.mxu0 0.0
      %4426 = vmatpush.msra.mxu0 0.0
      %4427 = vmatpush.msra.mxu0 0.0
      %4428 = vmatpush.msra.mxu0 0.0
      %4429 = vmatpush.msra.mxu0 0.0
      %4430 = vmatpush.msra.mxu0 0.0
      %4431 = vmatpush.msra.mxu0 0.0
      %4432 = vmatpush.msra.mxu0 0.0
      %4433 = vmatpush.msra.mxu0 0.0
      %4434 = vmatpush.msra.mxu0 0.0
      %4435 = vmatpush.msra.mxu0 0.0
      %4436 = vmatpush.msra.mxu0 0.0
      %v4437 = vand.u32 %v4414, 4294901760
      %4438 = vmatpush.msra.mxu0 %v4437
      %v4439 = vand.u32 %v4420, 4294901760
      %v4440 = vsub.f32 %v4420, %v4439
      %v4441 = vand.u32 %v4440, 4294901760
      %v4442 = vsub.f32 %v4440, %v4441
      %v4443 = vand.u32 %v4442, 4294901760
      %4444 = vmatmul.f32.gmra.mxu0 %v4443
      %v4445 = vpop.f32.mrf.mxu0
      %v4446 = vadd.f32 0.0, %v4445
      %4447 = vdwg.mxu0
      %4448 = vmatpush.msra.mxu0 0.0
      %4449 = vmatpush.msra.mxu0 0.0
      %4450 = vmatpush.msra.mxu0 0.0
      %4451 = vmatpush.msra.mxu0 0.0
      %4452 = vmatpush.msra.mxu0 0.0
      %4453 = vmatpush.msra.mxu0 0.0
      %4454 = vmatpush.msra.mxu0 0.0
      %4455 = vmatpush.msra.mxu0 0.0
      %4456 = vmatpush.msra.mxu0 0.0
      %4457 = vmatpush.msra.mxu0 0.0
      %4458 = vmatpush.msra.mxu0 0.0
      %4459 = vmatpush.msra.mxu0 0.0
      %4460 = vmatpush.msra.mxu0 0.0
      %4461 = vmatpush.msra.mxu0 0.0
      %4462 = vmatpush.msra.mxu0 0.0
      %v4463 = vand.u32 %v4414, 4294901760
      %v4464 = vsub.f32 %v4414, %v4463
      %v4465 = vand.u32 %v4464, 4294901760
      %v4466 = vsub.f32 %v4464, %v4465
      %v4467 = vand.u32 %v4466, 4294901760
      %4468 = vmatpush.msra.mxu0 %v4467
      %v4469 = vand.u32 %v4420, 4294901760
      %4470 = vmatmul.f32.gmra.mxu0 %v4469
      %v4471 = vpop.f32.mrf.mxu0
      %v4472 = vadd.f32 %v4446, %v4471
      %4473 = vdwg.mxu0
      %4474 = vmatpush.msra.mxu0 0.0
      %4475 = vmatpush.msra.mxu0 0.0
      %4476 = vmatpush.msra.mxu0 0.0
      %4477 = vmatpush.msra.mxu0 0.0
      %4478 = vmatpush.msra.mxu0 0.0
      %4479 = vmatpush.msra.mxu0 0.0
      %4480 = vmatpush.msra.mxu0 0.0
      %4481 = vmatpush.msra.mxu0 0.0
      %4482 = vmatpush.msra.mxu0 0.0
      %4483 = vmatpush.msra.mxu0 0.0
      %4484 = vmatpush.msra.mxu0 0.0
      %4485 = vmatpush.msra.mxu0 0.0
      %4486 = vmatpush.msra.mxu0 0.0
      %4487 = vmatpush.msra.mxu0 0.0
      %4488 = vmatpush.msra.mxu0 0.0
      %v4489 = vand.u32 %v4414, 4294901760
      %v4490 = vsub.f32 %v4414, %v4489
      %4491 = vmatpush.msra.mxu0 %v4490
      %v4492 = vand.u32 %v4420, 4294901760
      %v4493 = vsub.f32 %v4420, %v4492
      %4494 = vmatmul.f32.gmra.mxu0 %v4493
      %v4495 = vpop.f32.mrf.mxu0
      %v4496 = vadd.f32 %v4472, %v4495
      %4497 = vdwg.mxu0
      %4498 = vmatpush.msra.mxu0 0.0
      %4499 = vmatpush.msra.mxu0 0.0
      %4500 = vmatpush.msra.mxu0 0.0
      %4501 = vmatpush.msra.mxu0 0.0
      %4502 = vmatpush.msra.mxu0 0.0
      %4503 = vmatpush.msra.mxu0 0.0
      %4504 = vmatpush.msra.mxu0 0.0
      %4505 = vmatpush.msra.mxu0 0.0
      %4506 = vmatpush.msra.mxu0 0.0
      %4507 = vmatpush.msra.mxu0 0.0
      %4508 = vmatpush.msra.mxu0 0.0
      %4509 = vmatpush.msra.mxu0 0.0
      %4510 = vmatpush.msra.mxu0 0.0
      %4511 = vmatpush.msra.mxu0 0.0
      %4512 = vmatpush.msra.mxu0 0.0
      %v4513 = vand.u32 %v4414, 4294901760
      %4514 = vmatpush.msra.mxu0 %v4513
      %v4515 = vand.u32 %v4420, 4294901760
      %v4516 = vsub.f32 %v4420, %v4515
      %v4517 = vand.u32 %v4516, 4294901760
      %4518 = vmatmul.f32.gmra.mxu0 %v4517
      %v4519 = vpop.f32.mrf.mxu0
      %v4520 = vadd.f32 %v4496, %v4519
      %4521 = vdwg.mxu0
      %4522 = vmatpush.msra.mxu0 0.0
      %4523 = vmatpush.msra.mxu0 0.0
      %4524 = vmatpush.msra.mxu0 0.0
      %4525 = vmatpush.msra.mxu0 0.0
      %4526 = vmatpush.msra.mxu0 0.0
      %4527 = vmatpush.msra.mxu0 0.0
      %4528 = vmatpush.msra.mxu0 0.0
      %4529 = vmatpush.msra.mxu0 0.0
      %4530 = vmatpush.msra.mxu0 0.0
      %4531 = vmatpush.msra.mxu0 0.0
      %4532 = vmatpush.msra.mxu0 0.0
      %4533 = vmatpush.msra.mxu0 0.0
      %4534 = vmatpush.msra.mxu0 0.0
      %4535 = vmatpush.msra.mxu0 0.0
      %4536 = vmatpush.msra.mxu0 0.0
      %v4537 = vand.u32 %v4414, 4294901760
      %v4538 = vsub.f32 %v4414, %v4537
      %v4539 = vand.u32 %v4538, 4294901760
      %4540 = vmatpush.msra.mxu0 %v4539
      %v4541 = vand.u32 %v4420, 4294901760
      %4542 = vmatmul.f32.gmra.mxu0 %v4541
      %v4543 = vpop.f32.mrf.mxu0
      %v4544 = vadd.f32 %v4520, %v4543
      %4545 = vdwg.mxu0
      %4546 = vmatpush.msra.mxu0 0.0
      %4547 = vmatpush.msra.mxu0 0.0
      %4548 = vmatpush.msra.mxu0 0.0
      %4549 = vmatpush.msra.mxu0 0.0
      %4550 = vmatpush.msra.mxu0 0.0
      %4551 = vmatpush.msra.mxu0 0.0
      %4552 = vmatpush.msra.mxu0 0.0
      %4553 = vmatpush.msra.mxu0 0.0
      %4554 = vmatpush.msra.mxu0 0.0
      %4555 = vmatpush.msra.mxu0 0.0
      %4556 = vmatpush.msra.mxu0 0.0
      %4557 = vmatpush.msra.mxu0 0.0
      %4558 = vmatpush.msra.mxu0 0.0
      %4559 = vmatpush.msra.mxu0 0.0
      %4560 = vmatpush.msra.mxu0 0.0
      %v4561 = vand.u32 %v4414, 4294901760
      %4562 = vmatpush.msra.mxu0 %v4561
      %v4563 = vand.u32 %v4420, 4294901760
      %4564 = vmatmul.f32.gmra.mxu0 %v4563
      %v4565 = vpop.f32.mrf.mxu0
      %v4566 = vadd.f32 %v4544, %v4565
      %4567 = vdwg.mxu0
      %4568 = vmatpush.msra.mxu0 0.0
      %4569 = vmatpush.msra.mxu0 0.0
      %4570 = vmatpush.msra.mxu0 0.0
      %4571 = vmatpush.msra.mxu0 0.0
      %4572 = vmatpush.msra.mxu0 0.0
      %4573 = vmatpush.msra.mxu0 0.0
      %4574 = vmatpush.msra.mxu0 0.0
      %4575 = vmatpush.msra.mxu0 0.0
      %4576 = vmatpush.msra.mxu0 0.0
      %4577 = vmatpush.msra.mxu0 0.0
      %4578 = vmatpush.msra.mxu0 0.0
      %4579 = vmatpush.msra.mxu0 0.0
      %4580 = vmatpush.msra.mxu0 0.0
      %4581 = vmatpush.msra.mxu0 0.0
      %4582 = vmatpush.msra.mxu0 0.0
      %v4583 = vand.u32 %v4415, 4294901760
      %4584 = vmatpush.msra.mxu0 %v4583
      %v4585 = vand.u32 %v4420, 4294901760
      %v4586 = vsub.f32 %v4420, %v4585
      %v4587 = vand.u32 %v4586, 4294901760
      %v4588 = vsub.f32 %v4586, %v4587
      %v4589 = vand.u32 %v4588, 4294901760
      %4590 = vmatmul.f32.gmra.mxu0 %v4589
      %v4591 = vpop.f32.mrf.mxu0
      %v4592 = vadd.f32 0.0, %v4591
      %4593 = vdwg.mxu0
      %4594 = vmatpush.msra.mxu0 0.0
      %4595 = vmatpush.msra.mxu0 0.0
      %4596 = vmatpush.msra.mxu0 0.0
      %4597 = vmatpush.msra.mxu0 0.0
      %4598 = vmatpush.msra.mxu0 0.0
      %4599 = vmatpush.msra.mxu0 0.0
      %4600 = vmatpush.msra.mxu0 0.0
      %4601 = vmatpush.msra.mxu0 0.0
      %4602 = vmatpush.msra.mxu0 0.0
      %4603 = vmatpush.msra.mxu0 0.0
      %4604 = vmatpush.msra.mxu0 0.0
      %4605 = vmatpush.msra.mxu0 0.0
      %4606 = vmatpush.msra.mxu0 0.0
      %4607 = vmatpush.msra.mxu0 0.0
      %4608 = vmatpush.msra.mxu0 0.0
      %v4609 = vand.u32 %v4415, 4294901760
      %v4610 = vsub.f32 %v4415, %v4609
      %v4611 = vand.u32 %v4610, 4294901760
      %v4612 = vsub.f32 %v4610, %v4611
      %v4613 = vand.u32 %v4612, 4294901760
      %4614 = vmatpush.msra.mxu0 %v4613
      %v4615 = vand.u32 %v4420, 4294901760
      %4616 = vmatmul.f32.gmra.mxu0 %v4615
      %v4617 = vpop.f32.mrf.mxu0
      %v4618 = vadd.f32 %v4592, %v4617
      %4619 = vdwg.mxu0
      %4620 = vmatpush.msra.mxu0 0.0
      %4621 = vmatpush.msra.mxu0 0.0
      %4622 = vmatpush.msra.mxu0 0.0
      %4623 = vmatpush.msra.mxu0 0.0
      %4624 = vmatpush.msra.mxu0 0.0
      %4625 = vmatpush.msra.mxu0 0.0
      %4626 = vmatpush.msra.mxu0 0.0
      %4627 = vmatpush.msra.mxu0 0.0
      %4628 = vmatpush.msra.mxu0 0.0
      %4629 = vmatpush.msra.mxu0 0.0
      %4630 = vmatpush.msra.mxu0 0.0
      %4631 = vmatpush.msra.mxu0 0.0
      %4632 = vmatpush.msra.mxu0 0.0
      %4633 = vmatpush.msra.mxu0 0.0
      %4634 = vmatpush.msra.mxu0 0.0
      %v4635 = vand.u32 %v4415, 4294901760
      %v4636 = vsub.f32 %v4415, %v4635
      %4637 = vmatpush.msra.mxu0 %v4636
      %v4638 = vand.u32 %v4420, 4294901760
      %v4639 = vsub.f32 %v4420, %v4638
      %4640 = vmatmul.f32.gmra.mxu0 %v4639
      %v4641 = vpop.f32.mrf.mxu0
      %v4642 = vadd.f32 %v4618, %v4641
      %4643 = vdwg.mxu0
      %4644 = vmatpush.msra.mxu0 0.0
      %4645 = vmatpush.msra.mxu0 0.0
      %4646 = vmatpush.msra.mxu0 0.0
      %4647 = vmatpush.msra.mxu0 0.0
      %4648 = vmatpush.msra.mxu0 0.0
      %4649 = vmatpush.msra.mxu0 0.0
      %4650 = vmatpush.msra.mxu0 0.0
      %4651 = vmatpush.msra.mxu0 0.0
      %4652 = vmatpush.msra.mxu0 0.0
      %4653 = vmatpush.msra.mxu0 0.0
      %4654 = vmatpush.msra.mxu0 0.0
      %4655 = vmatpush.msra.mxu0 0.0
      %4656 = vmatpush.msra.mxu0 0.0
      %4657 = vmatpush.msra.mxu0 0.0
      %4658 = vmatpush.msra.mxu0 0.0
      %v4659 = vand.u32 %v4415, 4294901760
      %4660 = vmatpush.msra.mxu0 %v4659
      %v4661 = vand.u32 %v4420, 4294901760
      %v4662 = vsub.f32 %v4420, %v4661
      %v4663 = vand.u32 %v4662, 4294901760
      %4664 = vmatmul.f32.gmra.mxu0 %v4663
      %v4665 = vpop.f32.mrf.mxu0
      %v4666 = vadd.f32 %v4642, %v4665
      %4667 = vdwg.mxu0
      %4668 = vmatpush.msra.mxu0 0.0
      %4669 = vmatpush.msra.mxu0 0.0
      %4670 = vmatpush.msra.mxu0 0.0
      %4671 = vmatpush.msra.mxu0 0.0
      %4672 = vmatpush.msra.mxu0 0.0
      %4673 = vmatpush.msra.mxu0 0.0
      %4674 = vmatpush.msra.mxu0 0.0
      %4675 = vmatpush.msra.mxu0 0.0
      %4676 = vmatpush.msra.mxu0 0.0
      %4677 = vmatpush.msra.mxu0 0.0
      %4678 = vmatpush.msra.mxu0 0.0
      %4679 = vmatpush.msra.mxu0 0.0
      %4680 = vmatpush.msra.mxu0 0.0
      %4681 = vmatpush.msra.mxu0 0.0
      %4682 = vmatpush.msra.mxu0 0.0
      %v4683 = vand.u32 %v4415, 4294901760
      %v4684 = vsub.f32 %v4415, %v4683
      %v4685 = vand.u32 %v4684, 4294901760
      %4686 = vmatpush.msra.mxu0 %v4685
      %v4687 = vand.u32 %v4420, 4294901760
      %4688 = vmatmul.f32.gmra.mxu0 %v4687
      %v4689 = vpop.f32.mrf.mxu0
      %v4690 = vadd.f32 %v4666, %v4689
      %4691 = vdwg.mxu0
      %4692 = vmatpush.msra.mxu0 0.0
      %4693 = vmatpush.msra.mxu0 0.0
      %4694 = vmatpush.msra.mxu0 0.0
      %4695 = vmatpush.msra.mxu0 0.0
      %4696 = vmatpush.msra.mxu0 0.0
      %4697 = vmatpush.msra.mxu0 0.0
      %4698 = vmatpush.msra.mxu0 0.0
      %4699 = vmatpush.msra.mxu0 0.0
      %4700 = vmatpush.msra.mxu0 0.0
      %4701 = vmatpush.msra.mxu0 0.0
      %4702 = vmatpush.msra.mxu0 0.0
      %4703 = vmatpush.msra.mxu0 0.0
      %4704 = vmatpush.msra.mxu0 0.0
      %4705 = vmatpush.msra.mxu0 0.0
      %4706 = vmatpush.msra.mxu0 0.0
      %v4707 = vand.u32 %v4415, 4294901760
      %4708 = vmatpush.msra.mxu0 %v4707
      %v4709 = vand.u32 %v4420, 4294901760
      %4710 = vmatmul.f32.gmra.mxu0 %v4709
      %v4711 = vpop.f32.mrf.mxu0
      %v4712 = vadd.f32 %v4690, %v4711
      %4713 = vdwg.mxu0
      %4714 = vmatpush.msra.mxu0 0.0
      %4715 = vmatpush.msra.mxu0 0.0
      %4716 = vmatpush.msra.mxu0 0.0
      %4717 = vmatpush.msra.mxu0 0.0
      %4718 = vmatpush.msra.mxu0 0.0
      %4719 = vmatpush.msra.mxu0 0.0
      %4720 = vmatpush.msra.mxu0 0.0
      %4721 = vmatpush.msra.mxu0 0.0
      %4722 = vmatpush.msra.mxu0 0.0
      %4723 = vmatpush.msra.mxu0 0.0
      %4724 = vmatpush.msra.mxu0 0.0
      %4725 = vmatpush.msra.mxu0 0.0
      %4726 = vmatpush.msra.mxu0 0.0
      %4727 = vmatpush.msra.mxu0 0.0
      %4728 = vmatpush.msra.mxu0 0.0
      %v4729 = vand.u32 %v4412, 4294901760
      %4730 = vmatpush.msra.mxu0 %v4729
      %v4731 = vand.u32 %v4420, 4294901760
      %v4732 = vsub.f32 %v4420, %v4731
      %v4733 = vand.u32 %v4732, 4294901760
      %v4734 = vsub.f32 %v4732, %v4733
      %v4735 = vand.u32 %v4734, 4294901760
      %4736 = vmatmul.f32.gmra.mxu0 %v4735
      %v4737 = vpop.f32.mrf.mxu0
      %v4738 = vadd.f32 0.0, %v4737
      %4739 = vdwg.mxu0
      %4740 = vmatpush.msra.mxu0 0.0
      %4741 = vmatpush.msra.mxu0 0.0
      %4742 = vmatpush.msra.mxu0 0.0
      %4743 = vmatpush.msra.mxu0 0.0
      %4744 = vmatpush.msra.mxu0 0.0
      %4745 = vmatpush.msra.mxu0 0.0
      %4746 = vmatpush.msra.mxu0 0.0
      %4747 = vmatpush.msra.mxu0 0.0
      %4748 = vmatpush.msra.mxu0 0.0
      %4749 = vmatpush.msra.mxu0 0.0
      %4750 = vmatpush.msra.mxu0 0.0
      %4751 = vmatpush.msra.mxu0 0.0
      %4752 = vmatpush.msra.mxu0 0.0
      %4753 = vmatpush.msra.mxu0 0.0
      %4754 = vmatpush.msra.mxu0 0.0
      %v4755 = vand.u32 %v4412, 4294901760
      %v4756 = vsub.f32 %v4412, %v4755
      %v4757 = vand.u32 %v4756, 4294901760
      %v4758 = vsub.f32 %v4756, %v4757
      %v4759 = vand.u32 %v4758, 4294901760
      %4760 = vmatpush.msra.mxu0 %v4759
      %v4761 = vand.u32 %v4420, 4294901760
      %4762 = vmatmul.f32.gmra.mxu0 %v4761
      %v4763 = vpop.f32.mrf.mxu0
      %v4764 = vadd.f32 %v4738, %v4763
      %4765 = vdwg.mxu0
      %4766 = vmatpush.msra.mxu0 0.0
      %4767 = vmatpush.msra.mxu0 0.0
      %4768 = vmatpush.msra.mxu0 0.0
      %4769 = vmatpush.msra.mxu0 0.0
      %4770 = vmatpush.msra.mxu0 0.0
      %4771 = vmatpush.msra.mxu0 0.0
      %4772 = vmatpush.msra.mxu0 0.0
      %4773 = vmatpush.msra.mxu0 0.0
      %4774 = vmatpush.msra.mxu0 0.0
      %4775 = vmatpush.msra.mxu0 0.0
      %4776 = vmatpush.msra.mxu0 0.0
      %4777 = vmatpush.msra.mxu0 0.0
      %4778 = vmatpush.msra.mxu0 0.0
      %4779 = vmatpush.msra.mxu0 0.0
      %4780 = vmatpush.msra.mxu0 0.0
      %v4781 = vand.u32 %v4412, 4294901760
      %v4782 = vsub.f32 %v4412, %v4781
      %4783 = vmatpush.msra.mxu0 %v4782
      %v4784 = vand.u32 %v4420, 4294901760
      %v4785 = vsub.f32 %v4420, %v4784
      %4786 = vmatmul.f32.gmra.mxu0 %v4785
      %v4787 = vpop.f32.mrf.mxu0
      %v4788 = vadd.f32 %v4764, %v4787
      %4789 = vdwg.mxu0
      %4790 = vmatpush.msra.mxu0 0.0
      %4791 = vmatpush.msra.mxu0 0.0
      %4792 = vmatpush.msra.mxu0 0.0
      %4793 = vmatpush.msra.mxu0 0.0
      %4794 = vmatpush.msra.mxu0 0.0
      %4795 = vmatpush.msra.mxu0 0.0
      %4796 = vmatpush.msra.mxu0 0.0
      %4797 = vmatpush.msra.mxu0 0.0
      %4798 = vmatpush.msra.mxu0 0.0
      %4799 = vmatpush.msra.mxu0 0.0
      %4800 = vmatpush.msra.mxu0 0.0
      %4801 = vmatpush.msra.mxu0 0.0
      %4802 = vmatpush.msra.mxu0 0.0
      %4803 = vmatpush.msra.mxu0 0.0
      %4804 = vmatpush.msra.mxu0 0.0
      %v4805 = vand.u32 %v4412, 4294901760
      %4806 = vmatpush.msra.mxu0 %v4805
      %v4807 = vand.u32 %v4420, 4294901760
      %v4808 = vsub.f32 %v4420, %v4807
      %v4809 = vand.u32 %v4808, 4294901760
      %4810 = vmatmul.f32.gmra.mxu0 %v4809
      %v4811 = vpop.f32.mrf.mxu0
      %v4812 = vadd.f32 %v4788, %v4811
      %4813 = vdwg.mxu0
      %4814 = vmatpush.msra.mxu0 0.0
      %4815 = vmatpush.msra.mxu0 0.0
      %4816 = vmatpush.msra.mxu0 0.0
      %4817 = vmatpush.msra.mxu0 0.0
      %4818 = vmatpush.msra.mxu0 0.0
      %4819 = vmatpush.msra.mxu0 0.0
      %4820 = vmatpush.msra.mxu0 0.0
      %4821 = vmatpush.msra.mxu0 0.0
      %4822 = vmatpush.msra.mxu0 0.0
      %4823 = vmatpush.msra.mxu0 0.0
      %4824 = vmatpush.msra.mxu0 0.0
      %4825 = vmatpush.msra.mxu0 0.0
      %4826 = vmatpush.msra.mxu0 0.0
      %4827 = vmatpush.msra.mxu0 0.0
      %4828 = vmatpush.msra.mxu0 0.0
      %v4829 = vand.u32 %v4412, 4294901760
      %v4830 = vsub.f32 %v4412, %v4829
      %v4831 = vand.u32 %v4830, 4294901760
      %4832 = vmatpush.msra.mxu0 %v4831
      %v4833 = vand.u32 %v4420, 4294901760
      %4834 = vmatmul.f32.gmra.mxu0 %v4833
      %v4835 = vpop.f32.mrf.mxu0
      %v4836 = vadd.f32 %v4812, %v4835
      %4837 = vdwg.mxu0
      %4838 = vmatpush.msra.mxu0 0.0
      %4839 = vmatpush.msra.mxu0 0.0
      %4840 = vmatpush.msra.mxu0 0.0
      %4841 = vmatpush.msra.mxu0 0.0
      %4842 = vmatpush.msra.mxu0 0.0
      %4843 = vmatpush.msra.mxu0 0.0
      %4844 = vmatpush.msra.mxu0 0.0
      %4845 = vmatpush.msra.mxu0 0.0
      %4846 = vmatpush.msra.mxu0 0.0
      %4847 = vmatpush.msra.mxu0 0.0
      %4848 = vmatpush.msra.mxu0 0.0
      %4849 = vmatpush.msra.mxu0 0.0
      %4850 = vmatpush.msra.mxu0 0.0
      %4851 = vmatpush.msra.mxu0 0.0
      %4852 = vmatpush.msra.mxu0 0.0
      %v4853 = vand.u32 %v4412, 4294901760
      %4854 = vmatpush.msra.mxu0 %v4853
      %v4855 = vand.u32 %v4420, 4294901760
      %4856 = vmatmul.f32.gmra.mxu0 %v4855
      %v4857 = vpop.f32.mrf.mxu0
      %v4858 = vadd.f32 %v4836, %v4857
      %4859 = vdwg.mxu0
      %v4860 = vadd.f32 %v4402, %v4566
      %v4861 = vadd.f32 %v4403, %v4712
      %v4862 = vadd.f32 %v4404, %v4858
      %s4863 = scalar_lea.vmem %s3, 40
      %v4864 = vld [vmem:[%s4863] sm:$0xff]
      %4865 = vrot.lane.b32.xlu0 %v2581, 123
      %v4866 = vpop.permute.xlu0 %4865
      %4867 = vrot.lane.b32.xlu0 %v2582, 123
      %v4868 = vpop.permute.xlu0 %4867
      %4869 = vrot.lane.b32.xlu0 %v2583, 123
      %v4870 = vpop.permute.xlu0 %4869
      %vm4871 = vcmask 1006592
      %v4872 = vsel %vm4871, %v4866, %v4868
      %v4873 = vsel %vm4871, %v4868, %v4870
      %v4878 = vsel %vm412, %v4864, 0
      %4880 = vmatpush.msra.mxu0 0.0
      %4881 = vmatpush.msra.mxu0 0.0
      %4882 = vmatpush.msra.mxu0 0.0
      %4883 = vmatpush.msra.mxu0 0.0
      %4884 = vmatpush.msra.mxu0 0.0
      %4885 = vmatpush.msra.mxu0 0.0
      %4886 = vmatpush.msra.mxu0 0.0
      %4887 = vmatpush.msra.mxu0 0.0
      %4888 = vmatpush.msra.mxu0 0.0
      %4889 = vmatpush.msra.mxu0 0.0
      %4890 = vmatpush.msra.mxu0 0.0
      %4891 = vmatpush.msra.mxu0 0.0
      %4892 = vmatpush.msra.mxu0 0.0
      %4893 = vmatpush.msra.mxu0 0.0
      %4894 = vmatpush.msra.mxu0 0.0
      %v4895 = vand.u32 %v4872, 4294901760
      %4896 = vmatpush.msra.mxu0 %v4895
      %v4897 = vand.u32 %v4878, 4294901760
      %v4898 = vsub.f32 %v4878, %v4897
      %v4899 = vand.u32 %v4898, 4294901760
      %v4900 = vsub.f32 %v4898, %v4899
      %v4901 = vand.u32 %v4900, 4294901760
      %4902 = vmatmul.f32.gmra.mxu0 %v4901
      %v4903 = vpop.f32.mrf.mxu0
      %v4904 = vadd.f32 0.0, %v4903
      %4905 = vdwg.mxu0
      %4906 = vmatpush.msra.mxu0 0.0
      %4907 = vmatpush.msra.mxu0 0.0
      %4908 = vmatpush.msra.mxu0 0.0
      %4909 = vmatpush.msra.mxu0 0.0
      %4910 = vmatpush.msra.mxu0 0.0
      %4911 = vmatpush.msra.mxu0 0.0
      %4912 = vmatpush.msra.mxu0 0.0
      %4913 = vmatpush.msra.mxu0 0.0
      %4914 = vmatpush.msra.mxu0 0.0
      %4915 = vmatpush.msra.mxu0 0.0
      %4916 = vmatpush.msra.mxu0 0.0
      %4917 = vmatpush.msra.mxu0 0.0
      %4918 = vmatpush.msra.mxu0 0.0
      %4919 = vmatpush.msra.mxu0 0.0
      %4920 = vmatpush.msra.mxu0 0.0
      %v4921 = vand.u32 %v4872, 4294901760
      %v4922 = vsub.f32 %v4872, %v4921
      %v4923 = vand.u32 %v4922, 4294901760
      %v4924 = vsub.f32 %v4922, %v4923
      %v4925 = vand.u32 %v4924, 4294901760
      %4926 = vmatpush.msra.mxu0 %v4925
      %v4927 = vand.u32 %v4878, 4294901760
      %4928 = vmatmul.f32.gmra.mxu0 %v4927
      %v4929 = vpop.f32.mrf.mxu0
      %v4930 = vadd.f32 %v4904, %v4929
      %4931 = vdwg.mxu0
      %4932 = vmatpush.msra.mxu0 0.0
      %4933 = vmatpush.msra.mxu0 0.0
      %4934 = vmatpush.msra.mxu0 0.0
      %4935 = vmatpush.msra.mxu0 0.0
      %4936 = vmatpush.msra.mxu0 0.0
      %4937 = vmatpush.msra.mxu0 0.0
      %4938 = vmatpush.msra.mxu0 0.0
      %4939 = vmatpush.msra.mxu0 0.0
      %4940 = vmatpush.msra.mxu0 0.0
      %4941 = vmatpush.msra.mxu0 0.0
      %4942 = vmatpush.msra.mxu0 0.0
      %4943 = vmatpush.msra.mxu0 0.0
      %4944 = vmatpush.msra.mxu0 0.0
      %4945 = vmatpush.msra.mxu0 0.0
      %4946 = vmatpush.msra.mxu0 0.0
      %v4947 = vand.u32 %v4872, 4294901760
      %v4948 = vsub.f32 %v4872, %v4947
      %4949 = vmatpush.msra.mxu0 %v4948
      %v4950 = vand.u32 %v4878, 4294901760
      %v4951 = vsub.f32 %v4878, %v4950
      %4952 = vmatmul.f32.gmra.mxu0 %v4951
      %v4953 = vpop.f32.mrf.mxu0
      %v4954 = vadd.f32 %v4930, %v4953
      %4955 = vdwg.mxu0
      %4956 = vmatpush.msra.mxu0 0.0
      %4957 = vmatpush.msra.mxu0 0.0
      %4958 = vmatpush.msra.mxu0 0.0
      %4959 = vmatpush.msra.mxu0 0.0
      %4960 = vmatpush.msra.mxu0 0.0
      %4961 = vmatpush.msra.mxu0 0.0
      %4962 = vmatpush.msra.mxu0 0.0
      %4963 = vmatpush.msra.mxu0 0.0
      %4964 = vmatpush.msra.mxu0 0.0
      %4965 = vmatpush.msra.mxu0 0.0
      %4966 = vmatpush.msra.mxu0 0.0
      %4967 = vmatpush.msra.mxu0 0.0
      %4968 = vmatpush.msra.mxu0 0.0
      %4969 = vmatpush.msra.mxu0 0.0
      %4970 = vmatpush.msra.mxu0 0.0
      %v4971 = vand.u32 %v4872, 4294901760
      %4972 = vmatpush.msra.mxu0 %v4971
      %v4973 = vand.u32 %v4878, 4294901760
      %v4974 = vsub.f32 %v4878, %v4973
      %v4975 = vand.u32 %v4974, 4294901760
      %4976 = vmatmul.f32.gmra.mxu0 %v4975
      %v4977 = vpop.f32.mrf.mxu0
      %v4978 = vadd.f32 %v4954, %v4977
      %4979 = vdwg.mxu0
      %4980 = vmatpush.msra.mxu0 0.0
      %4981 = vmatpush.msra.mxu0 0.0
      %4982 = vmatpush.msra.mxu0 0.0
      %4983 = vmatpush.msra.mxu0 0.0
      %4984 = vmatpush.msra.mxu0 0.0
      %4985 = vmatpush.msra.mxu0 0.0
      %4986 = vmatpush.msra.mxu0 0.0
      %4987 = vmatpush.msra.mxu0 0.0
      %4988 = vmatpush.msra.mxu0 0.0
      %4989 = vmatpush.msra.mxu0 0.0
      %4990 = vmatpush.msra.mxu0 0.0
      %4991 = vmatpush.msra.mxu0 0.0
      %4992 = vmatpush.msra.mxu0 0.0
      %4993 = vmatpush.msra.mxu0 0.0
      %4994 = vmatpush.msra.mxu0 0.0
      %v4995 = vand.u32 %v4872, 4294901760
      %v4996 = vsub.f32 %v4872, %v4995
      %v4997 = vand.u32 %v4996, 4294901760
      %4998 = vmatpush.msra.mxu0 %v4997
      %v4999 = vand.u32 %v4878, 4294901760
      %5000 = vmatmul.f32.gmra.mxu0 %v4999
      %v5001 = vpop.f32.mrf.mxu0
      %v5002 = vadd.f32 %v4978, %v5001
      %5003 = vdwg.mxu0
      %5004 = vmatpush.msra.mxu0 0.0
      %5005 = vmatpush.msra.mxu0 0.0
      %5006 = vmatpush.msra.mxu0 0.0
      %5007 = vmatpush.msra.mxu0 0.0
      %5008 = vmatpush.msra.mxu0 0.0
      %5009 = vmatpush.msra.mxu0 0.0
      %5010 = vmatpush.msra.mxu0 0.0
      %5011 = vmatpush.msra.mxu0 0.0
      %5012 = vmatpush.msra.mxu0 0.0
      %5013 = vmatpush.msra.mxu0 0.0
      %5014 = vmatpush.msra.mxu0 0.0
      %5015 = vmatpush.msra.mxu0 0.0
      %5016 = vmatpush.msra.mxu0 0.0
      %5017 = vmatpush.msra.mxu0 0.0
      %5018 = vmatpush.msra.mxu0 0.0
      %v5019 = vand.u32 %v4872, 4294901760
      %5020 = vmatpush.msra.mxu0 %v5019
      %v5021 = vand.u32 %v4878, 4294901760
      %5022 = vmatmul.f32.gmra.mxu0 %v5021
      %v5023 = vpop.f32.mrf.mxu0
      %v5024 = vadd.f32 %v5002, %v5023
      %5025 = vdwg.mxu0
      %5026 = vmatpush.msra.mxu0 0.0
      %5027 = vmatpush.msra.mxu0 0.0
      %5028 = vmatpush.msra.mxu0 0.0
      %5029 = vmatpush.msra.mxu0 0.0
      %5030 = vmatpush.msra.mxu0 0.0
      %5031 = vmatpush.msra.mxu0 0.0
      %5032 = vmatpush.msra.mxu0 0.0
      %5033 = vmatpush.msra.mxu0 0.0
      %5034 = vmatpush.msra.mxu0 0.0
      %5035 = vmatpush.msra.mxu0 0.0
      %5036 = vmatpush.msra.mxu0 0.0
      %5037 = vmatpush.msra.mxu0 0.0
      %5038 = vmatpush.msra.mxu0 0.0
      %5039 = vmatpush.msra.mxu0 0.0
      %5040 = vmatpush.msra.mxu0 0.0
      %v5041 = vand.u32 %v4873, 4294901760
      %5042 = vmatpush.msra.mxu0 %v5041
      %v5043 = vand.u32 %v4878, 4294901760
      %v5044 = vsub.f32 %v4878, %v5043
      %v5045 = vand.u32 %v5044, 4294901760
      %v5046 = vsub.f32 %v5044, %v5045
      %v5047 = vand.u32 %v5046, 4294901760
      %5048 = vmatmul.f32.gmra.mxu0 %v5047
      %v5049 = vpop.f32.mrf.mxu0
      %v5050 = vadd.f32 0.0, %v5049
      %5051 = vdwg.mxu0
      %5052 = vmatpush.msra.mxu0 0.0
      %5053 = vmatpush.msra.mxu0 0.0
      %5054 = vmatpush.msra.mxu0 0.0
      %5055 = vmatpush.msra.mxu0 0.0
      %5056 = vmatpush.msra.mxu0 0.0
      %5057 = vmatpush.msra.mxu0 0.0
      %5058 = vmatpush.msra.mxu0 0.0
      %5059 = vmatpush.msra.mxu0 0.0
      %5060 = vmatpush.msra.mxu0 0.0
      %5061 = vmatpush.msra.mxu0 0.0
      %5062 = vmatpush.msra.mxu0 0.0
      %5063 = vmatpush.msra.mxu0 0.0
      %5064 = vmatpush.msra.mxu0 0.0
      %5065 = vmatpush.msra.mxu0 0.0
      %5066 = vmatpush.msra.mxu0 0.0
      %v5067 = vand.u32 %v4873, 4294901760
      %v5068 = vsub.f32 %v4873, %v5067
      %v5069 = vand.u32 %v5068, 4294901760
      %v5070 = vsub.f32 %v5068, %v5069
      %v5071 = vand.u32 %v5070, 4294901760
      %5072 = vmatpush.msra.mxu0 %v5071
      %v5073 = vand.u32 %v4878, 4294901760
      %5074 = vmatmul.f32.gmra.mxu0 %v5073
      %v5075 = vpop.f32.mrf.mxu0
      %v5076 = vadd.f32 %v5050, %v5075
      %5077 = vdwg.mxu0
      %5078 = vmatpush.msra.mxu0 0.0
      %5079 = vmatpush.msra.mxu0 0.0
      %5080 = vmatpush.msra.mxu0 0.0
      %5081 = vmatpush.msra.mxu0 0.0
      %5082 = vmatpush.msra.mxu0 0.0
      %5083 = vmatpush.msra.mxu0 0.0
      %5084 = vmatpush.msra.mxu0 0.0
      %5085 = vmatpush.msra.mxu0 0.0
      %5086 = vmatpush.msra.mxu0 0.0
      %5087 = vmatpush.msra.mxu0 0.0
      %5088 = vmatpush.msra.mxu0 0.0
      %5089 = vmatpush.msra.mxu0 0.0
      %5090 = vmatpush.msra.mxu0 0.0
      %5091 = vmatpush.msra.mxu0 0.0
      %5092 = vmatpush.msra.mxu0 0.0
      %v5093 = vand.u32 %v4873, 4294901760
      %v5094 = vsub.f32 %v4873, %v5093
      %5095 = vmatpush.msra.mxu0 %v5094
      %v5096 = vand.u32 %v4878, 4294901760
      %v5097 = vsub.f32 %v4878, %v5096
      %5098 = vmatmul.f32.gmra.mxu0 %v5097
      %v5099 = vpop.f32.mrf.mxu0
      %v5100 = vadd.f32 %v5076, %v5099
      %5101 = vdwg.mxu0
      %5102 = vmatpush.msra.mxu0 0.0
      %5103 = vmatpush.msra.mxu0 0.0
      %5104 = vmatpush.msra.mxu0 0.0
      %5105 = vmatpush.msra.mxu0 0.0
      %5106 = vmatpush.msra.mxu0 0.0
      %5107 = vmatpush.msra.mxu0 0.0
      %5108 = vmatpush.msra.mxu0 0.0
      %5109 = vmatpush.msra.mxu0 0.0
      %5110 = vmatpush.msra.mxu0 0.0
      %5111 = vmatpush.msra.mxu0 0.0
      %5112 = vmatpush.msra.mxu0 0.0
      %5113 = vmatpush.msra.mxu0 0.0
      %5114 = vmatpush.msra.mxu0 0.0
      %5115 = vmatpush.msra.mxu0 0.0
      %5116 = vmatpush.msra.mxu0 0.0
      %v5117 = vand.u32 %v4873, 4294901760
      %5118 = vmatpush.msra.mxu0 %v5117
      %v5119 = vand.u32 %v4878, 4294901760
      %v5120 = vsub.f32 %v4878, %v5119
      %v5121 = vand.u32 %v5120, 4294901760
      %5122 = vmatmul.f32.gmra.mxu0 %v5121
      %v5123 = vpop.f32.mrf.mxu0
      %v5124 = vadd.f32 %v5100, %v5123
      %5125 = vdwg.mxu0
      %5126 = vmatpush.msra.mxu0 0.0
      %5127 = vmatpush.msra.mxu0 0.0
      %5128 = vmatpush.msra.mxu0 0.0
      %5129 = vmatpush.msra.mxu0 0.0
      %5130 = vmatpush.msra.mxu0 0.0
      %5131 = vmatpush.msra.mxu0 0.0
      %5132 = vmatpush.msra.mxu0 0.0
      %5133 = vmatpush.msra.mxu0 0.0
      %5134 = vmatpush.msra.mxu0 0.0
      %5135 = vmatpush.msra.mxu0 0.0
      %5136 = vmatpush.msra.mxu0 0.0
      %5137 = vmatpush.msra.mxu0 0.0
      %5138 = vmatpush.msra.mxu0 0.0
      %5139 = vmatpush.msra.mxu0 0.0
      %5140 = vmatpush.msra.mxu0 0.0
      %v5141 = vand.u32 %v4873, 4294901760
      %v5142 = vsub.f32 %v4873, %v5141
      %v5143 = vand.u32 %v5142, 4294901760
      %5144 = vmatpush.msra.mxu0 %v5143
      %v5145 = vand.u32 %v4878, 4294901760
      %5146 = vmatmul.f32.gmra.mxu0 %v5145
      %v5147 = vpop.f32.mrf.mxu0
      %v5148 = vadd.f32 %v5124, %v5147
      %5149 = vdwg.mxu0
      %5150 = vmatpush.msra.mxu0 0.0
      %5151 = vmatpush.msra.mxu0 0.0
      %5152 = vmatpush.msra.mxu0 0.0
      %5153 = vmatpush.msra.mxu0 0.0
      %5154 = vmatpush.msra.mxu0 0.0
      %5155 = vmatpush.msra.mxu0 0.0
      %5156 = vmatpush.msra.mxu0 0.0
      %5157 = vmatpush.msra.mxu0 0.0
      %5158 = vmatpush.msra.mxu0 0.0
      %5159 = vmatpush.msra.mxu0 0.0
      %5160 = vmatpush.msra.mxu0 0.0
      %5161 = vmatpush.msra.mxu0 0.0
      %5162 = vmatpush.msra.mxu0 0.0
      %5163 = vmatpush.msra.mxu0 0.0
      %5164 = vmatpush.msra.mxu0 0.0
      %v5165 = vand.u32 %v4873, 4294901760
      %5166 = vmatpush.msra.mxu0 %v5165
      %v5167 = vand.u32 %v4878, 4294901760
      %5168 = vmatmul.f32.gmra.mxu0 %v5167
      %v5169 = vpop.f32.mrf.mxu0
      %v5170 = vadd.f32 %v5148, %v5169
      %5171 = vdwg.mxu0
      %5172 = vmatpush.msra.mxu0 0.0
      %5173 = vmatpush.msra.mxu0 0.0
      %5174 = vmatpush.msra.mxu0 0.0
      %5175 = vmatpush.msra.mxu0 0.0
      %5176 = vmatpush.msra.mxu0 0.0
      %5177 = vmatpush.msra.mxu0 0.0
      %5178 = vmatpush.msra.mxu0 0.0
      %5179 = vmatpush.msra.mxu0 0.0
      %5180 = vmatpush.msra.mxu0 0.0
      %5181 = vmatpush.msra.mxu0 0.0
      %5182 = vmatpush.msra.mxu0 0.0
      %5183 = vmatpush.msra.mxu0 0.0
      %5184 = vmatpush.msra.mxu0 0.0
      %5185 = vmatpush.msra.mxu0 0.0
      %5186 = vmatpush.msra.mxu0 0.0
      %v5187 = vand.u32 %v4870, 4294901760
      %5188 = vmatpush.msra.mxu0 %v5187
      %v5189 = vand.u32 %v4878, 4294901760
      %v5190 = vsub.f32 %v4878, %v5189
      %v5191 = vand.u32 %v5190, 4294901760
      %v5192 = vsub.f32 %v5190, %v5191
      %v5193 = vand.u32 %v5192, 4294901760
      %5194 = vmatmul.f32.gmra.mxu0 %v5193
      %v5195 = vpop.f32.mrf.mxu0
      %v5196 = vadd.f32 0.0, %v5195
      %5197 = vdwg.mxu0
      %5198 = vmatpush.msra.mxu0 0.0
      %5199 = vmatpush.msra.mxu0 0.0
      %5200 = vmatpush.msra.mxu0 0.0
      %5201 = vmatpush.msra.mxu0 0.0
      %5202 = vmatpush.msra.mxu0 0.0
      %5203 = vmatpush.msra.mxu0 0.0
      %5204 = vmatpush.msra.mxu0 0.0
      %5205 = vmatpush.msra.mxu0 0.0
      %5206 = vmatpush.msra.mxu0 0.0
      %5207 = vmatpush.msra.mxu0 0.0
      %5208 = vmatpush.msra.mxu0 0.0
      %5209 = vmatpush.msra.mxu0 0.0
      %5210 = vmatpush.msra.mxu0 0.0
      %5211 = vmatpush.msra.mxu0 0.0
      %5212 = vmatpush.msra.mxu0 0.0
      %v5213 = vand.u32 %v4870, 4294901760
      %v5214 = vsub.f32 %v4870, %v5213
      %v5215 = vand.u32 %v5214, 4294901760
      %v5216 = vsub.f32 %v5214, %v5215
      %v5217 = vand.u32 %v5216, 4294901760
      %5218 = vmatpush.msra.mxu0 %v5217
      %v5219 = vand.u32 %v4878, 4294901760
      %5220 = vmatmul.f32.gmra.mxu0 %v5219
      %v5221 = vpop.f32.mrf.mxu0
      %v5222 = vadd.f32 %v5196, %v5221
      %5223 = vdwg.mxu0
      %5224 = vmatpush.msra.mxu0 0.0
      %5225 = vmatpush.msra.mxu0 0.0
      %5226 = vmatpush.msra.mxu0 0.0
      %5227 = vmatpush.msra.mxu0 0.0
      %5228 = vmatpush.msra.mxu0 0.0
      %5229 = vmatpush.msra.mxu0 0.0
      %5230 = vmatpush.msra.mxu0 0.0
      %5231 = vmatpush.msra.mxu0 0.0
      %5232 = vmatpush.msra.mxu0 0.0
      %5233 = vmatpush.msra.mxu0 0.0
      %5234 = vmatpush.msra.mxu0 0.0
      %5235 = vmatpush.msra.mxu0 0.0
      %5236 = vmatpush.msra.mxu0 0.0
      %5237 = vmatpush.msra.mxu0 0.0
      %5238 = vmatpush.msra.mxu0 0.0
      %v5239 = vand.u32 %v4870, 4294901760
      %v5240 = vsub.f32 %v4870, %v5239
      %5241 = vmatpush.msra.mxu0 %v5240
      %v5242 = vand.u32 %v4878, 4294901760
      %v5243 = vsub.f32 %v4878, %v5242
      %5244 = vmatmul.f32.gmra.mxu0 %v5243
      %v5245 = vpop.f32.mrf.mxu0
      %v5246 = vadd.f32 %v5222, %v5245
      %5247 = vdwg.mxu0
      %5248 = vmatpush.msra.mxu0 0.0
      %5249 = vmatpush.msra.mxu0 0.0
      %5250 = vmatpush.msra.mxu0 0.0
      %5251 = vmatpush.msra.mxu0 0.0
      %5252 = vmatpush.msra.mxu0 0.0
      %5253 = vmatpush.msra.mxu0 0.0
      %5254 = vmatpush.msra.mxu0 0.0
      %5255 = vmatpush.msra.mxu0 0.0
      %5256 = vmatpush.msra.mxu0 0.0
      %5257 = vmatpush.msra.mxu0 0.0
      %5258 = vmatpush.msra.mxu0 0.0
      %5259 = vmatpush.msra.mxu0 0.0
      %5260 = vmatpush.msra.mxu0 0.0
      %5261 = vmatpush.msra.mxu0 0.0
      %5262 = vmatpush.msra.mxu0 0.0
      %v5263 = vand.u32 %v4870, 4294901760
      %5264 = vmatpush.msra.mxu0 %v5263
      %v5265 = vand.u32 %v4878, 4294901760
      %v5266 = vsub.f32 %v4878, %v5265
      %v5267 = vand.u32 %v5266, 4294901760
      %5268 = vmatmul.f32.gmra.mxu0 %v5267
      %v5269 = vpop.f32.mrf.mxu0
      %v5270 = vadd.f32 %v5246, %v5269
      %5271 = vdwg.mxu0
      %5272 = vmatpush.msra.mxu0 0.0
      %5273 = vmatpush.msra.mxu0 0.0
      %5274 = vmatpush.msra.mxu0 0.0
      %5275 = vmatpush.msra.mxu0 0.0
      %5276 = vmatpush.msra.mxu0 0.0
      %5277 = vmatpush.msra.mxu0 0.0
      %5278 = vmatpush.msra.mxu0 0.0
      %5279 = vmatpush.msra.mxu0 0.0
      %5280 = vmatpush.msra.mxu0 0.0
      %5281 = vmatpush.msra.mxu0 0.0
      %5282 = vmatpush.msra.mxu0 0.0
      %5283 = vmatpush.msra.mxu0 0.0
      %5284 = vmatpush.msra.mxu0 0.0
      %5285 = vmatpush.msra.mxu0 0.0
      %5286 = vmatpush.msra.mxu0 0.0
      %v5287 = vand.u32 %v4870, 4294901760
      %v5288 = vsub.f32 %v4870, %v5287
      %v5289 = vand.u32 %v5288, 4294901760
      %5290 = vmatpush.msra.mxu0 %v5289
      %v5291 = vand.u32 %v4878, 4294901760
      %5292 = vmatmul.f32.gmra.mxu0 %v5291
      %v5293 = vpop.f32.mrf.mxu0
      %v5294 = vadd.f32 %v5270, %v5293
      %5295 = vdwg.mxu0
      %5296 = vmatpush.msra.mxu0 0.0
      %5297 = vmatpush.msra.mxu0 0.0
      %5298 = vmatpush.msra.mxu0 0.0
      %5299 = vmatpush.msra.mxu0 0.0
      %5300 = vmatpush.msra.mxu0 0.0
      %5301 = vmatpush.msra.mxu0 0.0
      %5302 = vmatpush.msra.mxu0 0.0
      %5303 = vmatpush.msra.mxu0 0.0
      %5304 = vmatpush.msra.mxu0 0.0
      %5305 = vmatpush.msra.mxu0 0.0
      %5306 = vmatpush.msra.mxu0 0.0
      %5307 = vmatpush.msra.mxu0 0.0
      %5308 = vmatpush.msra.mxu0 0.0
      %5309 = vmatpush.msra.mxu0 0.0
      %5310 = vmatpush.msra.mxu0 0.0
      %v5311 = vand.u32 %v4870, 4294901760
      %5312 = vmatpush.msra.mxu0 %v5311
      %v5313 = vand.u32 %v4878, 4294901760
      %5314 = vmatmul.f32.gmra.mxu0 %v5313
      %v5315 = vpop.f32.mrf.mxu0
      %v5316 = vadd.f32 %v5294, %v5315
      %5317 = vdwg.mxu0
      %v5318 = vadd.f32 %v4860, %v5024
      %v5319 = vadd.f32 %v4861, %v5170
      %v5320 = vadd.f32 %v4862, %v5316
      %s5321 = scalar_lea.vmem %s3, 48
      %v5322 = vld [vmem:[%s5321] sm:$0xff]
      %5323 = vrot.lane.b32.xlu0 %v2581, 122
      %v5324 = vpop.permute.xlu0 %5323
      %5325 = vrot.lane.b32.xlu0 %v2582, 122
      %v5326 = vpop.permute.xlu0 %5325
      %5327 = vrot.lane.b32.xlu0 %v2583, 122
      %v5328 = vpop.permute.xlu0 %5327
      %vm5329 = vcmask 998400
      %v5330 = vsel %vm5329, %v5324, %v5326
      %v5331 = vsel %vm5329, %v5326, %v5328
      %v5336 = vsel %vm412, %v5322, 0
      %5338 = vmatpush.msra.mxu0 0.0
      %5339 = vmatpush.msra.mxu0 0.0
      %5340 = vmatpush.msra.mxu0 0.0
      %5341 = vmatpush.msra.mxu0 0.0
      %5342 = vmatpush.msra.mxu0 0.0
      %5343 = vmatpush.msra.mxu0 0.0
      %5344 = vmatpush.msra.mxu0 0.0
      %5345 = vmatpush.msra.mxu0 0.0
      %5346 = vmatpush.msra.mxu0 0.0
      %5347 = vmatpush.msra.mxu0 0.0
      %5348 = vmatpush.msra.mxu0 0.0
      %5349 = vmatpush.msra.mxu0 0.0
      %5350 = vmatpush.msra.mxu0 0.0
      %5351 = vmatpush.msra.mxu0 0.0
      %5352 = vmatpush.msra.mxu0 0.0
      %v5353 = vand.u32 %v5330, 4294901760
      %5354 = vmatpush.msra.mxu0 %v5353
      %v5355 = vand.u32 %v5336, 4294901760
      %v5356 = vsub.f32 %v5336, %v5355
      %v5357 = vand.u32 %v5356, 4294901760
      %v5358 = vsub.f32 %v5356, %v5357
      %v5359 = vand.u32 %v5358, 4294901760
      %5360 = vmatmul.f32.gmra.mxu0 %v5359
      %v5361 = vpop.f32.mrf.mxu0
      %v5362 = vadd.f32 0.0, %v5361
      %5363 = vdwg.mxu0
      %5364 = vmatpush.msra.mxu0 0.0
      %5365 = vmatpush.msra.mxu0 0.0
      %5366 = vmatpush.msra.mxu0 0.0
      %5367 = vmatpush.msra.mxu0 0.0
      %5368 = vmatpush.msra.mxu0 0.0
      %5369 = vmatpush.msra.mxu0 0.0
      %5370 = vmatpush.msra.mxu0 0.0
      %5371 = vmatpush.msra.mxu0 0.0
      %5372 = vmatpush.msra.mxu0 0.0
      %5373 = vmatpush.msra.mxu0 0.0
      %5374 = vmatpush.msra.mxu0 0.0
      %5375 = vmatpush.msra.mxu0 0.0
      %5376 = vmatpush.msra.mxu0 0.0
      %5377 = vmatpush.msra.mxu0 0.0
      %5378 = vmatpush.msra.mxu0 0.0
      %v5379 = vand.u32 %v5330, 4294901760
      %v5380 = vsub.f32 %v5330, %v5379
      %v5381 = vand.u32 %v5380, 4294901760
      %v5382 = vsub.f32 %v5380, %v5381
      %v5383 = vand.u32 %v5382, 4294901760
      %5384 = vmatpush.msra.mxu0 %v5383
      %v5385 = vand.u32 %v5336, 4294901760
      %5386 = vmatmul.f32.gmra.mxu0 %v5385
      %v5387 = vpop.f32.mrf.mxu0
      %v5388 = vadd.f32 %v5362, %v5387
      %5389 = vdwg.mxu0
      %5390 = vmatpush.msra.mxu0 0.0
      %5391 = vmatpush.msra.mxu0 0.0
      %5392 = vmatpush.msra.mxu0 0.0
      %5393 = vmatpush.msra.mxu0 0.0
      %5394 = vmatpush.msra.mxu0 0.0
      %5395 = vmatpush.msra.mxu0 0.0
      %5396 = vmatpush.msra.mxu0 0.0
      %5397 = vmatpush.msra.mxu0 0.0
      %5398 = vmatpush.msra.mxu0 0.0
      %5399 = vmatpush.msra.mxu0 0.0
      %5400 = vmatpush.msra.mxu0 0.0
      %5401 = vmatpush.msra.mxu0 0.0
      %5402 = vmatpush.msra.mxu0 0.0
      %5403 = vmatpush.msra.mxu0 0.0
      %5404 = vmatpush.msra.mxu0 0.0
      %v5405 = vand.u32 %v5330, 4294901760
      %v5406 = vsub.f32 %v5330, %v5405
      %5407 = vmatpush.msra.mxu0 %v5406
      %v5408 = vand.u32 %v5336, 4294901760
      %v5409 = vsub.f32 %v5336, %v5408
      %5410 = vmatmul.f32.gmra.mxu0 %v5409
      %v5411 = vpop.f32.mrf.mxu0
      %v5412 = vadd.f32 %v5388, %v5411
      %5413 = vdwg.mxu0
      %5414 = vmatpush.msra.mxu0 0.0
      %5415 = vmatpush.msra.mxu0 0.0
      %5416 = vmatpush.msra.mxu0 0.0
      %5417 = vmatpush.msra.mxu0 0.0
      %5418 = vmatpush.msra.mxu0 0.0
      %5419 = vmatpush.msra.mxu0 0.0
      %5420 = vmatpush.msra.mxu0 0.0
      %5421 = vmatpush.msra.mxu0 0.0
      %5422 = vmatpush.msra.mxu0 0.0
      %5423 = vmatpush.msra.mxu0 0.0
      %5424 = vmatpush.msra.mxu0 0.0
      %5425 = vmatpush.msra.mxu0 0.0
      %5426 = vmatpush.msra.mxu0 0.0
      %5427 = vmatpush.msra.mxu0 0.0
      %5428 = vmatpush.msra.mxu0 0.0
      %v5429 = vand.u32 %v5330, 4294901760
      %5430 = vmatpush.msra.mxu0 %v5429
      %v5431 = vand.u32 %v5336, 4294901760
      %v5432 = vsub.f32 %v5336, %v5431
      %v5433 = vand.u32 %v5432, 4294901760
      %5434 = vmatmul.f32.gmra.mxu0 %v5433
      %v5435 = vpop.f32.mrf.mxu0
      %v5436 = vadd.f32 %v5412, %v5435
      %5437 = vdwg.mxu0
      %5438 = vmatpush.msra.mxu0 0.0
      %5439 = vmatpush.msra.mxu0 0.0
      %5440 = vmatpush.msra.mxu0 0.0
      %5441 = vmatpush.msra.mxu0 0.0
      %5442 = vmatpush.msra.mxu0 0.0
      %5443 = vmatpush.msra.mxu0 0.0
      %5444 = vmatpush.msra.mxu0 0.0
      %5445 = vmatpush.msra.mxu0 0.0
      %5446 = vmatpush.msra.mxu0 0.0
      %5447 = vmatpush.msra.mxu0 0.0
      %5448 = vmatpush.msra.mxu0 0.0
      %5449 = vmatpush.msra.mxu0 0.0
      %5450 = vmatpush.msra.mxu0 0.0
      %5451 = vmatpush.msra.mxu0 0.0
      %5452 = vmatpush.msra.mxu0 0.0
      %v5453 = vand.u32 %v5330, 4294901760
      %v5454 = vsub.f32 %v5330, %v5453
      %v5455 = vand.u32 %v5454, 4294901760
      %5456 = vmatpush.msra.mxu0 %v5455
      %v5457 = vand.u32 %v5336, 4294901760
      %5458 = vmatmul.f32.gmra.mxu0 %v5457
      %v5459 = vpop.f32.mrf.mxu0
      %v5460 = vadd.f32 %v5436, %v5459
      %5461 = vdwg.mxu0
      %5462 = vmatpush.msra.mxu0 0.0
      %5463 = vmatpush.msra.mxu0 0.0
      %5464 = vmatpush.msra.mxu0 0.0
      %5465 = vmatpush.msra.mxu0 0.0
      %5466 = vmatpush.msra.mxu0 0.0
      %5467 = vmatpush.msra.mxu0 0.0
      %5468 = vmatpush.msra.mxu0 0.0
      %5469 = vmatpush.msra.mxu0 0.0
      %5470 = vmatpush.msra.mxu0 0.0
      %5471 = vmatpush.msra.mxu0 0.0
      %5472 = vmatpush.msra.mxu0 0.0
      %5473 = vmatpush.msra.mxu0 0.0
      %5474 = vmatpush.msra.mxu0 0.0
      %5475 = vmatpush.msra.mxu0 0.0
      %5476 = vmatpush.msra.mxu0 0.0
      %v5477 = vand.u32 %v5330, 4294901760
      %5478 = vmatpush.msra.mxu0 %v5477
      %v5479 = vand.u32 %v5336, 4294901760
      %5480 = vmatmul.f32.gmra.mxu0 %v5479
      %v5481 = vpop.f32.mrf.mxu0
      %v5482 = vadd.f32 %v5460, %v5481
      %5483 = vdwg.mxu0
      %5484 = vmatpush.msra.mxu0 0.0
      %5485 = vmatpush.msra.mxu0 0.0
      %5486 = vmatpush.msra.mxu0 0.0
      %5487 = vmatpush.msra.mxu0 0.0
      %5488 = vmatpush.msra.mxu0 0.0
      %5489 = vmatpush.msra.mxu0 0.0
      %5490 = vmatpush.msra.mxu0 0.0
      %5491 = vmatpush.msra.mxu0 0.0
      %5492 = vmatpush.msra.mxu0 0.0
      %5493 = vmatpush.msra.mxu0 0.0
      %5494 = vmatpush.msra.mxu0 0.0
      %5495 = vmatpush.msra.mxu0 0.0
      %5496 = vmatpush.msra.mxu0 0.0
      %5497 = vmatpush.msra.mxu0 0.0
      %5498 = vmatpush.msra.mxu0 0.0
      %v5499 = vand.u32 %v5331, 4294901760
      %5500 = vmatpush.msra.mxu0 %v5499
      %v5501 = vand.u32 %v5336, 4294901760
      %v5502 = vsub.f32 %v5336, %v5501
      %v5503 = vand.u32 %v5502, 4294901760
      %v5504 = vsub.f32 %v5502, %v5503
      %v5505 = vand.u32 %v5504, 4294901760
      %5506 = vmatmul.f32.gmra.mxu0 %v5505
      %v5507 = vpop.f32.mrf.mxu0
      %v5508 = vadd.f32 0.0, %v5507
      %5509 = vdwg.mxu0
      %5510 = vmatpush.msra.mxu0 0.0
      %5511 = vmatpush.msra.mxu0 0.0
      %5512 = vmatpush.msra.mxu0 0.0
      %5513 = vmatpush.msra.mxu0 0.0
      %5514 = vmatpush.msra.mxu0 0.0
      %5515 = vmatpush.msra.mxu0 0.0
      %5516 = vmatpush.msra.mxu0 0.0
      %5517 = vmatpush.msra.mxu0 0.0
      %5518 = vmatpush.msra.mxu0 0.0
      %5519 = vmatpush.msra.mxu0 0.0
      %5520 = vmatpush.msra.mxu0 0.0
      %5521 = vmatpush.msra.mxu0 0.0
      %5522 = vmatpush.msra.mxu0 0.0
      %5523 = vmatpush.msra.mxu0 0.0
      %5524 = vmatpush.msra.mxu0 0.0
      %v5525 = vand.u32 %v5331, 4294901760
      %v5526 = vsub.f32 %v5331, %v5525
      %v5527 = vand.u32 %v5526, 4294901760
      %v5528 = vsub.f32 %v5526, %v5527
      %v5529 = vand.u32 %v5528, 4294901760
      %5530 = vmatpush.msra.mxu0 %v5529
      %v5531 = vand.u32 %v5336, 4294901760
      %5532 = vmatmul.f32.gmra.mxu0 %v5531
      %v5533 = vpop.f32.mrf.mxu0
      %v5534 = vadd.f32 %v5508, %v5533
      %5535 = vdwg.mxu0
      %5536 = vmatpush.msra.mxu0 0.0
      %5537 = vmatpush.msra.mxu0 0.0
      %5538 = vmatpush.msra.mxu0 0.0
      %5539 = vmatpush.msra.mxu0 0.0
      %5540 = vmatpush.msra.mxu0 0.0
      %5541 = vmatpush.msra.mxu0 0.0
      %5542 = vmatpush.msra.mxu0 0.0
      %5543 = vmatpush.msra.mxu0 0.0
      %5544 = vmatpush.msra.mxu0 0.0
      %5545 = vmatpush.msra.mxu0 0.0
      %5546 = vmatpush.msra.mxu0 0.0
      %5547 = vmatpush.msra.mxu0 0.0
      %5548 = vmatpush.msra.mxu0 0.0
      %5549 = vmatpush.msra.mxu0 0.0
      %5550 = vmatpush.msra.mxu0 0.0
      %v5551 = vand.u32 %v5331, 4294901760
      %v5552 = vsub.f32 %v5331, %v5551
      %5553 = vmatpush.msra.mxu0 %v5552
      %v5554 = vand.u32 %v5336, 4294901760
      %v5555 = vsub.f32 %v5336, %v5554
      %5556 = vmatmul.f32.gmra.mxu0 %v5555
      %v5557 = vpop.f32.mrf.mxu0
      %v5558 = vadd.f32 %v5534, %v5557
      %5559 = vdwg.mxu0
      %5560 = vmatpush.msra.mxu0 0.0
      %5561 = vmatpush.msra.mxu0 0.0
      %5562 = vmatpush.msra.mxu0 0.0
      %5563 = vmatpush.msra.mxu0 0.0
      %5564 = vmatpush.msra.mxu0 0.0
      %5565 = vmatpush.msra.mxu0 0.0
      %5566 = vmatpush.msra.mxu0 0.0
      %5567 = vmatpush.msra.mxu0 0.0
      %5568 = vmatpush.msra.mxu0 0.0
      %5569 = vmatpush.msra.mxu0 0.0
      %5570 = vmatpush.msra.mxu0 0.0
      %5571 = vmatpush.msra.mxu0 0.0
      %5572 = vmatpush.msra.mxu0 0.0
      %5573 = vmatpush.msra.mxu0 0.0
      %5574 = vmatpush.msra.mxu0 0.0
      %v5575 = vand.u32 %v5331, 4294901760
      %5576 = vmatpush.msra.mxu0 %v5575
      %v5577 = vand.u32 %v5336, 4294901760
      %v5578 = vsub.f32 %v5336, %v5577
      %v5579 = vand.u32 %v5578, 4294901760
      %5580 = vmatmul.f32.gmra.mxu0 %v5579
      %v5581 = vpop.f32.mrf.mxu0
      %v5582 = vadd.f32 %v5558, %v5581
      %5583 = vdwg.mxu0
      %5584 = vmatpush.msra.mxu0 0.0
      %5585 = vmatpush.msra.mxu0 0.0
      %5586 = vmatpush.msra.mxu0 0.0
      %5587 = vmatpush.msra.mxu0 0.0
      %5588 = vmatpush.msra.mxu0 0.0
      %5589 = vmatpush.msra.mxu0 0.0
      %5590 = vmatpush.msra.mxu0 0.0
      %5591 = vmatpush.msra.mxu0 0.0
      %5592 = vmatpush.msra.mxu0 0.0
      %5593 = vmatpush.msra.mxu0 0.0
      %5594 = vmatpush.msra.mxu0 0.0
      %5595 = vmatpush.msra.mxu0 0.0
      %5596 = vmatpush.msra.mxu0 0.0
      %5597 = vmatpush.msra.mxu0 0.0
      %5598 = vmatpush.msra.mxu0 0.0
      %v5599 = vand.u32 %v5331, 4294901760
      %v5600 = vsub.f32 %v5331, %v5599
      %v5601 = vand.u32 %v5600, 4294901760
      %5602 = vmatpush.msra.mxu0 %v5601
      %v5603 = vand.u32 %v5336, 4294901760
      %5604 = vmatmul.f32.gmra.mxu0 %v5603
      %v5605 = vpop.f32.mrf.mxu0
      %v5606 = vadd.f32 %v5582, %v5605
      %5607 = vdwg.mxu0
      %5608 = vmatpush.msra.mxu0 0.0
      %5609 = vmatpush.msra.mxu0 0.0
      %5610 = vmatpush.msra.mxu0 0.0
      %5611 = vmatpush.msra.mxu0 0.0
      %5612 = vmatpush.msra.mxu0 0.0
      %5613 = vmatpush.msra.mxu0 0.0
      %5614 = vmatpush.msra.mxu0 0.0
      %5615 = vmatpush.msra.mxu0 0.0
      %5616 = vmatpush.msra.mxu0 0.0
      %5617 = vmatpush.msra.mxu0 0.0
      %5618 = vmatpush.msra.mxu0 0.0
      %5619 = vmatpush.msra.mxu0 0.0
      %5620 = vmatpush.msra.mxu0 0.0
      %5621 = vmatpush.msra.mxu0 0.0
      %5622 = vmatpush.msra.mxu0 0.0
      %v5623 = vand.u32 %v5331, 4294901760
      %5624 = vmatpush.msra.mxu0 %v5623
      %v5625 = vand.u32 %v5336, 4294901760
      %5626 = vmatmul.f32.gmra.mxu0 %v5625
      %v5627 = vpop.f32.mrf.mxu0
      %v5628 = vadd.f32 %v5606, %v5627
      %5629 = vdwg.mxu0
      %5630 = vmatpush.msra.mxu0 0.0
      %5631 = vmatpush.msra.mxu0 0.0
      %5632 = vmatpush.msra.mxu0 0.0
      %5633 = vmatpush.msra.mxu0 0.0
      %5634 = vmatpush.msra.mxu0 0.0
      %5635 = vmatpush.msra.mxu0 0.0
      %5636 = vmatpush.msra.mxu0 0.0
      %5637 = vmatpush.msra.mxu0 0.0
      %5638 = vmatpush.msra.mxu0 0.0
      %5639 = vmatpush.msra.mxu0 0.0
      %5640 = vmatpush.msra.mxu0 0.0
      %5641 = vmatpush.msra.mxu0 0.0
      %5642 = vmatpush.msra.mxu0 0.0
      %5643 = vmatpush.msra.mxu0 0.0
      %5644 = vmatpush.msra.mxu0 0.0
      %v5645 = vand.u32 %v5328, 4294901760
      %5646 = vmatpush.msra.mxu0 %v5645
      %v5647 = vand.u32 %v5336, 4294901760
      %v5648 = vsub.f32 %v5336, %v5647
      %v5649 = vand.u32 %v5648, 4294901760
      %v5650 = vsub.f32 %v5648, %v5649
      %v5651 = vand.u32 %v5650, 4294901760
      %5652 = vmatmul.f32.gmra.mxu0 %v5651
      %v5653 = vpop.f32.mrf.mxu0
      %v5654 = vadd.f32 0.0, %v5653
      %5655 = vdwg.mxu0
      %5656 = vmatpush.msra.mxu0 0.0
      %5657 = vmatpush.msra.mxu0 0.0
      %5658 = vmatpush.msra.mxu0 0.0
      %5659 = vmatpush.msra.mxu0 0.0
      %5660 = vmatpush.msra.mxu0 0.0
      %5661 = vmatpush.msra.mxu0 0.0
      %5662 = vmatpush.msra.mxu0 0.0
      %5663 = vmatpush.msra.mxu0 0.0
      %5664 = vmatpush.msra.mxu0 0.0
      %5665 = vmatpush.msra.mxu0 0.0
      %5666 = vmatpush.msra.mxu0 0.0
      %5667 = vmatpush.msra.mxu0 0.0
      %5668 = vmatpush.msra.mxu0 0.0
      %5669 = vmatpush.msra.mxu0 0.0
      %5670 = vmatpush.msra.mxu0 0.0
      %v5671 = vand.u32 %v5328, 4294901760
      %v5672 = vsub.f32 %v5328, %v5671
      %v5673 = vand.u32 %v5672, 4294901760
      %v5674 = vsub.f32 %v5672, %v5673
      %v5675 = vand.u32 %v5674, 4294901760
      %5676 = vmatpush.msra.mxu0 %v5675
      %v5677 = vand.u32 %v5336, 4294901760
      %5678 = vmatmul.f32.gmra.mxu0 %v5677
      %v5679 = vpop.f32.mrf.mxu0
      %v5680 = vadd.f32 %v5654, %v5679
      %5681 = vdwg.mxu0
      %5682 = vmatpush.msra.mxu0 0.0
      %5683 = vmatpush.msra.mxu0 0.0
      %5684 = vmatpush.msra.mxu0 0.0
      %5685 = vmatpush.msra.mxu0 0.0
      %5686 = vmatpush.msra.mxu0 0.0
      %5687 = vmatpush.msra.mxu0 0.0
      %5688 = vmatpush.msra.mxu0 0.0
      %5689 = vmatpush.msra.mxu0 0.0
      %5690 = vmatpush.msra.mxu0 0.0
      %5691 = vmatpush.msra.mxu0 0.0
      %5692 = vmatpush.msra.mxu0 0.0
      %5693 = vmatpush.msra.mxu0 0.0
      %5694 = vmatpush.msra.mxu0 0.0
      %5695 = vmatpush.msra.mxu0 0.0
      %5696 = vmatpush.msra.mxu0 0.0
      %v5697 = vand.u32 %v5328, 4294901760
      %v5698 = vsub.f32 %v5328, %v5697
      %5699 = vmatpush.msra.mxu0 %v5698
      %v5700 = vand.u32 %v5336, 4294901760
      %v5701 = vsub.f32 %v5336, %v5700
      %5702 = vmatmul.f32.gmra.mxu0 %v5701
      %v5703 = vpop.f32.mrf.mxu0
      %v5704 = vadd.f32 %v5680, %v5703
      %5705 = vdwg.mxu0
      %5706 = vmatpush.msra.mxu0 0.0
      %5707 = vmatpush.msra.mxu0 0.0
      %5708 = vmatpush.msra.mxu0 0.0
      %5709 = vmatpush.msra.mxu0 0.0
      %5710 = vmatpush.msra.mxu0 0.0
      %5711 = vmatpush.msra.mxu0 0.0
      %5712 = vmatpush.msra.mxu0 0.0
      %5713 = vmatpush.msra.mxu0 0.0
      %5714 = vmatpush.msra.mxu0 0.0
      %5715 = vmatpush.msra.mxu0 0.0
      %5716 = vmatpush.msra.mxu0 0.0
      %5717 = vmatpush.msra.mxu0 0.0
      %5718 = vmatpush.msra.mxu0 0.0
      %5719 = vmatpush.msra.mxu0 0.0
      %5720 = vmatpush.msra.mxu0 0.0
      %v5721 = vand.u32 %v5328, 4294901760
      %5722 = vmatpush.msra.mxu0 %v5721
      %v5723 = vand.u32 %v5336, 4294901760
      %v5724 = vsub.f32 %v5336, %v5723
      %v5725 = vand.u32 %v5724, 4294901760
      %5726 = vmatmul.f32.gmra.mxu0 %v5725
      %v5727 = vpop.f32.mrf.mxu0
      %v5728 = vadd.f32 %v5704, %v5727
      %5729 = vdwg.mxu0
      %5730 = vmatpush.msra.mxu0 0.0
      %5731 = vmatpush.msra.mxu0 0.0
      %5732 = vmatpush.msra.mxu0 0.0
      %5733 = vmatpush.msra.mxu0 0.0
      %5734 = vmatpush.msra.mxu0 0.0
      %5735 = vmatpush.msra.mxu0 0.0
      %5736 = vmatpush.msra.mxu0 0.0
      %5737 = vmatpush.msra.mxu0 0.0
      %5738 = vmatpush.msra.mxu0 0.0
      %5739 = vmatpush.msra.mxu0 0.0
      %5740 = vmatpush.msra.mxu0 0.0
      %5741 = vmatpush.msra.mxu0 0.0
      %5742 = vmatpush.msra.mxu0 0.0
      %5743 = vmatpush.msra.mxu0 0.0
      %5744 = vmatpush.msra.mxu0 0.0
      %v5745 = vand.u32 %v5328, 4294901760
      %v5746 = vsub.f32 %v5328, %v5745
      %v5747 = vand.u32 %v5746, 4294901760
      %5748 = vmatpush.msra.mxu0 %v5747
      %v5749 = vand.u32 %v5336, 4294901760
      %5750 = vmatmul.f32.gmra.mxu0 %v5749
      %v5751 = vpop.f32.mrf.mxu0
      %v5752 = vadd.f32 %v5728, %v5751
      %5753 = vdwg.mxu0
      %5754 = vmatpush.msra.mxu0 0.0
      %5755 = vmatpush.msra.mxu0 0.0
      %5756 = vmatpush.msra.mxu0 0.0
      %5757 = vmatpush.msra.mxu0 0.0
      %5758 = vmatpush.msra.mxu0 0.0
      %5759 = vmatpush.msra.mxu0 0.0
      %5760 = vmatpush.msra.mxu0 0.0
      %5761 = vmatpush.msra.mxu0 0.0
      %5762 = vmatpush.msra.mxu0 0.0
      %5763 = vmatpush.msra.mxu0 0.0
      %5764 = vmatpush.msra.mxu0 0.0
      %5765 = vmatpush.msra.mxu0 0.0
      %5766 = vmatpush.msra.mxu0 0.0
      %5767 = vmatpush.msra.mxu0 0.0
      %5768 = vmatpush.msra.mxu0 0.0
      %v5769 = vand.u32 %v5328, 4294901760
      %5770 = vmatpush.msra.mxu0 %v5769
      %v5771 = vand.u32 %v5336, 4294901760
      %5772 = vmatmul.f32.gmra.mxu0 %v5771
      %v5773 = vpop.f32.mrf.mxu0
      %v5774 = vadd.f32 %v5752, %v5773
      %5775 = vdwg.mxu0
      %v5776 = vadd.f32 %v5318, %v5482
      %v5777 = vadd.f32 %v5319, %v5628
      %v5778 = vadd.f32 %v5320, %v5774
      %v5779 = vld [vmem:[%s10] sm:$0x7]
      %v5781 = vperm.slane %v5779, 0
      %v5782 = vperm.slane %v5779, 1
      %v5783 = vperm.slane %v5779, 2
      %v5787 = vmul.f32 %v5776, %v5781
      %v5788 = vmul.f32 %v5777, %v5782
      %v5789 = vmul.f32 %v5778, %v5783
      %5790 = vst [vmem:[#allocation3] sm:$0xff] %v5787
      %5791 = vst [vmem:[#allocation3 + $0x8] sm:$0xff] %v5788
      %vm5792 = vcmask 785408
      %5793 = vst.msk [vmem:[#allocation3 + $0x10] sm:$0xff] %vm5792, %v5789
      %v5794 = vld [vmem:[%s6] sm:$0xff]
      %v5795 = vld [vmem:[%s8] sm:$0xff]
      %v5796 = vadd.f32 %v5794, %v5795
      %5798 = vset.pattern.permute.xlu0 0
      %5799 = vperm.xlu0 %5798, %v5796
      %v5800 = vpop.permute.xlu0 %5799
      %v5802 = vadd.f32 %v5800, 0.0
      %v5803 = vld [vmem:[#allocation2] sm:$0xff]
      %v5804 = vld [vmem:[#allocation2 + $0x8] sm:$0xff]
      %v5805 = vld [vmem:[#allocation2 + $0x10] sm:$0xff]
      %v5806 = vld [vmem:[%s9] ss:$8 sm:$0x3]
      %v5808 = vperm.slane %v5806, 0
      %v5809 = vperm.slane %v5806, 1
      %5810 = vrot.lane.b32.xlu0 %v5808, 125
      %v5811 = vpop.permute.xlu0 %5810
      %5812 = vrot.lane.b32.xlu0 %v5809, 125
      %v5813 = vpop.permute.xlu0 %5812
      %v5814 = vsel %vm407, %v5811, %v5813
      %v5818 = vmul.f32 %v5803, %v5811
      %v5819 = vmul.f32 %v5804, %v5814
      %v5820 = vmul.f32 %v5805, %v5813
      %v5821 = vld [vmem:[%s2] sm:$0xff]
      %5825 = vrot.lane.b32.xlu0 %v5818, 3
      %v5826 = vpop.permute.xlu0 %5825
      %5827 = vrot.lane.b32.xlu0 %v5819, 3
      %v5828 = vpop.permute.xlu0 %5827
      %5829 = vrot.lane.b32.xlu0 %v5820, 3
      %v5830 = vpop.permute.xlu0 %5829
      %vm5831 = vcmask 23552
      %v5832 = vsel %vm5831, %v5826, %v5828
      %v5833 = vsel %vm5831, %v5828, %v5830
      %v5837 = vsel %vm412, %v5821, 0
      %5839 = vmatpush.msra.mxu0 0.0
      %5840 = vmatpush.msra.mxu0 0.0
      %5841 = vmatpush.msra.mxu0 0.0
      %5842 = vmatpush.msra.mxu0 0.0
      %5843 = vmatpush.msra.mxu0 0.0
      %5844 = vmatpush.msra.mxu0 0.0
      %5845 = vmatpush.msra.mxu0 0.0
      %5846 = vmatpush.msra.mxu0 0.0
      %5847 = vmatpush.msra.mxu0 0.0
      %5848 = vmatpush.msra.mxu0 0.0
      %5849 = vmatpush.msra.mxu0 0.0
      %5850 = vmatpush.msra.mxu0 0.0
      %5851 = vmatpush.msra.mxu0 0.0
      %5852 = vmatpush.msra.mxu0 0.0
      %5853 = vmatpush.msra.mxu0 0.0
      %v5854 = vand.u32 %v5832, 4294901760
      %5855 = vmatpush.msra.mxu0 %v5854
      %v5856 = vand.u32 %v5837, 4294901760
      %v5857 = vsub.f32 %v5837, %v5856
      %v5858 = vand.u32 %v5857, 4294901760
      %v5859 = vsub.f32 %v5857, %v5858
      %v5860 = vand.u32 %v5859, 4294901760
      %5861 = vmatmul.f32.gmra.mxu0 %v5860
      %v5862 = vpop.f32.mrf.mxu0
      %v5863 = vadd.f32 0.0, %v5862
      %5864 = vdwg.mxu0
      %5865 = vmatpush.msra.mxu0 0.0
      %5866 = vmatpush.msra.mxu0 0.0
      %5867 = vmatpush.msra.mxu0 0.0
      %5868 = vmatpush.msra.mxu0 0.0
      %5869 = vmatpush.msra.mxu0 0.0
      %5870 = vmatpush.msra.mxu0 0.0
      %5871 = vmatpush.msra.mxu0 0.0
      %5872 = vmatpush.msra.mxu0 0.0
      %5873 = vmatpush.msra.mxu0 0.0
      %5874 = vmatpush.msra.mxu0 0.0
      %5875 = vmatpush.msra.mxu0 0.0
      %5876 = vmatpush.msra.mxu0 0.0
      %5877 = vmatpush.msra.mxu0 0.0
      %5878 = vmatpush.msra.mxu0 0.0
      %5879 = vmatpush.msra.mxu0 0.0
      %v5880 = vand.u32 %v5832, 4294901760
      %v5881 = vsub.f32 %v5832, %v5880
      %v5882 = vand.u32 %v5881, 4294901760
      %v5883 = vsub.f32 %v5881, %v5882
      %v5884 = vand.u32 %v5883, 4294901760
      %5885 = vmatpush.msra.mxu0 %v5884
      %v5886 = vand.u32 %v5837, 4294901760
      %5887 = vmatmul.f32.gmra.mxu0 %v5886
      %v5888 = vpop.f32.mrf.mxu0
      %v5889 = vadd.f32 %v5863, %v5888
      %5890 = vdwg.mxu0
      %5891 = vmatpush.msra.mxu0 0.0
      %5892 = vmatpush.msra.mxu0 0.0
      %5893 = vmatpush.msra.mxu0 0.0
      %5894 = vmatpush.msra.mxu0 0.0
      %5895 = vmatpush.msra.mxu0 0.0
      %5896 = vmatpush.msra.mxu0 0.0
      %5897 = vmatpush.msra.mxu0 0.0
      %5898 = vmatpush.msra.mxu0 0.0
      %5899 = vmatpush.msra.mxu0 0.0
      %5900 = vmatpush.msra.mxu0 0.0
      %5901 = vmatpush.msra.mxu0 0.0
      %5902 = vmatpush.msra.mxu0 0.0
      %5903 = vmatpush.msra.mxu0 0.0
      %5904 = vmatpush.msra.mxu0 0.0
      %5905 = vmatpush.msra.mxu0 0.0
      %v5906 = vand.u32 %v5832, 4294901760
      %v5907 = vsub.f32 %v5832, %v5906
      %5908 = vmatpush.msra.mxu0 %v5907
      %v5909 = vand.u32 %v5837, 4294901760
      %v5910 = vsub.f32 %v5837, %v5909
      %5911 = vmatmul.f32.gmra.mxu0 %v5910
      %v5912 = vpop.f32.mrf.mxu0
      %v5913 = vadd.f32 %v5889, %v5912
      %5914 = vdwg.mxu0
      %5915 = vmatpush.msra.mxu0 0.0
      %5916 = vmatpush.msra.mxu0 0.0
      %5917 = vmatpush.msra.mxu0 0.0
      %5918 = vmatpush.msra.mxu0 0.0
      %5919 = vmatpush.msra.mxu0 0.0
      %5920 = vmatpush.msra.mxu0 0.0
      %5921 = vmatpush.msra.mxu0 0.0
      %5922 = vmatpush.msra.mxu0 0.0
      %5923 = vmatpush.msra.mxu0 0.0
      %5924 = vmatpush.msra.mxu0 0.0
      %5925 = vmatpush.msra.mxu0 0.0
      %5926 = vmatpush.msra.mxu0 0.0
      %5927 = vmatpush.msra.mxu0 0.0
      %5928 = vmatpush.msra.mxu0 0.0
      %5929 = vmatpush.msra.mxu0 0.0
      %v5930 = vand.u32 %v5832, 4294901760
      %5931 = vmatpush.msra.mxu0 %v5930
      %v5932 = vand.u32 %v5837, 4294901760
      %v5933 = vsub.f32 %v5837, %v5932
      %v5934 = vand.u32 %v5933, 4294901760
      %5935 = vmatmul.f32.gmra.mxu0 %v5934
      %v5936 = vpop.f32.mrf.mxu0
      %v5937 = vadd.f32 %v5913, %v5936
      %5938 = vdwg.mxu0
      %5939 = vmatpush.msra.mxu0 0.0
      %5940 = vmatpush.msra.mxu0 0.0
      %5941 = vmatpush.msra.mxu0 0.0
      %5942 = vmatpush.msra.mxu0 0.0
      %5943 = vmatpush.msra.mxu0 0.0
      %5944 = vmatpush.msra.mxu0 0.0
      %5945 = vmatpush.msra.mxu0 0.0
      %5946 = vmatpush.msra.mxu0 0.0
      %5947 = vmatpush.msra.mxu0 0.0
      %5948 = vmatpush.msra.mxu0 0.0
      %5949 = vmatpush.msra.mxu0 0.0
      %5950 = vmatpush.msra.mxu0 0.0
      %5951 = vmatpush.msra.mxu0 0.0
      %5952 = vmatpush.msra.mxu0 0.0
      %5953 = vmatpush.msra.mxu0 0.0
      %v5954 = vand.u32 %v5832, 4294901760
      %v5955 = vsub.f32 %v5832, %v5954
      %v5956 = vand.u32 %v5955, 4294901760
      %5957 = vmatpush.msra.mxu0 %v5956
      %v5958 = vand.u32 %v5837, 4294901760
      %5959 = vmatmul.f32.gmra.mxu0 %v5958
      %v5960 = vpop.f32.mrf.mxu0
      %v5961 = vadd.f32 %v5937, %v5960
      %5962 = vdwg.mxu0
      %5963 = vmatpush.msra.mxu0 0.0
      %5964 = vmatpush.msra.mxu0 0.0
      %5965 = vmatpush.msra.mxu0 0.0
      %5966 = vmatpush.msra.mxu0 0.0
      %5967 = vmatpush.msra.mxu0 0.0
      %5968 = vmatpush.msra.mxu0 0.0
      %5969 = vmatpush.msra.mxu0 0.0
      %5970 = vmatpush.msra.mxu0 0.0
      %5971 = vmatpush.msra.mxu0 0.0
      %5972 = vmatpush.msra.mxu0 0.0
      %5973 = vmatpush.msra.mxu0 0.0
      %5974 = vmatpush.msra.mxu0 0.0
      %5975 = vmatpush.msra.mxu0 0.0
      %5976 = vmatpush.msra.mxu0 0.0
      %5977 = vmatpush.msra.mxu0 0.0
      %v5978 = vand.u32 %v5832, 4294901760
      %5979 = vmatpush.msra.mxu0 %v5978
      %v5980 = vand.u32 %v5837, 4294901760
      %5981 = vmatmul.f32.gmra.mxu0 %v5980
      %v5982 = vpop.f32.mrf.mxu0
      %v5983 = vadd.f32 %v5961, %v5982
      %5984 = vdwg.mxu0
      %5985 = vmatpush.msra.mxu0 0.0
      %5986 = vmatpush.msra.mxu0 0.0
      %5987 = vmatpush.msra.mxu0 0.0
      %5988 = vmatpush.msra.mxu0 0.0
      %5989 = vmatpush.msra.mxu0 0.0
      %5990 = vmatpush.msra.mxu0 0.0
      %5991 = vmatpush.msra.mxu0 0.0
      %5992 = vmatpush.msra.mxu0 0.0
      %5993 = vmatpush.msra.mxu0 0.0
      %5994 = vmatpush.msra.mxu0 0.0
      %5995 = vmatpush.msra.mxu0 0.0
      %5996 = vmatpush.msra.mxu0 0.0
      %5997 = vmatpush.msra.mxu0 0.0
      %5998 = vmatpush.msra.mxu0 0.0
      %5999 = vmatpush.msra.mxu0 0.0
      %v6000 = vand.u32 %v5833, 4294901760
      %6001 = vmatpush.msra.mxu0 %v6000
      %v6002 = vand.u32 %v5837, 4294901760
      %v6003 = vsub.f32 %v5837, %v6002
      %v6004 = vand.u32 %v6003, 4294901760
      %v6005 = vsub.f32 %v6003, %v6004
      %v6006 = vand.u32 %v6005, 4294901760
      %6007 = vmatmul.f32.gmra.mxu0 %v6006
      %v6008 = vpop.f32.mrf.mxu0
      %v6009 = vadd.f32 0.0, %v6008
      %6010 = vdwg.mxu0
      %6011 = vmatpush.msra.mxu0 0.0
      %6012 = vmatpush.msra.mxu0 0.0
      %6013 = vmatpush.msra.mxu0 0.0
      %6014 = vmatpush.msra.mxu0 0.0
      %6015 = vmatpush.msra.mxu0 0.0
      %6016 = vmatpush.msra.mxu0 0.0
      %6017 = vmatpush.msra.mxu0 0.0
      %6018 = vmatpush.msra.mxu0 0.0
      %6019 = vmatpush.msra.mxu0 0.0
      %6020 = vmatpush.msra.mxu0 0.0
      %6021 = vmatpush.msra.mxu0 0.0
      %6022 = vmatpush.msra.mxu0 0.0
      %6023 = vmatpush.msra.mxu0 0.0
      %6024 = vmatpush.msra.mxu0 0.0
      %6025 = vmatpush.msra.mxu0 0.0
      %v6026 = vand.u32 %v5833, 4294901760
      %v6027 = vsub.f32 %v5833, %v6026
      %v6028 = vand.u32 %v6027, 4294901760
      %v6029 = vsub.f32 %v6027, %v6028
      %v6030 = vand.u32 %v6029, 4294901760
      %6031 = vmatpush.msra.mxu0 %v6030
      %v6032 = vand.u32 %v5837, 4294901760
      %6033 = vmatmul.f32.gmra.mxu0 %v6032
      %v6034 = vpop.f32.mrf.mxu0
      %v6035 = vadd.f32 %v6009, %v6034
      %6036 = vdwg.mxu0
      %6037 = vmatpush.msra.mxu0 0.0
      %6038 = vmatpush.msra.mxu0 0.0
      %6039 = vmatpush.msra.mxu0 0.0
      %6040 = vmatpush.msra.mxu0 0.0
      %6041 = vmatpush.msra.mxu0 0.0
      %6042 = vmatpush.msra.mxu0 0.0
      %6043 = vmatpush.msra.mxu0 0.0
      %6044 = vmatpush.msra.mxu0 0.0
      %6045 = vmatpush.msra.mxu0 0.0
      %6046 = vmatpush.msra.mxu0 0.0
      %6047 = vmatpush.msra.mxu0 0.0
      %6048 = vmatpush.msra.mxu0 0.0
      %6049 = vmatpush.msra.mxu0 0.0
      %6050 = vmatpush.msra.mxu0 0.0
      %6051 = vmatpush.msra.mxu0 0.0
      %v6052 = vand.u32 %v5833, 4294901760
      %v6053 = vsub.f32 %v5833, %v6052
      %6054 = vmatpush.msra.mxu0 %v6053
      %v6055 = vand.u32 %v5837, 4294901760
      %v6056 = vsub.f32 %v5837, %v6055
      %6057 = vmatmul.f32.gmra.mxu0 %v6056
      %v6058 = vpop.f32.mrf.mxu0
      %v6059 = vadd.f32 %v6035, %v6058
      %6060 = vdwg.mxu0
      %6061 = vmatpush.msra.mxu0 0.0
      %6062 = vmatpush.msra.mxu0 0.0
      %6063 = vmatpush.msra.mxu0 0.0
      %6064 = vmatpush.msra.mxu0 0.0
      %6065 = vmatpush.msra.mxu0 0.0
      %6066 = vmatpush.msra.mxu0 0.0
      %6067 = vmatpush.msra.mxu0 0.0
      %6068 = vmatpush.msra.mxu0 0.0
      %6069 = vmatpush.msra.mxu0 0.0
      %6070 = vmatpush.msra.mxu0 0.0
      %6071 = vmatpush.msra.mxu0 0.0
      %6072 = vmatpush.msra.mxu0 0.0
      %6073 = vmatpush.msra.mxu0 0.0
      %6074 = vmatpush.msra.mxu0 0.0
      %6075 = vmatpush.msra.mxu0 0.0
      %v6076 = vand.u32 %v5833, 4294901760
      %6077 = vmatpush.msra.mxu0 %v6076
      %v6078 = vand.u32 %v5837, 4294901760
      %v6079 = vsub.f32 %v5837, %v6078
      %v6080 = vand.u32 %v6079, 4294901760
      %6081 = vmatmul.f32.gmra.mxu0 %v6080
      %v6082 = vpop.f32.mrf.mxu0
      %v6083 = vadd.f32 %v6059, %v6082
      %6084 = vdwg.mxu0
      %6085 = vmatpush.msra.mxu0 0.0
      %6086 = vmatpush.msra.mxu0 0.0
      %6087 = vmatpush.msra.mxu0 0.0
      %6088 = vmatpush.msra.mxu0 0.0
      %6089 = vmatpush.msra.mxu0 0.0
      %6090 = vmatpush.msra.mxu0 0.0
      %6091 = vmatpush.msra.mxu0 0.0
      %6092 = vmatpush.msra.mxu0 0.0
      %6093 = vmatpush.msra.mxu0 0.0
      %6094 = vmatpush.msra.mxu0 0.0
      %6095 = vmatpush.msra.mxu0 0.0
      %6096 = vmatpush.msra.mxu0 0.0
      %6097 = vmatpush.msra.mxu0 0.0
      %6098 = vmatpush.msra.mxu0 0.0
      %6099 = vmatpush.msra.mxu0 0.0
      %v6100 = vand.u32 %v5833, 4294901760
      %v6101 = vsub.f32 %v5833, %v6100
      %v6102 = vand.u32 %v6101, 4294901760
      %6103 = vmatpush.msra.mxu0 %v6102
      %v6104 = vand.u32 %v5837, 4294901760
      %6105 = vmatmul.f32.gmra.mxu0 %v6104
      %v6106 = vpop.f32.mrf.mxu0
      %v6107 = vadd.f32 %v6083, %v6106
      %6108 = vdwg.mxu0
      %6109 = vmatpush.msra.mxu0 0.0
      %6110 = vmatpush.msra.mxu0 0.0
      %6111 = vmatpush.msra.mxu0 0.0
      %6112 = vmatpush.msra.mxu0 0.0
      %6113 = vmatpush.msra.mxu0 0.0
      %6114 = vmatpush.msra.mxu0 0.0
      %6115 = vmatpush.msra.mxu0 0.0
      %6116 = vmatpush.msra.mxu0 0.0
      %6117 = vmatpush.msra.mxu0 0.0
      %6118 = vmatpush.msra.mxu0 0.0
      %6119 = vmatpush.msra.mxu0 0.0
      %6120 = vmatpush.msra.mxu0 0.0
      %6121 = vmatpush.msra.mxu0 0.0
      %6122 = vmatpush.msra.mxu0 0.0
      %6123 = vmatpush.msra.mxu0 0.0
      %v6124 = vand.u32 %v5833, 4294901760
      %6125 = vmatpush.msra.mxu0 %v6124
      %v6126 = vand.u32 %v5837, 4294901760
      %6127 = vmatmul.f32.gmra.mxu0 %v6126
      %v6128 = vpop.f32.mrf.mxu0
      %v6129 = vadd.f32 %v6107, %v6128
      %6130 = vdwg.mxu0
      %v6131 = vadd.f32 %v5802, %v5983
      %v6132 = vadd.f32 %v5802, %v6129
      %s6133 = scalar_lea.vmem %s9, 1
      %v6134 = vld [vmem:[%s6133] ss:$8 sm:$0x3]
      %v6136 = vperm.slane %v6134, 0
      %v6137 = vperm.slane %v6134, 1
      %6138 = vrot.lane.b32.xlu0 %v6136, 126
      %v6139 = vpop.permute.xlu0 %6138
      %6140 = vrot.lane.b32.xlu0 %v6137, 126
      %v6141 = vpop.permute.xlu0 %6140
      %v6142 = vsel %vm3498, %v6139, %v6141
      %v6146 = vmul.f32 %v5803, %v6139
      %v6147 = vmul.f32 %v5804, %v6142
      %v6148 = vmul.f32 %v5805, %v6141
      %s6149 = scalar_lea.vmem %s2, 8
      %v6150 = vld [vmem:[%s6149] sm:$0xff]
      %6154 = vrot.lane.b32.xlu0 %v6146, 2
      %v6155 = vpop.permute.xlu0 %6154
      %6156 = vrot.lane.b32.xlu0 %v6147, 2
      %v6157 = vpop.permute.xlu0 %6156
      %6158 = vrot.lane.b32.xlu0 %v6148, 2
      %v6159 = vpop.permute.xlu0 %6158
      %vm6160 = vcmask 15360
      %v6161 = vsel %vm6160, %v6155, %v6157
      %v6162 = vsel %vm6160, %v6157, %v6159
      %v6166 = vsel %vm412, %v6150, 0
      %6168 = vmatpush.msra.mxu0 0.0
      %6169 = vmatpush.msra.mxu0 0.0
      %6170 = vmatpush.msra.mxu0 0.0
      %6171 = vmatpush.msra.mxu0 0.0
      %6172 = vmatpush.msra.mxu0 0.0
      %6173 = vmatpush.msra.mxu0 0.0
      %6174 = vmatpush.msra.mxu0 0.0
      %6175 = vmatpush.msra.mxu0 0.0
      %6176 = vmatpush.msra.mxu0 0.0
      %6177 = vmatpush.msra.mxu0 0.0
      %6178 = vmatpush.msra.mxu0 0.0
      %6179 = vmatpush.msra.mxu0 0.0
      %6180 = vmatpush.msra.mxu0 0.0
      %6181 = vmatpush.msra.mxu0 0.0
      %6182 = vmatpush.msra.mxu0 0.0
      %v6183 = vand.u32 %v6161, 4294901760
      %6184 = vmatpush.msra.mxu0 %v6183
      %v6185 = vand.u32 %v6166, 4294901760
      %v6186 = vsub.f32 %v6166, %v6185
      %v6187 = vand.u32 %v6186, 4294901760
      %v6188 = vsub.f32 %v6186, %v6187
      %v6189 = vand.u32 %v6188, 4294901760
      %6190 = vmatmul.f32.gmra.mxu0 %v6189
      %v6191 = vpop.f32.mrf.mxu0
      %v6192 = vadd.f32 0.0, %v6191
      %6193 = vdwg.mxu0
      %6194 = vmatpush.msra.mxu0 0.0
      %6195 = vmatpush.msra.mxu0 0.0
      %6196 = vmatpush.msra.mxu0 0.0
      %6197 = vmatpush.msra.mxu0 0.0
      %6198 = vmatpush.msra.mxu0 0.0
      %6199 = vmatpush.msra.mxu0 0.0
      %6200 = vmatpush.msra.mxu0 0.0
      %6201 = vmatpush.msra.mxu0 0.0
      %6202 = vmatpush.msra.mxu0 0.0
      %6203 = vmatpush.msra.mxu0 0.0
      %6204 = vmatpush.msra.mxu0 0.0
      %6205 = vmatpush.msra.mxu0 0.0
      %6206 = vmatpush.msra.mxu0 0.0
      %6207 = vmatpush.msra.mxu0 0.0
      %6208 = vmatpush.msra.mxu0 0.0
      %v6209 = vand.u32 %v6161, 4294901760
      %v6210 = vsub.f32 %v6161, %v6209
      %v6211 = vand.u32 %v6210, 4294901760
      %v6212 = vsub.f32 %v6210, %v6211
      %v6213 = vand.u32 %v6212, 4294901760
      %6214 = vmatpush.msra.mxu0 %v6213
      %v6215 = vand.u32 %v6166, 4294901760
      %6216 = vmatmul.f32.gmra.mxu0 %v6215
      %v6217 = vpop.f32.mrf.mxu0
      %v6218 = vadd.f32 %v6192, %v6217
      %6219 = vdwg.mxu0
      %6220 = vmatpush.msra.mxu0 0.0
      %6221 = vmatpush.msra.mxu0 0.0
      %6222 = vmatpush.msra.mxu0 0.0
      %6223 = vmatpush.msra.mxu0 0.0
      %6224 = vmatpush.msra.mxu0 0.0
      %6225 = vmatpush.msra.mxu0 0.0
      %6226 = vmatpush.msra.mxu0 0.0
      %6227 = vmatpush.msra.mxu0 0.0
      %6228 = vmatpush.msra.mxu0 0.0
      %6229 = vmatpush.msra.mxu0 0.0
      %6230 = vmatpush.msra.mxu0 0.0
      %6231 = vmatpush.msra.mxu0 0.0
      %6232 = vmatpush.msra.mxu0 0.0
      %6233 = vmatpush.msra.mxu0 0.0
      %6234 = vmatpush.msra.mxu0 0.0
      %v6235 = vand.u32 %v6161, 4294901760
      %v6236 = vsub.f32 %v6161, %v6235
      %6237 = vmatpush.msra.mxu0 %v6236
      %v6238 = vand.u32 %v6166, 4294901760
      %v6239 = vsub.f32 %v6166, %v6238
      %6240 = vmatmul.f32.gmra.mxu0 %v6239
      %v6241 = vpop.f32.mrf.mxu0
      %v6242 = vadd.f32 %v6218, %v6241
      %6243 = vdwg.mxu0
      %6244 = vmatpush.msra.mxu0 0.0
      %6245 = vmatpush.msra.mxu0 0.0
      %6246 = vmatpush.msra.mxu0 0.0
      %6247 = vmatpush.msra.mxu0 0.0
      %6248 = vmatpush.msra.mxu0 0.0
      %6249 = vmatpush.msra.mxu0 0.0
      %6250 = vmatpush.msra.mxu0 0.0
      %6251 = vmatpush.msra.mxu0 0.0
      %6252 = vmatpush.msra.mxu0 0.0
      %6253 = vmatpush.msra.mxu0 0.0
      %6254 = vmatpush.msra.mxu0 0.0
      %6255 = vmatpush.msra.mxu0 0.0
      %6256 = vmatpush.msra.mxu0 0.0
      %6257 = vmatpush.msra.mxu0 0.0
      %6258 = vmatpush.msra.mxu0 0.0
      %v6259 = vand.u32 %v6161, 4294901760
      %6260 = vmatpush.msra.mxu0 %v6259
      %v6261 = vand.u32 %v6166, 4294901760
      %v6262 = vsub.f32 %v6166, %v6261
      %v6263 = vand.u32 %v6262, 4294901760
      %6264 = vmatmul.f32.gmra.mxu0 %v6263
      %v6265 = vpop.f32.mrf.mxu0
      %v6266 = vadd.f32 %v6242, %v6265
      %6267 = vdwg.mxu0
      %6268 = vmatpush.msra.mxu0 0.0
      %6269 = vmatpush.msra.mxu0 0.0
      %6270 = vmatpush.msra.mxu0 0.0
      %6271 = vmatpush.msra.mxu0 0.0
      %6272 = vmatpush.msra.mxu0 0.0
      %6273 = vmatpush.msra.mxu0 0.0
      %6274 = vmatpush.msra.mxu0 0.0
      %6275 = vmatpush.msra.mxu0 0.0
      %6276 = vmatpush.msra.mxu0 0.0
      %6277 = vmatpush.msra.mxu0 0.0
      %6278 = vmatpush.msra.mxu0 0.0
      %6279 = vmatpush.msra.mxu0 0.0
      %6280 = vmatpush.msra.mxu0 0.0
      %6281 = vmatpush.msra.mxu0 0.0
      %6282 = vmatpush.msra.mxu0 0.0
      %v6283 = vand.u32 %v6161, 4294901760
      %v6284 = vsub.f32 %v6161, %v6283
      %v6285 = vand.u32 %v6284, 4294901760
      %6286 = vmatpush.msra.mxu0 %v6285
      %v6287 = vand.u32 %v6166, 4294901760
      %6288 = vmatmul.f32.gmra.mxu0 %v6287
      %v6289 = vpop.f32.mrf.mxu0
      %v6290 = vadd.f32 %v6266, %v6289
      %6291 = vdwg.mxu0
      %6292 = vmatpush.msra.mxu0 0.0
      %6293 = vmatpush.msra.mxu0 0.0
      %6294 = vmatpush.msra.mxu0 0.0
      %6295 = vmatpush.msra.mxu0 0.0
      %6296 = vmatpush.msra.mxu0 0.0
      %6297 = vmatpush.msra.mxu0 0.0
      %6298 = vmatpush.msra.mxu0 0.0
      %6299 = vmatpush.msra.mxu0 0.0
      %6300 = vmatpush.msra.mxu0 0.0
      %6301 = vmatpush.msra.mxu0 0.0
      %6302 = vmatpush.msra.mxu0 0.0
      %6303 = vmatpush.msra.mxu0 0.0
      %6304 = vmatpush.msra.mxu0 0.0
      %6305 = vmatpush.msra.mxu0 0.0
      %6306 = vmatpush.msra.mxu0 0.0
      %v6307 = vand.u32 %v6161, 4294901760
      %6308 = vmatpush.msra.mxu0 %v6307
      %v6309 = vand.u32 %v6166, 4294901760
      %6310 = vmatmul.f32.gmra.mxu0 %v6309
      %v6311 = vpop.f32.mrf.mxu0
      %v6312 = vadd.f32 %v6290, %v6311
      %6313 = vdwg.mxu0
      %6314 = vmatpush.msra.mxu0 0.0
      %6315 = vmatpush.msra.mxu0 0.0
      %6316 = vmatpush.msra.mxu0 0.0
      %6317 = vmatpush.msra.mxu0 0.0
      %6318 = vmatpush.msra.mxu0 0.0
      %6319 = vmatpush.msra.mxu0 0.0
      %6320 = vmatpush.msra.mxu0 0.0
      %6321 = vmatpush.msra.mxu0 0.0
      %6322 = vmatpush.msra.mxu0 0.0
      %6323 = vmatpush.msra.mxu0 0.0
      %6324 = vmatpush.msra.mxu0 0.0
      %6325 = vmatpush.msra.mxu0 0.0
      %6326 = vmatpush.msra.mxu0 0.0
      %6327 = vmatpush.msra.mxu0 0.0
      %6328 = vmatpush.msra.mxu0 0.0
      %v6329 = vand.u32 %v6162, 4294901760
      %6330 = vmatpush.msra.mxu0 %v6329
      %v6331 = vand.u32 %v6166, 4294901760
      %v6332 = vsub.f32 %v6166, %v6331
      %v6333 = vand.u32 %v6332, 4294901760
      %v6334 = vsub.f32 %v6332, %v6333
      %v6335 = vand.u32 %v6334, 4294901760
      %6336 = vmatmul.f32.gmra.mxu0 %v6335
      %v6337 = vpop.f32.mrf.mxu0
      %v6338 = vadd.f32 0.0, %v6337
      %6339 = vdwg.mxu0
      %6340 = vmatpush.msra.mxu0 0.0
      %6341 = vmatpush.msra.mxu0 0.0
      %6342 = vmatpush.msra.mxu0 0.0
      %6343 = vmatpush.msra.mxu0 0.0
      %6344 = vmatpush.msra.mxu0 0.0
      %6345 = vmatpush.msra.mxu0 0.0
      %6346 = vmatpush.msra.mxu0 0.0
      %6347 = vmatpush.msra.mxu0 0.0
      %6348 = vmatpush.msra.mxu0 0.0
      %6349 = vmatpush.msra.mxu0 0.0
      %6350 = vmatpush.msra.mxu0 0.0
      %6351 = vmatpush.msra.mxu0 0.0
      %6352 = vmatpush.msra.mxu0 0.0
      %6353 = vmatpush.msra.mxu0 0.0
      %6354 = vmatpush.msra.mxu0 0.0
      %v6355 = vand.u32 %v6162, 4294901760
      %v6356 = vsub.f32 %v6162, %v6355
      %v6357 = vand.u32 %v6356, 4294901760
      %v6358 = vsub.f32 %v6356, %v6357
      %v6359 = vand.u32 %v6358, 4294901760
      %6360 = vmatpush.msra.mxu0 %v6359
      %v6361 = vand.u32 %v6166, 4294901760
      %6362 = vmatmul.f32.gmra.mxu0 %v6361
      %v6363 = vpop.f32.mrf.mxu0
      %v6364 = vadd.f32 %v6338, %v6363
      %6365 = vdwg.mxu0
      %6366 = vmatpush.msra.mxu0 0.0
      %6367 = vmatpush.msra.mxu0 0.0
      %6368 = vmatpush.msra.mxu0 0.0
      %6369 = vmatpush.msra.mxu0 0.0
      %6370 = vmatpush.msra.mxu0 0.0
      %6371 = vmatpush.msra.mxu0 0.0
      %6372 = vmatpush.msra.mxu0 0.0
      %6373 = vmatpush.msra.mxu0 0.0
      %6374 = vmatpush.msra.mxu0 0.0
      %6375 = vmatpush.msra.mxu0 0.0
      %6376 = vmatpush.msra.mxu0 0.0
      %6377 = vmatpush.msra.mxu0 0.0
      %6378 = vmatpush.msra.mxu0 0.0
      %6379 = vmatpush.msra.mxu0 0.0
      %6380 = vmatpush.msra.mxu0 0.0
      %v6381 = vand.u32 %v6162, 4294901760
      %v6382 = vsub.f32 %v6162, %v6381
      %6383 = vmatpush.msra.mxu0 %v6382
      %v6384 = vand.u32 %v6166, 4294901760
      %v6385 = vsub.f32 %v6166, %v6384
      %6386 = vmatmul.f32.gmra.mxu0 %v6385
      %v6387 = vpop.f32.mrf.mxu0
      %v6388 = vadd.f32 %v6364, %v6387
      %6389 = vdwg.mxu0
      %6390 = vmatpush.msra.mxu0 0.0
      %6391 = vmatpush.msra.mxu0 0.0
      %6392 = vmatpush.msra.mxu0 0.0
      %6393 = vmatpush.msra.mxu0 0.0
      %6394 = vmatpush.msra.mxu0 0.0
      %6395 = vmatpush.msra.mxu0 0.0
      %6396 = vmatpush.msra.mxu0 0.0
      %6397 = vmatpush.msra.mxu0 0.0
      %6398 = vmatpush.msra.mxu0 0.0
      %6399 = vmatpush.msra.mxu0 0.0
      %6400 = vmatpush.msra.mxu0 0.0
      %6401 = vmatpush.msra.mxu0 0.0
      %6402 = vmatpush.msra.mxu0 0.0
      %6403 = vmatpush.msra.mxu0 0.0
      %6404 = vmatpush.msra.mxu0 0.0
      %v6405 = vand.u32 %v6162, 4294901760
      %6406 = vmatpush.msra.mxu0 %v6405
      %v6407 = vand.u32 %v6166, 4294901760
      %v6408 = vsub.f32 %v6166, %v6407
      %v6409 = vand.u32 %v6408, 4294901760
      %6410 = vmatmul.f32.gmra.mxu0 %v6409
      %v6411 = vpop.f32.mrf.mxu0
      %v6412 = vadd.f32 %v6388, %v6411
      %6413 = vdwg.mxu0
      %6414 = vmatpush.msra.mxu0 0.0
      %6415 = vmatpush.msra.mxu0 0.0
      %6416 = vmatpush.msra.mxu0 0.0
      %6417 = vmatpush.msra.mxu0 0.0
      %6418 = vmatpush.msra.mxu0 0.0
      %6419 = vmatpush.msra.mxu0 0.0
      %6420 = vmatpush.msra.mxu0 0.0
      %6421 = vmatpush.msra.mxu0 0.0
      %6422 = vmatpush.msra.mxu0 0.0
      %6423 = vmatpush.msra.mxu0 0.0
      %6424 = vmatpush.msra.mxu0 0.0
      %6425 = vmatpush.msra.mxu0 0.0
      %6426 = vmatpush.msra.mxu0 0.0
      %6427 = vmatpush.msra.mxu0 0.0
      %6428 = vmatpush.msra.mxu0 0.0
      %v6429 = vand.u32 %v6162, 4294901760
      %v6430 = vsub.f32 %v6162, %v6429
      %v6431 = vand.u32 %v6430, 4294901760
      %6432 = vmatpush.msra.mxu0 %v6431
      %v6433 = vand.u32 %v6166, 4294901760
      %6434 = vmatmul.f32.gmra.mxu0 %v6433
      %v6435 = vpop.f32.mrf.mxu0
      %v6436 = vadd.f32 %v6412, %v6435
      %6437 = vdwg.mxu0
      %6438 = vmatpush.msra.mxu0 0.0
      %6439 = vmatpush.msra.mxu0 0.0
      %6440 = vmatpush.msra.mxu0 0.0
      %6441 = vmatpush.msra.mxu0 0.0
      %6442 = vmatpush.msra.mxu0 0.0
      %6443 = vmatpush.msra.mxu0 0.0
      %6444 = vmatpush.msra.mxu0 0.0
      %6445 = vmatpush.msra.mxu0 0.0
      %6446 = vmatpush.msra.mxu0 0.0
      %6447 = vmatpush.msra.mxu0 0.0
      %6448 = vmatpush.msra.mxu0 0.0
      %6449 = vmatpush.msra.mxu0 0.0
      %6450 = vmatpush.msra.mxu0 0.0
      %6451 = vmatpush.msra.mxu0 0.0
      %6452 = vmatpush.msra.mxu0 0.0
      %v6453 = vand.u32 %v6162, 4294901760
      %6454 = vmatpush.msra.mxu0 %v6453
      %v6455 = vand.u32 %v6166, 4294901760
      %6456 = vmatmul.f32.gmra.mxu0 %v6455
      %v6457 = vpop.f32.mrf.mxu0
      %v6458 = vadd.f32 %v6436, %v6457
      %6459 = vdwg.mxu0
      %v6460 = vadd.f32 %v6131, %v6312
      %v6461 = vadd.f32 %v6132, %v6458
      %s6462 = scalar_lea.vmem %s9, 2
      %v6463 = vld [vmem:[%s6462] ss:$8 sm:$0x3]
      %v6465 = vperm.slane %v6463, 0
      %v6466 = vperm.slane %v6463, 1
      %6467 = vrot.lane.b32.xlu0 %v6465, 127
      %v6468 = vpop.permute.xlu0 %6467
      %6469 = vrot.lane.b32.xlu0 %v6466, 127
      %v6470 = vpop.permute.xlu0 %6469
      %v6471 = vsel %vm3040, %v6468, %v6470
      %v6475 = vmul.f32 %v5803, %v6468
      %v6476 = vmul.f32 %v5804, %v6471
      %v6477 = vmul.f32 %v5805, %v6470
      %s6478 = scalar_lea.vmem %s2, 16
      %v6479 = vld [vmem:[%s6478] sm:$0xff]
      %6483 = vrot.lane.b32.xlu0 %v6475, 1
      %v6484 = vpop.permute.xlu0 %6483
      %6485 = vrot.lane.b32.xlu0 %v6476, 1
      %v6486 = vpop.permute.xlu0 %6485
      %6487 = vrot.lane.b32.xlu0 %v6477, 1
      %v6488 = vpop.permute.xlu0 %6487
      %vm6489 = vcmask 7168
      %v6490 = vsel %vm6489, %v6484, %v6486
      %v6491 = vsel %vm6489, %v6486, %v6488
      %v6495 = vsel %vm412, %v6479, 0
      %6497 = vmatpush.msra.mxu0 0.0
      %6498 = vmatpush.msra.mxu0 0.0
      %6499 = vmatpush.msra.mxu0 0.0
      %6500 = vmatpush.msra.mxu0 0.0
      %6501 = vmatpush.msra.mxu0 0.0
      %6502 = vmatpush.msra.mxu0 0.0
      %6503 = vmatpush.msra.mxu0 0.0
      %6504 = vmatpush.msra.mxu0 0.0
      %6505 = vmatpush.msra.mxu0 0.0
      %6506 = vmatpush.msra.mxu0 0.0
      %6507 = vmatpush.msra.mxu0 0.0
      %6508 = vmatpush.msra.mxu0 0.0
      %6509 = vmatpush.msra.mxu0 0.0
      %6510 = vmatpush.msra.mxu0 0.0
      %6511 = vmatpush.msra.mxu0 0.0
      %v6512 = vand.u32 %v6490, 4294901760
      %6513 = vmatpush.msra.mxu0 %v6512
      %v6514 = vand.u32 %v6495, 4294901760
      %v6515 = vsub.f32 %v6495, %v6514
      %v6516 = vand.u32 %v6515, 4294901760
      %v6517 = vsub.f32 %v6515, %v6516
      %v6518 = vand.u32 %v6517, 4294901760
      %6519 = vmatmul.f32.gmra.mxu0 %v6518
      %v6520 = vpop.f32.mrf.mxu0
      %v6521 = vadd.f32 0.0, %v6520
      %6522 = vdwg.mxu0
      %6523 = vmatpush.msra.mxu0 0.0
      %6524 = vmatpush.msra.mxu0 0.0
      %6525 = vmatpush.msra.mxu0 0.0
      %6526 = vmatpush.msra.mxu0 0.0
      %6527 = vmatpush.msra.mxu0 0.0
      %6528 = vmatpush.msra.mxu0 0.0
      %6529 = vmatpush.msra.mxu0 0.0
      %6530 = vmatpush.msra.mxu0 0.0
      %6531 = vmatpush.msra.mxu0 0.0
      %6532 = vmatpush.msra.mxu0 0.0
      %6533 = vmatpush.msra.mxu0 0.0
      %6534 = vmatpush.msra.mxu0 0.0
      %6535 = vmatpush.msra.mxu0 0.0
      %6536 = vmatpush.msra.mxu0 0.0
      %6537 = vmatpush.msra.mxu0 0.0
      %v6538 = vand.u32 %v6490, 4294901760
      %v6539 = vsub.f32 %v6490, %v6538
      %v6540 = vand.u32 %v6539, 4294901760
      %v6541 = vsub.f32 %v6539, %v6540
      %v6542 = vand.u32 %v6541, 4294901760
      %6543 = vmatpush.msra.mxu0 %v6542
      %v6544 = vand.u32 %v6495, 4294901760
      %6545 = vmatmul.f32.gmra.mxu0 %v6544
      %v6546 = vpop.f32.mrf.mxu0
      %v6547 = vadd.f32 %v6521, %v6546
      %6548 = vdwg.mxu0
      %6549 = vmatpush.msra.mxu0 0.0
      %6550 = vmatpush.msra.mxu0 0.0
      %6551 = vmatpush.msra.mxu0 0.0
      %6552 = vmatpush.msra.mxu0 0.0
      %6553 = vmatpush.msra.mxu0 0.0
      %6554 = vmatpush.msra.mxu0 0.0
      %6555 = vmatpush.msra.mxu0 0.0
      %6556 = vmatpush.msra.mxu0 0.0
      %6557 = vmatpush.msra.mxu0 0.0
      %6558 = vmatpush.msra.mxu0 0.0
      %6559 = vmatpush.msra.mxu0 0.0
      %6560 = vmatpush.msra.mxu0 0.0
      %6561 = vmatpush.msra.mxu0 0.0
      %6562 = vmatpush.msra.mxu0 0.0
      %6563 = vmatpush.msra.mxu0 0.0
      %v6564 = vand.u32 %v6490, 4294901760
      %v6565 = vsub.f32 %v6490, %v6564
      %6566 = vmatpush.msra.mxu0 %v6565
      %v6567 = vand.u32 %v6495, 4294901760
      %v6568 = vsub.f32 %v6495, %v6567
      %6569 = vmatmul.f32.gmra.mxu0 %v6568
      %v6570 = vpop.f32.mrf.mxu0
      %v6571 = vadd.f32 %v6547, %v6570
      %6572 = vdwg.mxu0
      %6573 = vmatpush.msra.mxu0 0.0
      %6574 = vmatpush.msra.mxu0 0.0
      %6575 = vmatpush.msra.mxu0 0.0
      %6576 = vmatpush.msra.mxu0 0.0
      %6577 = vmatpush.msra.mxu0 0.0
      %6578 = vmatpush.msra.mxu0 0.0
      %6579 = vmatpush.msra.mxu0 0.0
      %6580 = vmatpush.msra.mxu0 0.0
      %6581 = vmatpush.msra.mxu0 0.0
      %6582 = vmatpush.msra.mxu0 0.0
      %6583 = vmatpush.msra.mxu0 0.0
      %6584 = vmatpush.msra.mxu0 0.0
      %6585 = vmatpush.msra.mxu0 0.0
      %6586 = vmatpush.msra.mxu0 0.0
      %6587 = vmatpush.msra.mxu0 0.0
      %v6588 = vand.u32 %v6490, 4294901760
      %6589 = vmatpush.msra.mxu0 %v6588
      %v6590 = vand.u32 %v6495, 4294901760
      %v6591 = vsub.f32 %v6495, %v6590
      %v6592 = vand.u32 %v6591, 4294901760
      %6593 = vmatmul.f32.gmra.mxu0 %v6592
      %v6594 = vpop.f32.mrf.mxu0
      %v6595 = vadd.f32 %v6571, %v6594
      %6596 = vdwg.mxu0
      %6597 = vmatpush.msra.mxu0 0.0
      %6598 = vmatpush.msra.mxu0 0.0
      %6599 = vmatpush.msra.mxu0 0.0
      %6600 = vmatpush.msra.mxu0 0.0
      %6601 = vmatpush.msra.mxu0 0.0
      %6602 = vmatpush.msra.mxu0 0.0
      %6603 = vmatpush.msra.mxu0 0.0
      %6604 = vmatpush.msra.mxu0 0.0
      %6605 = vmatpush.msra.mxu0 0.0
      %6606 = vmatpush.msra.mxu0 0.0
      %6607 = vmatpush.msra.mxu0 0.0
      %6608 = vmatpush.msra.mxu0 0.0
      %6609 = vmatpush.msra.mxu0 0.0
      %6610 = vmatpush.msra.mxu0 0.0
      %6611 = vmatpush.msra.mxu0 0.0
      %v6612 = vand.u32 %v6490, 4294901760
      %v6613 = vsub.f32 %v6490, %v6612
      %v6614 = vand.u32 %v6613, 4294901760
      %6615 = vmatpush.msra.mxu0 %v6614
      %v6616 = vand.u32 %v6495, 4294901760
      %6617 = vmatmul.f32.gmra.mxu0 %v6616
      %v6618 = vpop.f32.mrf.mxu0
      %v6619 = vadd.f32 %v6595, %v6618
      %6620 = vdwg.mxu0
      %6621 = vmatpush.msra.mxu0 0.0
      %6622 = vmatpush.msra.mxu0 0.0
      %6623 = vmatpush.msra.mxu0 0.0
      %6624 = vmatpush.msra.mxu0 0.0
      %6625 = vmatpush.msra.mxu0 0.0
      %6626 = vmatpush.msra.mxu0 0.0
      %6627 = vmatpush.msra.mxu0 0.0
      %6628 = vmatpush.msra.mxu0 0.0
      %6629 = vmatpush.msra.mxu0 0.0
      %6630 = vmatpush.msra.mxu0 0.0
      %6631 = vmatpush.msra.mxu0 0.0
      %6632 = vmatpush.msra.mxu0 0.0
      %6633 = vmatpush.msra.mxu0 0.0
      %6634 = vmatpush.msra.mxu0 0.0
      %6635 = vmatpush.msra.mxu0 0.0
      %v6636 = vand.u32 %v6490, 4294901760
      %6637 = vmatpush.msra.mxu0 %v6636
      %v6638 = vand.u32 %v6495, 4294901760
      %6639 = vmatmul.f32.gmra.mxu0 %v6638
      %v6640 = vpop.f32.mrf.mxu0
      %v6641 = vadd.f32 %v6619, %v6640
      %6642 = vdwg.mxu0
      %6643 = vmatpush.msra.mxu0 0.0
      %6644 = vmatpush.msra.mxu0 0.0
      %6645 = vmatpush.msra.mxu0 0.0
      %6646 = vmatpush.msra.mxu0 0.0
      %6647 = vmatpush.msra.mxu0 0.0
      %6648 = vmatpush.msra.mxu0 0.0
      %6649 = vmatpush.msra.mxu0 0.0
      %6650 = vmatpush.msra.mxu0 0.0
      %6651 = vmatpush.msra.mxu0 0.0
      %6652 = vmatpush.msra.mxu0 0.0
      %6653 = vmatpush.msra.mxu0 0.0
      %6654 = vmatpush.msra.mxu0 0.0
      %6655 = vmatpush.msra.mxu0 0.0
      %6656 = vmatpush.msra.mxu0 0.0
      %6657 = vmatpush.msra.mxu0 0.0
      %v6658 = vand.u32 %v6491, 4294901760
      %6659 = vmatpush.msra.mxu0 %v6658
      %v6660 = vand.u32 %v6495, 4294901760
      %v6661 = vsub.f32 %v6495, %v6660
      %v6662 = vand.u32 %v6661, 4294901760
      %v6663 = vsub.f32 %v6661, %v6662
      %v6664 = vand.u32 %v6663, 4294901760
      %6665 = vmatmul.f32.gmra.mxu0 %v6664
      %v6666 = vpop.f32.mrf.mxu0
      %v6667 = vadd.f32 0.0, %v6666
      %6668 = vdwg.mxu0
      %6669 = vmatpush.msra.mxu0 0.0
      %6670 = vmatpush.msra.mxu0 0.0
      %6671 = vmatpush.msra.mxu0 0.0
      %6672 = vmatpush.msra.mxu0 0.0
      %6673 = vmatpush.msra.mxu0 0.0
      %6674 = vmatpush.msra.mxu0 0.0
      %6675 = vmatpush.msra.mxu0 0.0
      %6676 = vmatpush.msra.mxu0 0.0
      %6677 = vmatpush.msra.mxu0 0.0
      %6678 = vmatpush.msra.mxu0 0.0
      %6679 = vmatpush.msra.mxu0 0.0
      %6680 = vmatpush.msra.mxu0 0.0
      %6681 = vmatpush.msra.mxu0 0.0
      %6682 = vmatpush.msra.mxu0 0.0
      %6683 = vmatpush.msra.mxu0 0.0
      %v6684 = vand.u32 %v6491, 4294901760
      %v6685 = vsub.f32 %v6491, %v6684
      %v6686 = vand.u32 %v6685, 4294901760
      %v6687 = vsub.f32 %v6685, %v6686
      %v6688 = vand.u32 %v6687, 4294901760
      %6689 = vmatpush.msra.mxu0 %v6688
      %v6690 = vand.u32 %v6495, 4294901760
      %6691 = vmatmul.f32.gmra.mxu0 %v6690
      %v6692 = vpop.f32.mrf.mxu0
      %v6693 = vadd.f32 %v6667, %v6692
      %6694 = vdwg.mxu0
      %6695 = vmatpush.msra.mxu0 0.0
      %6696 = vmatpush.msra.mxu0 0.0
      %6697 = vmatpush.msra.mxu0 0.0
      %6698 = vmatpush.msra.mxu0 0.0
      %6699 = vmatpush.msra.mxu0 0.0
      %6700 = vmatpush.msra.mxu0 0.0
      %6701 = vmatpush.msra.mxu0 0.0
      %6702 = vmatpush.msra.mxu0 0.0
      %6703 = vmatpush.msra.mxu0 0.0
      %6704 = vmatpush.msra.mxu0 0.0
      %6705 = vmatpush.msra.mxu0 0.0
      %6706 = vmatpush.msra.mxu0 0.0
      %6707 = vmatpush.msra.mxu0 0.0
      %6708 = vmatpush.msra.mxu0 0.0
      %6709 = vmatpush.msra.mxu0 0.0
      %v6710 = vand.u32 %v6491, 4294901760
      %v6711 = vsub.f32 %v6491, %v6710
      %6712 = vmatpush.msra.mxu0 %v6711
      %v6713 = vand.u32 %v6495, 4294901760
      %v6714 = vsub.f32 %v6495, %v6713
      %6715 = vmatmul.f32.gmra.mxu0 %v6714
      %v6716 = vpop.f32.mrf.mxu0
      %v6717 = vadd.f32 %v6693, %v6716
      %6718 = vdwg.mxu0
      %6719 = vmatpush.msra.mxu0 0.0
      %6720 = vmatpush.msra.mxu0 0.0
      %6721 = vmatpush.msra.mxu0 0.0
      %6722 = vmatpush.msra.mxu0 0.0
      %6723 = vmatpush.msra.mxu0 0.0
      %6724 = vmatpush.msra.mxu0 0.0
      %6725 = vmatpush.msra.mxu0 0.0
      %6726 = vmatpush.msra.mxu0 0.0
      %6727 = vmatpush.msra.mxu0 0.0
      %6728 = vmatpush.msra.mxu0 0.0
      %6729 = vmatpush.msra.mxu0 0.0
      %6730 = vmatpush.msra.mxu0 0.0
      %6731 = vmatpush.msra.mxu0 0.0
      %6732 = vmatpush.msra.mxu0 0.0
      %6733 = vmatpush.msra.mxu0 0.0
      %v6734 = vand.u32 %v6491, 4294901760
      %6735 = vmatpush.msra.mxu0 %v6734
      %v6736 = vand.u32 %v6495, 4294901760
      %v6737 = vsub.f32 %v6495, %v6736
      %v6738 = vand.u32 %v6737, 4294901760
      %6739 = vmatmul.f32.gmra.mxu0 %v6738
      %v6740 = vpop.f32.mrf.mxu0
      %v6741 = vadd.f32 %v6717, %v6740
      %6742 = vdwg.mxu0
      %6743 = vmatpush.msra.mxu0 0.0
      %6744 = vmatpush.msra.mxu0 0.0
      %6745 = vmatpush.msra.mxu0 0.0
      %6746 = vmatpush.msra.mxu0 0.0
      %6747 = vmatpush.msra.mxu0 0.0
      %6748 = vmatpush.msra.mxu0 0.0
      %6749 = vmatpush.msra.mxu0 0.0
      %6750 = vmatpush.msra.mxu0 0.0
      %6751 = vmatpush.msra.mxu0 0.0
      %6752 = vmatpush.msra.mxu0 0.0
      %6753 = vmatpush.msra.mxu0 0.0
      %6754 = vmatpush.msra.mxu0 0.0
      %6755 = vmatpush.msra.mxu0 0.0
      %6756 = vmatpush.msra.mxu0 0.0
      %6757 = vmatpush.msra.mxu0 0.0
      %v6758 = vand.u32 %v6491, 4294901760
      %v6759 = vsub.f32 %v6491, %v6758
      %v6760 = vand.u32 %v6759, 4294901760
      %6761 = vmatpush.msra.mxu0 %v6760
      %v6762 = vand.u32 %v6495, 4294901760
      %6763 = vmatmul.f32.gmra.mxu0 %v6762
      %v6764 = vpop.f32.mrf.mxu0
      %v6765 = vadd.f32 %v6741, %v6764
      %6766 = vdwg.mxu0
      %6767 = vmatpush.msra.mxu0 0.0
      %6768 = vmatpush.msra.mxu0 0.0
      %6769 = vmatpush.msra.mxu0 0.0
      %6770 = vmatpush.msra.mxu0 0.0
      %6771 = vmatpush.msra.mxu0 0.0
      %6772 = vmatpush.msra.mxu0 0.0
      %6773 = vmatpush.msra.mxu0 0.0
      %6774 = vmatpush.msra.mxu0 0.0
      %6775 = vmatpush.msra.mxu0 0.0
      %6776 = vmatpush.msra.mxu0 0.0
      %6777 = vmatpush.msra.mxu0 0.0
      %6778 = vmatpush.msra.mxu0 0.0
      %6779 = vmatpush.msra.mxu0 0.0
      %6780 = vmatpush.msra.mxu0 0.0
      %6781 = vmatpush.msra.mxu0 0.0
      %v6782 = vand.u32 %v6491, 4294901760
      %6783 = vmatpush.msra.mxu0 %v6782
      %v6784 = vand.u32 %v6495, 4294901760
      %6785 = vmatmul.f32.gmra.mxu0 %v6784
      %v6786 = vpop.f32.mrf.mxu0
      %v6787 = vadd.f32 %v6765, %v6786
      %6788 = vdwg.mxu0
      %v6789 = vadd.f32 %v6460, %v6641
      %v6790 = vadd.f32 %v6461, %v6787
      %s6791 = scalar_lea.vmem %s9, 3
      %v6792 = vld [vmem:[%s6791] ss:$8 sm:$0x3]
      %v6794 = vperm.slane %v6792, 0
      %v6795 = vperm.slane %v6792, 1
      %v6798 = vmul.f32 %v5804, %v6794
      %v6799 = vmul.f32 %v5805, %v6795
      %s6800 = scalar_lea.vmem %s2, 24
      %v6801 = vld [vmem:[%s6800] sm:$0xff]
      %v6803 = vsel %vm412, %v6801, 0
      %6805 = vmatpush.msra.mxu0 0.0
      %6806 = vmatpush.msra.mxu0 0.0
      %6807 = vmatpush.msra.mxu0 0.0
      %6808 = vmatpush.msra.mxu0 0.0
      %6809 = vmatpush.msra.mxu0 0.0
      %6810 = vmatpush.msra.mxu0 0.0
      %6811 = vmatpush.msra.mxu0 0.0
      %6812 = vmatpush.msra.mxu0 0.0
      %6813 = vmatpush.msra.mxu0 0.0
      %6814 = vmatpush.msra.mxu0 0.0
      %6815 = vmatpush.msra.mxu0 0.0
      %6816 = vmatpush.msra.mxu0 0.0
      %6817 = vmatpush.msra.mxu0 0.0
      %6818 = vmatpush.msra.mxu0 0.0
      %6819 = vmatpush.msra.mxu0 0.0
      %v6820 = vand.u32 %v6798, 4294901760
      %6821 = vmatpush.msra.mxu0 %v6820
      %v6822 = vand.u32 %v6803, 4294901760
      %v6823 = vsub.f32 %v6803, %v6822
      %v6824 = vand.u32 %v6823, 4294901760
      %v6825 = vsub.f32 %v6823, %v6824
      %v6826 = vand.u32 %v6825, 4294901760
      %6827 = vmatmul.f32.gmra.mxu0 %v6826
      %v6828 = vpop.f32.mrf.mxu0
      %v6829 = vadd.f32 0.0, %v6828
      %6830 = vdwg.mxu0
      %6831 = vmatpush.msra.mxu0 0.0
      %6832 = vmatpush.msra.mxu0 0.0
      %6833 = vmatpush.msra.mxu0 0.0
      %6834 = vmatpush.msra.mxu0 0.0
      %6835 = vmatpush.msra.mxu0 0.0
      %6836 = vmatpush.msra.mxu0 0.0
      %6837 = vmatpush.msra.mxu0 0.0
      %6838 = vmatpush.msra.mxu0 0.0
      %6839 = vmatpush.msra.mxu0 0.0
      %6840 = vmatpush.msra.mxu0 0.0
      %6841 = vmatpush.msra.mxu0 0.0
      %6842 = vmatpush.msra.mxu0 0.0
      %6843 = vmatpush.msra.mxu0 0.0
      %6844 = vmatpush.msra.mxu0 0.0
      %6845 = vmatpush.msra.mxu0 0.0
      %v6846 = vand.u32 %v6798, 4294901760
      %v6847 = vsub.f32 %v6798, %v6846
      %v6848 = vand.u32 %v6847, 4294901760
      %v6849 = vsub.f32 %v6847, %v6848
      %v6850 = vand.u32 %v6849, 4294901760
      %6851 = vmatpush.msra.mxu0 %v6850
      %v6852 = vand.u32 %v6803, 4294901760
      %6853 = vmatmul.f32.gmra.mxu0 %v6852
      %v6854 = vpop.f32.mrf.mxu0
      %v6855 = vadd.f32 %v6829, %v6854
      %6856 = vdwg.mxu0
      %6857 = vmatpush.msra.mxu0 0.0
      %6858 = vmatpush.msra.mxu0 0.0
      %6859 = vmatpush.msra.mxu0 0.0
      %6860 = vmatpush.msra.mxu0 0.0
      %6861 = vmatpush.msra.mxu0 0.0
      %6862 = vmatpush.msra.mxu0 0.0
      %6863 = vmatpush.msra.mxu0 0.0
      %6864 = vmatpush.msra.mxu0 0.0
      %6865 = vmatpush.msra.mxu0 0.0
      %6866 = vmatpush.msra.mxu0 0.0
      %6867 = vmatpush.msra.mxu0 0.0
      %6868 = vmatpush.msra.mxu0 0.0
      %6869 = vmatpush.msra.mxu0 0.0
      %6870 = vmatpush.msra.mxu0 0.0
      %6871 = vmatpush.msra.mxu0 0.0
      %v6872 = vand.u32 %v6798, 4294901760
      %v6873 = vsub.f32 %v6798, %v6872
      %6874 = vmatpush.msra.mxu0 %v6873
      %v6875 = vand.u32 %v6803, 4294901760
      %v6876 = vsub.f32 %v6803, %v6875
      %6877 = vmatmul.f32.gmra.mxu0 %v6876
      %v6878 = vpop.f32.mrf.mxu0
      %v6879 = vadd.f32 %v6855, %v6878
      %6880 = vdwg.mxu0
      %6881 = vmatpush.msra.mxu0 0.0
      %6882 = vmatpush.msra.mxu0 0.0
      %6883 = vmatpush.msra.mxu0 0.0
      %6884 = vmatpush.msra.mxu0 0.0
      %6885 = vmatpush.msra.mxu0 0.0
      %6886 = vmatpush.msra.mxu0 0.0
      %6887 = vmatpush.msra.mxu0 0.0
      %6888 = vmatpush.msra.mxu0 0.0
      %6889 = vmatpush.msra.mxu0 0.0
      %6890 = vmatpush.msra.mxu0 0.0
      %6891 = vmatpush.msra.mxu0 0.0
      %6892 = vmatpush.msra.mxu0 0.0
      %6893 = vmatpush.msra.mxu0 0.0
      %6894 = vmatpush.msra.mxu0 0.0
      %6895 = vmatpush.msra.mxu0 0.0
      %v6896 = vand.u32 %v6798, 4294901760
      %6897 = vmatpush.msra.mxu0 %v6896
      %v6898 = vand.u32 %v6803, 4294901760
      %v6899 = vsub.f32 %v6803, %v6898
      %v6900 = vand.u32 %v6899, 4294901760
      %6901 = vmatmul.f32.gmra.mxu0 %v6900
      %v6902 = vpop.f32.mrf.mxu0
      %v6903 = vadd.f32 %v6879, %v6902
      %6904 = vdwg.mxu0
      %6905 = vmatpush.msra.mxu0 0.0
      %6906 = vmatpush.msra.mxu0 0.0
      %6907 = vmatpush.msra.mxu0 0.0
      %6908 = vmatpush.msra.mxu0 0.0
      %6909 = vmatpush.msra.mxu0 0.0
      %6910 = vmatpush.msra.mxu0 0.0
      %6911 = vmatpush.msra.mxu0 0.0
      %6912 = vmatpush.msra.mxu0 0.0
      %6913 = vmatpush.msra.mxu0 0.0
      %6914 = vmatpush.msra.mxu0 0.0
      %6915 = vmatpush.msra.mxu0 0.0
      %6916 = vmatpush.msra.mxu0 0.0
      %6917 = vmatpush.msra.mxu0 0.0
      %6918 = vmatpush.msra.mxu0 0.0
      %6919 = vmatpush.msra.mxu0 0.0
      %v6920 = vand.u32 %v6798, 4294901760
      %v6921 = vsub.f32 %v6798, %v6920
      %v6922 = vand.u32 %v6921, 4294901760
      %6923 = vmatpush.msra.mxu0 %v6922
      %v6924 = vand.u32 %v6803, 4294901760
      %6925 = vmatmul.f32.gmra.mxu0 %v6924
      %v6926 = vpop.f32.mrf.mxu0
      %v6927 = vadd.f32 %v6903, %v6926
      %6928 = vdwg.mxu0
      %6929 = vmatpush.msra.mxu0 0.0
      %6930 = vmatpush.msra.mxu0 0.0
      %6931 = vmatpush.msra.mxu0 0.0
      %6932 = vmatpush.msra.mxu0 0.0
      %6933 = vmatpush.msra.mxu0 0.0
      %6934 = vmatpush.msra.mxu0 0.0
      %6935 = vmatpush.msra.mxu0 0.0
      %6936 = vmatpush.msra.mxu0 0.0
      %6937 = vmatpush.msra.mxu0 0.0
      %6938 = vmatpush.msra.mxu0 0.0
      %6939 = vmatpush.msra.mxu0 0.0
      %6940 = vmatpush.msra.mxu0 0.0
      %6941 = vmatpush.msra.mxu0 0.0
      %6942 = vmatpush.msra.mxu0 0.0
      %6943 = vmatpush.msra.mxu0 0.0
      %v6944 = vand.u32 %v6798, 4294901760
      %6945 = vmatpush.msra.mxu0 %v6944
      %v6946 = vand.u32 %v6803, 4294901760
      %6947 = vmatmul.f32.gmra.mxu0 %v6946
      %v6948 = vpop.f32.mrf.mxu0
      %v6949 = vadd.f32 %v6927, %v6948
      %6950 = vdwg.mxu0
      %6951 = vmatpush.msra.mxu0 0.0
      %6952 = vmatpush.msra.mxu0 0.0
      %6953 = vmatpush.msra.mxu0 0.0
      %6954 = vmatpush.msra.mxu0 0.0
      %6955 = vmatpush.msra.mxu0 0.0
      %6956 = vmatpush.msra.mxu0 0.0
      %6957 = vmatpush.msra.mxu0 0.0
      %6958 = vmatpush.msra.mxu0 0.0
      %6959 = vmatpush.msra.mxu0 0.0
      %6960 = vmatpush.msra.mxu0 0.0
      %6961 = vmatpush.msra.mxu0 0.0
      %6962 = vmatpush.msra.mxu0 0.0
      %6963 = vmatpush.msra.mxu0 0.0
      %6964 = vmatpush.msra.mxu0 0.0
      %6965 = vmatpush.msra.mxu0 0.0
      %v6966 = vand.u32 %v6799, 4294901760
      %6967 = vmatpush.msra.mxu0 %v6966
      %v6968 = vand.u32 %v6803, 4294901760
      %v6969 = vsub.f32 %v6803, %v6968
      %v6970 = vand.u32 %v6969, 4294901760
      %v6971 = vsub.f32 %v6969, %v6970
      %v6972 = vand.u32 %v6971, 4294901760
      %6973 = vmatmul.f32.gmra.mxu0 %v6972
      %v6974 = vpop.f32.mrf.mxu0
      %v6975 = vadd.f32 0.0, %v6974
      %6976 = vdwg.mxu0
      %6977 = vmatpush.msra.mxu0 0.0
      %6978 = vmatpush.msra.mxu0 0.0
      %6979 = vmatpush.msra.mxu0 0.0
      %6980 = vmatpush.msra.mxu0 0.0
      %6981 = vmatpush.msra.mxu0 0.0
      %6982 = vmatpush.msra.mxu0 0.0
      %6983 = vmatpush.msra.mxu0 0.0
      %6984 = vmatpush.msra.mxu0 0.0
      %6985 = vmatpush.msra.mxu0 0.0
      %6986 = vmatpush.msra.mxu0 0.0
      %6987 = vmatpush.msra.mxu0 0.0
      %6988 = vmatpush.msra.mxu0 0.0
      %6989 = vmatpush.msra.mxu0 0.0
      %6990 = vmatpush.msra.mxu0 0.0
      %6991 = vmatpush.msra.mxu0 0.0
      %v6992 = vand.u32 %v6799, 4294901760
      %v6993 = vsub.f32 %v6799, %v6992
      %v6994 = vand.u32 %v6993, 4294901760
      %v6995 = vsub.f32 %v6993, %v6994
      %v6996 = vand.u32 %v6995, 4294901760
      %6997 = vmatpush.msra.mxu0 %v6996
      %v6998 = vand.u32 %v6803, 4294901760
      %6999 = vmatmul.f32.gmra.mxu0 %v6998
      %v7000 = vpop.f32.mrf.mxu0
      %v7001 = vadd.f32 %v6975, %v7000
      %7002 = vdwg.mxu0
      %7003 = vmatpush.msra.mxu0 0.0
      %7004 = vmatpush.msra.mxu0 0.0
      %7005 = vmatpush.msra.mxu0 0.0
      %7006 = vmatpush.msra.mxu0 0.0
      %7007 = vmatpush.msra.mxu0 0.0
      %7008 = vmatpush.msra.mxu0 0.0
      %7009 = vmatpush.msra.mxu0 0.0
      %7010 = vmatpush.msra.mxu0 0.0
      %7011 = vmatpush.msra.mxu0 0.0
      %7012 = vmatpush.msra.mxu0 0.0
      %7013 = vmatpush.msra.mxu0 0.0
      %7014 = vmatpush.msra.mxu0 0.0
      %7015 = vmatpush.msra.mxu0 0.0
      %7016 = vmatpush.msra.mxu0 0.0
      %7017 = vmatpush.msra.mxu0 0.0
      %v7018 = vand.u32 %v6799, 4294901760
      %v7019 = vsub.f32 %v6799, %v7018
      %7020 = vmatpush.msra.mxu0 %v7019
      %v7021 = vand.u32 %v6803, 4294901760
      %v7022 = vsub.f32 %v6803, %v7021
      %7023 = vmatmul.f32.gmra.mxu0 %v7022
      %v7024 = vpop.f32.mrf.mxu0
      %v7025 = vadd.f32 %v7001, %v7024
      %7026 = vdwg.mxu0
      %7027 = vmatpush.msra.mxu0 0.0
      %7028 = vmatpush.msra.mxu0 0.0
      %7029 = vmatpush.msra.mxu0 0.0
      %7030 = vmatpush.msra.mxu0 0.0
      %7031 = vmatpush.msra.mxu0 0.0
      %7032 = vmatpush.msra.mxu0 0.0
      %7033 = vmatpush.msra.mxu0 0.0
      %7034 = vmatpush.msra.mxu0 0.0
      %7035 = vmatpush.msra.mxu0 0.0
      %7036 = vmatpush.msra.mxu0 0.0
      %7037 = vmatpush.msra.mxu0 0.0
      %7038 = vmatpush.msra.mxu0 0.0
      %7039 = vmatpush.msra.mxu0 0.0
      %7040 = vmatpush.msra.mxu0 0.0
      %7041 = vmatpush.msra.mxu0 0.0
      %v7042 = vand.u32 %v6799, 4294901760
      %7043 = vmatpush.msra.mxu0 %v7042
      %v7044 = vand.u32 %v6803, 4294901760
      %v7045 = vsub.f32 %v6803, %v7044
      %v7046 = vand.u32 %v7045, 4294901760
      %7047 = vmatmul.f32.gmra.mxu0 %v7046
      %v7048 = vpop.f32.mrf.mxu0
      %v7049 = vadd.f32 %v7025, %v7048
      %7050 = vdwg.mxu0
      %7051 = vmatpush.msra.mxu0 0.0
      %7052 = vmatpush.msra.mxu0 0.0
      %7053 = vmatpush.msra.mxu0 0.0
      %7054 = vmatpush.msra.mxu0 0.0
      %7055 = vmatpush.msra.mxu0 0.0
      %7056 = vmatpush.msra.mxu0 0.0
      %7057 = vmatpush.msra.mxu0 0.0
      %7058 = vmatpush.msra.mxu0 0.0
      %7059 = vmatpush.msra.mxu0 0.0
      %7060 = vmatpush.msra.mxu0 0.0
      %7061 = vmatpush.msra.mxu0 0.0
      %7062 = vmatpush.msra.mxu0 0.0
      %7063 = vmatpush.msra.mxu0 0.0
      %7064 = vmatpush.msra.mxu0 0.0
      %7065 = vmatpush.msra.mxu0 0.0
      %v7066 = vand.u32 %v6799, 4294901760
      %v7067 = vsub.f32 %v6799, %v7066
      %v7068 = vand.u32 %v7067, 4294901760
      %7069 = vmatpush.msra.mxu0 %v7068
      %v7070 = vand.u32 %v6803, 4294901760
      %7071 = vmatmul.f32.gmra.mxu0 %v7070
      %v7072 = vpop.f32.mrf.mxu0
      %v7073 = vadd.f32 %v7049, %v7072
      %7074 = vdwg.mxu0
      %7075 = vmatpush.msra.mxu0 0.0
      %7076 = vmatpush.msra.mxu0 0.0
      %7077 = vmatpush.msra.mxu0 0.0
      %7078 = vmatpush.msra.mxu0 0.0
      %7079 = vmatpush.msra.mxu0 0.0
      %7080 = vmatpush.msra.mxu0 0.0
      %7081 = vmatpush.msra.mxu0 0.0
      %7082 = vmatpush.msra.mxu0 0.0
      %7083 = vmatpush.msra.mxu0 0.0
      %7084 = vmatpush.msra.mxu0 0.0
      %7085 = vmatpush.msra.mxu0 0.0
      %7086 = vmatpush.msra.mxu0 0.0
      %7087 = vmatpush.msra.mxu0 0.0
      %7088 = vmatpush.msra.mxu0 0.0
      %7089 = vmatpush.msra.mxu0 0.0
      %v7090 = vand.u32 %v6799, 4294901760
      %7091 = vmatpush.msra.mxu0 %v7090
      %v7092 = vand.u32 %v6803, 4294901760
      %7093 = vmatmul.f32.gmra.mxu0 %v7092
      %v7094 = vpop.f32.mrf.mxu0
      %v7095 = vadd.f32 %v7073, %v7094
      %7096 = vdwg.mxu0
      %v7097 = vadd.f32 %v6789, %v6949
      %v7098 = vadd.f32 %v6790, %v7095
      %v7099 = vld [vmem:[#allocation2 + $0x8] sm:$0xff]
      %v7100 = vld [vmem:[#allocation2 + $0x10] sm:$0xff]
      %v7101 = vld [vmem:[#allocation2 + $0x18] sm:$0xff]
      %s7102 = scalar_lea.vmem %s9, 4
      %v7103 = vld [vmem:[%s7102] ss:$8 sm:$0x3]
      %v7105 = vperm.slane %v7103, 0
      %v7106 = vperm.slane %v7103, 1
      %7107 = vrot.lane.b32.xlu0 %v7105, 1
      %v7108 = vpop.permute.xlu0 %7107
      %7109 = vrot.lane.b32.xlu0 %v7106, 1
      %v7110 = vpop.permute.xlu0 %7109
      %v7111 = vsel %vm6489, %v7108, %v7110
      %v7115 = vmul.f32 %v7099, %v7108
      %v7116 = vmul.f32 %v7100, %v7111
      %v7117 = vmul.f32 %v7101, %v7110
      %s7118 = scalar_lea.vmem %s2, 32
      %v7119 = vld [vmem:[%s7118] sm:$0xff]
      %7123 = vrot.lane.b32.xlu0 %v7115, 127
      %v7124 = vpop.permute.xlu0 %7123
      %7125 = vrot.lane.b32.xlu0 %v7116, 127
      %v7126 = vpop.permute.xlu0 %7125
      %7127 = vrot.lane.b32.xlu0 %v7117, 127
      %v7128 = vpop.permute.xlu0 %7127
      %v7129 = vsel %vm3040, %v7124, %v7126
      %v7130 = vsel %vm3040, %v7126, %v7128
      %v7134 = vsel %vm412, %v7119, 0
      %7136 = vmatpush.msra.mxu0 0.0
      %7137 = vmatpush.msra.mxu0 0.0
      %7138 = vmatpush.msra.mxu0 0.0
      %7139 = vmatpush.msra.mxu0 0.0
      %7140 = vmatpush.msra.mxu0 0.0
      %7141 = vmatpush.msra.mxu0 0.0
      %7142 = vmatpush.msra.mxu0 0.0
      %7143 = vmatpush.msra.mxu0 0.0
      %7144 = vmatpush.msra.mxu0 0.0
      %7145 = vmatpush.msra.mxu0 0.0
      %7146 = vmatpush.msra.mxu0 0.0
      %7147 = vmatpush.msra.mxu0 0.0
      %7148 = vmatpush.msra.mxu0 0.0
      %7149 = vmatpush.msra.mxu0 0.0
      %7150 = vmatpush.msra.mxu0 0.0
      %v7151 = vand.u32 %v7129, 4294901760
      %7152 = vmatpush.msra.mxu0 %v7151
      %v7153 = vand.u32 %v7134, 4294901760
      %v7154 = vsub.f32 %v7134, %v7153
      %v7155 = vand.u32 %v7154, 4294901760
      %v7156 = vsub.f32 %v7154, %v7155
      %v7157 = vand.u32 %v7156, 4294901760
      %7158 = vmatmul.f32.gmra.mxu0 %v7157
      %v7159 = vpop.f32.mrf.mxu0
      %v7160 = vadd.f32 0.0, %v7159
      %7161 = vdwg.mxu0
      %7162 = vmatpush.msra.mxu0 0.0
      %7163 = vmatpush.msra.mxu0 0.0
      %7164 = vmatpush.msra.mxu0 0.0
      %7165 = vmatpush.msra.mxu0 0.0
      %7166 = vmatpush.msra.mxu0 0.0
      %7167 = vmatpush.msra.mxu0 0.0
      %7168 = vmatpush.msra.mxu0 0.0
      %7169 = vmatpush.msra.mxu0 0.0
      %7170 = vmatpush.msra.mxu0 0.0
      %7171 = vmatpush.msra.mxu0 0.0
      %7172 = vmatpush.msra.mxu0 0.0
      %7173 = vmatpush.msra.mxu0 0.0
      %7174 = vmatpush.msra.mxu0 0.0
      %7175 = vmatpush.msra.mxu0 0.0
      %7176 = vmatpush.msra.mxu0 0.0
      %v7177 = vand.u32 %v7129, 4294901760
      %v7178 = vsub.f32 %v7129, %v7177
      %v7179 = vand.u32 %v7178, 4294901760
      %v7180 = vsub.f32 %v7178, %v7179
      %v7181 = vand.u32 %v7180, 4294901760
      %7182 = vmatpush.msra.mxu0 %v7181
      %v7183 = vand.u32 %v7134, 4294901760
      %7184 = vmatmul.f32.gmra.mxu0 %v7183
      %v7185 = vpop.f32.mrf.mxu0
      %v7186 = vadd.f32 %v7160, %v7185
      %7187 = vdwg.mxu0
      %7188 = vmatpush.msra.mxu0 0.0
      %7189 = vmatpush.msra.mxu0 0.0
      %7190 = vmatpush.msra.mxu0 0.0
      %7191 = vmatpush.msra.mxu0 0.0
      %7192 = vmatpush.msra.mxu0 0.0
      %7193 = vmatpush.msra.mxu0 0.0
      %7194 = vmatpush.msra.mxu0 0.0
      %7195 = vmatpush.msra.mxu0 0.0
      %7196 = vmatpush.msra.mxu0 0.0
      %7197 = vmatpush.msra.mxu0 0.0
      %7198 = vmatpush.msra.mxu0 0.0
      %7199 = vmatpush.msra.mxu0 0.0
      %7200 = vmatpush.msra.mxu0 0.0
      %7201 = vmatpush.msra.mxu0 0.0
      %7202 = vmatpush.msra.mxu0 0.0
      %v7203 = vand.u32 %v7129, 4294901760
      %v7204 = vsub.f32 %v7129, %v7203
      %7205 = vmatpush.msra.mxu0 %v7204
      %v7206 = vand.u32 %v7134, 4294901760
      %v7207 = vsub.f32 %v7134, %v7206
      %7208 = vmatmul.f32.gmra.mxu0 %v7207
      %v7209 = vpop.f32.mrf.mxu0
      %v7210 = vadd.f32 %v7186, %v7209
      %7211 = vdwg.mxu0
      %7212 = vmatpush.msra.mxu0 0.0
      %7213 = vmatpush.msra.mxu0 0.0
      %7214 = vmatpush.msra.mxu0 0.0
      %7215 = vmatpush.msra.mxu0 0.0
      %7216 = vmatpush.msra.mxu0 0.0
      %7217 = vmatpush.msra.mxu0 0.0
      %7218 = vmatpush.msra.mxu0 0.0
      %7219 = vmatpush.msra.mxu0 0.0
      %7220 = vmatpush.msra.mxu0 0.0
      %7221 = vmatpush.msra.mxu0 0.0
      %7222 = vmatpush.msra.mxu0 0.0
      %7223 = vmatpush.msra.mxu0 0.0
      %7224 = vmatpush.msra.mxu0 0.0
      %7225 = vmatpush.msra.mxu0 0.0
      %7226 = vmatpush.msra.mxu0 0.0
      %v7227 = vand.u32 %v7129, 4294901760
      %7228 = vmatpush.msra.mxu0 %v7227
      %v7229 = vand.u32 %v7134, 4294901760
      %v7230 = vsub.f32 %v7134, %v7229
      %v7231 = vand.u32 %v7230, 4294901760
      %7232 = vmatmul.f32.gmra.mxu0 %v7231
      %v7233 = vpop.f32.mrf.mxu0
      %v7234 = vadd.f32 %v7210, %v7233
      %7235 = vdwg.mxu0
      %7236 = vmatpush.msra.mxu0 0.0
      %7237 = vmatpush.msra.mxu0 0.0
      %7238 = vmatpush.msra.mxu0 0.0
      %7239 = vmatpush.msra.mxu0 0.0
      %7240 = vmatpush.msra.mxu0 0.0
      %7241 = vmatpush.msra.mxu0 0.0
      %7242 = vmatpush.msra.mxu0 0.0
      %7243 = vmatpush.msra.mxu0 0.0
      %7244 = vmatpush.msra.mxu0 0.0
      %7245 = vmatpush.msra.mxu0 0.0
      %7246 = vmatpush.msra.mxu0 0.0
      %7247 = vmatpush.msra.mxu0 0.0
      %7248 = vmatpush.msra.mxu0 0.0
      %7249 = vmatpush.msra.mxu0 0.0
      %7250 = vmatpush.msra.mxu0 0.0
      %v7251 = vand.u32 %v7129, 4294901760
      %v7252 = vsub.f32 %v7129, %v7251
      %v7253 = vand.u32 %v7252, 4294901760
      %7254 = vmatpush.msra.mxu0 %v7253
      %v7255 = vand.u32 %v7134, 4294901760
      %7256 = vmatmul.f32.gmra.mxu0 %v7255
      %v7257 = vpop.f32.mrf.mxu0
      %v7258 = vadd.f32 %v7234, %v7257
      %7259 = vdwg.mxu0
      %7260 = vmatpush.msra.mxu0 0.0
      %7261 = vmatpush.msra.mxu0 0.0
      %7262 = vmatpush.msra.mxu0 0.0
      %7263 = vmatpush.msra.mxu0 0.0
      %7264 = vmatpush.msra.mxu0 0.0
      %7265 = vmatpush.msra.mxu0 0.0
      %7266 = vmatpush.msra.mxu0 0.0
      %7267 = vmatpush.msra.mxu0 0.0
      %7268 = vmatpush.msra.mxu0 0.0
      %7269 = vmatpush.msra.mxu0 0.0
      %7270 = vmatpush.msra.mxu0 0.0
      %7271 = vmatpush.msra.mxu0 0.0
      %7272 = vmatpush.msra.mxu0 0.0
      %7273 = vmatpush.msra.mxu0 0.0
      %7274 = vmatpush.msra.mxu0 0.0
      %v7275 = vand.u32 %v7129, 4294901760
      %7276 = vmatpush.msra.mxu0 %v7275
      %v7277 = vand.u32 %v7134, 4294901760
      %7278 = vmatmul.f32.gmra.mxu0 %v7277
      %v7279 = vpop.f32.mrf.mxu0
      %v7280 = vadd.f32 %v7258, %v7279
      %7281 = vdwg.mxu0
      %7282 = vmatpush.msra.mxu0 0.0
      %7283 = vmatpush.msra.mxu0 0.0
      %7284 = vmatpush.msra.mxu0 0.0
      %7285 = vmatpush.msra.mxu0 0.0
      %7286 = vmatpush.msra.mxu0 0.0
      %7287 = vmatpush.msra.mxu0 0.0
      %7288 = vmatpush.msra.mxu0 0.0
      %7289 = vmatpush.msra.mxu0 0.0
      %7290 = vmatpush.msra.mxu0 0.0
      %7291 = vmatpush.msra.mxu0 0.0
      %7292 = vmatpush.msra.mxu0 0.0
      %7293 = vmatpush.msra.mxu0 0.0
      %7294 = vmatpush.msra.mxu0 0.0
      %7295 = vmatpush.msra.mxu0 0.0
      %7296 = vmatpush.msra.mxu0 0.0
      %v7297 = vand.u32 %v7130, 4294901760
      %7298 = vmatpush.msra.mxu0 %v7297
      %v7299 = vand.u32 %v7134, 4294901760
      %v7300 = vsub.f32 %v7134, %v7299
      %v7301 = vand.u32 %v7300, 4294901760
      %v7302 = vsub.f32 %v7300, %v7301
      %v7303 = vand.u32 %v7302, 4294901760
      %7304 = vmatmul.f32.gmra.mxu0 %v7303
      %v7305 = vpop.f32.mrf.mxu0
      %v7306 = vadd.f32 0.0, %v7305
      %7307 = vdwg.mxu0
      %7308 = vmatpush.msra.mxu0 0.0
      %7309 = vmatpush.msra.mxu0 0.0
      %7310 = vmatpush.msra.mxu0 0.0
      %7311 = vmatpush.msra.mxu0 0.0
      %7312 = vmatpush.msra.mxu0 0.0
      %7313 = vmatpush.msra.mxu0 0.0
      %7314 = vmatpush.msra.mxu0 0.0
      %7315 = vmatpush.msra.mxu0 0.0
      %7316 = vmatpush.msra.mxu0 0.0
      %7317 = vmatpush.msra.mxu0 0.0
      %7318 = vmatpush.msra.mxu0 0.0
      %7319 = vmatpush.msra.mxu0 0.0
      %7320 = vmatpush.msra.mxu0 0.0
      %7321 = vmatpush.msra.mxu0 0.0
      %7322 = vmatpush.msra.mxu0 0.0
      %v7323 = vand.u32 %v7130, 4294901760
      %v7324 = vsub.f32 %v7130, %v7323
      %v7325 = vand.u32 %v7324, 4294901760
      %v7326 = vsub.f32 %v7324, %v7325
      %v7327 = vand.u32 %v7326, 4294901760
      %7328 = vmatpush.msra.mxu0 %v7327
      %v7329 = vand.u32 %v7134, 4294901760
      %7330 = vmatmul.f32.gmra.mxu0 %v7329
      %v7331 = vpop.f32.mrf.mxu0
      %v7332 = vadd.f32 %v7306, %v7331
      %7333 = vdwg.mxu0
      %7334 = vmatpush.msra.mxu0 0.0
      %7335 = vmatpush.msra.mxu0 0.0
      %7336 = vmatpush.msra.mxu0 0.0
      %7337 = vmatpush.msra.mxu0 0.0
      %7338 = vmatpush.msra.mxu0 0.0
      %7339 = vmatpush.msra.mxu0 0.0
      %7340 = vmatpush.msra.mxu0 0.0
      %7341 = vmatpush.msra.mxu0 0.0
      %7342 = vmatpush.msra.mxu0 0.0
      %7343 = vmatpush.msra.mxu0 0.0
      %7344 = vmatpush.msra.mxu0 0.0
      %7345 = vmatpush.msra.mxu0 0.0
      %7346 = vmatpush.msra.mxu0 0.0
      %7347 = vmatpush.msra.mxu0 0.0
      %7348 = vmatpush.msra.mxu0 0.0
      %v7349 = vand.u32 %v7130, 4294901760
      %v7350 = vsub.f32 %v7130, %v7349
      %7351 = vmatpush.msra.mxu0 %v7350
      %v7352 = vand.u32 %v7134, 4294901760
      %v7353 = vsub.f32 %v7134, %v7352
      %7354 = vmatmul.f32.gmra.mxu0 %v7353
      %v7355 = vpop.f32.mrf.mxu0
      %v7356 = vadd.f32 %v7332, %v7355
      %7357 = vdwg.mxu0
      %7358 = vmatpush.msra.mxu0 0.0
      %7359 = vmatpush.msra.mxu0 0.0
      %7360 = vmatpush.msra.mxu0 0.0
      %7361 = vmatpush.msra.mxu0 0.0
      %7362 = vmatpush.msra.mxu0 0.0
      %7363 = vmatpush.msra.mxu0 0.0
      %7364 = vmatpush.msra.mxu0 0.0
      %7365 = vmatpush.msra.mxu0 0.0
      %7366 = vmatpush.msra.mxu0 0.0
      %7367 = vmatpush.msra.mxu0 0.0
      %7368 = vmatpush.msra.mxu0 0.0
      %7369 = vmatpush.msra.mxu0 0.0
      %7370 = vmatpush.msra.mxu0 0.0
      %7371 = vmatpush.msra.mxu0 0.0
      %7372 = vmatpush.msra.mxu0 0.0
      %v7373 = vand.u32 %v7130, 4294901760
      %7374 = vmatpush.msra.mxu0 %v7373
      %v7375 = vand.u32 %v7134, 4294901760
      %v7376 = vsub.f32 %v7134, %v7375
      %v7377 = vand.u32 %v7376, 4294901760
      %7378 = vmatmul.f32.gmra.mxu0 %v7377
      %v7379 = vpop.f32.mrf.mxu0
      %v7380 = vadd.f32 %v7356, %v7379
      %7381 = vdwg.mxu0
      %7382 = vmatpush.msra.mxu0 0.0
      %7383 = vmatpush.msra.mxu0 0.0
      %7384 = vmatpush.msra.mxu0 0.0
      %7385 = vmatpush.msra.mxu0 0.0
      %7386 = vmatpush.msra.mxu0 0.0
      %7387 = vmatpush.msra.mxu0 0.0
      %7388 = vmatpush.msra.mxu0 0.0
      %7389 = vmatpush.msra.mxu0 0.0
      %7390 = vmatpush.msra.mxu0 0.0
      %7391 = vmatpush.msra.mxu0 0.0
      %7392 = vmatpush.msra.mxu0 0.0
      %7393 = vmatpush.msra.mxu0 0.0
      %7394 = vmatpush.msra.mxu0 0.0
      %7395 = vmatpush.msra.mxu0 0.0
      %7396 = vmatpush.msra.mxu0 0.0
      %v7397 = vand.u32 %v7130, 4294901760
      %v7398 = vsub.f32 %v7130, %v7397
      %v7399 = vand.u32 %v7398, 4294901760
      %7400 = vmatpush.msra.mxu0 %v7399
      %v7401 = vand.u32 %v7134, 4294901760
      %7402 = vmatmul.f32.gmra.mxu0 %v7401
      %v7403 = vpop.f32.mrf.mxu0
      %v7404 = vadd.f32 %v7380, %v7403
      %7405 = vdwg.mxu0
      %7406 = vmatpush.msra.mxu0 0.0
      %7407 = vmatpush.msra.mxu0 0.0
      %7408 = vmatpush.msra.mxu0 0.0
      %7409 = vmatpush.msra.mxu0 0.0
      %7410 = vmatpush.msra.mxu0 0.0
      %7411 = vmatpush.msra.mxu0 0.0
      %7412 = vmatpush.msra.mxu0 0.0
      %7413 = vmatpush.msra.mxu0 0.0
      %7414 = vmatpush.msra.mxu0 0.0
      %7415 = vmatpush.msra.mxu0 0.0
      %7416 = vmatpush.msra.mxu0 0.0
      %7417 = vmatpush.msra.mxu0 0.0
      %7418 = vmatpush.msra.mxu0 0.0
      %7419 = vmatpush.msra.mxu0 0.0
      %7420 = vmatpush.msra.mxu0 0.0
      %v7421 = vand.u32 %v7130, 4294901760
      %7422 = vmatpush.msra.mxu0 %v7421
      %v7423 = vand.u32 %v7134, 4294901760
      %7424 = vmatmul.f32.gmra.mxu0 %v7423
      %v7425 = vpop.f32.mrf.mxu0
      %v7426 = vadd.f32 %v7404, %v7425
      %7427 = vdwg.mxu0
      %v7428 = vadd.f32 %v7097, %v7280
      %v7429 = vadd.f32 %v7098, %v7426
      %s7430 = scalar_lea.vmem %s9, 5
      %v7431 = vld [vmem:[%s7430] ss:$8 sm:$0x3]
      %v7433 = vperm.slane %v7431, 0
      %v7434 = vperm.slane %v7431, 1
      %7435 = vrot.lane.b32.xlu0 %v7433, 2
      %v7436 = vpop.permute.xlu0 %7435
      %7437 = vrot.lane.b32.xlu0 %v7434, 2
      %v7438 = vpop.permute.xlu0 %7437
      %v7439 = vsel %vm6160, %v7436, %v7438
      %v7443 = vmul.f32 %v7099, %v7436
      %v7444 = vmul.f32 %v7100, %v7439
      %v7445 = vmul.f32 %v7101, %v7438
      %s7446 = scalar_lea.vmem %s2, 40
      %v7447 = vld [vmem:[%s7446] sm:$0xff]
      %7451 = vrot.lane.b32.xlu0 %v7443, 126
      %v7452 = vpop.permute.xlu0 %7451
      %7453 = vrot.lane.b32.xlu0 %v7444, 126
      %v7454 = vpop.permute.xlu0 %7453
      %7455 = vrot.lane.b32.xlu0 %v7445, 126
      %v7456 = vpop.permute.xlu0 %7455
      %v7457 = vsel %vm3498, %v7452, %v7454
      %v7458 = vsel %vm3498, %v7454, %v7456
      %v7462 = vsel %vm412, %v7447, 0
      %7464 = vmatpush.msra.mxu0 0.0
      %7465 = vmatpush.msra.mxu0 0.0
      %7466 = vmatpush.msra.mxu0 0.0
      %7467 = vmatpush.msra.mxu0 0.0
      %7468 = vmatpush.msra.mxu0 0.0
      %7469 = vmatpush.msra.mxu0 0.0
      %7470 = vmatpush.msra.mxu0 0.0
      %7471 = vmatpush.msra.mxu0 0.0
      %7472 = vmatpush.msra.mxu0 0.0
      %7473 = vmatpush.msra.mxu0 0.0
      %7474 = vmatpush.msra.mxu0 0.0
      %7475 = vmatpush.msra.mxu0 0.0
      %7476 = vmatpush.msra.mxu0 0.0
      %7477 = vmatpush.msra.mxu0 0.0
      %7478 = vmatpush.msra.mxu0 0.0
      %v7479 = vand.u32 %v7457, 4294901760
      %7480 = vmatpush.msra.mxu0 %v7479
      %v7481 = vand.u32 %v7462, 4294901760
      %v7482 = vsub.f32 %v7462, %v7481
      %v7483 = vand.u32 %v7482, 4294901760
      %v7484 = vsub.f32 %v7482, %v7483
      %v7485 = vand.u32 %v7484, 4294901760
      %7486 = vmatmul.f32.gmra.mxu0 %v7485
      %v7487 = vpop.f32.mrf.mxu0
      %v7488 = vadd.f32 0.0, %v7487
      %7489 = vdwg.mxu0
      %7490 = vmatpush.msra.mxu0 0.0
      %7491 = vmatpush.msra.mxu0 0.0
      %7492 = vmatpush.msra.mxu0 0.0
      %7493 = vmatpush.msra.mxu0 0.0
      %7494 = vmatpush.msra.mxu0 0.0
      %7495 = vmatpush.msra.mxu0 0.0
      %7496 = vmatpush.msra.mxu0 0.0
      %7497 = vmatpush.msra.mxu0 0.0
      %7498 = vmatpush.msra.mxu0 0.0
      %7499 = vmatpush.msra.mxu0 0.0
      %7500 = vmatpush.msra.mxu0 0.0
      %7501 = vmatpush.msra.mxu0 0.0
      %7502 = vmatpush.msra.mxu0 0.0
      %7503 = vmatpush.msra.mxu0 0.0
      %7504 = vmatpush.msra.mxu0 0.0
      %v7505 = vand.u32 %v7457, 4294901760
      %v7506 = vsub.f32 %v7457, %v7505
      %v7507 = vand.u32 %v7506, 4294901760
      %v7508 = vsub.f32 %v7506, %v7507
      %v7509 = vand.u32 %v7508, 4294901760
      %7510 = vmatpush.msra.mxu0 %v7509
      %v7511 = vand.u32 %v7462, 4294901760
      %7512 = vmatmul.f32.gmra.mxu0 %v7511
      %v7513 = vpop.f32.mrf.mxu0
      %v7514 = vadd.f32 %v7488, %v7513
      %7515 = vdwg.mxu0
      %7516 = vmatpush.msra.mxu0 0.0
      %7517 = vmatpush.msra.mxu0 0.0
      %7518 = vmatpush.msra.mxu0 0.0
      %7519 = vmatpush.msra.mxu0 0.0
      %7520 = vmatpush.msra.mxu0 0.0
      %7521 = vmatpush.msra.mxu0 0.0
      %7522 = vmatpush.msra.mxu0 0.0
      %7523 = vmatpush.msra.mxu0 0.0
      %7524 = vmatpush.msra.mxu0 0.0
      %7525 = vmatpush.msra.mxu0 0.0
      %7526 = vmatpush.msra.mxu0 0.0
      %7527 = vmatpush.msra.mxu0 0.0
      %7528 = vmatpush.msra.mxu0 0.0
      %7529 = vmatpush.msra.mxu0 0.0
      %7530 = vmatpush.msra.mxu0 0.0
      %v7531 = vand.u32 %v7457, 4294901760
      %v7532 = vsub.f32 %v7457, %v7531
      %7533 = vmatpush.msra.mxu0 %v7532
      %v7534 = vand.u32 %v7462, 4294901760
      %v7535 = vsub.f32 %v7462, %v7534
      %7536 = vmatmul.f32.gmra.mxu0 %v7535
      %v7537 = vpop.f32.mrf.mxu0
      %v7538 = vadd.f32 %v7514, %v7537
      %7539 = vdwg.mxu0
      %7540 = vmatpush.msra.mxu0 0.0
      %7541 = vmatpush.msra.mxu0 0.0
      %7542 = vmatpush.msra.mxu0 0.0
      %7543 = vmatpush.msra.mxu0 0.0
      %7544 = vmatpush.msra.mxu0 0.0
      %7545 = vmatpush.msra.mxu0 0.0
      %7546 = vmatpush.msra.mxu0 0.0
      %7547 = vmatpush.msra.mxu0 0.0
      %7548 = vmatpush.msra.mxu0 0.0
      %7549 = vmatpush.msra.mxu0 0.0
      %7550 = vmatpush.msra.mxu0 0.0
      %7551 = vmatpush.msra.mxu0 0.0
      %7552 = vmatpush.msra.mxu0 0.0
      %7553 = vmatpush.msra.mxu0 0.0
      %7554 = vmatpush.msra.mxu0 0.0
      %v7555 = vand.u32 %v7457, 4294901760
      %7556 = vmatpush.msra.mxu0 %v7555
      %v7557 = vand.u32 %v7462, 4294901760
      %v7558 = vsub.f32 %v7462, %v7557
      %v7559 = vand.u32 %v7558, 4294901760
      %7560 = vmatmul.f32.gmra.mxu0 %v7559
      %v7561 = vpop.f32.mrf.mxu0
      %v7562 = vadd.f32 %v7538, %v7561
      %7563 = vdwg.mxu0
      %7564 = vmatpush.msra.mxu0 0.0
      %7565 = vmatpush.msra.mxu0 0.0
      %7566 = vmatpush.msra.mxu0 0.0
      %7567 = vmatpush.msra.mxu0 0.0
      %7568 = vmatpush.msra.mxu0 0.0
      %7569 = vmatpush.msra.mxu0 0.0
      %7570 = vmatpush.msra.mxu0 0.0
      %7571 = vmatpush.msra.mxu0 0.0
      %7572 = vmatpush.msra.mxu0 0.0
      %7573 = vmatpush.msra.mxu0 0.0
      %7574 = vmatpush.msra.mxu0 0.0
      %7575 = vmatpush.msra.mxu0 0.0
      %7576 = vmatpush.msra.mxu0 0.0
      %7577 = vmatpush.msra.mxu0 0.0
      %7578 = vmatpush.msra.mxu0 0.0
      %v7579 = vand.u32 %v7457, 4294901760
      %v7580 = vsub.f32 %v7457, %v7579
      %v7581 = vand.u32 %v7580, 4294901760
      %7582 = vmatpush.msra.mxu0 %v7581
      %v7583 = vand.u32 %v7462, 4294901760
      %7584 = vmatmul.f32.gmra.mxu0 %v7583
      %v7585 = vpop.f32.mrf.mxu0
      %v7586 = vadd.f32 %v7562, %v7585
      %7587 = vdwg.mxu0
      %7588 = vmatpush.msra.mxu0 0.0
      %7589 = vmatpush.msra.mxu0 0.0
      %7590 = vmatpush.msra.mxu0 0.0
      %7591 = vmatpush.msra.mxu0 0.0
      %7592 = vmatpush.msra.mxu0 0.0
      %7593 = vmatpush.msra.mxu0 0.0
      %7594 = vmatpush.msra.mxu0 0.0
      %7595 = vmatpush.msra.mxu0 0.0
      %7596 = vmatpush.msra.mxu0 0.0
      %7597 = vmatpush.msra.mxu0 0.0
      %7598 = vmatpush.msra.mxu0 0.0
      %7599 = vmatpush.msra.mxu0 0.0
      %7600 = vmatpush.msra.mxu0 0.0
      %7601 = vmatpush.msra.mxu0 0.0
      %7602 = vmatpush.msra.mxu0 0.0
      %v7603 = vand.u32 %v7457, 4294901760
      %7604 = vmatpush.msra.mxu0 %v7603
      %v7605 = vand.u32 %v7462, 4294901760
      %7606 = vmatmul.f32.gmra.mxu0 %v7605
      %v7607 = vpop.f32.mrf.mxu0
      %v7608 = vadd.f32 %v7586, %v7607
      %7609 = vdwg.mxu0
      %7610 = vmatpush.msra.mxu0 0.0
      %7611 = vmatpush.msra.mxu0 0.0
      %7612 = vmatpush.msra.mxu0 0.0
      %7613 = vmatpush.msra.mxu0 0.0
      %7614 = vmatpush.msra.mxu0 0.0
      %7615 = vmatpush.msra.mxu0 0.0
      %7616 = vmatpush.msra.mxu0 0.0
      %7617 = vmatpush.msra.mxu0 0.0
      %7618 = vmatpush.msra.mxu0 0.0
      %7619 = vmatpush.msra.mxu0 0.0
      %7620 = vmatpush.msra.mxu0 0.0
      %7621 = vmatpush.msra.mxu0 0.0
      %7622 = vmatpush.msra.mxu0 0.0
      %7623 = vmatpush.msra.mxu0 0.0
      %7624 = vmatpush.msra.mxu0 0.0
      %v7625 = vand.u32 %v7458, 4294901760
      %7626 = vmatpush.msra.mxu0 %v7625
      %v7627 = vand.u32 %v7462, 4294901760
      %v7628 = vsub.f32 %v7462, %v7627
      %v7629 = vand.u32 %v7628, 4294901760
      %v7630 = vsub.f32 %v7628, %v7629
      %v7631 = vand.u32 %v7630, 4294901760
      %7632 = vmatmul.f32.gmra.mxu0 %v7631
      %v7633 = vpop.f32.mrf.mxu0
      %v7634 = vadd.f32 0.0, %v7633
      %7635 = vdwg.mxu0
      %7636 = vmatpush.msra.mxu0 0.0
      %7637 = vmatpush.msra.mxu0 0.0
      %7638 = vmatpush.msra.mxu0 0.0
      %7639 = vmatpush.msra.mxu0 0.0
      %7640 = vmatpush.msra.mxu0 0.0
      %7641 = vmatpush.msra.mxu0 0.0
      %7642 = vmatpush.msra.mxu0 0.0
      %7643 = vmatpush.msra.mxu0 0.0
      %7644 = vmatpush.msra.mxu0 0.0
      %7645 = vmatpush.msra.mxu0 0.0
      %7646 = vmatpush.msra.mxu0 0.0
      %7647 = vmatpush.msra.mxu0 0.0
      %7648 = vmatpush.msra.mxu0 0.0
      %7649 = vmatpush.msra.mxu0 0.0
      %7650 = vmatpush.msra.mxu0 0.0
      %v7651 = vand.u32 %v7458, 4294901760
      %v7652 = vsub.f32 %v7458, %v7651
      %v7653 = vand.u32 %v7652, 4294901760
      %v7654 = vsub.f32 %v7652, %v7653
      %v7655 = vand.u32 %v7654, 4294901760
      %7656 = vmatpush.msra.mxu0 %v7655
      %v7657 = vand.u32 %v7462, 4294901760
      %7658 = vmatmul.f32.gmra.mxu0 %v7657
      %v7659 = vpop.f32.mrf.mxu0
      %v7660 = vadd.f32 %v7634, %v7659
      %7661 = vdwg.mxu0
      %7662 = vmatpush.msra.mxu0 0.0
      %7663 = vmatpush.msra.mxu0 0.0
      %7664 = vmatpush.msra.mxu0 0.0
      %7665 = vmatpush.msra.mxu0 0.0
      %7666 = vmatpush.msra.mxu0 0.0
      %7667 = vmatpush.msra.mxu0 0.0
      %7668 = vmatpush.msra.mxu0 0.0
      %7669 = vmatpush.msra.mxu0 0.0
      %7670 = vmatpush.msra.mxu0 0.0
      %7671 = vmatpush.msra.mxu0 0.0
      %7672 = vmatpush.msra.mxu0 0.0
      %7673 = vmatpush.msra.mxu0 0.0
      %7674 = vmatpush.msra.mxu0 0.0
      %7675 = vmatpush.msra.mxu0 0.0
      %7676 = vmatpush.msra.mxu0 0.0
      %v7677 = vand.u32 %v7458, 4294901760
      %v7678 = vsub.f32 %v7458, %v7677
      %7679 = vmatpush.msra.mxu0 %v7678
      %v7680 = vand.u32 %v7462, 4294901760
      %v7681 = vsub.f32 %v7462, %v7680
      %7682 = vmatmul.f32.gmra.mxu0 %v7681
      %v7683 = vpop.f32.mrf.mxu0
      %v7684 = vadd.f32 %v7660, %v7683
      %7685 = vdwg.mxu0
      %7686 = vmatpush.msra.mxu0 0.0
      %7687 = vmatpush.msra.mxu0 0.0
      %7688 = vmatpush.msra.mxu0 0.0
      %7689 = vmatpush.msra.mxu0 0.0
      %7690 = vmatpush.msra.mxu0 0.0
      %7691 = vmatpush.msra.mxu0 0.0
      %7692 = vmatpush.msra.mxu0 0.0
      %7693 = vmatpush.msra.mxu0 0.0
      %7694 = vmatpush.msra.mxu0 0.0
      %7695 = vmatpush.msra.mxu0 0.0
      %7696 = vmatpush.msra.mxu0 0.0
      %7697 = vmatpush.msra.mxu0 0.0
      %7698 = vmatpush.msra.mxu0 0.0
      %7699 = vmatpush.msra.mxu0 0.0
      %7700 = vmatpush.msra.mxu0 0.0
      %v7701 = vand.u32 %v7458, 4294901760
      %7702 = vmatpush.msra.mxu0 %v7701
      %v7703 = vand.u32 %v7462, 4294901760
      %v7704 = vsub.f32 %v7462, %v7703
      %v7705 = vand.u32 %v7704, 4294901760
      %7706 = vmatmul.f32.gmra.mxu0 %v7705
      %v7707 = vpop.f32.mrf.mxu0
      %v7708 = vadd.f32 %v7684, %v7707
      %7709 = vdwg.mxu0
      %7710 = vmatpush.msra.mxu0 0.0
      %7711 = vmatpush.msra.mxu0 0.0
      %7712 = vmatpush.msra.mxu0 0.0
      %7713 = vmatpush.msra.mxu0 0.0
      %7714 = vmatpush.msra.mxu0 0.0
      %7715 = vmatpush.msra.mxu0 0.0
      %7716 = vmatpush.msra.mxu0 0.0
      %7717 = vmatpush.msra.mxu0 0.0
      %7718 = vmatpush.msra.mxu0 0.0
      %7719 = vmatpush.msra.mxu0 0.0
      %7720 = vmatpush.msra.mxu0 0.0
      %7721 = vmatpush.msra.mxu0 0.0
      %7722 = vmatpush.msra.mxu0 0.0
      %7723 = vmatpush.msra.mxu0 0.0
      %7724 = vmatpush.msra.mxu0 0.0
      %v7725 = vand.u32 %v7458, 4294901760
      %v7726 = vsub.f32 %v7458, %v7725
      %v7727 = vand.u32 %v7726, 4294901760
      %7728 = vmatpush.msra.mxu0 %v7727
      %v7729 = vand.u32 %v7462, 4294901760
      %7730 = vmatmul.f32.gmra.mxu0 %v7729
      %v7731 = vpop.f32.mrf.mxu0
      %v7732 = vadd.f32 %v7708, %v7731
      %7733 = vdwg.mxu0
      %7734 = vmatpush.msra.mxu0 0.0
      %7735 = vmatpush.msra.mxu0 0.0
      %7736 = vmatpush.msra.mxu0 0.0
      %7737 = vmatpush.msra.mxu0 0.0
      %7738 = vmatpush.msra.mxu0 0.0
      %7739 = vmatpush.msra.mxu0 0.0
      %7740 = vmatpush.msra.mxu0 0.0
      %7741 = vmatpush.msra.mxu0 0.0
      %7742 = vmatpush.msra.mxu0 0.0
      %7743 = vmatpush.msra.mxu0 0.0
      %7744 = vmatpush.msra.mxu0 0.0
      %7745 = vmatpush.msra.mxu0 0.0
      %7746 = vmatpush.msra.mxu0 0.0
      %7747 = vmatpush.msra.mxu0 0.0
      %7748 = vmatpush.msra.mxu0 0.0
      %v7749 = vand.u32 %v7458, 4294901760
      %7750 = vmatpush.msra.mxu0 %v7749
      %v7751 = vand.u32 %v7462, 4294901760
      %7752 = vmatmul.f32.gmra.mxu0 %v7751
      %v7753 = vpop.f32.mrf.mxu0
      %v7754 = vadd.f32 %v7732, %v7753
      %7755 = vdwg.mxu0
      %v7756 = vadd.f32 %v7428, %v7608
      %v7757 = vadd.f32 %v7429, %v7754
      %s7758 = scalar_lea.vmem %s9, 6
      %v7759 = vld [vmem:[%s7758] ss:$8 sm:$0x3]
      %v7761 = vperm.slane %v7759, 0
      %v7762 = vperm.slane %v7759, 1
      %7763 = vrot.lane.b32.xlu0 %v7761, 3
      %v7764 = vpop.permute.xlu0 %7763
      %7765 = vrot.lane.b32.xlu0 %v7762, 3
      %v7766 = vpop.permute.xlu0 %7765
      %v7767 = vsel %vm5831, %v7764, %v7766
      %v7771 = vmul.f32 %v7099, %v7764
      %v7772 = vmul.f32 %v7100, %v7767
      %v7773 = vmul.f32 %v7101, %v7766
      %s7774 = scalar_lea.vmem %s2, 48
      %v7775 = vld [vmem:[%s7774] sm:$0xff]
      %7779 = vrot.lane.b32.xlu0 %v7771, 125
      %v7780 = vpop.permute.xlu0 %7779
      %7781 = vrot.lane.b32.xlu0 %v7772, 125
      %v7782 = vpop.permute.xlu0 %7781
      %7783 = vrot.lane.b32.xlu0 %v7773, 125
      %v7784 = vpop.permute.xlu0 %7783
      %v7785 = vsel %vm407, %v7780, %v7782
      %v7786 = vsel %vm407, %v7782, %v7784
      %v7790 = vsel %vm412, %v7775, 0
      %7792 = vmatpush.msra.mxu0 0.0
      %7793 = vmatpush.msra.mxu0 0.0
      %7794 = vmatpush.msra.mxu0 0.0
      %7795 = vmatpush.msra.mxu0 0.0
      %7796 = vmatpush.msra.mxu0 0.0
      %7797 = vmatpush.msra.mxu0 0.0
      %7798 = vmatpush.msra.mxu0 0.0
      %7799 = vmatpush.msra.mxu0 0.0
      %7800 = vmatpush.msra.mxu0 0.0
      %7801 = vmatpush.msra.mxu0 0.0
      %7802 = vmatpush.msra.mxu0 0.0
      %7803 = vmatpush.msra.mxu0 0.0
      %7804 = vmatpush.msra.mxu0 0.0
      %7805 = vmatpush.msra.mxu0 0.0
      %7806 = vmatpush.msra.mxu0 0.0
      %v7807 = vand.u32 %v7785, 4294901760
      %7808 = vmatpush.msra.mxu0 %v7807
      %v7809 = vand.u32 %v7790, 4294901760
      %v7810 = vsub.f32 %v7790, %v7809
      %v7811 = vand.u32 %v7810, 4294901760
      %v7812 = vsub.f32 %v7810, %v7811
      %v7813 = vand.u32 %v7812, 4294901760
      %7814 = vmatmul.f32.gmra.mxu0 %v7813
      %v7815 = vpop.f32.mrf.mxu0
      %v7816 = vadd.f32 0.0, %v7815
      %7817 = vdwg.mxu0
      %7818 = vmatpush.msra.mxu0 0.0
      %7819 = vmatpush.msra.mxu0 0.0
      %7820 = vmatpush.msra.mxu0 0.0
      %7821 = vmatpush.msra.mxu0 0.0
      %7822 = vmatpush.msra.mxu0 0.0
      %7823 = vmatpush.msra.mxu0 0.0
      %7824 = vmatpush.msra.mxu0 0.0
      %7825 = vmatpush.msra.mxu0 0.0
      %7826 = vmatpush.msra.mxu0 0.0
      %7827 = vmatpush.msra.mxu0 0.0
      %7828 = vmatpush.msra.mxu0 0.0
      %7829 = vmatpush.msra.mxu0 0.0
      %7830 = vmatpush.msra.mxu0 0.0
      %7831 = vmatpush.msra.mxu0 0.0
      %7832 = vmatpush.msra.mxu0 0.0
      %v7833 = vand.u32 %v7785, 4294901760
      %v7834 = vsub.f32 %v7785, %v7833
      %v7835 = vand.u32 %v7834, 4294901760
      %v7836 = vsub.f32 %v7834, %v7835
      %v7837 = vand.u32 %v7836, 4294901760
      %7838 = vmatpush.msra.mxu0 %v7837
      %v7839 = vand.u32 %v7790, 4294901760
      %7840 = vmatmul.f32.gmra.mxu0 %v7839
      %v7841 = vpop.f32.mrf.mxu0
      %v7842 = vadd.f32 %v7816, %v7841
      %7843 = vdwg.mxu0
      %7844 = vmatpush.msra.mxu0 0.0
      %7845 = vmatpush.msra.mxu0 0.0
      %7846 = vmatpush.msra.mxu0 0.0
      %7847 = vmatpush.msra.mxu0 0.0
      %7848 = vmatpush.msra.mxu0 0.0
      %7849 = vmatpush.msra.mxu0 0.0
      %7850 = vmatpush.msra.mxu0 0.0
      %7851 = vmatpush.msra.mxu0 0.0
      %7852 = vmatpush.msra.mxu0 0.0
      %7853 = vmatpush.msra.mxu0 0.0
      %7854 = vmatpush.msra.mxu0 0.0
      %7855 = vmatpush.msra.mxu0 0.0
      %7856 = vmatpush.msra.mxu0 0.0
      %7857 = vmatpush.msra.mxu0 0.0
      %7858 = vmatpush.msra.mxu0 0.0
      %v7859 = vand.u32 %v7785, 4294901760
      %v7860 = vsub.f32 %v7785, %v7859
      %7861 = vmatpush.msra.mxu0 %v7860
      %v7862 = vand.u32 %v7790, 4294901760
      %v7863 = vsub.f32 %v7790, %v7862
      %7864 = vmatmul.f32.gmra.mxu0 %v7863
      %v7865 = vpop.f32.mrf.mxu0
      %v7866 = vadd.f32 %v7842, %v7865
      %7867 = vdwg.mxu0
      %7868 = vmatpush.msra.mxu0 0.0
      %7869 = vmatpush.msra.mxu0 0.0
      %7870 = vmatpush.msra.mxu0 0.0
      %7871 = vmatpush.msra.mxu0 0.0
      %7872 = vmatpush.msra.mxu0 0.0
      %7873 = vmatpush.msra.mxu0 0.0
      %7874 = vmatpush.msra.mxu0 0.0
      %7875 = vmatpush.msra.mxu0 0.0
      %7876 = vmatpush.msra.mxu0 0.0
      %7877 = vmatpush.msra.mxu0 0.0
      %7878 = vmatpush.msra.mxu0 0.0
      %7879 = vmatpush.msra.mxu0 0.0
      %7880 = vmatpush.msra.mxu0 0.0
      %7881 = vmatpush.msra.mxu0 0.0
      %7882 = vmatpush.msra.mxu0 0.0
      %v7883 = vand.u32 %v7785, 4294901760
      %7884 = vmatpush.msra.mxu0 %v7883
      %v7885 = vand.u32 %v7790, 4294901760
      %v7886 = vsub.f32 %v7790, %v7885
      %v7887 = vand.u32 %v7886, 4294901760
      %7888 = vmatmul.f32.gmra.mxu0 %v7887
      %v7889 = vpop.f32.mrf.mxu0
      %v7890 = vadd.f32 %v7866, %v7889
      %7891 = vdwg.mxu0
      %7892 = vmatpush.msra.mxu0 0.0
      %7893 = vmatpush.msra.mxu0 0.0
      %7894 = vmatpush.msra.mxu0 0.0
      %7895 = vmatpush.msra.mxu0 0.0
      %7896 = vmatpush.msra.mxu0 0.0
      %7897 = vmatpush.msra.mxu0 0.0
      %7898 = vmatpush.msra.mxu0 0.0
      %7899 = vmatpush.msra.mxu0 0.0
      %7900 = vmatpush.msra.mxu0 0.0
      %7901 = vmatpush.msra.mxu0 0.0
      %7902 = vmatpush.msra.mxu0 0.0
      %7903 = vmatpush.msra.mxu0 0.0
      %7904 = vmatpush.msra.mxu0 0.0
      %7905 = vmatpush.msra.mxu0 0.0
      %7906 = vmatpush.msra.mxu0 0.0
      %v7907 = vand.u32 %v7785, 4294901760
      %v7908 = vsub.f32 %v7785, %v7907
      %v7909 = vand.u32 %v7908, 4294901760
      %7910 = vmatpush.msra.mxu0 %v7909
      %v7911 = vand.u32 %v7790, 4294901760
      %7912 = vmatmul.f32.gmra.mxu0 %v7911
      %v7913 = vpop.f32.mrf.mxu0
      %v7914 = vadd.f32 %v7890, %v7913
      %7915 = vdwg.mxu0
      %7916 = vmatpush.msra.mxu0 0.0
      %7917 = vmatpush.msra.mxu0 0.0
      %7918 = vmatpush.msra.mxu0 0.0
      %7919 = vmatpush.msra.mxu0 0.0
      %7920 = vmatpush.msra.mxu0 0.0
      %7921 = vmatpush.msra.mxu0 0.0
      %7922 = vmatpush.msra.mxu0 0.0
      %7923 = vmatpush.msra.mxu0 0.0
      %7924 = vmatpush.msra.mxu0 0.0
      %7925 = vmatpush.msra.mxu0 0.0
      %7926 = vmatpush.msra.mxu0 0.0
      %7927 = vmatpush.msra.mxu0 0.0
      %7928 = vmatpush.msra.mxu0 0.0
      %7929 = vmatpush.msra.mxu0 0.0
      %7930 = vmatpush.msra.mxu0 0.0
      %v7931 = vand.u32 %v7785, 4294901760
      %7932 = vmatpush.msra.mxu0 %v7931
      %v7933 = vand.u32 %v7790, 4294901760
      %7934 = vmatmul.f32.gmra.mxu0 %v7933
      %v7935 = vpop.f32.mrf.mxu0
      %v7936 = vadd.f32 %v7914, %v7935
      %7937 = vdwg.mxu0
      %7938 = vmatpush.msra.mxu0 0.0
      %7939 = vmatpush.msra.mxu0 0.0
      %7940 = vmatpush.msra.mxu0 0.0
      %7941 = vmatpush.msra.mxu0 0.0
      %7942 = vmatpush.msra.mxu0 0.0
      %7943 = vmatpush.msra.mxu0 0.0
      %7944 = vmatpush.msra.mxu0 0.0
      %7945 = vmatpush.msra.mxu0 0.0
      %7946 = vmatpush.msra.mxu0 0.0
      %7947 = vmatpush.msra.mxu0 0.0
      %7948 = vmatpush.msra.mxu0 0.0
      %7949 = vmatpush.msra.mxu0 0.0
      %7950 = vmatpush.msra.mxu0 0.0
      %7951 = vmatpush.msra.mxu0 0.0
      %7952 = vmatpush.msra.mxu0 0.0
      %v7953 = vand.u32 %v7786, 4294901760
      %7954 = vmatpush.msra.mxu0 %v7953
      %v7955 = vand.u32 %v7790, 4294901760
      %v7956 = vsub.f32 %v7790, %v7955
      %v7957 = vand.u32 %v7956, 4294901760
      %v7958 = vsub.f32 %v7956, %v7957
      %v7959 = vand.u32 %v7958, 4294901760
      %7960 = vmatmul.f32.gmra.mxu0 %v7959
      %v7961 = vpop.f32.mrf.mxu0
      %v7962 = vadd.f32 0.0, %v7961
      %7963 = vdwg.mxu0
      %7964 = vmatpush.msra.mxu0 0.0
      %7965 = vmatpush.msra.mxu0 0.0
      %7966 = vmatpush.msra.mxu0 0.0
      %7967 = vmatpush.msra.mxu0 0.0
      %7968 = vmatpush.msra.mxu0 0.0
      %7969 = vmatpush.msra.mxu0 0.0
      %7970 = vmatpush.msra.mxu0 0.0
      %7971 = vmatpush.msra.mxu0 0.0
      %7972 = vmatpush.msra.mxu0 0.0
      %7973 = vmatpush.msra.mxu0 0.0
      %7974 = vmatpush.msra.mxu0 0.0
      %7975 = vmatpush.msra.mxu0 0.0
      %7976 = vmatpush.msra.mxu0 0.0
      %7977 = vmatpush.msra.mxu0 0.0
      %7978 = vmatpush.msra.mxu0 0.0
      %v7979 = vand.u32 %v7786, 4294901760
      %v7980 = vsub.f32 %v7786, %v7979
      %v7981 = vand.u32 %v7980, 4294901760
      %v7982 = vsub.f32 %v7980, %v7981
      %v7983 = vand.u32 %v7982, 4294901760
      %7984 = vmatpush.msra.mxu0 %v7983
      %v7985 = vand.u32 %v7790, 4294901760
      %7986 = vmatmul.f32.gmra.mxu0 %v7985
      %v7987 = vpop.f32.mrf.mxu0
      %v7988 = vadd.f32 %v7962, %v7987
      %7989 = vdwg.mxu0
      %7990 = vmatpush.msra.mxu0 0.0
      %7991 = vmatpush.msra.mxu0 0.0
      %7992 = vmatpush.msra.mxu0 0.0
      %7993 = vmatpush.msra.mxu0 0.0
      %7994 = vmatpush.msra.mxu0 0.0
      %7995 = vmatpush.msra.mxu0 0.0
      %7996 = vmatpush.msra.mxu0 0.0
      %7997 = vmatpush.msra.mxu0 0.0
      %7998 = vmatpush.msra.mxu0 0.0
      %7999 = vmatpush.msra.mxu0 0.0
      %8000 = vmatpush.msra.mxu0 0.0
      %8001 = vmatpush.msra.mxu0 0.0
      %8002 = vmatpush.msra.mxu0 0.0
      %8003 = vmatpush.msra.mxu0 0.0
      %8004 = vmatpush.msra.mxu0 0.0
      %v8005 = vand.u32 %v7786, 4294901760
      %v8006 = vsub.f32 %v7786, %v8005
      %8007 = vmatpush.msra.mxu0 %v8006
      %v8008 = vand.u32 %v7790, 4294901760
      %v8009 = vsub.f32 %v7790, %v8008
      %8010 = vmatmul.f32.gmra.mxu0 %v8009
      %v8011 = vpop.f32.mrf.mxu0
      %v8012 = vadd.f32 %v7988, %v8011
      %8013 = vdwg.mxu0
      %8014 = vmatpush.msra.mxu0 0.0
      %8015 = vmatpush.msra.mxu0 0.0
      %8016 = vmatpush.msra.mxu0 0.0
      %8017 = vmatpush.msra.mxu0 0.0
      %8018 = vmatpush.msra.mxu0 0.0
      %8019 = vmatpush.msra.mxu0 0.0
      %8020 = vmatpush.msra.mxu0 0.0
      %8021 = vmatpush.msra.mxu0 0.0
      %8022 = vmatpush.msra.mxu0 0.0
      %8023 = vmatpush.msra.mxu0 0.0
      %8024 = vmatpush.msra.mxu0 0.0
      %8025 = vmatpush.msra.mxu0 0.0
      %8026 = vmatpush.msra.mxu0 0.0
      %8027 = vmatpush.msra.mxu0 0.0
      %8028 = vmatpush.msra.mxu0 0.0
      %v8029 = vand.u32 %v7786, 4294901760
      %8030 = vmatpush.msra.mxu0 %v8029
      %v8031 = vand.u32 %v7790, 4294901760
      %v8032 = vsub.f32 %v7790, %v8031
      %v8033 = vand.u32 %v8032, 4294901760
      %8034 = vmatmul.f32.gmra.mxu0 %v8033
      %v8035 = vpop.f32.mrf.mxu0
      %v8036 = vadd.f32 %v8012, %v8035
      %8037 = vdwg.mxu0
      %8038 = vmatpush.msra.mxu0 0.0
      %8039 = vmatpush.msra.mxu0 0.0
      %8040 = vmatpush.msra.mxu0 0.0
      %8041 = vmatpush.msra.mxu0 0.0
      %8042 = vmatpush.msra.mxu0 0.0
      %8043 = vmatpush.msra.mxu0 0.0
      %8044 = vmatpush.msra.mxu0 0.0
      %8045 = vmatpush.msra.mxu0 0.0
      %8046 = vmatpush.msra.mxu0 0.0
      %8047 = vmatpush.msra.mxu0 0.0
      %8048 = vmatpush.msra.mxu0 0.0
      %8049 = vmatpush.msra.mxu0 0.0
      %8050 = vmatpush.msra.mxu0 0.0
      %8051 = vmatpush.msra.mxu0 0.0
      %8052 = vmatpush.msra.mxu0 0.0
      %v8053 = vand.u32 %v7786, 4294901760
      %v8054 = vsub.f32 %v7786, %v8053
      %v8055 = vand.u32 %v8054, 4294901760
      %8056 = vmatpush.msra.mxu0 %v8055
      %v8057 = vand.u32 %v7790, 4294901760
      %8058 = vmatmul.f32.gmra.mxu0 %v8057
      %v8059 = vpop.f32.mrf.mxu0
      %v8060 = vadd.f32 %v8036, %v8059
      %8061 = vdwg.mxu0
      %8062 = vmatpush.msra.mxu0 0.0
      %8063 = vmatpush.msra.mxu0 0.0
      %8064 = vmatpush.msra.mxu0 0.0
      %8065 = vmatpush.msra.mxu0 0.0
      %8066 = vmatpush.msra.mxu0 0.0
      %8067 = vmatpush.msra.mxu0 0.0
      %8068 = vmatpush.msra.mxu0 0.0
      %8069 = vmatpush.msra.mxu0 0.0
      %8070 = vmatpush.msra.mxu0 0.0
      %8071 = vmatpush.msra.mxu0 0.0
      %8072 = vmatpush.msra.mxu0 0.0
      %8073 = vmatpush.msra.mxu0 0.0
      %8074 = vmatpush.msra.mxu0 0.0
      %8075 = vmatpush.msra.mxu0 0.0
      %8076 = vmatpush.msra.mxu0 0.0
      %v8077 = vand.u32 %v7786, 4294901760
      %8078 = vmatpush.msra.mxu0 %v8077
      %v8079 = vand.u32 %v7790, 4294901760
      %8080 = vmatmul.f32.gmra.mxu0 %v8079
      %v8081 = vpop.f32.mrf.mxu0
      %v8082 = vadd.f32 %v8060, %v8081
      %8083 = vdwg.mxu0
      %v8084 = vadd.f32 %v7756, %v7936
      %v8085 = vadd.f32 %v7757, %v8082
      %v8086 = vld [vmem:[#allocation3] sm:$0xff]
      %v8087 = vld [vmem:[#allocation3 + $0x8] sm:$0xff]
      %v8088 = vld [vmem:[%s4] sm:$0xff]
      %v8090 = vsel %vm412, %v8088, 0
      %8092 = vmatpush.msra.mxu0 0.0
      %8093 = vmatpush.msra.mxu0 0.0
      %8094 = vmatpush.msra.mxu0 0.0
      %8095 = vmatpush.msra.mxu0 0.0
      %8096 = vmatpush.msra.mxu0 0.0
      %8097 = vmatpush.msra.mxu0 0.0
      %8098 = vmatpush.msra.mxu0 0.0
      %8099 = vmatpush.msra.mxu0 0.0
      %8100 = vmatpush.msra.mxu0 0.0
      %8101 = vmatpush.msra.mxu0 0.0
      %8102 = vmatpush.msra.mxu0 0.0
      %8103 = vmatpush.msra.mxu0 0.0
      %8104 = vmatpush.msra.mxu0 0.0
      %8105 = vmatpush.msra.mxu0 0.0
      %8106 = vmatpush.msra.mxu0 0.0
      %v8107 = vand.u32 %v8086, 4294901760
      %8108 = vmatpush.msra.mxu0 %v8107
      %v8109 = vand.u32 %v8090, 4294901760
      %v8110 = vsub.f32 %v8090, %v8109
      %v8111 = vand.u32 %v8110, 4294901760
      %v8112 = vsub.f32 %v8110, %v8111
      %v8113 = vand.u32 %v8112, 4294901760
      %8114 = vmatmul.f32.gmra.mxu0 %v8113
      %v8115 = vpop.f32.mrf.mxu0
      %v8116 = vadd.f32 0.0, %v8115
      %8117 = vdwg.mxu0
      %8118 = vmatpush.msra.mxu0 0.0
      %8119 = vmatpush.msra.mxu0 0.0
      %8120 = vmatpush.msra.mxu0 0.0
      %8121 = vmatpush.msra.mxu0 0.0
      %8122 = vmatpush.msra.mxu0 0.0
      %8123 = vmatpush.msra.mxu0 0.0
      %8124 = vmatpush.msra.mxu0 0.0
      %8125 = vmatpush.msra.mxu0 0.0
      %8126 = vmatpush.msra.mxu0 0.0
      %8127 = vmatpush.msra.mxu0 0.0
      %8128 = vmatpush.msra.mxu0 0.0
      %8129 = vmatpush.msra.mxu0 0.0
      %8130 = vmatpush.msra.mxu0 0.0
      %8131 = vmatpush.msra.mxu0 0.0
      %8132 = vmatpush.msra.mxu0 0.0
      %v8133 = vand.u32 %v8086, 4294901760
      %v8134 = vsub.f32 %v8086, %v8133
      %v8135 = vand.u32 %v8134, 4294901760
      %v8136 = vsub.f32 %v8134, %v8135
      %v8137 = vand.u32 %v8136, 4294901760
      %8138 = vmatpush.msra.mxu0 %v8137
      %v8139 = vand.u32 %v8090, 4294901760
      %8140 = vmatmul.f32.gmra.mxu0 %v8139
      %v8141 = vpop.f32.mrf.mxu0
      %v8142 = vadd.f32 %v8116, %v8141
      %8143 = vdwg.mxu0
      %8144 = vmatpush.msra.mxu0 0.0
      %8145 = vmatpush.msra.mxu0 0.0
      %8146 = vmatpush.msra.mxu0 0.0
      %8147 = vmatpush.msra.mxu0 0.0
      %8148 = vmatpush.msra.mxu0 0.0
      %8149 = vmatpush.msra.mxu0 0.0
      %8150 = vmatpush.msra.mxu0 0.0
      %8151 = vmatpush.msra.mxu0 0.0
      %8152 = vmatpush.msra.mxu0 0.0
      %8153 = vmatpush.msra.mxu0 0.0
      %8154 = vmatpush.msra.mxu0 0.0
      %8155 = vmatpush.msra.mxu0 0.0
      %8156 = vmatpush.msra.mxu0 0.0
      %8157 = vmatpush.msra.mxu0 0.0
      %8158 = vmatpush.msra.mxu0 0.0
      %v8159 = vand.u32 %v8086, 4294901760
      %v8160 = vsub.f32 %v8086, %v8159
      %8161 = vmatpush.msra.mxu0 %v8160
      %v8162 = vand.u32 %v8090, 4294901760
      %v8163 = vsub.f32 %v8090, %v8162
      %8164 = vmatmul.f32.gmra.mxu0 %v8163
      %v8165 = vpop.f32.mrf.mxu0
      %v8166 = vadd.f32 %v8142, %v8165
      %8167 = vdwg.mxu0
      %8168 = vmatpush.msra.mxu0 0.0
      %8169 = vmatpush.msra.mxu0 0.0
      %8170 = vmatpush.msra.mxu0 0.0
      %8171 = vmatpush.msra.mxu0 0.0
      %8172 = vmatpush.msra.mxu0 0.0
      %8173 = vmatpush.msra.mxu0 0.0
      %8174 = vmatpush.msra.mxu0 0.0
      %8175 = vmatpush.msra.mxu0 0.0
      %8176 = vmatpush.msra.mxu0 0.0
      %8177 = vmatpush.msra.mxu0 0.0
      %8178 = vmatpush.msra.mxu0 0.0
      %8179 = vmatpush.msra.mxu0 0.0
      %8180 = vmatpush.msra.mxu0 0.0
      %8181 = vmatpush.msra.mxu0 0.0
      %8182 = vmatpush.msra.mxu0 0.0
      %v8183 = vand.u32 %v8086, 4294901760
      %8184 = vmatpush.msra.mxu0 %v8183
      %v8185 = vand.u32 %v8090, 4294901760
      %v8186 = vsub.f32 %v8090, %v8185
      %v8187 = vand.u32 %v8186, 4294901760
      %8188 = vmatmul.f32.gmra.mxu0 %v8187
      %v8189 = vpop.f32.mrf.mxu0
      %v8190 = vadd.f32 %v8166, %v8189
      %8191 = vdwg.mxu0
      %8192 = vmatpush.msra.mxu0 0.0
      %8193 = vmatpush.msra.mxu0 0.0
      %8194 = vmatpush.msra.mxu0 0.0
      %8195 = vmatpush.msra.mxu0 0.0
      %8196 = vmatpush.msra.mxu0 0.0
      %8197 = vmatpush.msra.mxu0 0.0
      %8198 = vmatpush.msra.mxu0 0.0
      %8199 = vmatpush.msra.mxu0 0.0
      %8200 = vmatpush.msra.mxu0 0.0
      %8201 = vmatpush.msra.mxu0 0.0
      %8202 = vmatpush.msra.mxu0 0.0
      %8203 = vmatpush.msra.mxu0 0.0
      %8204 = vmatpush.msra.mxu0 0.0
      %8205 = vmatpush.msra.mxu0 0.0
      %8206 = vmatpush.msra.mxu0 0.0
      %v8207 = vand.u32 %v8086, 4294901760
      %v8208 = vsub.f32 %v8086, %v8207
      %v8209 = vand.u32 %v8208, 4294901760
      %8210 = vmatpush.msra.mxu0 %v8209
      %v8211 = vand.u32 %v8090, 4294901760
      %8212 = vmatmul.f32.gmra.mxu0 %v8211
      %v8213 = vpop.f32.mrf.mxu0
      %v8214 = vadd.f32 %v8190, %v8213
      %8215 = vdwg.mxu0
      %8216 = vmatpush.msra.mxu0 0.0
      %8217 = vmatpush.msra.mxu0 0.0
      %8218 = vmatpush.msra.mxu0 0.0
      %8219 = vmatpush.msra.mxu0 0.0
      %8220 = vmatpush.msra.mxu0 0.0
      %8221 = vmatpush.msra.mxu0 0.0
      %8222 = vmatpush.msra.mxu0 0.0
      %8223 = vmatpush.msra.mxu0 0.0
      %8224 = vmatpush.msra.mxu0 0.0
      %8225 = vmatpush.msra.mxu0 0.0
      %8226 = vmatpush.msra.mxu0 0.0
      %8227 = vmatpush.msra.mxu0 0.0
      %8228 = vmatpush.msra.mxu0 0.0
      %8229 = vmatpush.msra.mxu0 0.0
      %8230 = vmatpush.msra.mxu0 0.0
      %v8231 = vand.u32 %v8086, 4294901760
      %8232 = vmatpush.msra.mxu0 %v8231
      %v8233 = vand.u32 %v8090, 4294901760
      %8234 = vmatmul.f32.gmra.mxu0 %v8233
      %v8235 = vpop.f32.mrf.mxu0
      %v8236 = vadd.f32 %v8214, %v8235
      %8237 = vdwg.mxu0
      %8238 = vmatpush.msra.mxu0 0.0
      %8239 = vmatpush.msra.mxu0 0.0
      %8240 = vmatpush.msra.mxu0 0.0
      %8241 = vmatpush.msra.mxu0 0.0
      %8242 = vmatpush.msra.mxu0 0.0
      %8243 = vmatpush.msra.mxu0 0.0
      %8244 = vmatpush.msra.mxu0 0.0
      %8245 = vmatpush.msra.mxu0 0.0
      %8246 = vmatpush.msra.mxu0 0.0
      %8247 = vmatpush.msra.mxu0 0.0
      %8248 = vmatpush.msra.mxu0 0.0
      %8249 = vmatpush.msra.mxu0 0.0
      %8250 = vmatpush.msra.mxu0 0.0
      %8251 = vmatpush.msra.mxu0 0.0
      %8252 = vmatpush.msra.mxu0 0.0
      %v8253 = vand.u32 %v8087, 4294901760
      %8254 = vmatpush.msra.mxu0 %v8253
      %v8255 = vand.u32 %v8090, 4294901760
      %v8256 = vsub.f32 %v8090, %v8255
      %v8257 = vand.u32 %v8256, 4294901760
      %v8258 = vsub.f32 %v8256, %v8257
      %v8259 = vand.u32 %v8258, 4294901760
      %8260 = vmatmul.f32.gmra.mxu0 %v8259
      %v8261 = vpop.f32.mrf.mxu0
      %v8262 = vadd.f32 0.0, %v8261
      %8263 = vdwg.mxu0
      %8264 = vmatpush.msra.mxu0 0.0
      %8265 = vmatpush.msra.mxu0 0.0
      %8266 = vmatpush.msra.mxu0 0.0
      %8267 = vmatpush.msra.mxu0 0.0
      %8268 = vmatpush.msra.mxu0 0.0
      %8269 = vmatpush.msra.mxu0 0.0
      %8270 = vmatpush.msra.mxu0 0.0
      %8271 = vmatpush.msra.mxu0 0.0
      %8272 = vmatpush.msra.mxu0 0.0
      %8273 = vmatpush.msra.mxu0 0.0
      %8274 = vmatpush.msra.mxu0 0.0
      %8275 = vmatpush.msra.mxu0 0.0
      %8276 = vmatpush.msra.mxu0 0.0
      %8277 = vmatpush.msra.mxu0 0.0
      %8278 = vmatpush.msra.mxu0 0.0
      %v8279 = vand.u32 %v8087, 4294901760
      %v8280 = vsub.f32 %v8087, %v8279
      %v8281 = vand.u32 %v8280, 4294901760
      %v8282 = vsub.f32 %v8280, %v8281
      %v8283 = vand.u32 %v8282, 4294901760
      %8284 = vmatpush.msra.mxu0 %v8283
      %v8285 = vand.u32 %v8090, 4294901760
      %8286 = vmatmul.f32.gmra.mxu0 %v8285
      %v8287 = vpop.f32.mrf.mxu0
      %v8288 = vadd.f32 %v8262, %v8287
      %8289 = vdwg.mxu0
      %8290 = vmatpush.msra.mxu0 0.0
      %8291 = vmatpush.msra.mxu0 0.0
      %8292 = vmatpush.msra.mxu0 0.0
      %8293 = vmatpush.msra.mxu0 0.0
      %8294 = vmatpush.msra.mxu0 0.0
      %8295 = vmatpush.msra.mxu0 0.0
      %8296 = vmatpush.msra.mxu0 0.0
      %8297 = vmatpush.msra.mxu0 0.0
      %8298 = vmatpush.msra.mxu0 0.0
      %8299 = vmatpush.msra.mxu0 0.0
      %8300 = vmatpush.msra.mxu0 0.0
      %8301 = vmatpush.msra.mxu0 0.0
      %8302 = vmatpush.msra.mxu0 0.0
      %8303 = vmatpush.msra.mxu0 0.0
      %8304 = vmatpush.msra.mxu0 0.0
      %v8305 = vand.u32 %v8087, 4294901760
      %v8306 = vsub.f32 %v8087, %v8305
      %8307 = vmatpush.msra.mxu0 %v8306
      %v8308 = vand.u32 %v8090, 4294901760
      %v8309 = vsub.f32 %v8090, %v8308
      %8310 = vmatmul.f32.gmra.mxu0 %v8309
      %v8311 = vpop.f32.mrf.mxu0
      %v8312 = vadd.f32 %v8288, %v8311
      %8313 = vdwg.mxu0
      %8314 = vmatpush.msra.mxu0 0.0
      %8315 = vmatpush.msra.mxu0 0.0
      %8316 = vmatpush.msra.mxu0 0.0
      %8317 = vmatpush.msra.mxu0 0.0
      %8318 = vmatpush.msra.mxu0 0.0
      %8319 = vmatpush.msra.mxu0 0.0
      %8320 = vmatpush.msra.mxu0 0.0
      %8321 = vmatpush.msra.mxu0 0.0
      %8322 = vmatpush.msra.mxu0 0.0
      %8323 = vmatpush.msra.mxu0 0.0
      %8324 = vmatpush.msra.mxu0 0.0
      %8325 = vmatpush.msra.mxu0 0.0
      %8326 = vmatpush.msra.mxu0 0.0
      %8327 = vmatpush.msra.mxu0 0.0
      %8328 = vmatpush.msra.mxu0 0.0
      %v8329 = vand.u32 %v8087, 4294901760
      %8330 = vmatpush.msra.mxu0 %v8329
      %v8331 = vand.u32 %v8090, 4294901760
      %v8332 = vsub.f32 %v8090, %v8331
      %v8333 = vand.u32 %v8332, 4294901760
      %8334 = vmatmul.f32.gmra.mxu0 %v8333
      %v8335 = vpop.f32.mrf.mxu0
      %v8336 = vadd.f32 %v8312, %v8335
      %8337 = vdwg.mxu0
      %8338 = vmatpush.msra.mxu0 0.0
      %8339 = vmatpush.msra.mxu0 0.0
      %8340 = vmatpush.msra.mxu0 0.0
      %8341 = vmatpush.msra.mxu0 0.0
      %8342 = vmatpush.msra.mxu0 0.0
      %8343 = vmatpush.msra.mxu0 0.0
      %8344 = vmatpush.msra.mxu0 0.0
      %8345 = vmatpush.msra.mxu0 0.0
      %8346 = vmatpush.msra.mxu0 0.0
      %8347 = vmatpush.msra.mxu0 0.0
      %8348 = vmatpush.msra.mxu0 0.0
      %8349 = vmatpush.msra.mxu0 0.0
      %8350 = vmatpush.msra.mxu0 0.0
      %8351 = vmatpush.msra.mxu0 0.0
      %8352 = vmatpush.msra.mxu0 0.0
      %v8353 = vand.u32 %v8087, 4294901760
      %v8354 = vsub.f32 %v8087, %v8353
      %v8355 = vand.u32 %v8354, 4294901760
      %8356 = vmatpush.msra.mxu0 %v8355
      %v8357 = vand.u32 %v8090, 4294901760
      %8358 = vmatmul.f32.gmra.mxu0 %v8357
      %v8359 = vpop.f32.mrf.mxu0
      %v8360 = vadd.f32 %v8336, %v8359
      %8361 = vdwg.mxu0
      %8362 = vmatpush.msra.mxu0 0.0
      %8363 = vmatpush.msra.mxu0 0.0
      %8364 = vmatpush.msra.mxu0 0.0
      %8365 = vmatpush.msra.mxu0 0.0
      %8366 = vmatpush.msra.mxu0 0.0
      %8367 = vmatpush.msra.mxu0 0.0
      %8368 = vmatpush.msra.mxu0 0.0
      %8369 = vmatpush.msra.mxu0 0.0
      %8370 = vmatpush.msra.mxu0 0.0
      %8371 = vmatpush.msra.mxu0 0.0
      %8372 = vmatpush.msra.mxu0 0.0
      %8373 = vmatpush.msra.mxu0 0.0
      %8374 = vmatpush.msra.mxu0 0.0
      %8375 = vmatpush.msra.mxu0 0.0
      %8376 = vmatpush.msra.mxu0 0.0
      %v8377 = vand.u32 %v8087, 4294901760
      %8378 = vmatpush.msra.mxu0 %v8377
      %v8379 = vand.u32 %v8090, 4294901760
      %8380 = vmatmul.f32.gmra.mxu0 %v8379
      %v8381 = vpop.f32.mrf.mxu0
      %v8382 = vadd.f32 %v8360, %v8381
      %8383 = vdwg.mxu0
      %v8384 = vadd.f32 %v8084, %v8236
      %v8385 = vadd.f32 %v8085, %v8382
      %v8386 = vld [vmem:[#allocation3] sm:$0xff]
      %v8387 = vld [vmem:[#allocation3 + $0x8] sm:$0xff]
      %v8388 = vld [vmem:[#allocation3 + $0x10] sm:$0xff]
      %s8389 = scalar_lea.vmem %s4, 8
      %v8390 = vld [vmem:[%s8389] sm:$0xff]
      %8394 = vrot.lane.b32.xlu0 %v8386, 112
      %v8395 = vpop.permute.xlu0 %8394
      %8396 = vrot.lane.b32.xlu0 %v8387, 112
      %v8397 = vpop.permute.xlu0 %8396
      %8398 = vrot.lane.b32.xlu0 %v8388, 112
      %v8399 = vpop.permute.xlu0 %8398
      %vm8400 = vcmask 916480
      %v8401 = vsel %vm8400, %v8395, %v8397
      %v8402 = vsel %vm8400, %v8397, %v8399
      %v8406 = vsel %vm412, %v8390, 0
      %8408 = vmatpush.msra.mxu0 0.0
      %8409 = vmatpush.msra.mxu0 0.0
      %8410 = vmatpush.msra.mxu0 0.0
      %8411 = vmatpush.msra.mxu0 0.0
      %8412 = vmatpush.msra.mxu0 0.0
      %8413 = vmatpush.msra.mxu0 0.0
      %8414 = vmatpush.msra.mxu0 0.0
      %8415 = vmatpush.msra.mxu0 0.0
      %8416 = vmatpush.msra.mxu0 0.0
      %8417 = vmatpush.msra.mxu0 0.0
      %8418 = vmatpush.msra.mxu0 0.0
      %8419 = vmatpush.msra.mxu0 0.0
      %8420 = vmatpush.msra.mxu0 0.0
      %8421 = vmatpush.msra.mxu0 0.0
      %8422 = vmatpush.msra.mxu0 0.0
      %v8423 = vand.u32 %v8401, 4294901760
      %8424 = vmatpush.msra.mxu0 %v8423
      %v8425 = vand.u32 %v8406, 4294901760
      %v8426 = vsub.f32 %v8406, %v8425
      %v8427 = vand.u32 %v8426, 4294901760
      %v8428 = vsub.f32 %v8426, %v8427
      %v8429 = vand.u32 %v8428, 4294901760
      %8430 = vmatmul.f32.gmra.mxu0 %v8429
      %v8431 = vpop.f32.mrf.mxu0
      %v8432 = vadd.f32 0.0, %v8431
      %8433 = vdwg.mxu0
      %8434 = vmatpush.msra.mxu0 0.0
      %8435 = vmatpush.msra.mxu0 0.0
      %8436 = vmatpush.msra.mxu0 0.0
      %8437 = vmatpush.msra.mxu0 0.0
      %8438 = vmatpush.msra.mxu0 0.0
      %8439 = vmatpush.msra.mxu0 0.0
      %8440 = vmatpush.msra.mxu0 0.0
      %8441 = vmatpush.msra.mxu0 0.0
      %8442 = vmatpush.msra.mxu0 0.0
      %8443 = vmatpush.msra.mxu0 0.0
      %8444 = vmatpush.msra.mxu0 0.0
      %8445 = vmatpush.msra.mxu0 0.0
      %8446 = vmatpush.msra.mxu0 0.0
      %8447 = vmatpush.msra.mxu0 0.0
      %8448 = vmatpush.msra.mxu0 0.0
      %v8449 = vand.u32 %v8401, 4294901760
      %v8450 = vsub.f32 %v8401, %v8449
      %v8451 = vand.u32 %v8450, 4294901760
      %v8452 = vsub.f32 %v8450, %v8451
      %v8453 = vand.u32 %v8452, 4294901760
      %8454 = vmatpush.msra.mxu0 %v8453
      %v8455 = vand.u32 %v8406, 4294901760
      %8456 = vmatmul.f32.gmra.mxu0 %v8455
      %v8457 = vpop.f32.mrf.mxu0
      %v8458 = vadd.f32 %v8432, %v8457
      %8459 = vdwg.mxu0
      %8460 = vmatpush.msra.mxu0 0.0
      %8461 = vmatpush.msra.mxu0 0.0
      %8462 = vmatpush.msra.mxu0 0.0
      %8463 = vmatpush.msra.mxu0 0.0
      %8464 = vmatpush.msra.mxu0 0.0
      %8465 = vmatpush.msra.mxu0 0.0
      %8466 = vmatpush.msra.mxu0 0.0
      %8467 = vmatpush.msra.mxu0 0.0
      %8468 = vmatpush.msra.mxu0 0.0
      %8469 = vmatpush.msra.mxu0 0.0
      %8470 = vmatpush.msra.mxu0 0.0
      %8471 = vmatpush.msra.mxu0 0.0
      %8472 = vmatpush.msra.mxu0 0.0
      %8473 = vmatpush.msra.mxu0 0.0
      %8474 = vmatpush.msra.mxu0 0.0
      %v8475 = vand.u32 %v8401, 4294901760
      %v8476 = vsub.f32 %v8401, %v8475
      %8477 = vmatpush.msra.mxu0 %v8476
      %v8478 = vand.u32 %v8406, 4294901760
      %v8479 = vsub.f32 %v8406, %v8478
      %8480 = vmatmul.f32.gmra.mxu0 %v8479
      %v8481 = vpop.f32.mrf.mxu0
      %v8482 = vadd.f32 %v8458, %v8481
      %8483 = vdwg.mxu0
      %8484 = vmatpush.msra.mxu0 0.0
      %8485 = vmatpush.msra.mxu0 0.0
      %8486 = vmatpush.msra.mxu0 0.0
      %8487 = vmatpush.msra.mxu0 0.0
      %8488 = vmatpush.msra.mxu0 0.0
      %8489 = vmatpush.msra.mxu0 0.0
      %8490 = vmatpush.msra.mxu0 0.0
      %8491 = vmatpush.msra.mxu0 0.0
      %8492 = vmatpush.msra.mxu0 0.0
      %8493 = vmatpush.msra.mxu0 0.0
      %8494 = vmatpush.msra.mxu0 0.0
      %8495 = vmatpush.msra.mxu0 0.0
      %8496 = vmatpush.msra.mxu0 0.0
      %8497 = vmatpush.msra.mxu0 0.0
      %8498 = vmatpush.msra.mxu0 0.0
      %v8499 = vand.u32 %v8401, 4294901760
      %8500 = vmatpush.msra.mxu0 %v8499
      %v8501 = vand.u32 %v8406, 4294901760
      %v8502 = vsub.f32 %v8406, %v8501
      %v8503 = vand.u32 %v8502, 4294901760
      %8504 = vmatmul.f32.gmra.mxu0 %v8503
      %v8505 = vpop.f32.mrf.mxu0
      %v8506 = vadd.f32 %v8482, %v8505
      %8507 = vdwg.mxu0
      %8508 = vmatpush.msra.mxu0 0.0
      %8509 = vmatpush.msra.mxu0 0.0
      %8510 = vmatpush.msra.mxu0 0.0
      %8511 = vmatpush.msra.mxu0 0.0
      %8512 = vmatpush.msra.mxu0 0.0
      %8513 = vmatpush.msra.mxu0 0.0
      %8514 = vmatpush.msra.mxu0 0.0
      %8515 = vmatpush.msra.mxu0 0.0
      %8516 = vmatpush.msra.mxu0 0.0
      %8517 = vmatpush.msra.mxu0 0.0
      %8518 = vmatpush.msra.mxu0 0.0
      %8519 = vmatpush.msra.mxu0 0.0
      %8520 = vmatpush.msra.mxu0 0.0
      %8521 = vmatpush.msra.mxu0 0.0
      %8522 = vmatpush.msra.mxu0 0.0
      %v8523 = vand.u32 %v8401, 4294901760
      %v8524 = vsub.f32 %v8401, %v8523
      %v8525 = vand.u32 %v8524, 4294901760
      %8526 = vmatpush.msra.mxu0 %v8525
      %v8527 = vand.u32 %v8406, 4294901760
      %8528 = vmatmul.f32.gmra.mxu0 %v8527
      %v8529 = vpop.f32.mrf.mxu0
      %v8530 = vadd.f32 %v8506, %v8529
      %8531 = vdwg.mxu0
      %8532 = vmatpush.msra.mxu0 0.0
      %8533 = vmatpush.msra.mxu0 0.0
      %8534 = vmatpush.msra.mxu0 0.0
      %8535 = vmatpush.msra.mxu0 0.0
      %8536 = vmatpush.msra.mxu0 0.0
      %8537 = vmatpush.msra.mxu0 0.0
      %8538 = vmatpush.msra.mxu0 0.0
      %8539 = vmatpush.msra.mxu0 0.0
      %8540 = vmatpush.msra.mxu0 0.0
      %8541 = vmatpush.msra.mxu0 0.0
      %8542 = vmatpush.msra.mxu0 0.0
      %8543 = vmatpush.msra.mxu0 0.0
      %8544 = vmatpush.msra.mxu0 0.0
      %8545 = vmatpush.msra.mxu0 0.0
      %8546 = vmatpush.msra.mxu0 0.0
      %v8547 = vand.u32 %v8401, 4294901760
      %8548 = vmatpush.msra.mxu0 %v8547
      %v8549 = vand.u32 %v8406, 4294901760
      %8550 = vmatmul.f32.gmra.mxu0 %v8549
      %v8551 = vpop.f32.mrf.mxu0
      %v8552 = vadd.f32 %v8530, %v8551
      %8553 = vdwg.mxu0
      %8554 = vmatpush.msra.mxu0 0.0
      %8555 = vmatpush.msra.mxu0 0.0
      %8556 = vmatpush.msra.mxu0 0.0
      %8557 = vmatpush.msra.mxu0 0.0
      %8558 = vmatpush.msra.mxu0 0.0
      %8559 = vmatpush.msra.mxu0 0.0
      %8560 = vmatpush.msra.mxu0 0.0
      %8561 = vmatpush.msra.mxu0 0.0
      %8562 = vmatpush.msra.mxu0 0.0
      %8563 = vmatpush.msra.mxu0 0.0
      %8564 = vmatpush.msra.mxu0 0.0
      %8565 = vmatpush.msra.mxu0 0.0
      %8566 = vmatpush.msra.mxu0 0.0
      %8567 = vmatpush.msra.mxu0 0.0
      %8568 = vmatpush.msra.mxu0 0.0
      %v8569 = vand.u32 %v8402, 4294901760
      %8570 = vmatpush.msra.mxu0 %v8569
      %v8571 = vand.u32 %v8406, 4294901760
      %v8572 = vsub.f32 %v8406, %v8571
      %v8573 = vand.u32 %v8572, 4294901760
      %v8574 = vsub.f32 %v8572, %v8573
      %v8575 = vand.u32 %v8574, 4294901760
      %8576 = vmatmul.f32.gmra.mxu0 %v8575
      %v8577 = vpop.f32.mrf.mxu0
      %v8578 = vadd.f32 0.0, %v8577
      %8579 = vdwg.mxu0
      %8580 = vmatpush.msra.mxu0 0.0
      %8581 = vmatpush.msra.mxu0 0.0
      %8582 = vmatpush.msra.mxu0 0.0
      %8583 = vmatpush.msra.mxu0 0.0
      %8584 = vmatpush.msra.mxu0 0.0
      %8585 = vmatpush.msra.mxu0 0.0
      %8586 = vmatpush.msra.mxu0 0.0
      %8587 = vmatpush.msra.mxu0 0.0
      %8588 = vmatpush.msra.mxu0 0.0
      %8589 = vmatpush.msra.mxu0 0.0
      %8590 = vmatpush.msra.mxu0 0.0
      %8591 = vmatpush.msra.mxu0 0.0
      %8592 = vmatpush.msra.mxu0 0.0
      %8593 = vmatpush.msra.mxu0 0.0
      %8594 = vmatpush.msra.mxu0 0.0
      %v8595 = vand.u32 %v8402, 4294901760
      %v8596 = vsub.f32 %v8402, %v8595
      %v8597 = vand.u32 %v8596, 4294901760
      %v8598 = vsub.f32 %v8596, %v8597
      %v8599 = vand.u32 %v8598, 4294901760
      %8600 = vmatpush.msra.mxu0 %v8599
      %v8601 = vand.u32 %v8406, 4294901760
      %8602 = vmatmul.f32.gmra.mxu0 %v8601
      %v8603 = vpop.f32.mrf.mxu0
      %v8604 = vadd.f32 %v8578, %v8603
      %8605 = vdwg.mxu0
      %8606 = vmatpush.msra.mxu0 0.0
      %8607 = vmatpush.msra.mxu0 0.0
      %8608 = vmatpush.msra.mxu0 0.0
      %8609 = vmatpush.msra.mxu0 0.0
      %8610 = vmatpush.msra.mxu0 0.0
      %8611 = vmatpush.msra.mxu0 0.0
      %8612 = vmatpush.msra.mxu0 0.0
      %8613 = vmatpush.msra.mxu0 0.0
      %8614 = vmatpush.msra.mxu0 0.0
      %8615 = vmatpush.msra.mxu0 0.0
      %8616 = vmatpush.msra.mxu0 0.0
      %8617 = vmatpush.msra.mxu0 0.0
      %8618 = vmatpush.msra.mxu0 0.0
      %8619 = vmatpush.msra.mxu0 0.0
      %8620 = vmatpush.msra.mxu0 0.0
      %v8621 = vand.u32 %v8402, 4294901760
      %v8622 = vsub.f32 %v8402, %v8621
      %8623 = vmatpush.msra.mxu0 %v8622
      %v8624 = vand.u32 %v8406, 4294901760
      %v8625 = vsub.f32 %v8406, %v8624
      %8626 = vmatmul.f32.gmra.mxu0 %v8625
      %v8627 = vpop.f32.mrf.mxu0
      %v8628 = vadd.f32 %v8604, %v8627
      %8629 = vdwg.mxu0
      %8630 = vmatpush.msra.mxu0 0.0
      %8631 = vmatpush.msra.mxu0 0.0
      %8632 = vmatpush.msra.mxu0 0.0
      %8633 = vmatpush.msra.mxu0 0.0
      %8634 = vmatpush.msra.mxu0 0.0
      %8635 = vmatpush.msra.mxu0 0.0
      %8636 = vmatpush.msra.mxu0 0.0
      %8637 = vmatpush.msra.mxu0 0.0
      %8638 = vmatpush.msra.mxu0 0.0
      %8639 = vmatpush.msra.mxu0 0.0
      %8640 = vmatpush.msra.mxu0 0.0
      %8641 = vmatpush.msra.mxu0 0.0
      %8642 = vmatpush.msra.mxu0 0.0
      %8643 = vmatpush.msra.mxu0 0.0
      %8644 = vmatpush.msra.mxu0 0.0
      %v8645 = vand.u32 %v8402, 4294901760
      %8646 = vmatpush.msra.mxu0 %v8645
      %v8647 = vand.u32 %v8406, 4294901760
      %v8648 = vsub.f32 %v8406, %v8647
      %v8649 = vand.u32 %v8648, 4294901760
      %8650 = vmatmul.f32.gmra.mxu0 %v8649
      %v8651 = vpop.f32.mrf.mxu0
      %v8652 = vadd.f32 %v8628, %v8651
      %8653 = vdwg.mxu0
      %8654 = vmatpush.msra.mxu0 0.0
      %8655 = vmatpush.msra.mxu0 0.0
      %8656 = vmatpush.msra.mxu0 0.0
      %8657 = vmatpush.msra.mxu0 0.0
      %8658 = vmatpush.msra.mxu0 0.0
      %8659 = vmatpush.msra.mxu0 0.0
      %8660 = vmatpush.msra.mxu0 0.0
      %8661 = vmatpush.msra.mxu0 0.0
      %8662 = vmatpush.msra.mxu0 0.0
      %8663 = vmatpush.msra.mxu0 0.0
      %8664 = vmatpush.msra.mxu0 0.0
      %8665 = vmatpush.msra.mxu0 0.0
      %8666 = vmatpush.msra.mxu0 0.0
      %8667 = vmatpush.msra.mxu0 0.0
      %8668 = vmatpush.msra.mxu0 0.0
      %v8669 = vand.u32 %v8402, 4294901760
      %v8670 = vsub.f32 %v8402, %v8669
      %v8671 = vand.u32 %v8670, 4294901760
      %8672 = vmatpush.msra.mxu0 %v8671
      %v8673 = vand.u32 %v8406, 4294901760
      %8674 = vmatmul.f32.gmra.mxu0 %v8673
      %v8675 = vpop.f32.mrf.mxu0
      %v8676 = vadd.f32 %v8652, %v8675
      %8677 = vdwg.mxu0
      %8678 = vmatpush.msra.mxu0 0.0
      %8679 = vmatpush.msra.mxu0 0.0
      %8680 = vmatpush.msra.mxu0 0.0
      %8681 = vmatpush.msra.mxu0 0.0
      %8682 = vmatpush.msra.mxu0 0.0
      %8683 = vmatpush.msra.mxu0 0.0
      %8684 = vmatpush.msra.mxu0 0.0
      %8685 = vmatpush.msra.mxu0 0.0
      %8686 = vmatpush.msra.mxu0 0.0
      %8687 = vmatpush.msra.mxu0 0.0
      %8688 = vmatpush.msra.mxu0 0.0
      %8689 = vmatpush.msra.mxu0 0.0
      %8690 = vmatpush.msra.mxu0 0.0
      %8691 = vmatpush.msra.mxu0 0.0
      %8692 = vmatpush.msra.mxu0 0.0
      %v8693 = vand.u32 %v8402, 4294901760
      %8694 = vmatpush.msra.mxu0 %v8693
      %v8695 = vand.u32 %v8406, 4294901760
      %8696 = vmatmul.f32.gmra.mxu0 %v8695
      %v8697 = vpop.f32.mrf.mxu0
      %v8698 = vadd.f32 %v8676, %v8697
      %8699 = vdwg.mxu0
      %v8700 = vadd.f32 %v8384, %v8552
      %v8701 = vadd.f32 %v8385, %v8698
      %s8702 = scalar_lea.vmem %s4, 16
      %v8703 = vld [vmem:[%s8702] sm:$0xff]
      %8704 = vrot.lane.b32.xlu0 %v8386, 96
      %v8705 = vpop.permute.xlu0 %8704
      %8706 = vrot.lane.b32.xlu0 %v8387, 96
      %v8707 = vpop.permute.xlu0 %8706
      %8708 = vrot.lane.b32.xlu0 %v8388, 96
      %v8709 = vpop.permute.xlu0 %8708
      %v8710 = vsel %vm5792, %v8705, %v8707
      %v8711 = vsel %vm5792, %v8707, %v8709
      %v8715 = vsel %vm412, %v8703, 0
      %8717 = vmatpush.msra.mxu0 0.0
      %8718 = vmatpush.msra.mxu0 0.0
      %8719 = vmatpush.msra.mxu0 0.0
      %8720 = vmatpush.msra.mxu0 0.0
      %8721 = vmatpush.msra.mxu0 0.0
      %8722 = vmatpush.msra.mxu0 0.0
      %8723 = vmatpush.msra.mxu0 0.0
      %8724 = vmatpush.msra.mxu0 0.0
      %8725 = vmatpush.msra.mxu0 0.0
      %8726 = vmatpush.msra.mxu0 0.0
      %8727 = vmatpush.msra.mxu0 0.0
      %8728 = vmatpush.msra.mxu0 0.0
      %8729 = vmatpush.msra.mxu0 0.0
      %8730 = vmatpush.msra.mxu0 0.0
      %8731 = vmatpush.msra.mxu0 0.0
      %v8732 = vand.u32 %v8710, 4294901760
      %8733 = vmatpush.msra.mxu0 %v8732
      %v8734 = vand.u32 %v8715, 4294901760
      %v8735 = vsub.f32 %v8715, %v8734
      %v8736 = vand.u32 %v8735, 4294901760
      %v8737 = vsub.f32 %v8735, %v8736
      %v8738 = vand.u32 %v8737, 4294901760
      %8739 = vmatmul.f32.gmra.mxu0 %v8738
      %v8740 = vpop.f32.mrf.mxu0
      %v8741 = vadd.f32 0.0, %v8740
      %8742 = vdwg.mxu0
      %8743 = vmatpush.msra.mxu0 0.0
      %8744 = vmatpush.msra.mxu0 0.0
      %8745 = vmatpush.msra.mxu0 0.0
      %8746 = vmatpush.msra.mxu0 0.0
      %8747 = vmatpush.msra.mxu0 0.0
      %8748 = vmatpush.msra.mxu0 0.0
      %8749 = vmatpush.msra.mxu0 0.0
      %8750 = vmatpush.msra.mxu0 0.0
      %8751 = vmatpush.msra.mxu0 0.0
      %8752 = vmatpush.msra.mxu0 0.0
      %8753 = vmatpush.msra.mxu0 0.0
      %8754 = vmatpush.msra.mxu0 0.0
      %8755 = vmatpush.msra.mxu0 0.0
      %8756 = vmatpush.msra.mxu0 0.0
      %8757 = vmatpush.msra.mxu0 0.0
      %v8758 = vand.u32 %v8710, 4294901760
      %v8759 = vsub.f32 %v8710, %v8758
      %v8760 = vand.u32 %v8759, 4294901760
      %v8761 = vsub.f32 %v8759, %v8760
      %v8762 = vand.u32 %v8761, 4294901760
      %8763 = vmatpush.msra.mxu0 %v8762
      %v8764 = vand.u32 %v8715, 4294901760
      %8765 = vmatmul.f32.gmra.mxu0 %v8764
      %v8766 = vpop.f32.mrf.mxu0
      %v8767 = vadd.f32 %v8741, %v8766
      %8768 = vdwg.mxu0
      %8769 = vmatpush.msra.mxu0 0.0
      %8770 = vmatpush.msra.mxu0 0.0
      %8771 = vmatpush.msra.mxu0 0.0
      %8772 = vmatpush.msra.mxu0 0.0
      %8773 = vmatpush.msra.mxu0 0.0
      %8774 = vmatpush.msra.mxu0 0.0
      %8775 = vmatpush.msra.mxu0 0.0
      %8776 = vmatpush.msra.mxu0 0.0
      %8777 = vmatpush.msra.mxu0 0.0
      %8778 = vmatpush.msra.mxu0 0.0
      %8779 = vmatpush.msra.mxu0 0.0
      %8780 = vmatpush.msra.mxu0 0.0
      %8781 = vmatpush.msra.mxu0 0.0
      %8782 = vmatpush.msra.mxu0 0.0
      %8783 = vmatpush.msra.mxu0 0.0
      %v8784 = vand.u32 %v8710, 4294901760
      %v8785 = vsub.f32 %v8710, %v8784
      %8786 = vmatpush.msra.mxu0 %v8785
      %v8787 = vand.u32 %v8715, 4294901760
      %v8788 = vsub.f32 %v8715, %v8787
      %8789 = vmatmul.f32.gmra.mxu0 %v8788
      %v8790 = vpop.f32.mrf.mxu0
      %v8791 = vadd.f32 %v8767, %v8790
      %8792 = vdwg.mxu0
      %8793 = vmatpush.msra.mxu0 0.0
      %8794 = vmatpush.msra.mxu0 0.0
      %8795 = vmatpush.msra.mxu0 0.0
      %8796 = vmatpush.msra.mxu0 0.0
      %8797 = vmatpush.msra.mxu0 0.0
      %8798 = vmatpush.msra.mxu0 0.0
      %8799 = vmatpush.msra.mxu0 0.0
      %8800 = vmatpush.msra.mxu0 0.0
      %8801 = vmatpush.msra.mxu0 0.0
      %8802 = vmatpush.msra.mxu0 0.0
      %8803 = vmatpush.msra.mxu0 0.0
      %8804 = vmatpush.msra.mxu0 0.0
      %8805 = vmatpush.msra.mxu0 0.0
      %8806 = vmatpush.msra.mxu0 0.0
      %8807 = vmatpush.msra.mxu0 0.0
      %v8808 = vand.u32 %v8710, 4294901760
      %8809 = vmatpush.msra.mxu0 %v8808
      %v8810 = vand.u32 %v8715, 4294901760
      %v8811 = vsub.f32 %v8715, %v8810
      %v8812 = vand.u32 %v8811, 4294901760
      %8813 = vmatmul.f32.gmra.mxu0 %v8812
      %v8814 = vpop.f32.mrf.mxu0
      %v8815 = vadd.f32 %v8791, %v8814
      %8816 = vdwg.mxu0
      %8817 = vmatpush.msra.mxu0 0.0
      %8818 = vmatpush.msra.mxu0 0.0
      %8819 = vmatpush.msra.mxu0 0.0
      %8820 = vmatpush.msra.mxu0 0.0
      %8821 = vmatpush.msra.mxu0 0.0
      %8822 = vmatpush.msra.mxu0 0.0
      %8823 = vmatpush.msra.mxu0 0.0
      %8824 = vmatpush.msra.mxu0 0.0
      %8825 = vmatpush.msra.mxu0 0.0
      %8826 = vmatpush.msra.mxu0 0.0
      %8827 = vmatpush.msra.mxu0 0.0
      %8828 = vmatpush.msra.mxu0 0.0
      %8829 = vmatpush.msra.mxu0 0.0
      %8830 = vmatpush.msra.mxu0 0.0
      %8831 = vmatpush.msra.mxu0 0.0
      %v8832 = vand.u32 %v8710, 4294901760
      %v8833 = vsub.f32 %v8710, %v8832
      %v8834 = vand.u32 %v8833, 4294901760
      %8835 = vmatpush.msra.mxu0 %v8834
      %v8836 = vand.u32 %v8715, 4294901760
      %8837 = vmatmul.f32.gmra.mxu0 %v8836
      %v8838 = vpop.f32.mrf.mxu0
      %v8839 = vadd.f32 %v8815, %v8838
      %8840 = vdwg.mxu0
      %8841 = vmatpush.msra.mxu0 0.0
      %8842 = vmatpush.msra.mxu0 0.0
      %8843 = vmatpush.msra.mxu0 0.0
      %8844 = vmatpush.msra.mxu0 0.0
      %8845 = vmatpush.msra.mxu0 0.0
      %8846 = vmatpush.msra.mxu0 0.0
      %8847 = vmatpush.msra.mxu0 0.0
      %8848 = vmatpush.msra.mxu0 0.0
      %8849 = vmatpush.msra.mxu0 0.0
      %8850 = vmatpush.msra.mxu0 0.0
      %8851 = vmatpush.msra.mxu0 0.0
      %8852 = vmatpush.msra.mxu0 0.0
      %8853 = vmatpush.msra.mxu0 0.0
      %8854 = vmatpush.msra.mxu0 0.0
      %8855 = vmatpush.msra.mxu0 0.0
      %v8856 = vand.u32 %v8710, 4294901760
      %8857 = vmatpush.msra.mxu0 %v8856
      %v8858 = vand.u32 %v8715, 4294901760
      %8859 = vmatmul.f32.gmra.mxu0 %v8858
      %v8860 = vpop.f32.mrf.mxu0
      %v8861 = vadd.f32 %v8839, %v8860
      %8862 = vdwg.mxu0
      %8863 = vmatpush.msra.mxu0 0.0
      %8864 = vmatpush.msra.mxu0 0.0
      %8865 = vmatpush.msra.mxu0 0.0
      %8866 = vmatpush.msra.mxu0 0.0
      %8867 = vmatpush.msra.mxu0 0.0
      %8868 = vmatpush.msra.mxu0 0.0
      %8869 = vmatpush.msra.mxu0 0.0
      %8870 = vmatpush.msra.mxu0 0.0
      %8871 = vmatpush.msra.mxu0 0.0
      %8872 = vmatpush.msra.mxu0 0.0
      %8873 = vmatpush.msra.mxu0 0.0
      %8874 = vmatpush.msra.mxu0 0.0
      %8875 = vmatpush.msra.mxu0 0.0
      %8876 = vmatpush.msra.mxu0 0.0
      %8877 = vmatpush.msra.mxu0 0.0
      %v8878 = vand.u32 %v8711, 4294901760
      %8879 = vmatpush.msra.mxu0 %v8878
      %v8880 = vand.u32 %v8715, 4294901760
      %v8881 = vsub.f32 %v8715, %v8880
      %v8882 = vand.u32 %v8881, 4294901760
      %v8883 = vsub.f32 %v8881, %v8882
      %v8884 = vand.u32 %v8883, 4294901760
      %8885 = vmatmul.f32.gmra.mxu0 %v8884
      %v8886 = vpop.f32.mrf.mxu0
      %v8887 = vadd.f32 0.0, %v8886
      %8888 = vdwg.mxu0
      %8889 = vmatpush.msra.mxu0 0.0
      %8890 = vmatpush.msra.mxu0 0.0
      %8891 = vmatpush.msra.mxu0 0.0
      %8892 = vmatpush.msra.mxu0 0.0
      %8893 = vmatpush.msra.mxu0 0.0
      %8894 = vmatpush.msra.mxu0 0.0
      %8895 = vmatpush.msra.mxu0 0.0
      %8896 = vmatpush.msra.mxu0 0.0
      %8897 = vmatpush.msra.mxu0 0.0
      %8898 = vmatpush.msra.mxu0 0.0
      %8899 = vmatpush.msra.mxu0 0.0
      %8900 = vmatpush.msra.mxu0 0.0
      %8901 = vmatpush.msra.mxu0 0.0
      %8902 = vmatpush.msra.mxu0 0.0
      %8903 = vmatpush.msra.mxu0 0.0
      %v8904 = vand.u32 %v8711, 4294901760
      %v8905 = vsub.f32 %v8711, %v8904
      %v8906 = vand.u32 %v8905, 4294901760
      %v8907 = vsub.f32 %v8905, %v8906
      %v8908 = vand.u32 %v8907, 4294901760
      %8909 = vmatpush.msra.mxu0 %v8908
      %v8910 = vand.u32 %v8715, 4294901760
      %8911 = vmatmul.f32.gmra.mxu0 %v8910
      %v8912 = vpop.f32.mrf.mxu0
      %v8913 = vadd.f32 %v8887, %v8912
      %8914 = vdwg.mxu0
      %8915 = vmatpush.msra.mxu0 0.0
      %8916 = vmatpush.msra.mxu0 0.0
      %8917 = vmatpush.msra.mxu0 0.0
      %8918 = vmatpush.msra.mxu0 0.0
      %8919 = vmatpush.msra.mxu0 0.0
      %8920 = vmatpush.msra.mxu0 0.0
      %8921 = vmatpush.msra.mxu0 0.0
      %8922 = vmatpush.msra.mxu0 0.0
      %8923 = vmatpush.msra.mxu0 0.0
      %8924 = vmatpush.msra.mxu0 0.0
      %8925 = vmatpush.msra.mxu0 0.0
      %8926 = vmatpush.msra.mxu0 0.0
      %8927 = vmatpush.msra.mxu0 0.0
      %8928 = vmatpush.msra.mxu0 0.0
      %8929 = vmatpush.msra.mxu0 0.0
      %v8930 = vand.u32 %v8711, 4294901760
      %v8931 = vsub.f32 %v8711, %v8930
      %8932 = vmatpush.msra.mxu0 %v8931
      %v8933 = vand.u32 %v8715, 4294901760
      %v8934 = vsub.f32 %v8715, %v8933
      %8935 = vmatmul.f32.gmra.mxu0 %v8934
      %v8936 = vpop.f32.mrf.mxu0
      %v8937 = vadd.f32 %v8913, %v8936
      %8938 = vdwg.mxu0
      %8939 = vmatpush.msra.mxu0 0.0
      %8940 = vmatpush.msra.mxu0 0.0
      %8941 = vmatpush.msra.mxu0 0.0
      %8942 = vmatpush.msra.mxu0 0.0
      %8943 = vmatpush.msra.mxu0 0.0
      %8944 = vmatpush.msra.mxu0 0.0
      %8945 = vmatpush.msra.mxu0 0.0
      %8946 = vmatpush.msra.mxu0 0.0
      %8947 = vmatpush.msra.mxu0 0.0
      %8948 = vmatpush.msra.mxu0 0.0
      %8949 = vmatpush.msra.mxu0 0.0
      %8950 = vmatpush.msra.mxu0 0.0
      %8951 = vmatpush.msra.mxu0 0.0
      %8952 = vmatpush.msra.mxu0 0.0
      %8953 = vmatpush.msra.mxu0 0.0
      %v8954 = vand.u32 %v8711, 4294901760
      %8955 = vmatpush.msra.mxu0 %v8954
      %v8956 = vand.u32 %v8715, 4294901760
      %v8957 = vsub.f32 %v8715, %v8956
      %v8958 = vand.u32 %v8957, 4294901760
      %8959 = vmatmul.f32.gmra.mxu0 %v8958
      %v8960 = vpop.f32.mrf.mxu0
      %v8961 = vadd.f32 %v8937, %v8960
      %8962 = vdwg.mxu0
      %8963 = vmatpush.msra.mxu0 0.0
      %8964 = vmatpush.msra.mxu0 0.0
      %8965 = vmatpush.msra.mxu0 0.0
      %8966 = vmatpush.msra.mxu0 0.0
      %8967 = vmatpush.msra.mxu0 0.0
      %8968 = vmatpush.msra.mxu0 0.0
      %8969 = vmatpush.msra.mxu0 0.0
      %8970 = vmatpush.msra.mxu0 0.0
      %8971 = vmatpush.msra.mxu0 0.0
      %8972 = vmatpush.msra.mxu0 0.0
      %8973 = vmatpush.msra.mxu0 0.0
      %8974 = vmatpush.msra.mxu0 0.0
      %8975 = vmatpush.msra.mxu0 0.0
      %8976 = vmatpush.msra.mxu0 0.0
      %8977 = vmatpush.msra.mxu0 0.0
      %v8978 = vand.u32 %v8711, 4294901760
      %v8979 = vsub.f32 %v8711, %v8978
      %v8980 = vand.u32 %v8979, 4294901760
      %8981 = vmatpush.msra.mxu0 %v8980
      %v8982 = vand.u32 %v8715, 4294901760
      %8983 = vmatmul.f32.gmra.mxu0 %v8982
      %v8984 = vpop.f32.mrf.mxu0
      %v8985 = vadd.f32 %v8961, %v8984
      %8986 = vdwg.mxu0
      %8987 = vmatpush.msra.mxu0 0.0
      %8988 = vmatpush.msra.mxu0 0.0
      %8989 = vmatpush.msra.mxu0 0.0
      %8990 = vmatpush.msra.mxu0 0.0
      %8991 = vmatpush.msra.mxu0 0.0
      %8992 = vmatpush.msra.mxu0 0.0
      %8993 = vmatpush.msra.mxu0 0.0
      %8994 = vmatpush.msra.mxu0 0.0
      %8995 = vmatpush.msra.mxu0 0.0
      %8996 = vmatpush.msra.mxu0 0.0
      %8997 = vmatpush.msra.mxu0 0.0
      %8998 = vmatpush.msra.mxu0 0.0
      %8999 = vmatpush.msra.mxu0 0.0
      %9000 = vmatpush.msra.mxu0 0.0
      %9001 = vmatpush.msra.mxu0 0.0
      %v9002 = vand.u32 %v8711, 4294901760
      %9003 = vmatpush.msra.mxu0 %v9002
      %v9004 = vand.u32 %v8715, 4294901760
      %9005 = vmatmul.f32.gmra.mxu0 %v9004
      %v9006 = vpop.f32.mrf.mxu0
      %v9007 = vadd.f32 %v8985, %v9006
      %9008 = vdwg.mxu0
      %v9009 = vadd.f32 %v8700, %v8861
      %v9010 = vadd.f32 %v8701, %v9007
      %s9011 = scalar_lea.vmem %s4, 24
      %v9012 = vld [vmem:[%s9011] sm:$0xff]
      %9013 = vrot.lane.b32.xlu0 %v8386, 80
      %v9014 = vpop.permute.xlu0 %9013
      %9015 = vrot.lane.b32.xlu0 %v8387, 80
      %v9016 = vpop.permute.xlu0 %9015
      %9017 = vrot.lane.b32.xlu0 %v8388, 80
      %v9018 = vpop.permute.xlu0 %9017
      %vm9019 = vcmask 654336
      %v9020 = vsel %vm9019, %v9014, %v9016
      %v9021 = vsel %vm9019, %v9016, %v9018
      %v9025 = vsel %vm412, %v9012, 0
      %9027 = vmatpush.msra.mxu0 0.0
      %9028 = vmatpush.msra.mxu0 0.0
      %9029 = vmatpush.msra.mxu0 0.0
      %9030 = vmatpush.msra.mxu0 0.0
      %9031 = vmatpush.msra.mxu0 0.0
      %9032 = vmatpush.msra.mxu0 0.0
      %9033 = vmatpush.msra.mxu0 0.0
      %9034 = vmatpush.msra.mxu0 0.0
      %9035 = vmatpush.msra.mxu0 0.0
      %9036 = vmatpush.msra.mxu0 0.0
      %9037 = vmatpush.msra.mxu0 0.0
      %9038 = vmatpush.msra.mxu0 0.0
      %9039 = vmatpush.msra.mxu0 0.0
      %9040 = vmatpush.msra.mxu0 0.0
      %9041 = vmatpush.msra.mxu0 0.0
      %v9042 = vand.u32 %v9020, 4294901760
      %9043 = vmatpush.msra.mxu0 %v9042
      %v9044 = vand.u32 %v9025, 4294901760
      %v9045 = vsub.f32 %v9025, %v9044
      %v9046 = vand.u32 %v9045, 4294901760
      %v9047 = vsub.f32 %v9045, %v9046
      %v9048 = vand.u32 %v9047, 4294901760
      %9049 = vmatmul.f32.gmra.mxu0 %v9048
      %v9050 = vpop.f32.mrf.mxu0
      %v9051 = vadd.f32 0.0, %v9050
      %9052 = vdwg.mxu0
      %9053 = vmatpush.msra.mxu0 0.0
      %9054 = vmatpush.msra.mxu0 0.0
      %9055 = vmatpush.msra.mxu0 0.0
      %9056 = vmatpush.msra.mxu0 0.0
      %9057 = vmatpush.msra.mxu0 0.0
      %9058 = vmatpush.msra.mxu0 0.0
      %9059 = vmatpush.msra.mxu0 0.0
      %9060 = vmatpush.msra.mxu0 0.0
      %9061 = vmatpush.msra.mxu0 0.0
      %9062 = vmatpush.msra.mxu0 0.0
      %9063 = vmatpush.msra.mxu0 0.0
      %9064 = vmatpush.msra.mxu0 0.0
      %9065 = vmatpush.msra.mxu0 0.0
      %9066 = vmatpush.msra.mxu0 0.0
      %9067 = vmatpush.msra.mxu0 0.0
      %v9068 = vand.u32 %v9020, 4294901760
      %v9069 = vsub.f32 %v9020, %v9068
      %v9070 = vand.u32 %v9069, 4294901760
      %v9071 = vsub.f32 %v9069, %v9070
      %v9072 = vand.u32 %v9071, 4294901760
      %9073 = vmatpush.msra.mxu0 %v9072
      %v9074 = vand.u32 %v9025, 4294901760
      %9075 = vmatmul.f32.gmra.mxu0 %v9074
      %v9076 = vpop.f32.mrf.mxu0
      %v9077 = vadd.f32 %v9051, %v9076
      %9078 = vdwg.mxu0
      %9079 = vmatpush.msra.mxu0 0.0
      %9080 = vmatpush.msra.mxu0 0.0
      %9081 = vmatpush.msra.mxu0 0.0
      %9082 = vmatpush.msra.mxu0 0.0
      %9083 = vmatpush.msra.mxu0 0.0
      %9084 = vmatpush.msra.mxu0 0.0
      %9085 = vmatpush.msra.mxu0 0.0
      %9086 = vmatpush.msra.mxu0 0.0
      %9087 = vmatpush.msra.mxu0 0.0
      %9088 = vmatpush.msra.mxu0 0.0
      %9089 = vmatpush.msra.mxu0 0.0
      %9090 = vmatpush.msra.mxu0 0.0
      %9091 = vmatpush.msra.mxu0 0.0
      %9092 = vmatpush.msra.mxu0 0.0
      %9093 = vmatpush.msra.mxu0 0.0
      %v9094 = vand.u32 %v9020, 4294901760
      %v9095 = vsub.f32 %v9020, %v9094
      %9096 = vmatpush.msra.mxu0 %v9095
      %v9097 = vand.u32 %v9025, 4294901760
      %v9098 = vsub.f32 %v9025, %v9097
      %9099 = vmatmul.f32.gmra.mxu0 %v9098
      %v9100 = vpop.f32.mrf.mxu0
      %v9101 = vadd.f32 %v9077, %v9100
      %9102 = vdwg.mxu0
      %9103 = vmatpush.msra.mxu0 0.0
      %9104 = vmatpush.msra.mxu0 0.0
      %9105 = vmatpush.msra.mxu0 0.0
      %9106 = vmatpush.msra.mxu0 0.0
      %9107 = vmatpush.msra.mxu0 0.0
      %9108 = vmatpush.msra.mxu0 0.0
      %9109 = vmatpush.msra.mxu0 0.0
      %9110 = vmatpush.msra.mxu0 0.0
      %9111 = vmatpush.msra.mxu0 0.0
      %9112 = vmatpush.msra.mxu0 0.0
      %9113 = vmatpush.msra.mxu0 0.0
      %9114 = vmatpush.msra.mxu0 0.0
      %9115 = vmatpush.msra.mxu0 0.0
      %9116 = vmatpush.msra.mxu0 0.0
      %9117 = vmatpush.msra.mxu0 0.0
      %v9118 = vand.u32 %v9020, 4294901760
      %9119 = vmatpush.msra.mxu0 %v9118
      %v9120 = vand.u32 %v9025, 4294901760
      %v9121 = vsub.f32 %v9025, %v9120
      %v9122 = vand.u32 %v9121, 4294901760
      %9123 = vmatmul.f32.gmra.mxu0 %v9122
      %v9124 = vpop.f32.mrf.mxu0
      %v9125 = vadd.f32 %v9101, %v9124
      %9126 = vdwg.mxu0
      %9127 = vmatpush.msra.mxu0 0.0
      %9128 = vmatpush.msra.mxu0 0.0
      %9129 = vmatpush.msra.mxu0 0.0
      %9130 = vmatpush.msra.mxu0 0.0
      %9131 = vmatpush.msra.mxu0 0.0
      %9132 = vmatpush.msra.mxu0 0.0
      %9133 = vmatpush.msra.mxu0 0.0
      %9134 = vmatpush.msra.mxu0 0.0
      %9135 = vmatpush.msra.mxu0 0.0
      %9136 = vmatpush.msra.mxu0 0.0
      %9137 = vmatpush.msra.mxu0 0.0
      %9138 = vmatpush.msra.mxu0 0.0
      %9139 = vmatpush.msra.mxu0 0.0
      %9140 = vmatpush.msra.mxu0 0.0
      %9141 = vmatpush.msra.mxu0 0.0
      %v9142 = vand.u32 %v9020, 4294901760
      %v9143 = vsub.f32 %v9020, %v9142
      %v9144 = vand.u32 %v9143, 4294901760
      %9145 = vmatpush.msra.mxu0 %v9144
      %v9146 = vand.u32 %v9025, 4294901760
      %9147 = vmatmul.f32.gmra.mxu0 %v9146
      %v9148 = vpop.f32.mrf.mxu0
      %v9149 = vadd.f32 %v9125, %v9148
      %9150 = vdwg.mxu0
      %9151 = vmatpush.msra.mxu0 0.0
      %9152 = vmatpush.msra.mxu0 0.0
      %9153 = vmatpush.msra.mxu0 0.0
      %9154 = vmatpush.msra.mxu0 0.0
      %9155 = vmatpush.msra.mxu0 0.0
      %9156 = vmatpush.msra.mxu0 0.0
      %9157 = vmatpush.msra.mxu0 0.0
      %9158 = vmatpush.msra.mxu0 0.0
      %9159 = vmatpush.msra.mxu0 0.0
      %9160 = vmatpush.msra.mxu0 0.0
      %9161 = vmatpush.msra.mxu0 0.0
      %9162 = vmatpush.msra.mxu0 0.0
      %9163 = vmatpush.msra.mxu0 0.0
      %9164 = vmatpush.msra.mxu0 0.0
      %9165 = vmatpush.msra.mxu0 0.0
      %v9166 = vand.u32 %v9020, 4294901760
      %9167 = vmatpush.msra.mxu0 %v9166
      %v9168 = vand.u32 %v9025, 4294901760
      %9169 = vmatmul.f32.gmra.mxu0 %v9168
      %v9170 = vpop.f32.mrf.mxu0
      %v9171 = vadd.f32 %v9149, %v9170
      %9172 = vdwg.mxu0
      %9173 = vmatpush.msra.mxu0 0.0
      %9174 = vmatpush.msra.mxu0 0.0
      %9175 = vmatpush.msra.mxu0 0.0
      %9176 = vmatpush.msra.mxu0 0.0
      %9177 = vmatpush.msra.mxu0 0.0
      %9178 = vmatpush.msra.mxu0 0.0
      %9179 = vmatpush.msra.mxu0 0.0
      %9180 = vmatpush.msra.mxu0 0.0
      %9181 = vmatpush.msra.mxu0 0.0
      %9182 = vmatpush.msra.mxu0 0.0
      %9183 = vmatpush.msra.mxu0 0.0
      %9184 = vmatpush.msra.mxu0 0.0
      %9185 = vmatpush.msra.mxu0 0.0
      %9186 = vmatpush.msra.mxu0 0.0
      %9187 = vmatpush.msra.mxu0 0.0
      %v9188 = vand.u32 %v9021, 4294901760
      %9189 = vmatpush.msra.mxu0 %v9188
      %v9190 = vand.u32 %v9025, 4294901760
      %v9191 = vsub.f32 %v9025, %v9190
      %v9192 = vand.u32 %v9191, 4294901760
      %v9193 = vsub.f32 %v9191, %v9192
      %v9194 = vand.u32 %v9193, 4294901760
      %9195 = vmatmul.f32.gmra.mxu0 %v9194
      %v9196 = vpop.f32.mrf.mxu0
      %v9197 = vadd.f32 0.0, %v9196
      %9198 = vdwg.mxu0
      %9199 = vmatpush.msra.mxu0 0.0
      %9200 = vmatpush.msra.mxu0 0.0
      %9201 = vmatpush.msra.mxu0 0.0
      %9202 = vmatpush.msra.mxu0 0.0
      %9203 = vmatpush.msra.mxu0 0.0
      %9204 = vmatpush.msra.mxu0 0.0
      %9205 = vmatpush.msra.mxu0 0.0
      %9206 = vmatpush.msra.mxu0 0.0
      %9207 = vmatpush.msra.mxu0 0.0
      %9208 = vmatpush.msra.mxu0 0.0
      %9209 = vmatpush.msra.mxu0 0.0
      %9210 = vmatpush.msra.mxu0 0.0
      %9211 = vmatpush.msra.mxu0 0.0
      %9212 = vmatpush.msra.mxu0 0.0
      %9213 = vmatpush.msra.mxu0 0.0
      %v9214 = vand.u32 %v9021, 4294901760
      %v9215 = vsub.f32 %v9021, %v9214
      %v9216 = vand.u32 %v9215, 4294901760
      %v9217 = vsub.f32 %v9215, %v9216
      %v9218 = vand.u32 %v9217, 4294901760
      %9219 = vmatpush.msra.mxu0 %v9218
      %v9220 = vand.u32 %v9025, 4294901760
      %9221 = vmatmul.f32.gmra.mxu0 %v9220
      %v9222 = vpop.f32.mrf.mxu0
      %v9223 = vadd.f32 %v9197, %v9222
      %9224 = vdwg.mxu0
      %9225 = vmatpush.msra.mxu0 0.0
      %9226 = vmatpush.msra.mxu0 0.0
      %9227 = vmatpush.msra.mxu0 0.0
      %9228 = vmatpush.msra.mxu0 0.0
      %9229 = vmatpush.msra.mxu0 0.0
      %9230 = vmatpush.msra.mxu0 0.0
      %9231 = vmatpush.msra.mxu0 0.0
      %9232 = vmatpush.msra.mxu0 0.0
      %9233 = vmatpush.msra.mxu0 0.0
      %9234 = vmatpush.msra.mxu0 0.0
      %9235 = vmatpush.msra.mxu0 0.0
      %9236 = vmatpush.msra.mxu0 0.0
      %9237 = vmatpush.msra.mxu0 0.0
      %9238 = vmatpush.msra.mxu0 0.0
      %9239 = vmatpush.msra.mxu0 0.0
      %v9240 = vand.u32 %v9021, 4294901760
      %v9241 = vsub.f32 %v9021, %v9240
      %9242 = vmatpush.msra.mxu0 %v9241
      %v9243 = vand.u32 %v9025, 4294901760
      %v9244 = vsub.f32 %v9025, %v9243
      %9245 = vmatmul.f32.gmra.mxu0 %v9244
      %v9246 = vpop.f32.mrf.mxu0
      %v9247 = vadd.f32 %v9223, %v9246
      %9248 = vdwg.mxu0
      %9249 = vmatpush.msra.mxu0 0.0
      %9250 = vmatpush.msra.mxu0 0.0
      %9251 = vmatpush.msra.mxu0 0.0
      %9252 = vmatpush.msra.mxu0 0.0
      %9253 = vmatpush.msra.mxu0 0.0
      %9254 = vmatpush.msra.mxu0 0.0
      %9255 = vmatpush.msra.mxu0 0.0
      %9256 = vmatpush.msra.mxu0 0.0
      %9257 = vmatpush.msra.mxu0 0.0
      %9258 = vmatpush.msra.mxu0 0.0
      %9259 = vmatpush.msra.mxu0 0.0
      %9260 = vmatpush.msra.mxu0 0.0
      %9261 = vmatpush.msra.mxu0 0.0
      %9262 = vmatpush.msra.mxu0 0.0
      %9263 = vmatpush.msra.mxu0 0.0
      %v9264 = vand.u32 %v9021, 4294901760
      %9265 = vmatpush.msra.mxu0 %v9264
      %v9266 = vand.u32 %v9025, 4294901760
      %v9267 = vsub.f32 %v9025, %v9266
      %v9268 = vand.u32 %v9267, 4294901760
      %9269 = vmatmul.f32.gmra.mxu0 %v9268
      %v9270 = vpop.f32.mrf.mxu0
      %v9271 = vadd.f32 %v9247, %v9270
      %9272 = vdwg.mxu0
      %9273 = vmatpush.msra.mxu0 0.0
      %9274 = vmatpush.msra.mxu0 0.0
      %9275 = vmatpush.msra.mxu0 0.0
      %9276 = vmatpush.msra.mxu0 0.0
      %9277 = vmatpush.msra.mxu0 0.0
      %9278 = vmatpush.msra.mxu0 0.0
      %9279 = vmatpush.msra.mxu0 0.0
      %9280 = vmatpush.msra.mxu0 0.0
      %9281 = vmatpush.msra.mxu0 0.0
      %9282 = vmatpush.msra.mxu0 0.0
      %9283 = vmatpush.msra.mxu0 0.0
      %9284 = vmatpush.msra.mxu0 0.0
      %9285 = vmatpush.msra.mxu0 0.0
      %9286 = vmatpush.msra.mxu0 0.0
      %9287 = vmatpush.msra.mxu0 0.0
      %v9288 = vand.u32 %v9021, 4294901760
      %v9289 = vsub.f32 %v9021, %v9288
      %v9290 = vand.u32 %v9289, 4294901760
      %9291 = vmatpush.msra.mxu0 %v9290
      %v9292 = vand.u32 %v9025, 4294901760
      %9293 = vmatmul.f32.gmra.mxu0 %v9292
      %v9294 = vpop.f32.mrf.mxu0
      %v9295 = vadd.f32 %v9271, %v9294
      %9296 = vdwg.mxu0
      %9297 = vmatpush.msra.mxu0 0.0
      %9298 = vmatpush.msra.mxu0 0.0
      %9299 = vmatpush.msra.mxu0 0.0
      %9300 = vmatpush.msra.mxu0 0.0
      %9301 = vmatpush.msra.mxu0 0.0
      %9302 = vmatpush.msra.mxu0 0.0
      %9303 = vmatpush.msra.mxu0 0.0
      %9304 = vmatpush.msra.mxu0 0.0
      %9305 = vmatpush.msra.mxu0 0.0
      %9306 = vmatpush.msra.mxu0 0.0
      %9307 = vmatpush.msra.mxu0 0.0
      %9308 = vmatpush.msra.mxu0 0.0
      %9309 = vmatpush.msra.mxu0 0.0
      %9310 = vmatpush.msra.mxu0 0.0
      %9311 = vmatpush.msra.mxu0 0.0
      %v9312 = vand.u32 %v9021, 4294901760
      %9313 = vmatpush.msra.mxu0 %v9312
      %v9314 = vand.u32 %v9025, 4294901760
      %9315 = vmatmul.f32.gmra.mxu0 %v9314
      %v9316 = vpop.f32.mrf.mxu0
      %v9317 = vadd.f32 %v9295, %v9316
      %9318 = vdwg.mxu0
      %v9319 = vadd.f32 %v9009, %v9171
      %v9320 = vadd.f32 %v9010, %v9317
      %s9321 = scalar_lea.vmem %s4, 32
      %v9322 = vld [vmem:[%s9321] sm:$0xff]
      %9323 = vrot.lane.b32.xlu0 %v8386, 64
      %v9324 = vpop.permute.xlu0 %9323
      %9325 = vrot.lane.b32.xlu0 %v8387, 64
      %v9326 = vpop.permute.xlu0 %9325
      %9327 = vrot.lane.b32.xlu0 %v8388, 64
      %v9328 = vpop.permute.xlu0 %9327
      %vm9329 = vcmask 523264
      %v9330 = vsel %vm9329, %v9324, %v9326
      %v9331 = vsel %vm9329, %v9326, %v9328
      %v9335 = vsel %vm412, %v9322, 0
      %9337 = vmatpush.msra.mxu0 0.0
      %9338 = vmatpush.msra.mxu0 0.0
      %9339 = vmatpush.msra.mxu0 0.0
      %9340 = vmatpush.msra.mxu0 0.0
      %9341 = vmatpush.msra.mxu0 0.0
      %9342 = vmatpush.msra.mxu0 0.0
      %9343 = vmatpush.msra.mxu0 0.0
      %9344 = vmatpush.msra.mxu0 0.0
      %9345 = vmatpush.msra.mxu0 0.0
      %9346 = vmatpush.msra.mxu0 0.0
      %9347 = vmatpush.msra.mxu0 0.0
      %9348 = vmatpush.msra.mxu0 0.0
      %9349 = vmatpush.msra.mxu0 0.0
      %9350 = vmatpush.msra.mxu0 0.0
      %9351 = vmatpush.msra.mxu0 0.0
      %v9352 = vand.u32 %v9330, 4294901760
      %9353 = vmatpush.msra.mxu0 %v9352
      %v9354 = vand.u32 %v9335, 4294901760
      %v9355 = vsub.f32 %v9335, %v9354
      %v9356 = vand.u32 %v9355, 4294901760
      %v9357 = vsub.f32 %v9355, %v9356
      %v9358 = vand.u32 %v9357, 4294901760
      %9359 = vmatmul.f32.gmra.mxu0 %v9358
      %v9360 = vpop.f32.mrf.mxu0
      %v9361 = vadd.f32 0.0, %v9360
      %9362 = vdwg.mxu0
      %9363 = vmatpush.msra.mxu0 0.0
      %9364 = vmatpush.msra.mxu0 0.0
      %9365 = vmatpush.msra.mxu0 0.0
      %9366 = vmatpush.msra.mxu0 0.0
      %9367 = vmatpush.msra.mxu0 0.0
      %9368 = vmatpush.msra.mxu0 0.0
      %9369 = vmatpush.msra.mxu0 0.0
      %9370 = vmatpush.msra.mxu0 0.0
      %9371 = vmatpush.msra.mxu0 0.0
      %9372 = vmatpush.msra.mxu0 0.0
      %9373 = vmatpush.msra.mxu0 0.0
      %9374 = vmatpush.msra.mxu0 0.0
      %9375 = vmatpush.msra.mxu0 0.0
      %9376 = vmatpush.msra.mxu0 0.0
      %9377 = vmatpush.msra.mxu0 0.0
      %v9378 = vand.u32 %v9330, 4294901760
      %v9379 = vsub.f32 %v9330, %v9378
      %v9380 = vand.u32 %v9379, 4294901760
      %v9381 = vsub.f32 %v9379, %v9380
      %v9382 = vand.u32 %v9381, 4294901760
      %9383 = vmatpush.msra.mxu0 %v9382
      %v9384 = vand.u32 %v9335, 4294901760
      %9385 = vmatmul.f32.gmra.mxu0 %v9384
      %v9386 = vpop.f32.mrf.mxu0
      %v9387 = vadd.f32 %v9361, %v9386
      %9388 = vdwg.mxu0
      %9389 = vmatpush.msra.mxu0 0.0
      %9390 = vmatpush.msra.mxu0 0.0
      %9391 = vmatpush.msra.mxu0 0.0
      %9392 = vmatpush.msra.mxu0 0.0
      %9393 = vmatpush.msra.mxu0 0.0
      %9394 = vmatpush.msra.mxu0 0.0
      %9395 = vmatpush.msra.mxu0 0.0
      %9396 = vmatpush.msra.mxu0 0.0
      %9397 = vmatpush.msra.mxu0 0.0
      %9398 = vmatpush.msra.mxu0 0.0
      %9399 = vmatpush.msra.mxu0 0.0
      %9400 = vmatpush.msra.mxu0 0.0
      %9401 = vmatpush.msra.mxu0 0.0
      %9402 = vmatpush.msra.mxu0 0.0
      %9403 = vmatpush.msra.mxu0 0.0
      %v9404 = vand.u32 %v9330, 4294901760
      %v9405 = vsub.f32 %v9330, %v9404
      %9406 = vmatpush.msra.mxu0 %v9405
      %v9407 = vand.u32 %v9335, 4294901760
      %v9408 = vsub.f32 %v9335, %v9407
      %9409 = vmatmul.f32.gmra.mxu0 %v9408
      %v9410 = vpop.f32.mrf.mxu0
      %v9411 = vadd.f32 %v9387, %v9410
      %9412 = vdwg.mxu0
      %9413 = vmatpush.msra.mxu0 0.0
      %9414 = vmatpush.msra.mxu0 0.0
      %9415 = vmatpush.msra.mxu0 0.0
      %9416 = vmatpush.msra.mxu0 0.0
      %9417 = vmatpush.msra.mxu0 0.0
      %9418 = vmatpush.msra.mxu0 0.0
      %9419 = vmatpush.msra.mxu0 0.0
      %9420 = vmatpush.msra.mxu0 0.0
      %9421 = vmatpush.msra.mxu0 0.0
      %9422 = vmatpush.msra.mxu0 0.0
      %9423 = vmatpush.msra.mxu0 0.0
      %9424 = vmatpush.msra.mxu0 0.0
      %9425 = vmatpush.msra.mxu0 0.0
      %9426 = vmatpush.msra.mxu0 0.0
      %9427 = vmatpush.msra.mxu0 0.0
      %v9428 = vand.u32 %v9330, 4294901760
      %9429 = vmatpush.msra.mxu0 %v9428
      %v9430 = vand.u32 %v9335, 4294901760
      %v9431 = vsub.f32 %v9335, %v9430
      %v9432 = vand.u32 %v9431, 4294901760
      %9433 = vmatmul.f32.gmra.mxu0 %v9432
      %v9434 = vpop.f32.mrf.mxu0
      %v9435 = vadd.f32 %v9411, %v9434
      %9436 = vdwg.mxu0
      %9437 = vmatpush.msra.mxu0 0.0
      %9438 = vmatpush.msra.mxu0 0.0
      %9439 = vmatpush.msra.mxu0 0.0
      %9440 = vmatpush.msra.mxu0 0.0
      %9441 = vmatpush.msra.mxu0 0.0
      %9442 = vmatpush.msra.mxu0 0.0
      %9443 = vmatpush.msra.mxu0 0.0
      %9444 = vmatpush.msra.mxu0 0.0
      %9445 = vmatpush.msra.mxu0 0.0
      %9446 = vmatpush.msra.mxu0 0.0
      %9447 = vmatpush.msra.mxu0 0.0
      %9448 = vmatpush.msra.mxu0 0.0
      %9449 = vmatpush.msra.mxu0 0.0
      %9450 = vmatpush.msra.mxu0 0.0
      %9451 = vmatpush.msra.mxu0 0.0
      %v9452 = vand.u32 %v9330, 4294901760
      %v9453 = vsub.f32 %v9330, %v9452
      %v9454 = vand.u32 %v9453, 4294901760
      %9455 = vmatpush.msra.mxu0 %v9454
      %v9456 = vand.u32 %v9335, 4294901760
      %9457 = vmatmul.f32.gmra.mxu0 %v9456
      %v9458 = vpop.f32.mrf.mxu0
      %v9459 = vadd.f32 %v9435, %v9458
      %9460 = vdwg.mxu0
      %9461 = vmatpush.msra.mxu0 0.0
      %9462 = vmatpush.msra.mxu0 0.0
      %9463 = vmatpush.msra.mxu0 0.0
      %9464 = vmatpush.msra.mxu0 0.0
      %9465 = vmatpush.msra.mxu0 0.0
      %9466 = vmatpush.msra.mxu0 0.0
      %9467 = vmatpush.msra.mxu0 0.0
      %9468 = vmatpush.msra.mxu0 0.0
      %9469 = vmatpush.msra.mxu0 0.0
      %9470 = vmatpush.msra.mxu0 0.0
      %9471 = vmatpush.msra.mxu0 0.0
      %9472 = vmatpush.msra.mxu0 0.0
      %9473 = vmatpush.msra.mxu0 0.0
      %9474 = vmatpush.msra.mxu0 0.0
      %9475 = vmatpush.msra.mxu0 0.0
      %v9476 = vand.u32 %v9330, 4294901760
      %9477 = vmatpush.msra.mxu0 %v9476
      %v9478 = vand.u32 %v9335, 4294901760
      %9479 = vmatmul.f32.gmra.mxu0 %v9478
      %v9480 = vpop.f32.mrf.mxu0
      %v9481 = vadd.f32 %v9459, %v9480
      %9482 = vdwg.mxu0
      %9483 = vmatpush.msra.mxu0 0.0
      %9484 = vmatpush.msra.mxu0 0.0
      %9485 = vmatpush.msra.mxu0 0.0
      %9486 = vmatpush.msra.mxu0 0.0
      %9487 = vmatpush.msra.mxu0 0.0
      %9488 = vmatpush.msra.mxu0 0.0
      %9489 = vmatpush.msra.mxu0 0.0
      %9490 = vmatpush.msra.mxu0 0.0
      %9491 = vmatpush.msra.mxu0 0.0
      %9492 = vmatpush.msra.mxu0 0.0
      %9493 = vmatpush.msra.mxu0 0.0
      %9494 = vmatpush.msra.mxu0 0.0
      %9495 = vmatpush.msra.mxu0 0.0
      %9496 = vmatpush.msra.mxu0 0.0
      %9497 = vmatpush.msra.mxu0 0.0
      %v9498 = vand.u32 %v9331, 4294901760
      %9499 = vmatpush.msra.mxu0 %v9498
      %v9500 = vand.u32 %v9335, 4294901760
      %v9501 = vsub.f32 %v9335, %v9500
      %v9502 = vand.u32 %v9501, 4294901760
      %v9503 = vsub.f32 %v9501, %v9502
      %v9504 = vand.u32 %v9503, 4294901760
      %9505 = vmatmul.f32.gmra.mxu0 %v9504
      %v9506 = vpop.f32.mrf.mxu0
      %v9507 = vadd.f32 0.0, %v9506
      %9508 = vdwg.mxu0
      %9509 = vmatpush.msra.mxu0 0.0
      %9510 = vmatpush.msra.mxu0 0.0
      %9511 = vmatpush.msra.mxu0 0.0
      %9512 = vmatpush.msra.mxu0 0.0
      %9513 = vmatpush.msra.mxu0 0.0
      %9514 = vmatpush.msra.mxu0 0.0
      %9515 = vmatpush.msra.mxu0 0.0
      %9516 = vmatpush.msra.mxu0 0.0
      %9517 = vmatpush.msra.mxu0 0.0
      %9518 = vmatpush.msra.mxu0 0.0
      %9519 = vmatpush.msra.mxu0 0.0
      %9520 = vmatpush.msra.mxu0 0.0
      %9521 = vmatpush.msra.mxu0 0.0
      %9522 = vmatpush.msra.mxu0 0.0
      %9523 = vmatpush.msra.mxu0 0.0
      %v9524 = vand.u32 %v9331, 4294901760
      %v9525 = vsub.f32 %v9331, %v9524
      %v9526 = vand.u32 %v9525, 4294901760
      %v9527 = vsub.f32 %v9525, %v9526
      %v9528 = vand.u32 %v9527, 4294901760
      %9529 = vmatpush.msra.mxu0 %v9528
      %v9530 = vand.u32 %v9335, 4294901760
      %9531 = vmatmul.f32.gmra.mxu0 %v9530
      %v9532 = vpop.f32.mrf.mxu0
      %v9533 = vadd.f32 %v9507, %v9532
      %9534 = vdwg.mxu0
      %9535 = vmatpush.msra.mxu0 0.0
      %9536 = vmatpush.msra.mxu0 0.0
      %9537 = vmatpush.msra.mxu0 0.0
      %9538 = vmatpush.msra.mxu0 0.0
      %9539 = vmatpush.msra.mxu0 0.0
      %9540 = vmatpush.msra.mxu0 0.0
      %9541 = vmatpush.msra.mxu0 0.0
      %9542 = vmatpush.msra.mxu0 0.0
      %9543 = vmatpush.msra.mxu0 0.0
      %9544 = vmatpush.msra.mxu0 0.0
      %9545 = vmatpush.msra.mxu0 0.0
      %9546 = vmatpush.msra.mxu0 0.0
      %9547 = vmatpush.msra.mxu0 0.0
      %9548 = vmatpush.msra.mxu0 0.0
      %9549 = vmatpush.msra.mxu0 0.0
      %v9550 = vand.u32 %v9331, 4294901760
      %v9551 = vsub.f32 %v9331, %v9550
      %9552 = vmatpush.msra.mxu0 %v9551
      %v9553 = vand.u32 %v9335, 4294901760
      %v9554 = vsub.f32 %v9335, %v9553
      %9555 = vmatmul.f32.gmra.mxu0 %v9554
      %v9556 = vpop.f32.mrf.mxu0
      %v9557 = vadd.f32 %v9533, %v9556
      %9558 = vdwg.mxu0
      %9559 = vmatpush.msra.mxu0 0.0
      %9560 = vmatpush.msra.mxu0 0.0
      %9561 = vmatpush.msra.mxu0 0.0
      %9562 = vmatpush.msra.mxu0 0.0
      %9563 = vmatpush.msra.mxu0 0.0
      %9564 = vmatpush.msra.mxu0 0.0
      %9565 = vmatpush.msra.mxu0 0.0
      %9566 = vmatpush.msra.mxu0 0.0
      %9567 = vmatpush.msra.mxu0 0.0
      %9568 = vmatpush.msra.mxu0 0.0
      %9569 = vmatpush.msra.mxu0 0.0
      %9570 = vmatpush.msra.mxu0 0.0
      %9571 = vmatpush.msra.mxu0 0.0
      %9572 = vmatpush.msra.mxu0 0.0
      %9573 = vmatpush.msra.mxu0 0.0
      %v9574 = vand.u32 %v9331, 4294901760
      %9575 = vmatpush.msra.mxu0 %v9574
      %v9576 = vand.u32 %v9335, 4294901760
      %v9577 = vsub.f32 %v9335, %v9576
      %v9578 = vand.u32 %v9577, 4294901760
      %9579 = vmatmul.f32.gmra.mxu0 %v9578
      %v9580 = vpop.f32.mrf.mxu0
      %v9581 = vadd.f32 %v9557, %v9580
      %9582 = vdwg.mxu0
      %9583 = vmatpush.msra.mxu0 0.0
      %9584 = vmatpush.msra.mxu0 0.0
      %9585 = vmatpush.msra.mxu0 0.0
      %9586 = vmatpush.msra.mxu0 0.0
      %9587 = vmatpush.msra.mxu0 0.0
      %9588 = vmatpush.msra.mxu0 0.0
      %9589 = vmatpush.msra.mxu0 0.0
      %9590 = vmatpush.msra.mxu0 0.0
      %9591 = vmatpush.msra.mxu0 0.0
      %9592 = vmatpush.msra.mxu0 0.0
      %9593 = vmatpush.msra.mxu0 0.0
      %9594 = vmatpush.msra.mxu0 0.0
      %9595 = vmatpush.msra.mxu0 0.0
      %9596 = vmatpush.msra.mxu0 0.0
      %9597 = vmatpush.msra.mxu0 0.0
      %v9598 = vand.u32 %v9331, 4294901760
      %v9599 = vsub.f32 %v9331, %v9598
      %v9600 = vand.u32 %v9599, 4294901760
      %9601 = vmatpush.msra.mxu0 %v9600
      %v9602 = vand.u32 %v9335, 4294901760
      %9603 = vmatmul.f32.gmra.mxu0 %v9602
      %v9604 = vpop.f32.mrf.mxu0
      %v9605 = vadd.f32 %v9581, %v9604
      %9606 = vdwg.mxu0
      %9607 = vmatpush.msra.mxu0 0.0
      %9608 = vmatpush.msra.mxu0 0.0
      %9609 = vmatpush.msra.mxu0 0.0
      %9610 = vmatpush.msra.mxu0 0.0
      %9611 = vmatpush.msra.mxu0 0.0
      %9612 = vmatpush.msra.mxu0 0.0
      %9613 = vmatpush.msra.mxu0 0.0
      %9614 = vmatpush.msra.mxu0 0.0
      %9615 = vmatpush.msra.mxu0 0.0
      %9616 = vmatpush.msra.mxu0 0.0
      %9617 = vmatpush.msra.mxu0 0.0
      %9618 = vmatpush.msra.mxu0 0.0
      %9619 = vmatpush.msra.mxu0 0.0
      %9620 = vmatpush.msra.mxu0 0.0
      %9621 = vmatpush.msra.mxu0 0.0
      %v9622 = vand.u32 %v9331, 4294901760
      %9623 = vmatpush.msra.mxu0 %v9622
      %v9624 = vand.u32 %v9335, 4294901760
      %9625 = vmatmul.f32.gmra.mxu0 %v9624
      %v9626 = vpop.f32.mrf.mxu0
      %v9627 = vadd.f32 %v9605, %v9626
      %9628 = vdwg.mxu0
      %v9629 = vadd.f32 %v9319, %v9481
      %v9630 = vadd.f32 %v9320, %v9627
      %s9631 = scalar_lea.vmem %s4, 40
      %v9632 = vld [vmem:[%s9631] sm:$0xff]
      %9633 = vrot.lane.b32.xlu0 %v8386, 48
      %v9634 = vpop.permute.xlu0 %9633
      %9635 = vrot.lane.b32.xlu0 %v8387, 48
      %v9636 = vpop.permute.xlu0 %9635
      %9637 = vrot.lane.b32.xlu0 %v8388, 48
      %v9638 = vpop.permute.xlu0 %9637
      %vm9639 = vcmask 392192
      %v9640 = vsel %vm9639, %v9634, %v9636
      %v9641 = vsel %vm9639, %v9636, %v9638
      %v9645 = vsel %vm412, %v9632, 0
      %9647 = vmatpush.msra.mxu0 0.0
      %9648 = vmatpush.msra.mxu0 0.0
      %9649 = vmatpush.msra.mxu0 0.0
      %9650 = vmatpush.msra.mxu0 0.0
      %9651 = vmatpush.msra.mxu0 0.0
      %9652 = vmatpush.msra.mxu0 0.0
      %9653 = vmatpush.msra.mxu0 0.0
      %9654 = vmatpush.msra.mxu0 0.0
      %9655 = vmatpush.msra.mxu0 0.0
      %9656 = vmatpush.msra.mxu0 0.0
      %9657 = vmatpush.msra.mxu0 0.0
      %9658 = vmatpush.msra.mxu0 0.0
      %9659 = vmatpush.msra.mxu0 0.0
      %9660 = vmatpush.msra.mxu0 0.0
      %9661 = vmatpush.msra.mxu0 0.0
      %v9662 = vand.u32 %v9640, 4294901760
      %9663 = vmatpush.msra.mxu0 %v9662
      %v9664 = vand.u32 %v9645, 4294901760
      %v9665 = vsub.f32 %v9645, %v9664
      %v9666 = vand.u32 %v9665, 4294901760
      %v9667 = vsub.f32 %v9665, %v9666
      %v9668 = vand.u32 %v9667, 4294901760
      %9669 = vmatmul.f32.gmra.mxu0 %v9668
      %v9670 = vpop.f32.mrf.mxu0
      %v9671 = vadd.f32 0.0, %v9670
      %9672 = vdwg.mxu0
      %9673 = vmatpush.msra.mxu0 0.0
      %9674 = vmatpush.msra.mxu0 0.0
      %9675 = vmatpush.msra.mxu0 0.0
      %9676 = vmatpush.msra.mxu0 0.0
      %9677 = vmatpush.msra.mxu0 0.0
      %9678 = vmatpush.msra.mxu0 0.0
      %9679 = vmatpush.msra.mxu0 0.0
      %9680 = vmatpush.msra.mxu0 0.0
      %9681 = vmatpush.msra.mxu0 0.0
      %9682 = vmatpush.msra.mxu0 0.0
      %9683 = vmatpush.msra.mxu0 0.0
      %9684 = vmatpush.msra.mxu0 0.0
      %9685 = vmatpush.msra.mxu0 0.0
      %9686 = vmatpush.msra.mxu0 0.0
      %9687 = vmatpush.msra.mxu0 0.0
      %v9688 = vand.u32 %v9640, 4294901760
      %v9689 = vsub.f32 %v9640, %v9688
      %v9690 = vand.u32 %v9689, 4294901760
      %v9691 = vsub.f32 %v9689, %v9690
      %v9692 = vand.u32 %v9691, 4294901760
      %9693 = vmatpush.msra.mxu0 %v9692
      %v9694 = vand.u32 %v9645, 4294901760
      %9695 = vmatmul.f32.gmra.mxu0 %v9694
      %v9696 = vpop.f32.mrf.mxu0
      %v9697 = vadd.f32 %v9671, %v9696
      %9698 = vdwg.mxu0
      %9699 = vmatpush.msra.mxu0 0.0
      %9700 = vmatpush.msra.mxu0 0.0
      %9701 = vmatpush.msra.mxu0 0.0
      %9702 = vmatpush.msra.mxu0 0.0
      %9703 = vmatpush.msra.mxu0 0.0
      %9704 = vmatpush.msra.mxu0 0.0
      %9705 = vmatpush.msra.mxu0 0.0
      %9706 = vmatpush.msra.mxu0 0.0
      %9707 = vmatpush.msra.mxu0 0.0
      %9708 = vmatpush.msra.mxu0 0.0
      %9709 = vmatpush.msra.mxu0 0.0
      %9710 = vmatpush.msra.mxu0 0.0
      %9711 = vmatpush.msra.mxu0 0.0
      %9712 = vmatpush.msra.mxu0 0.0
      %9713 = vmatpush.msra.mxu0 0.0
      %v9714 = vand.u32 %v9640, 4294901760
      %v9715 = vsub.f32 %v9640, %v9714
      %9716 = vmatpush.msra.mxu0 %v9715
      %v9717 = vand.u32 %v9645, 4294901760
      %v9718 = vsub.f32 %v9645, %v9717
      %9719 = vmatmul.f32.gmra.mxu0 %v9718
      %v9720 = vpop.f32.mrf.mxu0
      %v9721 = vadd.f32 %v9697, %v9720
      %9722 = vdwg.mxu0
      %9723 = vmatpush.msra.mxu0 0.0
      %9724 = vmatpush.msra.mxu0 0.0
      %9725 = vmatpush.msra.mxu0 0.0
      %9726 = vmatpush.msra.mxu0 0.0
      %9727 = vmatpush.msra.mxu0 0.0
      %9728 = vmatpush.msra.mxu0 0.0
      %9729 = vmatpush.msra.mxu0 0.0
      %9730 = vmatpush.msra.mxu0 0.0
      %9731 = vmatpush.msra.mxu0 0.0
      %9732 = vmatpush.msra.mxu0 0.0
      %9733 = vmatpush.msra.mxu0 0.0
      %9734 = vmatpush.msra.mxu0 0.0
      %9735 = vmatpush.msra.mxu0 0.0
      %9736 = vmatpush.msra.mxu0 0.0
      %9737 = vmatpush.msra.mxu0 0.0
      %v9738 = vand.u32 %v9640, 4294901760
      %9739 = vmatpush.msra.mxu0 %v9738
      %v9740 = vand.u32 %v9645, 4294901760
      %v9741 = vsub.f32 %v9645, %v9740
      %v9742 = vand.u32 %v9741, 4294901760
      %9743 = vmatmul.f32.gmra.mxu0 %v9742
      %v9744 = vpop.f32.mrf.mxu0
      %v9745 = vadd.f32 %v9721, %v9744
      %9746 = vdwg.mxu0
      %9747 = vmatpush.msra.mxu0 0.0
      %9748 = vmatpush.msra.mxu0 0.0
      %9749 = vmatpush.msra.mxu0 0.0
      %9750 = vmatpush.msra.mxu0 0.0
      %9751 = vmatpush.msra.mxu0 0.0
      %9752 = vmatpush.msra.mxu0 0.0
      %9753 = vmatpush.msra.mxu0 0.0
      %9754 = vmatpush.msra.mxu0 0.0
      %9755 = vmatpush.msra.mxu0 0.0
      %9756 = vmatpush.msra.mxu0 0.0
      %9757 = vmatpush.msra.mxu0 0.0
      %9758 = vmatpush.msra.mxu0 0.0
      %9759 = vmatpush.msra.mxu0 0.0
      %9760 = vmatpush.msra.mxu0 0.0
      %9761 = vmatpush.msra.mxu0 0.0
      %v9762 = vand.u32 %v9640, 4294901760
      %v9763 = vsub.f32 %v9640, %v9762
      %v9764 = vand.u32 %v9763, 4294901760
      %9765 = vmatpush.msra.mxu0 %v9764
      %v9766 = vand.u32 %v9645, 4294901760
      %9767 = vmatmul.f32.gmra.mxu0 %v9766
      %v9768 = vpop.f32.mrf.mxu0
      %v9769 = vadd.f32 %v9745, %v9768
      %9770 = vdwg.mxu0
      %9771 = vmatpush.msra.mxu0 0.0
      %9772 = vmatpush.msra.mxu0 0.0
      %9773 = vmatpush.msra.mxu0 0.0
      %9774 = vmatpush.msra.mxu0 0.0
      %9775 = vmatpush.msra.mxu0 0.0
      %9776 = vmatpush.msra.mxu0 0.0
      %9777 = vmatpush.msra.mxu0 0.0
      %9778 = vmatpush.msra.mxu0 0.0
      %9779 = vmatpush.msra.mxu0 0.0
      %9780 = vmatpush.msra.mxu0 0.0
      %9781 = vmatpush.msra.mxu0 0.0
      %9782 = vmatpush.msra.mxu0 0.0
      %9783 = vmatpush.msra.mxu0 0.0
      %9784 = vmatpush.msra.mxu0 0.0
      %9785 = vmatpush.msra.mxu0 0.0
      %v9786 = vand.u32 %v9640, 4294901760
      %9787 = vmatpush.msra.mxu0 %v9786
      %v9788 = vand.u32 %v9645, 4294901760
      %9789 = vmatmul.f32.gmra.mxu0 %v9788
      %v9790 = vpop.f32.mrf.mxu0
      %v9791 = vadd.f32 %v9769, %v9790
      %9792 = vdwg.mxu0
      %9793 = vmatpush.msra.mxu0 0.0
      %9794 = vmatpush.msra.mxu0 0.0
      %9795 = vmatpush.msra.mxu0 0.0
      %9796 = vmatpush.msra.mxu0 0.0
      %9797 = vmatpush.msra.mxu0 0.0
      %9798 = vmatpush.msra.mxu0 0.0
      %9799 = vmatpush.msra.mxu0 0.0
      %9800 = vmatpush.msra.mxu0 0.0
      %9801 = vmatpush.msra.mxu0 0.0
      %9802 = vmatpush.msra.mxu0 0.0
      %9803 = vmatpush.msra.mxu0 0.0
      %9804 = vmatpush.msra.mxu0 0.0
      %9805 = vmatpush.msra.mxu0 0.0
      %9806 = vmatpush.msra.mxu0 0.0
      %9807 = vmatpush.msra.mxu0 0.0
      %v9808 = vand.u32 %v9641, 4294901760
      %9809 = vmatpush.msra.mxu0 %v9808
      %v9810 = vand.u32 %v9645, 4294901760
      %v9811 = vsub.f32 %v9645, %v9810
      %v9812 = vand.u32 %v9811, 4294901760
      %v9813 = vsub.f32 %v9811, %v9812
      %v9814 = vand.u32 %v9813, 4294901760
      %9815 = vmatmul.f32.gmra.mxu0 %v9814
      %v9816 = vpop.f32.mrf.mxu0
      %v9817 = vadd.f32 0.0, %v9816
      %9818 = vdwg.mxu0
      %9819 = vmatpush.msra.mxu0 0.0
      %9820 = vmatpush.msra.mxu0 0.0
      %9821 = vmatpush.msra.mxu0 0.0
      %9822 = vmatpush.msra.mxu0 0.0
      %9823 = vmatpush.msra.mxu0 0.0
      %9824 = vmatpush.msra.mxu0 0.0
      %9825 = vmatpush.msra.mxu0 0.0
      %9826 = vmatpush.msra.mxu0 0.0
      %9827 = vmatpush.msra.mxu0 0.0
      %9828 = vmatpush.msra.mxu0 0.0
      %9829 = vmatpush.msra.mxu0 0.0
      %9830 = vmatpush.msra.mxu0 0.0
      %9831 = vmatpush.msra.mxu0 0.0
      %9832 = vmatpush.msra.mxu0 0.0
      %9833 = vmatpush.msra.mxu0 0.0
      %v9834 = vand.u32 %v9641, 4294901760
      %v9835 = vsub.f32 %v9641, %v9834
      %v9836 = vand.u32 %v9835, 4294901760
      %v9837 = vsub.f32 %v9835, %v9836
      %v9838 = vand.u32 %v9837, 4294901760
      %9839 = vmatpush.msra.mxu0 %v9838
      %v9840 = vand.u32 %v9645, 4294901760
      %9841 = vmatmul.f32.gmra.mxu0 %v9840
      %v9842 = vpop.f32.mrf.mxu0
      %v9843 = vadd.f32 %v9817, %v9842
      %9844 = vdwg.mxu0
      %9845 = vmatpush.msra.mxu0 0.0
      %9846 = vmatpush.msra.mxu0 0.0
      %9847 = vmatpush.msra.mxu0 0.0
      %9848 = vmatpush.msra.mxu0 0.0
      %9849 = vmatpush.msra.mxu0 0.0
      %9850 = vmatpush.msra.mxu0 0.0
      %9851 = vmatpush.msra.mxu0 0.0
      %9852 = vmatpush.msra.mxu0 0.0
      %9853 = vmatpush.msra.mxu0 0.0
      %9854 = vmatpush.msra.mxu0 0.0
      %9855 = vmatpush.msra.mxu0 0.0
      %9856 = vmatpush.msra.mxu0 0.0
      %9857 = vmatpush.msra.mxu0 0.0
      %9858 = vmatpush.msra.mxu0 0.0
      %9859 = vmatpush.msra.mxu0 0.0
      %v9860 = vand.u32 %v9641, 4294901760
      %v9861 = vsub.f32 %v9641, %v9860
      %9862 = vmatpush.msra.mxu0 %v9861
      %v9863 = vand.u32 %v9645, 4294901760
      %v9864 = vsub.f32 %v9645, %v9863
      %9865 = vmatmul.f32.gmra.mxu0 %v9864
      %v9866 = vpop.f32.mrf.mxu0
      %v9867 = vadd.f32 %v9843, %v9866
      %9868 = vdwg.mxu0
      %9869 = vmatpush.msra.mxu0 0.0
      %9870 = vmatpush.msra.mxu0 0.0
      %9871 = vmatpush.msra.mxu0 0.0
      %9872 = vmatpush.msra.mxu0 0.0
      %9873 = vmatpush.msra.mxu0 0.0
      %9874 = vmatpush.msra.mxu0 0.0
      %9875 = vmatpush.msra.mxu0 0.0
      %9876 = vmatpush.msra.mxu0 0.0
      %9877 = vmatpush.msra.mxu0 0.0
      %9878 = vmatpush.msra.mxu0 0.0
      %9879 = vmatpush.msra.mxu0 0.0
      %9880 = vmatpush.msra.mxu0 0.0
      %9881 = vmatpush.msra.mxu0 0.0
      %9882 = vmatpush.msra.mxu0 0.0
      %9883 = vmatpush.msra.mxu0 0.0
      %v9884 = vand.u32 %v9641, 4294901760
      %9885 = vmatpush.msra.mxu0 %v9884
      %v9886 = vand.u32 %v9645, 4294901760
      %v9887 = vsub.f32 %v9645, %v9886
      %v9888 = vand.u32 %v9887, 4294901760
      %9889 = vmatmul.f32.gmra.mxu0 %v9888
      %v9890 = vpop.f32.mrf.mxu0
      %v9891 = vadd.f32 %v9867, %v9890
      %9892 = vdwg.mxu0
      %9893 = vmatpush.msra.mxu0 0.0
      %9894 = vmatpush.msra.mxu0 0.0
      %9895 = vmatpush.msra.mxu0 0.0
      %9896 = vmatpush.msra.mxu0 0.0
      %9897 = vmatpush.msra.mxu0 0.0
      %9898 = vmatpush.msra.mxu0 0.0
      %9899 = vmatpush.msra.mxu0 0.0
      %9900 = vmatpush.msra.mxu0 0.0
      %9901 = vmatpush.msra.mxu0 0.0
      %9902 = vmatpush.msra.mxu0 0.0
      %9903 = vmatpush.msra.mxu0 0.0
      %9904 = vmatpush.msra.mxu0 0.0
      %9905 = vmatpush.msra.mxu0 0.0
      %9906 = vmatpush.msra.mxu0 0.0
      %9907 = vmatpush.msra.mxu0 0.0
      %v9908 = vand.u32 %v9641, 4294901760
      %v9909 = vsub.f32 %v9641, %v9908
      %v9910 = vand.u32 %v9909, 4294901760
      %9911 = vmatpush.msra.mxu0 %v9910
      %v9912 = vand.u32 %v9645, 4294901760
      %9913 = vmatmul.f32.gmra.mxu0 %v9912
      %v9914 = vpop.f32.mrf.mxu0
      %v9915 = vadd.f32 %v9891, %v9914
      %9916 = vdwg.mxu0
      %9917 = vmatpush.msra.mxu0 0.0
      %9918 = vmatpush.msra.mxu0 0.0
      %9919 = vmatpush.msra.mxu0 0.0
      %9920 = vmatpush.msra.mxu0 0.0
      %9921 = vmatpush.msra.mxu0 0.0
      %9922 = vmatpush.msra.mxu0 0.0
      %9923 = vmatpush.msra.mxu0 0.0
      %9924 = vmatpush.msra.mxu0 0.0
      %9925 = vmatpush.msra.mxu0 0.0
      %9926 = vmatpush.msra.mxu0 0.0
      %9927 = vmatpush.msra.mxu0 0.0
      %9928 = vmatpush.msra.mxu0 0.0
      %9929 = vmatpush.msra.mxu0 0.0
      %9930 = vmatpush.msra.mxu0 0.0
      %9931 = vmatpush.msra.mxu0 0.0
      %v9932 = vand.u32 %v9641, 4294901760
      %9933 = vmatpush.msra.mxu0 %v9932
      %v9934 = vand.u32 %v9645, 4294901760
      %9935 = vmatmul.f32.gmra.mxu0 %v9934
      %v9936 = vpop.f32.mrf.mxu0
      %v9937 = vadd.f32 %v9915, %v9936
      %9938 = vdwg.mxu0
      %v9939 = vadd.f32 %v9629, %v9791
      %v9940 = vadd.f32 %v9630, %v9937
      %s9941 = scalar_lea.vmem %s4, 48
      %v9942 = vld [vmem:[%s9941] sm:$0xff]
      %9943 = vrot.lane.b32.xlu0 %v8386, 32
      %v9944 = vpop.permute.xlu0 %9943
      %9945 = vrot.lane.b32.xlu0 %v8387, 32
      %v9946 = vpop.permute.xlu0 %9945
      %9947 = vrot.lane.b32.xlu0 %v8388, 32
      %v9948 = vpop.permute.xlu0 %9947
      %vm9949 = vcmask 261120
      %v9950 = vsel %vm9949, %v9944, %v9946
      %v9951 = vsel %vm9949, %v9946, %v9948
      %v9955 = vsel %vm412, %v9942, 0
      %9957 = vmatpush.msra.mxu0 0.0
      %9958 = vmatpush.msra.mxu0 0.0
      %9959 = vmatpush.msra.mxu0 0.0
      %9960 = vmatpush.msra.mxu0 0.0
      %9961 = vmatpush.msra.mxu0 0.0
      %9962 = vmatpush.msra.mxu0 0.0
      %9963 = vmatpush.msra.mxu0 0.0
      %9964 = vmatpush.msra.mxu0 0.0
      %9965 = vmatpush.msra.mxu0 0.0
      %9966 = vmatpush.msra.mxu0 0.0
      %9967 = vmatpush.msra.mxu0 0.0
      %9968 = vmatpush.msra.mxu0 0.0
      %9969 = vmatpush.msra.mxu0 0.0
      %9970 = vmatpush.msra.mxu0 0.0
      %9971 = vmatpush.msra.mxu0 0.0
      %v9972 = vand.u32 %v9950, 4294901760
      %9973 = vmatpush.msra.mxu0 %v9972
      %v9974 = vand.u32 %v9955, 4294901760
      %v9975 = vsub.f32 %v9955, %v9974
      %v9976 = vand.u32 %v9975, 4294901760
      %v9977 = vsub.f32 %v9975, %v9976
      %v9978 = vand.u32 %v9977, 4294901760
      %9979 = vmatmul.f32.gmra.mxu0 %v9978
      %v9980 = vpop.f32.mrf.mxu0
      %v9981 = vadd.f32 0.0, %v9980
      %9982 = vdwg.mxu0
      %9983 = vmatpush.msra.mxu0 0.0
      %9984 = vmatpush.msra.mxu0 0.0
      %9985 = vmatpush.msra.mxu0 0.0
      %9986 = vmatpush.msra.mxu0 0.0
      %9987 = vmatpush.msra.mxu0 0.0
      %9988 = vmatpush.msra.mxu0 0.0
      %9989 = vmatpush.msra.mxu0 0.0
      %9990 = vmatpush.msra.mxu0 0.0
      %9991 = vmatpush.msra.mxu0 0.0
      %9992 = vmatpush.msra.mxu0 0.0
      %9993 = vmatpush.msra.mxu0 0.0
      %9994 = vmatpush.msra.mxu0 0.0
      %9995 = vmatpush.msra.mxu0 0.0
      %9996 = vmatpush.msra.mxu0 0.0
      %9997 = vmatpush.msra.mxu0 0.0
      %v9998 = vand.u32 %v9950, 4294901760
      %v9999 = vsub.f32 %v9950, %v9998
      %v10000 = vand.u32 %v9999, 4294901760
      %v10001 = vsub.f32 %v9999, %v10000
      %v10002 = vand.u32 %v10001, 4294901760
      %10003 = vmatpush.msra.mxu0 %v10002
      %v10004 = vand.u32 %v9955, 4294901760
      %10005 = vmatmul.f32.gmra.mxu0 %v10004
      %v10006 = vpop.f32.mrf.mxu0
      %v10007 = vadd.f32 %v9981, %v10006
      %10008 = vdwg.mxu0
      %10009 = vmatpush.msra.mxu0 0.0
      %10010 = vmatpush.msra.mxu0 0.0
      %10011 = vmatpush.msra.mxu0 0.0
      %10012 = vmatpush.msra.mxu0 0.0
      %10013 = vmatpush.msra.mxu0 0.0
      %10014 = vmatpush.msra.mxu0 0.0
      %10015 = vmatpush.msra.mxu0 0.0
      %10016 = vmatpush.msra.mxu0 0.0
      %10017 = vmatpush.msra.mxu0 0.0
      %10018 = vmatpush.msra.mxu0 0.0
      %10019 = vmatpush.msra.mxu0 0.0
      %10020 = vmatpush.msra.mxu0 0.0
      %10021 = vmatpush.msra.mxu0 0.0
      %10022 = vmatpush.msra.mxu0 0.0
      %10023 = vmatpush.msra.mxu0 0.0
      %v10024 = vand.u32 %v9950, 4294901760
      %v10025 = vsub.f32 %v9950, %v10024
      %10026 = vmatpush.msra.mxu0 %v10025
      %v10027 = vand.u32 %v9955, 4294901760
      %v10028 = vsub.f32 %v9955, %v10027
      %10029 = vmatmul.f32.gmra.mxu0 %v10028
      %v10030 = vpop.f32.mrf.mxu0
      %v10031 = vadd.f32 %v10007, %v10030
      %10032 = vdwg.mxu0
      %10033 = vmatpush.msra.mxu0 0.0
      %10034 = vmatpush.msra.mxu0 0.0
      %10035 = vmatpush.msra.mxu0 0.0
      %10036 = vmatpush.msra.mxu0 0.0
      %10037 = vmatpush.msra.mxu0 0.0
      %10038 = vmatpush.msra.mxu0 0.0
      %10039 = vmatpush.msra.mxu0 0.0
      %10040 = vmatpush.msra.mxu0 0.0
      %10041 = vmatpush.msra.mxu0 0.0
      %10042 = vmatpush.msra.mxu0 0.0
      %10043 = vmatpush.msra.mxu0 0.0
      %10044 = vmatpush.msra.mxu0 0.0
      %10045 = vmatpush.msra.mxu0 0.0
      %10046 = vmatpush.msra.mxu0 0.0
      %10047 = vmatpush.msra.mxu0 0.0
      %v10048 = vand.u32 %v9950, 4294901760
      %10049 = vmatpush.msra.mxu0 %v10048
      %v10050 = vand.u32 %v9955, 4294901760
      %v10051 = vsub.f32 %v9955, %v10050
      %v10052 = vand.u32 %v10051, 4294901760
      %10053 = vmatmul.f32.gmra.mxu0 %v10052
      %v10054 = vpop.f32.mrf.mxu0
      %v10055 = vadd.f32 %v10031, %v10054
      %10056 = vdwg.mxu0
      %10057 = vmatpush.msra.mxu0 0.0
      %10058 = vmatpush.msra.mxu0 0.0
      %10059 = vmatpush.msra.mxu0 0.0
      %10060 = vmatpush.msra.mxu0 0.0
      %10061 = vmatpush.msra.mxu0 0.0
      %10062 = vmatpush.msra.mxu0 0.0
      %10063 = vmatpush.msra.mxu0 0.0
      %10064 = vmatpush.msra.mxu0 0.0
      %10065 = vmatpush.msra.mxu0 0.0
      %10066 = vmatpush.msra.mxu0 0.0
      %10067 = vmatpush.msra.mxu0 0.0
      %10068 = vmatpush.msra.mxu0 0.0
      %10069 = vmatpush.msra.mxu0 0.0
      %10070 = vmatpush.msra.mxu0 0.0
      %10071 = vmatpush.msra.mxu0 0.0
      %v10072 = vand.u32 %v9950, 4294901760
      %v10073 = vsub.f32 %v9950, %v10072
      %v10074 = vand.u32 %v10073, 4294901760
      %10075 = vmatpush.msra.mxu0 %v10074
      %v10076 = vand.u32 %v9955, 4294901760
      %10077 = vmatmul.f32.gmra.mxu0 %v10076
      %v10078 = vpop.f32.mrf.mxu0
      %v10079 = vadd.f32 %v10055, %v10078
      %10080 = vdwg.mxu0
      %10081 = vmatpush.msra.mxu0 0.0
      %10082 = vmatpush.msra.mxu0 0.0
      %10083 = vmatpush.msra.mxu0 0.0
      %10084 = vmatpush.msra.mxu0 0.0
      %10085 = vmatpush.msra.mxu0 0.0
      %10086 = vmatpush.msra.mxu0 0.0
      %10087 = vmatpush.msra.mxu0 0.0
      %10088 = vmatpush.msra.mxu0 0.0
      %10089 = vmatpush.msra.mxu0 0.0
      %10090 = vmatpush.msra.mxu0 0.0
      %10091 = vmatpush.msra.mxu0 0.0
      %10092 = vmatpush.msra.mxu0 0.0
      %10093 = vmatpush.msra.mxu0 0.0
      %10094 = vmatpush.msra.mxu0 0.0
      %10095 = vmatpush.msra.mxu0 0.0
      %v10096 = vand.u32 %v9950, 4294901760
      %10097 = vmatpush.msra.mxu0 %v10096
      %v10098 = vand.u32 %v9955, 4294901760
      %10099 = vmatmul.f32.gmra.mxu0 %v10098
      %v10100 = vpop.f32.mrf.mxu0
      %v10101 = vadd.f32 %v10079, %v10100
      %10102 = vdwg.mxu0
      %10103 = vmatpush.msra.mxu0 0.0
      %10104 = vmatpush.msra.mxu0 0.0
      %10105 = vmatpush.msra.mxu0 0.0
      %10106 = vmatpush.msra.mxu0 0.0
      %10107 = vmatpush.msra.mxu0 0.0
      %10108 = vmatpush.msra.mxu0 0.0
      %10109 = vmatpush.msra.mxu0 0.0
      %10110 = vmatpush.msra.mxu0 0.0
      %10111 = vmatpush.msra.mxu0 0.0
      %10112 = vmatpush.msra.mxu0 0.0
      %10113 = vmatpush.msra.mxu0 0.0
      %10114 = vmatpush.msra.mxu0 0.0
      %10115 = vmatpush.msra.mxu0 0.0
      %10116 = vmatpush.msra.mxu0 0.0
      %10117 = vmatpush.msra.mxu0 0.0
      %v10118 = vand.u32 %v9951, 4294901760
      %10119 = vmatpush.msra.mxu0 %v10118
      %v10120 = vand.u32 %v9955, 4294901760
      %v10121 = vsub.f32 %v9955, %v10120
      %v10122 = vand.u32 %v10121, 4294901760
      %v10123 = vsub.f32 %v10121, %v10122
      %v10124 = vand.u32 %v10123, 4294901760
      %10125 = vmatmul.f32.gmra.mxu0 %v10124
      %v10126 = vpop.f32.mrf.mxu0
      %v10127 = vadd.f32 0.0, %v10126
      %10128 = vdwg.mxu0
      %10129 = vmatpush.msra.mxu0 0.0
      %10130 = vmatpush.msra.mxu0 0.0
      %10131 = vmatpush.msra.mxu0 0.0
      %10132 = vmatpush.msra.mxu0 0.0
      %10133 = vmatpush.msra.mxu0 0.0
      %10134 = vmatpush.msra.mxu0 0.0
      %10135 = vmatpush.msra.mxu0 0.0
      %10136 = vmatpush.msra.mxu0 0.0
      %10137 = vmatpush.msra.mxu0 0.0
      %10138 = vmatpush.msra.mxu0 0.0
      %10139 = vmatpush.msra.mxu0 0.0
      %10140 = vmatpush.msra.mxu0 0.0
      %10141 = vmatpush.msra.mxu0 0.0
      %10142 = vmatpush.msra.mxu0 0.0
      %10143 = vmatpush.msra.mxu0 0.0
      %v10144 = vand.u32 %v9951, 4294901760
      %v10145 = vsub.f32 %v9951, %v10144
      %v10146 = vand.u32 %v10145, 4294901760
      %v10147 = vsub.f32 %v10145, %v10146
      %v10148 = vand.u32 %v10147, 4294901760
      %10149 = vmatpush.msra.mxu0 %v10148
      %v10150 = vand.u32 %v9955, 4294901760
      %10151 = vmatmul.f32.gmra.mxu0 %v10150
      %v10152 = vpop.f32.mrf.mxu0
      %v10153 = vadd.f32 %v10127, %v10152
      %10154 = vdwg.mxu0
      %10155 = vmatpush.msra.mxu0 0.0
      %10156 = vmatpush.msra.mxu0 0.0
      %10157 = vmatpush.msra.mxu0 0.0
      %10158 = vmatpush.msra.mxu0 0.0
      %10159 = vmatpush.msra.mxu0 0.0
      %10160 = vmatpush.msra.mxu0 0.0
      %10161 = vmatpush.msra.mxu0 0.0
      %10162 = vmatpush.msra.mxu0 0.0
      %10163 = vmatpush.msra.mxu0 0.0
      %10164 = vmatpush.msra.mxu0 0.0
      %10165 = vmatpush.msra.mxu0 0.0
      %10166 = vmatpush.msra.mxu0 0.0
      %10167 = vmatpush.msra.mxu0 0.0
      %10168 = vmatpush.msra.mxu0 0.0
      %10169 = vmatpush.msra.mxu0 0.0
      %v10170 = vand.u32 %v9951, 4294901760
      %v10171 = vsub.f32 %v9951, %v10170
      %10172 = vmatpush.msra.mxu0 %v10171
      %v10173 = vand.u32 %v9955, 4294901760
      %v10174 = vsub.f32 %v9955, %v10173
      %10175 = vmatmul.f32.gmra.mxu0 %v10174
      %v10176 = vpop.f32.mrf.mxu0
      %v10177 = vadd.f32 %v10153, %v10176
      %10178 = vdwg.mxu0
      %10179 = vmatpush.msra.mxu0 0.0
      %10180 = vmatpush.msra.mxu0 0.0
      %10181 = vmatpush.msra.mxu0 0.0
      %10182 = vmatpush.msra.mxu0 0.0
      %10183 = vmatpush.msra.mxu0 0.0
      %10184 = vmatpush.msra.mxu0 0.0
      %10185 = vmatpush.msra.mxu0 0.0
      %10186 = vmatpush.msra.mxu0 0.0
      %10187 = vmatpush.msra.mxu0 0.0
      %10188 = vmatpush.msra.mxu0 0.0
      %10189 = vmatpush.msra.mxu0 0.0
      %10190 = vmatpush.msra.mxu0 0.0
      %10191 = vmatpush.msra.mxu0 0.0
      %10192 = vmatpush.msra.mxu0 0.0
      %10193 = vmatpush.msra.mxu0 0.0
      %v10194 = vand.u32 %v9951, 4294901760
      %10195 = vmatpush.msra.mxu0 %v10194
      %v10196 = vand.u32 %v9955, 4294901760
      %v10197 = vsub.f32 %v9955, %v10196
      %v10198 = vand.u32 %v10197, 4294901760
      %10199 = vmatmul.f32.gmra.mxu0 %v10198
      %v10200 = vpop.f32.mrf.mxu0
      %v10201 = vadd.f32 %v10177, %v10200
      %10202 = vdwg.mxu0
      %10203 = vmatpush.msra.mxu0 0.0
      %10204 = vmatpush.msra.mxu0 0.0
      %10205 = vmatpush.msra.mxu0 0.0
      %10206 = vmatpush.msra.mxu0 0.0
      %10207 = vmatpush.msra.mxu0 0.0
      %10208 = vmatpush.msra.mxu0 0.0
      %10209 = vmatpush.msra.mxu0 0.0
      %10210 = vmatpush.msra.mxu0 0.0
      %10211 = vmatpush.msra.mxu0 0.0
      %10212 = vmatpush.msra.mxu0 0.0
      %10213 = vmatpush.msra.mxu0 0.0
      %10214 = vmatpush.msra.mxu0 0.0
      %10215 = vmatpush.msra.mxu0 0.0
      %10216 = vmatpush.msra.mxu0 0.0
      %10217 = vmatpush.msra.mxu0 0.0
      %v10218 = vand.u32 %v9951, 4294901760
      %v10219 = vsub.f32 %v9951, %v10218
      %v10220 = vand.u32 %v10219, 4294901760
      %10221 = vmatpush.msra.mxu0 %v10220
      %v10222 = vand.u32 %v9955, 4294901760
      %10223 = vmatmul.f32.gmra.mxu0 %v10222
      %v10224 = vpop.f32.mrf.mxu0
      %v10225 = vadd.f32 %v10201, %v10224
      %10226 = vdwg.mxu0
      %10227 = vmatpush.msra.mxu0 0.0
      %10228 = vmatpush.msra.mxu0 0.0
      %10229 = vmatpush.msra.mxu0 0.0
      %10230 = vmatpush.msra.mxu0 0.0
      %10231 = vmatpush.msra.mxu0 0.0
      %10232 = vmatpush.msra.mxu0 0.0
      %10233 = vmatpush.msra.mxu0 0.0
      %10234 = vmatpush.msra.mxu0 0.0
      %10235 = vmatpush.msra.mxu0 0.0
      %10236 = vmatpush.msra.mxu0 0.0
      %10237 = vmatpush.msra.mxu0 0.0
      %10238 = vmatpush.msra.mxu0 0.0
      %10239 = vmatpush.msra.mxu0 0.0
      %10240 = vmatpush.msra.mxu0 0.0
      %10241 = vmatpush.msra.mxu0 0.0
      %v10242 = vand.u32 %v9951, 4294901760
      %10243 = vmatpush.msra.mxu0 %v10242
      %v10244 = vand.u32 %v9955, 4294901760
      %10245 = vmatmul.f32.gmra.mxu0 %v10244
      %v10246 = vpop.f32.mrf.mxu0
      %v10247 = vadd.f32 %v10225, %v10246
      %10248 = vdwg.mxu0
      %v10249 = vadd.f32 %v9939, %v10101
      %v10250 = vadd.f32 %v9940, %v10247
      %10251 = vst [vmem:[%s386] sm:$0xff] %v10249
      %10252 = vst [vmem:[%s386 + $0x8] sm:$0xff] %v10250
      %p10253 = scmp.lt.s32.totalorder %s22, 1
      %s10254 = scalar_select %p10253, %s22, 1
      %s10255 = smul.addr %s10254, 2
      %s10256 = smul.addr %s10255, 8
      %s10257 = scalar_lea.vmem %s11, %s10256
      // Predicated region
      $region65: #{gcn_forward.1} parent=63 // pred_check
        %p10258 = pneg %p276
      $region66: #{gcn_forward.1} parent=63 // pred_check_branch
        %10260 = sbr.rel (%p10258) target = $region68
      $region67: #{gcn_forward.1} parent=63 // pred_region
        _
      $region68: #{gcn_forward.1} parent=63 // pred_fallthru
        _
    $region64: #{gcn_forward.1} parent=5 // pred_fallthru
      _
    %p10261 = scmp.le.s32.totalorder 2, %s17
    // Predicated region
    $region69: #{gcn_forward.1} parent=5 // pred_check
      %p10262 = pneg %p10261
    $region70: #{gcn_forward.1} parent=5 // pred_check_branch
      %10264 = sbr.rel (%p10262) target = $region72
    $region71: #{gcn_forward.1} parent=5 // pred_region
      %s10265 = ssub.s32 %s17, 2
      // Predicated region
      $region73: #{gcn_forward.1} parent=71 // pred_check
        %p10266 = pneg %p282
      $region74: #{gcn_forward.1} parent=71 // pred_check_branch
        %10268 = sbr.rel (%p10266) target = $region76
      $region75: #{gcn_forward.1} parent=71 // pred_region
        %p10269 = scmp.lt.s32.totalorder %s23, 1
        %s10270 = scalar_select %p10269, %s23, 1
        %s10271 = smul.addr %s10270, 2
        %s10272 = smul.addr %s10271, 8
        %s10273 = scalar_lea.vmem %s11, %s10272
      $region76: #{gcn_forward.1} parent=71 // pred_fallthru
        _
    $region72: #{gcn_forward.1} parent=5 // pred_fallthru
      _
  $region6: #{gcn_forward.1} parent=0 // loop_footer
    %s21 = sadd.s32 1, %s17
  $region7: #{gcn_forward.1} parent=0 // loop_footer_branch
    %16 = sbr.rel target = $region3
  $region8: #{gcn_forward.1} parent=0 // loop_exit
    _

</llo_original>
